<compile_context>
chip_gen: v7x
topology: tpu7x:2x2x1
jax: 0.10.0
libtpu: 0.0.40
codegen_flags: <defaults>
</compile_context>

<pallas_src>
import math

import jax
import jax.numpy as jnp
from jax import lax
from jax.experimental import pallas as pl
from jax.experimental.pallas import tpu as pltpu


_LN_EPS = 1e-4          # matches Matcha LayerNorm eps
_MASK_FILL = -1e4       # matches Matcha masked_fill value
_LANE = 128
NCHUNK = 2              # parallel grid steps (v7x has 2 TensorCores; cheap on v5e/v6e)


def _rup(x, m=_LANE):
    return ((x + m - 1) // m) * m


# ------------------------------------------------------------------ logical parameters

def init_params(key, *, n_vocab, n_feats, hidden_base, spk_emb_dim,
                prenet_layers, prenet_kernel, enc_layers, n_heads,
                filter_channels, ffn_kernel):
    """Logical (unpadded) parameters, matmul ("x @ W") orientation.

    To load real PyTorch weights: Conv1d weight (Cout, Cin, K) -> transpose to
    (K, Cin, Cout); 1x1 convs / Linear (Cout, Cin) -> transpose to (Cin, Cout).
    """
    hid = hidden_base + spk_emb_dim
    keys = iter(jax.random.split(key, 512))

    def nrm(shape, std=0.02):
        return std * jax.random.normal(next(keys), shape, jnp.float32)

    Cb, K, Kf, Fc = hidden_base, prenet_kernel, ffn_kernel, filter_channels
    p = {}
    # nn.Embedding init: normal(0, hidden_dim**-0.5) with the *pre-concat* hidden_dim
    p["emb"] = (Cb ** -0.5) * jax.random.normal(next(keys), (n_vocab, Cb), jnp.float32)

    # ConvReluNorm prenet
    p["prenet_w"] = nrm((prenet_layers, K, Cb, Cb))           # (L, K, Cin, Cout)
    p["prenet_b"] = nrm((prenet_layers, Cb))
    p["prenet_g"] = jnp.ones((prenet_layers, Cb), jnp.float32)
    p["prenet_beta"] = jnp.zeros((prenet_layers, Cb), jnp.float32)
    p["prenet_proj_w"] = jnp.zeros((Cb, Cb), jnp.float32)     # zero-init in reference
    p["prenet_proj_b"] = jnp.zeros((Cb,), jnp.float32)

    enc = []
    for _ in range(enc_layers):
        enc.append(dict(
            wq=nrm((hid, hid)), bq=nrm((hid,)),
            wk=nrm((hid, hid)), bk=nrm((hid,)),
            wv=nrm((hid, hid)), bv=nrm((hid,)),
            wo=nrm((hid, hid)), bo=nrm((hid,)),
            g1=jnp.ones((hid,), jnp.float32), b1=jnp.zeros((hid,), jnp.float32),
            ffn_w1=nrm((Kf, hid, Fc)), ffn_b1=nrm((Fc,)),
            ffn_w2=nrm((Kf, Fc, hid)), ffn_b2=nrm((hid,)),
            g2=jnp.ones((hid,), jnp.float32), b2=jnp.zeros((hid,), jnp.float32),
        ))
    p["enc"] = enc

    p["proj_m_w"] = nrm((hid, n_feats))
    p["proj_m_b"] = nrm((n_feats,))
    return p


# ----------------------------------------------------------- pack into kernel layout

def pack_params(p, *, n_heads):
    """Zero-pad all channel dims to 128-lane multiples, cast MXU weights to bf16 and
    pack every small vector into one (N, 128) f32 slab (one DMA)."""
    f32, bf16 = jnp.float32, jnp.bfloat16
    emb = p["emb"]
    Cb = emb.shape[1]
    Lpre, Kpre = p["prenet_w"].shape[0], p["prenet_w"].shape[1]
    enc = p["enc"]
    Lenc = len(enc)
    hid = enc[0]["wq"].shape[0]
    Kf = enc[0]["ffn_w1"].shape[0]
    Fc = enc[0]["ffn_w1"].shape[2]
    Nf = p["proj_m_w"].shape[1]
    H = n_heads
    assert hid % H == 0
    dh = hid // H
    spk = hid - Cb

    PADC = _rup(max(Cb, hid))
    Fp = _rup(Fc)
    Nfp = _rup(Nf)
    DHP = _rup(dh)
    SLABW = max(PADC, Fp, Nfp, DHP)

    def pad2(w, r, c):
        return jnp.zeros((r, c), f32).at[:w.shape[0], :w.shape[1]].set(w)

    # ---- big MXU weights (bf16) ----
    wpre = jnp.zeros((Lpre, Kpre, PADC, PADC), f32).at[:, :, :Cb, :Cb].set(p["prenet_w"])
    wpproj = pad2(p["prenet_proj_w"], PADC, PADC)

    wqkv = jnp.zeros((Lenc, PADC, 3 * H * DHP), f32)
    wo = jnp.zeros((Lenc, H, DHP, PADC), f32)
    w1 = jnp.zeros((Lenc, Kf, PADC, Fp), f32)
    w2 = jnp.zeros((Lenc, Kf, Fp, PADC), f32)
    for l, lw in enumerate(enc):
        for h in range(H):
            c0 = (0 * H + h) * DHP
            c1 = (1 * H + h) * DHP
            c2 = (2 * H + h) * DHP
            wqkv = wqkv.at[l, :hid, c0:c0 + dh].set(lw["wq"][:, h * dh:(h + 1) * dh])
            wqkv = wqkv.at[l, :hid, c1:c1 + dh].set(lw["wk"][:, h * dh:(h + 1) * dh])
            wqkv = wqkv.at[l, :hid, c2:c2 + dh].set(lw["wv"][:, h * dh:(h + 1) * dh])
            wo = wo.at[l, h, :dh, :hid].set(lw["wo"][h * dh:(h + 1) * dh, :])
        w1 = w1.at[l, :, :hid, :Fc].set(lw["ffn_w1"])
        w2 = w2.at[l, :, :Fc, :hid].set(lw["ffn_w2"])
    wpm = pad2(p["proj_m_w"], PADC, Nfp)

    # ---- small-vector slab (f32) ----
    rows, sidx = [], {}

    def add_row(name, vec):
        sidx[name] = len(rows)
        rows.append(jnp.zeros((SLABW,), f32).at[:vec.shape[0]].set(vec))

    for l in range(Lpre):
        add_row(f"pre_b{l}", p["prenet_b"][l])
        add_row(f"pre_g{l}", p["prenet_g"][l])
        add_row(f"pre_beta{l}", p["prenet_beta"][l])
    add_row("pre_proj_b", p["prenet_proj_b"])
    for l, lw in enumerate(enc):
        for h in range(H):
            add_row(f"bq{l}_{h}", lw["bq"][h * dh:(h + 1) * dh])
            add_row(f"bk{l}_{h}", lw["bk"][h * dh:(h + 1) * dh])
            add_row(f"bv{l}_{h}", lw["bv"][h * dh:(h + 1) * dh])
        add_row(f"bo{l}", lw["bo"])
        add_row(f"g1_{l}", lw["g1"])
        add_row(f"b1_{l}", lw["b1"])
        add_row(f"fb1_{l}", lw["ffn_b1"])
        add_row(f"fb2_{l}", lw["ffn_b2"])
        add_row(f"g2_{l}", lw["g2"])
        add_row(f"b2_{l}", lw["b2"])
    add_row("pm_b", p["proj_m_b"])
    slab = jnp.stack(rows, axis=0)

    meta = dict(Cb=Cb, hid=hid, spk=spk, H=H, dh=dh, Lpre=Lpre, Kpre=Kpre,
                Lenc=Lenc, Kf=Kf, Fc=Fc, Nf=Nf,
                PADC=PADC, Fp=Fp, Nfp=Nfp, DHP=DHP, SLABW=SLABW, slab_idx=sidx)
    return dict(emb=emb, slab=slab,
                wpre=wpre.astype(bf16), wpproj=wpproj.astype(bf16),
                wqkv=wqkv.astype(bf16), wo=wo.astype(bf16),
                w1=w1.astype(bf16), w2=w2.astype(bf16), wpm=wpm.astype(bf16),
                meta=meta)


# ------------------------------------------------------------------------ fused kernel

def _make_kernel(meta, *, Bh, T):
    Cb, hid, H, dh = meta["Cb"], meta["hid"], meta["H"], meta["dh"]
    Lpre, Kpre, Lenc, Kf = meta["Lpre"], meta["Kpre"], meta["Lenc"], meta["Kf"]
    Fc, Nf = meta["Fc"], meta["Nf"]
    PADC, Fp, Nfp, DHP, SLABW = meta["PADC"], meta["Fp"], meta["Nfp"], meta["DHP"], meta["SLABW"]
    sidx = meta["slab_idx"]
    Rows = Bh * T
    scale = 1.0 / math.sqrt(dh)
    f32, bf16 = jnp.float32, jnp.bfloat16

    def kernel(lens_ref, x_ref, spk_ref, sml_ref, wpre_ref, wpproj_ref,
               wqkv_ref, wo_ref, w1_ref, w2_ref, wpm_ref, o_ref):
        sml = sml_ref[...]                                        # (NS, SLABW) f32

        def srow(name, width):
            r = sml[sidx[name]:sidx[name] + 1, :]                 # (1, SLABW)
            return r if width == SLABW else r[:, :width]

        lv = lens_ref[0]                                          # (Bh, 1) int32

        # -------- masks, built in-kernel (no O(T^2) HBM tensor) --------
        ti = lax.broadcasted_iota(jnp.int32, (T, 1), 0)
        qi = lax.broadcasted_iota(jnp.int32, (T, T), 0)
        ki = lax.broadcasted_iota(jnp.int32, (T, T), 1)
        mparts, aparts = [], []
        for b in range(Bh):
            lb = lv[b:b + 1, :]                                   # (1, 1)
            mparts.append((ti < lb).astype(f32))                  # (T, 1) time mask
            aparts.append((qi < lb) & (ki < lb))                  # (T, T) attn mask
        mask = mparts[0] if Bh == 1 else jnp.concatenate(mparts, axis=0)   # (Rows, 1)
        if Bh > 1:
            t_col = jnp.concatenate([ti] * Bh, axis=0)            # (Rows, 1) pos-in-seq

        # channel-validity masks: LN statistics must only see real channels
        chp = (lax.broadcasted_iota(jnp.int32, (1, PADC), 1) < Cb).astype(f32)
        che = (lax.broadcasted_iota(jnp.int32, (1, PADC), 1) < hid).astype(f32)

        def layernorm(xr, g_row, b_row, chm, c_true):
            mean = jnp.sum(xr * chm, axis=-1, keepdims=True) * (1.0 / c_true)
            xc = (xr - mean) * chm
            var = jnp.sum(xc * xc, axis=-1, keepdims=True) * (1.0 / c_true)
            return xc * lax.rsqrt(var + _LN_EPS) * g_row + b_row

        def conv1d(xr, get_tap, bias_row, K, cin_p, cout_p):
            """'same' 1-D conv over time as K accumulating MXU dots on statically
            shifted row views (no lane-concat im2col). xr: (Rows, cin_p) f32,
            already time-masked; weights bf16."""
            if K == 1:
                return jnp.dot(xr.astype(bf16), get_tap(0),
                               preferred_element_type=f32) + bias_row
            pad = (K - 1) // 2
            zpad = jnp.zeros((pad, cin_p), f32)
            xp = jnp.concatenate([zpad, xr, zpad], axis=0)        # (Rows + 2*pad, cin_p)
            acc = jnp.zeros((Rows, cout_p), f32)
            for k in range(K):
                s = k - pad
                xs = xp[k:k + Rows, :]                            # rows shifted by s
                if Bh > 1 and s != 0:                             # stop cross-sequence taps
                    ok = ((t_col + s >= 0) & (t_col + s < T)).astype(f32)
                    xs = xs * ok
                acc = acc + jnp.dot(xs.astype(bf16), get_tap(k),
                                    preferred_element_type=f32)
            return acc + bias_row

        # ---------------- prenet: ConvReluNorm ----------------
        x0 = x_ref[0]                                             # (Rows, PADC) f32
        h = x0
        for l in range(Lpre):
            y = conv1d(h * mask, lambda k, l=l: wpre_ref[l, k],
                       srow(f"pre_b{l}", PADC), Kpre, PADC, PADC)
            y = layernorm(y, srow(f"pre_g{l}", PADC), srow(f"pre_beta{l}", PADC), chp, Cb)
            h = jnp.maximum(y, 0.0)                               # dropout: eval mode
        h = x0 + jnp.dot(h.astype(bf16), wpproj_ref[...],
                         preferred_element_type=f32) + srow("pre_proj_b", PADC)
        h = h * mask

        # ------- speaker-embedding "concat": spk slab is pre-placed at lanes [Cb, Cb+spk) -------
        if Bh == 1:
            h = h + spk_ref[0]                                    # (1, PADC) broadcasts
        else:
            spk_rows = jnp.concatenate(
                [jnp.broadcast_to(spk_ref[0, b:b + 1, :], (T, PADC)) for b in range(Bh)],
                axis=0)
            h = h + spk_rows

        # ---------------- transformer encoder ----------------
        for l in range(Lenc):
            hm = h * mask                                         # (Rows, PADC)
            qkv = jnp.dot(hm.astype(bf16), wqkv_ref[l],
                          preferred_element_type=f32)             # (Rows, 3*H*DHP)

            y = jnp.zeros((Rows, PADC), f32)
            for hh in range(H):                                   # 128-aligned head slices
                q0 = (0 * H + hh) * DHP
                k0 = (1 * H + hh) * DHP
                v0 = (2 * H + hh) * DHP
                qh = qkv[:, q0:q0 + DHP] + srow(f"bq{l}_{hh}", DHP)
                kh = qkv[:, k0:k0 + DHP] + srow(f"bk{l}_{hh}", DHP)
                vh = qkv[:, v0:v0 + DHP] + srow(f"bv{l}_{hh}", DHP)
                cparts = []
                for b in range(Bh):
                    r0, r1 = b * T, (b + 1) * T
                    s = lax.dot_general(qh[r0:r1].astype(bf16), kh[r0:r1].astype(bf16),
                                        (((1,), (1,)), ((), ())),
                                        preferred_element_type=f32) * scale
                    s = jnp.where(aparts[b], s, jnp.float32(_MASK_FILL))
                    p = jnp.exp(s - jnp.max(s, axis=-1, keepdims=True))
                    p = p * pl.reciprocal(jnp.sum(p, axis=-1, keepdims=True), approx=True)
                    cparts.append(jnp.dot(p.astype(bf16), vh[r0:r1].astype(bf16),
                                          preferred_element_type=f32))     # (T, DHP)
                ctx = cparts[0] if Bh == 1 else jnp.concatenate(cparts, axis=0)
                # per-head output projection: avoids the lane concat of head outputs
                y = y + jnp.dot(ctx.astype(bf16), wo_ref[l, hh],
                                preferred_element_type=f32)
            y = y + srow(f"bo{l}", PADC)
            h1 = layernorm(hm + y, srow(f"g1_{l}", PADC), srow(f"b1_{l}", PADC), che, hid)

            # FFN: conv(Kf) + ReLU, conv(Kf), masks, LN
            y1 = conv1d(h1 * mask, lambda k, l=l: w1_ref[l, k],
                        srow(f"fb1_{l}", Fp), Kf, PADC, Fp)
            y1 = jnp.maximum(y1, 0.0)
            y2 = conv1d(y1 * mask, lambda k, l=l: w2_ref[l, k],
                        srow(f"fb2_{l}", PADC), Kf, Fp, PADC)
            y2 = y2 * mask
            h = layernorm(h1 + y2, srow(f"g2_{l}", PADC), srow(f"b2_{l}", PADC), che, hid)

        # trailing encoder mask + final 1x1 projection (lane-dense padded output)
        h = h * mask
        mu = (jnp.dot(h.astype(bf16), wpm_ref[...], preferred_element_type=f32)
              + srow("pm_b", Nfp)) * mask
        o_ref[0] = mu.astype(o_ref.dtype)

    return kernel


# ----------------------------------------------------------------------------- forward

def text_encoder_forward(packed, src_seq, src_lengths, sids):
    """
    src_seq: (B, T) int32, src_lengths: (B,) int32, sids: (B, spk_emb_dim) f32.
    Returns mu (B, n_feats, T), src_word_emb (B, hidden_base, T), src_mask (B, T) bool.
    """
    meta = packed["meta"]
    Cb, hid, spk, Nf = meta["Cb"], meta["hid"], meta["spk"], meta["Nf"]
    PADC, Fp, Nfp, DHP, SLABW = meta["PADC"], meta["Fp"], meta["Nfp"], meta["DHP"], meta["SLABW"]
    Lpre, Kpre, Lenc, Kf, H = meta["Lpre"], meta["Kpre"], meta["Lenc"], meta["Kf"], meta["H"]

    B, T = src_seq.shape
    lengths = src_lengths.astype(jnp.int32)

    # embedding lookup (XLA gather) scaled by sqrt of the post-concat hidden dim,
    # matching `self.hidden_dim` at forward time in the reference module.
    x = jnp.take(packed["emb"], src_seq, axis=0) * math.sqrt(hid)     # (B, T, Cb)
    src_word_emb_nct = jnp.transpose(x, (0, 2, 1))                    # (B, Cb, T)

    # pad batch to NCHUNK chunks and channels to PADC lanes (lane-dense kernel I/O)
    Bp = -(-B // NCHUNK) * NCHUNK
    Bh = Bp // NCHUNK
    Rows = Bh * T
    xp = jnp.zeros((Bp, T, PADC), jnp.float32).at[:B, :, :Cb].set(x)
    lens_p = jnp.zeros((Bp,), jnp.int32).at[:B].set(lengths)
    spk_slab = jnp.zeros((Bp, PADC), jnp.float32)
    if spk > 0:
        spk_slab = spk_slab.at[:B, Cb:Cb + spk].set(sids.astype(jnp.float32))

    x_c = xp.reshape(NCHUNK, Rows, PADC)
    lens_c = lens_p.reshape(NCHUNK, Bh, 1)
    spk_c = spk_slab.reshape(NCHUNK, Bh, PADC)
    NS = packed["slab"].shape[0]

    kern = _make_kernel(meta, Bh=Bh, T=T)
    in_specs = [
        pl.BlockSpec((1, Bh, 1), lambda c: (c, 0, 0)),
        pl.BlockSpec((1, Rows, PADC), lambda c: (c, 0, 0)),
        pl.BlockSpec((1, Bh, PADC), lambda c: (c, 0, 0)),
        pl.BlockSpec((NS, SLABW), lambda c: (0, 0)),
        pl.BlockSpec((Lpre, Kpre, PADC, PADC), lambda c: (0, 0, 0, 0)),
        pl.BlockSpec((PADC, PADC), lambda c: (0, 0)),
        pl.BlockSpec((Lenc, PADC, 3 * H * DHP), lambda c: (0, 0, 0)),
        pl.BlockSpec((Lenc, H, DHP, PADC), lambda c: (0, 0, 0, 0)),
        pl.BlockSpec((Lenc, Kf, PADC, Fp), lambda c: (0, 0, 0, 0)),
        pl.BlockSpec((Lenc, Kf, Fp, PADC), lambda c: (0, 0, 0, 0)),
        pl.BlockSpec((PADC, Nfp), lambda c: (0, 0)),
    ]
    out = pl.pallas_call(
        kern,
        out_shape=jax.ShapeDtypeStruct((NCHUNK, Rows, Nfp), jnp.float32),
        grid=(NCHUNK,),
        in_specs=in_specs,
        out_specs=pl.BlockSpec((1, Rows, Nfp), lambda c: (c, 0, 0)),
        compiler_params=pltpu.CompilerParams(dimension_semantics=("parallel",)),
    )(lens_c, x_c, spk_c, packed["slab"], packed["wpre"], packed["wpproj"],
      packed["wqkv"], packed["wo"], packed["w1"], packed["w2"], packed["wpm"])

    mu = out.reshape(Bp, T, Nfp)[:B, :, :Nf]
    mu_nct = jnp.transpose(mu, (0, 2, 1))                             # (B, n_feats, T)
    mask_bool = jnp.arange(T)[None, :] < lengths[:, None]             # (B, T)
    return mu_nct, src_word_emb_nct, mask_bool


# ---------------------------------------------------------------------------------- main

if __name__ == "__main__":
    n_vocab = 50
    n_feats = 16
    hidden_base = 32        # encoder_params['hidden_dim']
    spk_emb_dim = 8         # n_spks > 1 -> speaker embedding concatenated
    n_heads = 2
    B, T = 2, 16

    key = jax.random.PRNGKey(0)
    kp, ks, kspk = jax.random.split(key, 3)

    raw = init_params(
        kp,
        n_vocab=n_vocab, n_feats=n_feats, hidden_base=hidden_base,
        spk_emb_dim=spk_emb_dim,
        prenet_layers=2, prenet_kernel=5,
        enc_layers=2, n_heads=n_heads, filter_channels=64, ffn_kernel=3,
    )
    packed = pack_params(raw, n_heads=n_heads)

    src_seq = jax.random.randint(ks, (B, T), 0, n_vocab, dtype=jnp.int32)
    src_lengths = jnp.array([T, 12], dtype=jnp.int32)
    sids = 0.1 * jax.random.normal(kspk, (B, spk_emb_dim), jnp.float32)

    mu, src_word_emb, src_mask = text_encoder_forward(packed, src_seq, src_lengths, sids)

    jax.block_until_ready(mu)
    jax.block_until_ready(src_word_emb)
    jax.block_until_ready(src_mask)

    assert mu.shape == (B, n_feats, T)
    assert src_word_emb.shape == (B, hidden_base, T)
    assert src_mask.shape == (B, T) and src_mask.dtype == jnp.bool_
    assert bool(jnp.all(jnp.isfinite(mu)))
    # masked positions of mu must be exactly zero
    assert bool(jnp.all(jnp.where(src_mask[:, None, :], True, mu == 0.0)))

    print("KERNEL_OK")
</pallas_src>

<mosaic_0001>
module attributes {stable_mosaic.version = 11 : i64} {
  func.func @kernel(%arg0: i32, %arg1: memref<1x1x1xi32, #tpu.memory_space<vmem>>, %arg2: memref<1x16x128xf32, #tpu.memory_space<vmem>>, %arg3: memref<1x1x128xf32, #tpu.memory_space<vmem>>, %arg4: memref<34x128xf32, #tpu.memory_space<vmem>>, %arg5: memref<2x5x128x128xbf16, #tpu.memory_space<vmem>>, %arg6: memref<128x128xbf16, #tpu.memory_space<vmem>>, %arg7: memref<2x128x768xbf16, #tpu.memory_space<vmem>>, %arg8: memref<2x2x128x128xbf16, #tpu.memory_space<vmem>>, %arg9: memref<2x3x128x128xbf16, #tpu.memory_space<vmem>>, %arg10: memref<2x3x128x128xbf16, #tpu.memory_space<vmem>>, %arg11: memref<128x128xbf16, #tpu.memory_space<vmem>>, %arg12: memref<1x16x128xf32, #tpu.memory_space<vmem>>) attributes {dimension_semantics = [#tpu.dimension_semantics<parallel>], iteration_bounds = array<i64: 2>, scalar_prefetch = 0 : i64, scratch_operands = 0 : i64, tpu.core_type = #tpu.core_type<tc>, window_params = [{transform_indices = @transform_0, window_bounds = array<i64: 1, 1, 1>}, {transform_indices = @transform_1, window_bounds = array<i64: 1, 16, 128>}, {transform_indices = @transform_2, window_bounds = array<i64: 1, 1, 128>}, {pipeline_mode = #tpu.pipeline_mode<synchronous>, transform_indices = @transform_3, window_bounds = array<i64: 34, 128>}, {pipeline_mode = #tpu.pipeline_mode<synchronous>, transform_indices = @transform_4, window_bounds = array<i64: 2, 5, 128, 128>}, {pipeline_mode = #tpu.pipeline_mode<synchronous>, transform_indices = @transform_5, window_bounds = array<i64: 128, 128>}, {pipeline_mode = #tpu.pipeline_mode<synchronous>, transform_indices = @transform_6, window_bounds = array<i64: 2, 128, 768>}, {pipeline_mode = #tpu.pipeline_mode<synchronous>, transform_indices = @transform_7, window_bounds = array<i64: 2, 2, 128, 128>}, {pipeline_mode = #tpu.pipeline_mode<synchronous>, transform_indices = @transform_8, window_bounds = array<i64: 2, 3, 128, 128>}, {pipeline_mode = #tpu.pipeline_mode<synchronous>, transform_indices = @transform_9, window_bounds = array<i64: 2, 3, 128, 128>}, {pipeline_mode = #tpu.pipeline_mode<synchronous>, transform_indices = @transform_10, window_bounds = array<i64: 128, 128>}, {transform_indices = @transform_11, window_bounds = array<i64: 1, 16, 128>}]} {
    %c0 = arith.constant 0 : index
    %c0_0 = arith.constant 0 : index
    %0 = vector.load %arg4[%c0, %c0_0] : memref<34x128xf32, #tpu.memory_space<vmem>>, vector<34x128xf32>
    %c0_1 = arith.constant 0 : index
    %c0_2 = arith.constant 0 : index
    %c0_3 = arith.constant 0 : index
    %1 = vector.load %arg1[%c0_1, %c0_2, %c0_3] : memref<1x1x1xi32, #tpu.memory_space<vmem>>, vector<1x1x1xi32>
    %2 = vector.shape_cast %1 : vector<1x1x1xi32> to vector<1x1xi32>
    %3 = tpu.iota {dimensions = array<i32: 0>} : vector<16x1xi32>
    %4 = tpu.iota {dimensions = array<i32: 0>} : vector<16x16xi32>
    %5 = tpu.iota {dimensions = array<i32: 1>} : vector<16x16xi32>
    %6 = vector.broadcast %2 : vector<1x1xi32> to vector<16x1xi32>
    %7 = arith.cmpi slt, %3, %6 : vector<16x1xi32>
    %8 = arith.extui %7 : vector<16x1xi1> to vector<16x1xi32>
    %9 = arith.sitofp %8 : vector<16x1xi32> to vector<16x1xf32>
    %10 = vector.broadcast %2 : vector<1x1xi32> to vector<16x16xi32>
    %11 = arith.cmpi slt, %4, %10 : vector<16x16xi32>
    %12 = vector.broadcast %2 : vector<1x1xi32> to vector<16x16xi32>
    %13 = arith.cmpi slt, %5, %12 : vector<16x16xi32>
    %14 = arith.andi %11, %13 : vector<16x16xi1>
    %15 = tpu.iota {dimensions = array<i32: 1>} : vector<1x128xi32>
    %c32_i32 = arith.constant 32 : i32
    %16 = vector.broadcast %c32_i32 : i32 to vector<1x128xi32>
    %17 = arith.cmpi slt, %15, %16 : vector<1x128xi32>
    %18 = arith.extui %17 : vector<1x128xi1> to vector<1x128xi32>
    %19 = arith.sitofp %18 : vector<1x128xi32> to vector<1x128xf32>
    %20 = tpu.iota {dimensions = array<i32: 1>} : vector<1x128xi32>
    %c40_i32 = arith.constant 40 : i32
    %21 = vector.broadcast %c40_i32 : i32 to vector<1x128xi32>
    %22 = arith.cmpi slt, %20, %21 : vector<1x128xi32>
    %23 = arith.extui %22 : vector<1x128xi1> to vector<1x128xi32>
    %24 = arith.sitofp %23 : vector<1x128xi32> to vector<1x128xf32>
    %c0_4 = arith.constant 0 : index
    %c0_5 = arith.constant 0 : index
    %c0_6 = arith.constant 0 : index
    %25 = vector.load %arg2[%c0_4, %c0_5, %c0_6] : memref<1x16x128xf32, #tpu.memory_space<vmem>>, vector<1x16x128xf32>
    %26 = vector.shape_cast %25 : vector<1x16x128xf32> to vector<16x128xf32>
    %27 = vector.broadcast %9 : vector<16x1xf32> to vector<16x128xf32>
    %28 = arith.mulf %26, %27 : vector<16x128xf32>
    %29 = vector.extract_strided_slice %0 {offsets = [0, 0], sizes = [1, 128], strides = [1, 1]} : vector<34x128xf32> to vector<1x128xf32>
    %cst = arith.constant 0.000000e+00 : f32
    %30 = vector.broadcast %cst : f32 to vector<2x128xf32>
    %31 = tpu.concatenate %30, %28, %30 in 0 : vector<2x128xf32>, vector<16x128xf32>, vector<2x128xf32> -> vector<20x128xf32>
    %cst_7 = arith.constant 0.000000e+00 : f32
    %32 = vector.broadcast %cst_7 : f32 to vector<16x128xf32>
    %33 = vector.extract_strided_slice %31 {offsets = [0, 0], sizes = [16, 128], strides = [1, 1]} : vector<20x128xf32> to vector<16x128xf32>
    %34 = arith.truncf %33 : vector<16x128xf32> to vector<16x128xbf16>
    %c0_8 = arith.constant 0 : index
    %c0_9 = arith.constant 0 : index
    %c0_10 = arith.constant 0 : index
    %c0_11 = arith.constant 0 : index
    %35 = vector.load %arg5[%c0_8, %c0_9, %c0_10, %c0_11] : memref<2x5x128x128xbf16, #tpu.memory_space<vmem>>, vector<1x1x128x128xbf16>
    %36 = vector.shape_cast %35 : vector<1x1x128x128xbf16> to vector<128x128xbf16>
    %cst_12 = arith.constant dense<0.000000e+00> : vector<16x128xf32>
    %37 = tpu.matmul %34, %36, %cst_12 {dimension_numbers = #tpu.dot_dimension_numbers<[1], [0], [0], [1], [0, 0, 1, 1], [], []>} : vector<16x128xbf16>, vector<128x128xbf16>, vector<16x128xf32> -> vector<16x128xf32>
    %38 = arith.addf %32, %37 : vector<16x128xf32>
    %39 = vector.extract_strided_slice %31 {offsets = [1, 0], sizes = [16, 128], strides = [1, 1]} : vector<20x128xf32> to vector<16x128xf32>
    %40 = arith.truncf %39 : vector<16x128xf32> to vector<16x128xbf16>
    %c0_13 = arith.constant 0 : index
    %c1 = arith.constant 1 : index
    %c0_14 = arith.constant 0 : index
    %c0_15 = arith.constant 0 : index
    %41 = vector.load %arg5[%c0_13, %c1, %c0_14, %c0_15] : memref<2x5x128x128xbf16, #tpu.memory_space<vmem>>, vector<1x1x128x128xbf16>
    %42 = vector.shape_cast %41 : vector<1x1x128x128xbf16> to vector<128x128xbf16>
    %cst_16 = arith.constant dense<0.000000e+00> : vector<16x128xf32>
    %43 = tpu.matmul %40, %42, %cst_16 {dimension_numbers = #tpu.dot_dimension_numbers<[1], [0], [0], [1], [0, 0, 1, 1], [], []>} : vector<16x128xbf16>, vector<128x128xbf16>, vector<16x128xf32> -> vector<16x128xf32>
    %44 = arith.addf %38, %43 : vector<16x128xf32>
    %45 = vector.extract_strided_slice %31 {offsets = [2, 0], sizes = [16, 128], strides = [1, 1]} : vector<20x128xf32> to vector<16x128xf32>
    %46 = arith.truncf %45 : vector<16x128xf32> to vector<16x128xbf16>
    %c0_17 = arith.constant 0 : index
    %c2 = arith.constant 2 : index
    %c0_18 = arith.constant 0 : index
    %c0_19 = arith.constant 0 : index
    %47 = vector.load %arg5[%c0_17, %c2, %c0_18, %c0_19] : memref<2x5x128x128xbf16, #tpu.memory_space<vmem>>, vector<1x1x128x128xbf16>
    %48 = vector.shape_cast %47 : vector<1x1x128x128xbf16> to vector<128x128xbf16>
    %cst_20 = arith.constant dense<0.000000e+00> : vector<16x128xf32>
    %49 = tpu.matmul %46, %48, %cst_20 {dimension_numbers = #tpu.dot_dimension_numbers<[1], [0], [0], [1], [0, 0, 1, 1], [], []>} : vector<16x128xbf16>, vector<128x128xbf16>, vector<16x128xf32> -> vector<16x128xf32>
    %50 = arith.addf %44, %49 : vector<16x128xf32>
    %51 = vector.extract_strided_slice %31 {offsets = [3, 0], sizes = [16, 128], strides = [1, 1]} : vector<20x128xf32> to vector<16x128xf32>
    %52 = arith.truncf %51 : vector<16x128xf32> to vector<16x128xbf16>
    %c0_21 = arith.constant 0 : index
    %c3 = arith.constant 3 : index
    %c0_22 = arith.constant 0 : index
    %c0_23 = arith.constant 0 : index
    %53 = vector.load %arg5[%c0_21, %c3, %c0_22, %c0_23] : memref<2x5x128x128xbf16, #tpu.memory_space<vmem>>, vector<1x1x128x128xbf16>
    %54 = vector.shape_cast %53 : vector<1x1x128x128xbf16> to vector<128x128xbf16>
    %cst_24 = arith.constant dense<0.000000e+00> : vector<16x128xf32>
    %55 = tpu.matmul %52, %54, %cst_24 {dimension_numbers = #tpu.dot_dimension_numbers<[1], [0], [0], [1], [0, 0, 1, 1], [], []>} : vector<16x128xbf16>, vector<128x128xbf16>, vector<16x128xf32> -> vector<16x128xf32>
    %56 = arith.addf %50, %55 : vector<16x128xf32>
    %57 = vector.extract_strided_slice %31 {offsets = [4, 0], sizes = [16, 128], strides = [1, 1]} : vector<20x128xf32> to vector<16x128xf32>
    %58 = arith.truncf %57 : vector<16x128xf32> to vector<16x128xbf16>
    %c0_25 = arith.constant 0 : index
    %c4 = arith.constant 4 : index
    %c0_26 = arith.constant 0 : index
    %c0_27 = arith.constant 0 : index
    %59 = vector.load %arg5[%c0_25, %c4, %c0_26, %c0_27] : memref<2x5x128x128xbf16, #tpu.memory_space<vmem>>, vector<1x1x128x128xbf16>
    %60 = vector.shape_cast %59 : vector<1x1x128x128xbf16> to vector<128x128xbf16>
    %cst_28 = arith.constant dense<0.000000e+00> : vector<16x128xf32>
    %61 = tpu.matmul %58, %60, %cst_28 {dimension_numbers = #tpu.dot_dimension_numbers<[1], [0], [0], [1], [0, 0, 1, 1], [], []>} : vector<16x128xbf16>, vector<128x128xbf16>, vector<16x128xf32> -> vector<16x128xf32>
    %62 = arith.addf %56, %61 : vector<16x128xf32>
    %63 = vector.broadcast %29 : vector<1x128xf32> to vector<16x128xf32>
    %64 = arith.addf %62, %63 : vector<16x128xf32>
    %65 = vector.extract_strided_slice %0 {offsets = [1, 0], sizes = [1, 128], strides = [1, 1]} : vector<34x128xf32> to vector<1x128xf32>
    %66 = vector.extract_strided_slice %0 {offsets = [2, 0], sizes = [1, 128], strides = [1, 1]} : vector<34x128xf32> to vector<1x128xf32>
    %67 = vector.broadcast %19 : vector<1x128xf32> to vector<16x128xf32>
    %68 = arith.mulf %64, %67 : vector<16x128xf32>
    %cst_29 = arith.constant dense<0.000000e+00> : vector<16xf32>
    %69 = vector.multi_reduction <add>, %68, %cst_29 [1] : vector<16x128xf32> to vector<16xf32>
    %70 = vector.shape_cast %69 : vector<16xf32> to vector<16x1xf32>
    %cst_30 = arith.constant 3.125000e-02 : f32
    %71 = vector.broadcast %cst_30 : f32 to vector<16x1xf32>
    %72 = arith.mulf %70, %71 : vector<16x1xf32>
    %73 = vector.broadcast %72 : vector<16x1xf32> to vector<16x128xf32>
    %74 = arith.subf %64, %73 : vector<16x128xf32>
    %75 = vector.broadcast %19 : vector<1x128xf32> to vector<16x128xf32>
    %76 = arith.mulf %74, %75 : vector<16x128xf32>
    %77 = arith.mulf %76, %76 : vector<16x128xf32>
    %cst_31 = arith.constant dense<0.000000e+00> : vector<16xf32>
    %78 = vector.multi_reduction <add>, %77, %cst_31 [1] : vector<16x128xf32> to vector<16xf32>
    %79 = vector.shape_cast %78 : vector<16xf32> to vector<16x1xf32>
    %cst_32 = arith.constant 3.125000e-02 : f32
    %80 = vector.broadcast %cst_32 : f32 to vector<16x1xf32>
    %81 = arith.mulf %79, %80 : vector<16x1xf32>
    %cst_33 = arith.constant 9.99999974E-5 : f32
    %82 = vector.broadcast %cst_33 : f32 to vector<16x1xf32>
    %83 = arith.addf %81, %82 : vector<16x1xf32>
    %84 = math.rsqrt %83 : vector<16x1xf32>
    %85 = vector.broadcast %84 : vector<16x1xf32> to vector<16x128xf32>
    %86 = arith.mulf %76, %85 : vector<16x128xf32>
    %87 = vector.broadcast %65 : vector<1x128xf32> to vector<16x128xf32>
    %88 = arith.mulf %86, %87 : vector<16x128xf32>
    %89 = vector.broadcast %66 : vector<1x128xf32> to vector<16x128xf32>
    %90 = arith.addf %88, %89 : vector<16x128xf32>
    %cst_34 = arith.constant 0.000000e+00 : f32
    %91 = vector.broadcast %cst_34 : f32 to vector<16x128xf32>
    %92 = arith.maximumf %90, %91 : vector<16x128xf32>
    %93 = vector.broadcast %9 : vector<16x1xf32> to vector<16x128xf32>
    %94 = arith.mulf %92, %93 : vector<16x128xf32>
    %95 = vector.extract_strided_slice %0 {offsets = [3, 0], sizes = [1, 128], strides = [1, 1]} : vector<34x128xf32> to vector<1x128xf32>
    %cst_35 = arith.constant 0.000000e+00 : f32
    %96 = vector.broadcast %cst_35 : f32 to vector<2x128xf32>
    %97 = tpu.concatenate %96, %94, %96 in 0 : vector<2x128xf32>, vector<16x128xf32>, vector<2x128xf32> -> vector<20x128xf32>
    %cst_36 = arith.constant 0.000000e+00 : f32
    %98 = vector.broadcast %cst_36 : f32 to vector<16x128xf32>
    %99 = vector.extract_strided_slice %97 {offsets = [0, 0], sizes = [16, 128], strides = [1, 1]} : vector<20x128xf32> to vector<16x128xf32>
    %100 = arith.truncf %99 : vector<16x128xf32> to vector<16x128xbf16>
    %c1_37 = arith.constant 1 : index
    %c0_38 = arith.constant 0 : index
    %c0_39 = arith.constant 0 : index
    %c0_40 = arith.constant 0 : index
    %101 = vector.load %arg5[%c1_37, %c0_38, %c0_39, %c0_40] : memref<2x5x128x128xbf16, #tpu.memory_space<vmem>>, vector<1x1x128x128xbf16>
    %102 = vector.shape_cast %101 : vector<1x1x128x128xbf16> to vector<128x128xbf16>
    %cst_41 = arith.constant dense<0.000000e+00> : vector<16x128xf32>
    %103 = tpu.matmul %100, %102, %cst_41 {dimension_numbers = #tpu.dot_dimension_numbers<[1], [0], [0], [1], [0, 0, 1, 1], [], []>} : vector<16x128xbf16>, vector<128x128xbf16>, vector<16x128xf32> -> vector<16x128xf32>
    %104 = arith.addf %98, %103 : vector<16x128xf32>
    %105 = vector.extract_strided_slice %97 {offsets = [1, 0], sizes = [16, 128], strides = [1, 1]} : vector<20x128xf32> to vector<16x128xf32>
    %106 = arith.truncf %105 : vector<16x128xf32> to vector<16x128xbf16>
    %c1_42 = arith.constant 1 : index
    %c1_43 = arith.constant 1 : index
    %c0_44 = arith.constant 0 : index
    %c0_45 = arith.constant 0 : index
    %107 = vector.load %arg5[%c1_42, %c1_43, %c0_44, %c0_45] : memref<2x5x128x128xbf16, #tpu.memory_space<vmem>>, vector<1x1x128x128xbf16>
    %108 = vector.shape_cast %107 : vector<1x1x128x128xbf16> to vector<128x128xbf16>
    %cst_46 = arith.constant dense<0.000000e+00> : vector<16x128xf32>
    %109 = tpu.matmul %106, %108, %cst_46 {dimension_numbers = #tpu.dot_dimension_numbers<[1], [0], [0], [1], [0, 0, 1, 1], [], []>} : vector<16x128xbf16>, vector<128x128xbf16>, vector<16x128xf32> -> vector<16x128xf32>
    %110 = arith.addf %104, %109 : vector<16x128xf32>
    %111 = vector.extract_strided_slice %97 {offsets = [2, 0], sizes = [16, 128], strides = [1, 1]} : vector<20x128xf32> to vector<16x128xf32>
    %112 = arith.truncf %111 : vector<16x128xf32> to vector<16x128xbf16>
    %c1_47 = arith.constant 1 : index
    %c2_48 = arith.constant 2 : index
    %c0_49 = arith.constant 0 : index
    %c0_50 = arith.constant 0 : index
    %113 = vector.load %arg5[%c1_47, %c2_48, %c0_49, %c0_50] : memref<2x5x128x128xbf16, #tpu.memory_space<vmem>>, vector<1x1x128x128xbf16>
    %114 = vector.shape_cast %113 : vector<1x1x128x128xbf16> to vector<128x128xbf16>
    %cst_51 = arith.constant dense<0.000000e+00> : vector<16x128xf32>
    %115 = tpu.matmul %112, %114, %cst_51 {dimension_numbers = #tpu.dot_dimension_numbers<[1], [0], [0], [1], [0, 0, 1, 1], [], []>} : vector<16x128xbf16>, vector<128x128xbf16>, vector<16x128xf32> -> vector<16x128xf32>
    %116 = arith.addf %110, %115 : vector<16x128xf32>
    %117 = vector.extract_strided_slice %97 {offsets = [3, 0], sizes = [16, 128], strides = [1, 1]} : vector<20x128xf32> to vector<16x128xf32>
    %118 = arith.truncf %117 : vector<16x128xf32> to vector<16x128xbf16>
    %c1_52 = arith.constant 1 : index
    %c3_53 = arith.constant 3 : index
    %c0_54 = arith.constant 0 : index
    %c0_55 = arith.constant 0 : index
    %119 = vector.load %arg5[%c1_52, %c3_53, %c0_54, %c0_55] : memref<2x5x128x128xbf16, #tpu.memory_space<vmem>>, vector<1x1x128x128xbf16>
    %120 = vector.shape_cast %119 : vector<1x1x128x128xbf16> to vector<128x128xbf16>
    %cst_56 = arith.constant dense<0.000000e+00> : vector<16x128xf32>
    %121 = tpu.matmul %118, %120, %cst_56 {dimension_numbers = #tpu.dot_dimension_numbers<[1], [0], [0], [1], [0, 0, 1, 1], [], []>} : vector<16x128xbf16>, vector<128x128xbf16>, vector<16x128xf32> -> vector<16x128xf32>
    %122 = arith.addf %116, %121 : vector<16x128xf32>
    %123 = vector.extract_strided_slice %97 {offsets = [4, 0], sizes = [16, 128], strides = [1, 1]} : vector<20x128xf32> to vector<16x128xf32>
    %124 = arith.truncf %123 : vector<16x128xf32> to vector<16x128xbf16>
    %c1_57 = arith.constant 1 : index
    %c4_58 = arith.constant 4 : index
    %c0_59 = arith.constant 0 : index
    %c0_60 = arith.constant 0 : index
    %125 = vector.load %arg5[%c1_57, %c4_58, %c0_59, %c0_60] : memref<2x5x128x128xbf16, #tpu.memory_space<vmem>>, vector<1x1x128x128xbf16>
    %126 = vector.shape_cast %125 : vector<1x1x128x128xbf16> to vector<128x128xbf16>
    %cst_61 = arith.constant dense<0.000000e+00> : vector<16x128xf32>
    %127 = tpu.matmul %124, %126, %cst_61 {dimension_numbers = #tpu.dot_dimension_numbers<[1], [0], [0], [1], [0, 0, 1, 1], [], []>} : vector<16x128xbf16>, vector<128x128xbf16>, vector<16x128xf32> -> vector<16x128xf32>
    %128 = arith.addf %122, %127 : vector<16x128xf32>
    %129 = vector.broadcast %95 : vector<1x128xf32> to vector<16x128xf32>
    %130 = arith.addf %128, %129 : vector<16x128xf32>
    %131 = vector.extract_strided_slice %0 {offsets = [4, 0], sizes = [1, 128], strides = [1, 1]} : vector<34x128xf32> to vector<1x128xf32>
    %132 = vector.extract_strided_slice %0 {offsets = [5, 0], sizes = [1, 128], strides = [1, 1]} : vector<34x128xf32> to vector<1x128xf32>
    %133 = vector.broadcast %19 : vector<1x128xf32> to vector<16x128xf32>
    %134 = arith.mulf %130, %133 : vector<16x128xf32>
    %cst_62 = arith.constant dense<0.000000e+00> : vector<16xf32>
    %135 = vector.multi_reduction <add>, %134, %cst_62 [1] : vector<16x128xf32> to vector<16xf32>
    %136 = vector.shape_cast %135 : vector<16xf32> to vector<16x1xf32>
    %cst_63 = arith.constant 3.125000e-02 : f32
    %137 = vector.broadcast %cst_63 : f32 to vector<16x1xf32>
    %138 = arith.mulf %136, %137 : vector<16x1xf32>
    %139 = vector.broadcast %138 : vector<16x1xf32> to vector<16x128xf32>
    %140 = arith.subf %130, %139 : vector<16x128xf32>
    %141 = vector.broadcast %19 : vector<1x128xf32> to vector<16x128xf32>
    %142 = arith.mulf %140, %141 : vector<16x128xf32>
    %143 = arith.mulf %142, %142 : vector<16x128xf32>
    %cst_64 = arith.constant dense<0.000000e+00> : vector<16xf32>
    %144 = vector.multi_reduction <add>, %143, %cst_64 [1] : vector<16x128xf32> to vector<16xf32>
    %145 = vector.shape_cast %144 : vector<16xf32> to vector<16x1xf32>
    %cst_65 = arith.constant 3.125000e-02 : f32
    %146 = vector.broadcast %cst_65 : f32 to vector<16x1xf32>
    %147 = arith.mulf %145, %146 : vector<16x1xf32>
    %cst_66 = arith.constant 9.99999974E-5 : f32
    %148 = vector.broadcast %cst_66 : f32 to vector<16x1xf32>
    %149 = arith.addf %147, %148 : vector<16x1xf32>
    %150 = math.rsqrt %149 : vector<16x1xf32>
    %151 = vector.broadcast %150 : vector<16x1xf32> to vector<16x128xf32>
    %152 = arith.mulf %142, %151 : vector<16x128xf32>
    %153 = vector.broadcast %131 : vector<1x128xf32> to vector<16x128xf32>
    %154 = arith.mulf %152, %153 : vector<16x128xf32>
    %155 = vector.broadcast %132 : vector<1x128xf32> to vector<16x128xf32>
    %156 = arith.addf %154, %155 : vector<16x128xf32>
    %cst_67 = arith.constant 0.000000e+00 : f32
    %157 = vector.broadcast %cst_67 : f32 to vector<16x128xf32>
    %158 = arith.maximumf %156, %157 : vector<16x128xf32>
    %159 = arith.truncf %158 : vector<16x128xf32> to vector<16x128xbf16>
    %c0_68 = arith.constant 0 : index
    %c0_69 = arith.constant 0 : index
    %160 = vector.load %arg6[%c0_68, %c0_69] : memref<128x128xbf16, #tpu.memory_space<vmem>>, vector<128x128xbf16>
    %cst_70 = arith.constant dense<0.000000e+00> : vector<16x128xf32>
    %161 = tpu.matmul %159, %160, %cst_70 {dimension_numbers = #tpu.dot_dimension_numbers<[1], [0], [0], [1], [0, 0, 1, 1], [], []>} : vector<16x128xbf16>, vector<128x128xbf16>, vector<16x128xf32> -> vector<16x128xf32>
    %162 = arith.addf %26, %161 : vector<16x128xf32>
    %163 = vector.extract_strided_slice %0 {offsets = [6, 0], sizes = [1, 128], strides = [1, 1]} : vector<34x128xf32> to vector<1x128xf32>
    %164 = vector.broadcast %163 : vector<1x128xf32> to vector<16x128xf32>
    %165 = arith.addf %162, %164 : vector<16x128xf32>
    %166 = vector.broadcast %9 : vector<16x1xf32> to vector<16x128xf32>
    %167 = arith.mulf %165, %166 : vector<16x128xf32>
    %c0_71 = arith.constant 0 : index
    %c0_72 = arith.constant 0 : index
    %c0_73 = arith.constant 0 : index
    %168 = vector.load %arg3[%c0_71, %c0_72, %c0_73] : memref<1x1x128xf32, #tpu.memory_space<vmem>>, vector<1x1x128xf32>
    %169 = vector.shape_cast %168 : vector<1x1x128xf32> to vector<1x128xf32>
    %170 = vector.broadcast %169 : vector<1x128xf32> to vector<16x128xf32>
    %171 = arith.addf %167, %170 : vector<16x128xf32>
    %172 = vector.broadcast %9 : vector<16x1xf32> to vector<16x128xf32>
    %173 = arith.mulf %171, %172 : vector<16x128xf32>
    %174 = arith.truncf %173 : vector<16x128xf32> to vector<16x128xbf16>
    %c0_74 = arith.constant 0 : index
    %c0_75 = arith.constant 0 : index
    %c0_76 = arith.constant 0 : index
    %175 = vector.load %arg7[%c0_74, %c0_75, %c0_76] : memref<2x128x768xbf16, #tpu.memory_space<vmem>>, vector<1x128x768xbf16>
    %176 = vector.shape_cast %175 : vector<1x128x768xbf16> to vector<128x768xbf16>
    %cst_77 = arith.constant dense<0.000000e+00> : vector<16x768xf32>
    %177 = tpu.matmul %174, %176, %cst_77 {dimension_numbers = #tpu.dot_dimension_numbers<[1], [0], [0], [1], [0, 0, 1, 1], [], []>} : vector<16x128xbf16>, vector<128x768xbf16>, vector<16x768xf32> -> vector<16x768xf32>
    %cst_78 = arith.constant 0.000000e+00 : f32
    %178 = vector.broadcast %cst_78 : f32 to vector<16x128xf32>
    %179 = vector.extract_strided_slice %177 {offsets = [0, 0], sizes = [16, 128], strides = [1, 1]} : vector<16x768xf32> to vector<16x128xf32>
    %180 = vector.extract_strided_slice %0 {offsets = [7, 0], sizes = [1, 128], strides = [1, 1]} : vector<34x128xf32> to vector<1x128xf32>
    %181 = vector.broadcast %180 : vector<1x128xf32> to vector<16x128xf32>
    %182 = arith.addf %179, %181 : vector<16x128xf32>
    %183 = vector.extract_strided_slice %177 {offsets = [0, 256], sizes = [16, 128], strides = [1, 1]} : vector<16x768xf32> to vector<16x128xf32>
    %184 = vector.extract_strided_slice %0 {offsets = [8, 0], sizes = [1, 128], strides = [1, 1]} : vector<34x128xf32> to vector<1x128xf32>
    %185 = vector.broadcast %184 : vector<1x128xf32> to vector<16x128xf32>
    %186 = arith.addf %183, %185 : vector<16x128xf32>
    %187 = vector.extract_strided_slice %177 {offsets = [0, 512], sizes = [16, 128], strides = [1, 1]} : vector<16x768xf32> to vector<16x128xf32>
    %188 = vector.extract_strided_slice %0 {offsets = [9, 0], sizes = [1, 128], strides = [1, 1]} : vector<34x128xf32> to vector<1x128xf32>
    %189 = vector.broadcast %188 : vector<1x128xf32> to vector<16x128xf32>
    %190 = arith.addf %187, %189 : vector<16x128xf32>
    %191 = arith.truncf %182 : vector<16x128xf32> to vector<16x128xbf16>
    %192 = arith.truncf %186 : vector<16x128xf32> to vector<16x128xbf16>
    %cst_79 = arith.constant dense<0.000000e+00> : vector<16x16xf32>
    %193 = tpu.matmul %191, %192, %cst_79 {dimension_numbers = #tpu.dot_dimension_numbers<[1], [1], [0], [0], [0, 0, 1, 0], [], []>} : vector<16x128xbf16>, vector<16x128xbf16>, vector<16x16xf32> -> vector<16x16xf32>
    %cst_80 = arith.constant 0.223606795 : f32
    %194 = vector.broadcast %cst_80 : f32 to vector<16x16xf32>
    %195 = arith.mulf %193, %194 : vector<16x16xf32>
    %cst_81 = arith.constant -1.000000e+04 : f32
    %196 = vector.broadcast %cst_81 : f32 to vector<16x16xf32>
    %197 = arith.select %14, %195, %196 : vector<16x16xi1>, vector<16x16xf32>
    %cst_82 = arith.constant dense<0xFF800000> : vector<16xf32>
    %198 = vector.multi_reduction <maximumf>, %197, %cst_82 [1] : vector<16x16xf32> to vector<16xf32>
    %199 = vector.shape_cast %198 : vector<16xf32> to vector<16x1xf32>
    %200 = vector.broadcast %199 : vector<16x1xf32> to vector<16x16xf32>
    %201 = arith.subf %197, %200 : vector<16x16xf32>
    %202 = math.exp %201 : vector<16x16xf32>
    %cst_83 = arith.constant dense<0.000000e+00> : vector<16xf32>
    %203 = vector.multi_reduction <add>, %202, %cst_83 [1] : vector<16x16xf32> to vector<16xf32>
    %204 = vector.shape_cast %203 : vector<16xf32> to vector<16x1xf32>
    %205 = tpu.reciprocal %204 {approx = true} : vector<16x1xf32> -> vector<16x1xf32>
    %206 = vector.broadcast %205 : vector<16x1xf32> to vector<16x16xf32>
    %207 = arith.mulf %202, %206 : vector<16x16xf32>
    %208 = arith.truncf %207 : vector<16x16xf32> to vector<16x16xbf16>
    %209 = arith.truncf %190 : vector<16x128xf32> to vector<16x128xbf16>
    %cst_84 = arith.constant dense<0.000000e+00> : vector<16x128xf32>
    %210 = tpu.matmul %208, %209, %cst_84 {dimension_numbers = #tpu.dot_dimension_numbers<[1], [0], [0], [1], [0, 0, 1, 1], [], []>} : vector<16x16xbf16>, vector<16x128xbf16>, vector<16x128xf32> -> vector<16x128xf32>
    %211 = arith.truncf %210 : vector<16x128xf32> to vector<16x128xbf16>
    %c0_85 = arith.constant 0 : index
    %c0_86 = arith.constant 0 : index
    %c0_87 = arith.constant 0 : index
    %c0_88 = arith.constant 0 : index
    %212 = vector.load %arg8[%c0_85, %c0_86, %c0_87, %c0_88] : memref<2x2x128x128xbf16, #tpu.memory_space<vmem>>, vector<1x1x128x128xbf16>
    %213 = vector.shape_cast %212 : vector<1x1x128x128xbf16> to vector<128x128xbf16>
    %cst_89 = arith.constant dense<0.000000e+00> : vector<16x128xf32>
    %214 = tpu.matmul %211, %213, %cst_89 {dimension_numbers = #tpu.dot_dimension_numbers<[1], [0], [0], [1], [0, 0, 1, 1], [], []>} : vector<16x128xbf16>, vector<128x128xbf16>, vector<16x128xf32> -> vector<16x128xf32>
    %215 = arith.addf %178, %214 : vector<16x128xf32>
    %216 = vector.extract_strided_slice %177 {offsets = [0, 128], sizes = [16, 128], strides = [1, 1]} : vector<16x768xf32> to vector<16x128xf32>
    %217 = vector.extract_strided_slice %0 {offsets = [10, 0], sizes = [1, 128], strides = [1, 1]} : vector<34x128xf32> to vector<1x128xf32>
    %218 = vector.broadcast %217 : vector<1x128xf32> to vector<16x128xf32>
    %219 = arith.addf %216, %218 : vector<16x128xf32>
    %220 = vector.extract_strided_slice %177 {offsets = [0, 384], sizes = [16, 128], strides = [1, 1]} : vector<16x768xf32> to vector<16x128xf32>
    %221 = vector.extract_strided_slice %0 {offsets = [11, 0], sizes = [1, 128], strides = [1, 1]} : vector<34x128xf32> to vector<1x128xf32>
    %222 = vector.broadcast %221 : vector<1x128xf32> to vector<16x128xf32>
    %223 = arith.addf %220, %222 : vector<16x128xf32>
    %224 = vector.extract_strided_slice %177 {offsets = [0, 640], sizes = [16, 128], strides = [1, 1]} : vector<16x768xf32> to vector<16x128xf32>
    %225 = vector.extract_strided_slice %0 {offsets = [12, 0], sizes = [1, 128], strides = [1, 1]} : vector<34x128xf32> to vector<1x128xf32>
    %226 = vector.broadcast %225 : vector<1x128xf32> to vector<16x128xf32>
    %227 = arith.addf %224, %226 : vector<16x128xf32>
    %228 = arith.truncf %219 : vector<16x128xf32> to vector<16x128xbf16>
    %229 = arith.truncf %223 : vector<16x128xf32> to vector<16x128xbf16>
    %cst_90 = arith.constant dense<0.000000e+00> : vector<16x16xf32>
    %230 = tpu.matmul %228, %229, %cst_90 {dimension_numbers = #tpu.dot_dimension_numbers<[1], [1], [0], [0], [0, 0, 1, 0], [], []>} : vector<16x128xbf16>, vector<16x128xbf16>, vector<16x16xf32> -> vector<16x16xf32>
    %cst_91 = arith.constant 0.223606795 : f32
    %231 = vector.broadcast %cst_91 : f32 to vector<16x16xf32>
    %232 = arith.mulf %230, %231 : vector<16x16xf32>
    %cst_92 = arith.constant -1.000000e+04 : f32
    %233 = vector.broadcast %cst_92 : f32 to vector<16x16xf32>
    %234 = arith.select %14, %232, %233 : vector<16x16xi1>, vector<16x16xf32>
    %cst_93 = arith.constant dense<0xFF800000> : vector<16xf32>
    %235 = vector.multi_reduction <maximumf>, %234, %cst_93 [1] : vector<16x16xf32> to vector<16xf32>
    %236 = vector.shape_cast %235 : vector<16xf32> to vector<16x1xf32>
    %237 = vector.broadcast %236 : vector<16x1xf32> to vector<16x16xf32>
    %238 = arith.subf %234, %237 : vector<16x16xf32>
    %239 = math.exp %238 : vector<16x16xf32>
    %cst_94 = arith.constant dense<0.000000e+00> : vector<16xf32>
    %240 = vector.multi_reduction <add>, %239, %cst_94 [1] : vector<16x16xf32> to vector<16xf32>
    %241 = vector.shape_cast %240 : vector<16xf32> to vector<16x1xf32>
    %242 = tpu.reciprocal %241 {approx = true} : vector<16x1xf32> -> vector<16x1xf32>
    %243 = vector.broadcast %242 : vector<16x1xf32> to vector<16x16xf32>
    %244 = arith.mulf %239, %243 : vector<16x16xf32>
    %245 = arith.truncf %244 : vector<16x16xf32> to vector<16x16xbf16>
    %246 = arith.truncf %227 : vector<16x128xf32> to vector<16x128xbf16>
    %cst_95 = arith.constant dense<0.000000e+00> : vector<16x128xf32>
    %247 = tpu.matmul %245, %246, %cst_95 {dimension_numbers = #tpu.dot_dimension_numbers<[1], [0], [0], [1], [0, 0, 1, 1], [], []>} : vector<16x16xbf16>, vector<16x128xbf16>, vector<16x128xf32> -> vector<16x128xf32>
    %248 = arith.truncf %247 : vector<16x128xf32> to vector<16x128xbf16>
    %c0_96 = arith.constant 0 : index
    %c1_97 = arith.constant 1 : index
    %c0_98 = arith.constant 0 : index
    %c0_99 = arith.constant 0 : index
    %249 = vector.load %arg8[%c0_96, %c1_97, %c0_98, %c0_99] : memref<2x2x128x128xbf16, #tpu.memory_space<vmem>>, vector<1x1x128x128xbf16>
    %250 = vector.shape_cast %249 : vector<1x1x128x128xbf16> to vector<128x128xbf16>
    %cst_100 = arith.constant dense<0.000000e+00> : vector<16x128xf32>
    %251 = tpu.matmul %248, %250, %cst_100 {dimension_numbers = #tpu.dot_dimension_numbers<[1], [0], [0], [1], [0, 0, 1, 1], [], []>} : vector<16x128xbf16>, vector<128x128xbf16>, vector<16x128xf32> -> vector<16x128xf32>
    %252 = arith.addf %215, %251 : vector<16x128xf32>
    %253 = vector.extract_strided_slice %0 {offsets = [13, 0], sizes = [1, 128], strides = [1, 1]} : vector<34x128xf32> to vector<1x128xf32>
    %254 = vector.broadcast %253 : vector<1x128xf32> to vector<16x128xf32>
    %255 = arith.addf %252, %254 : vector<16x128xf32>
    %256 = arith.addf %173, %255 : vector<16x128xf32>
    %257 = vector.extract_strided_slice %0 {offsets = [14, 0], sizes = [1, 128], strides = [1, 1]} : vector<34x128xf32> to vector<1x128xf32>
    %258 = vector.extract_strided_slice %0 {offsets = [15, 0], sizes = [1, 128], strides = [1, 1]} : vector<34x128xf32> to vector<1x128xf32>
    %259 = vector.broadcast %24 : vector<1x128xf32> to vector<16x128xf32>
    %260 = arith.mulf %256, %259 : vector<16x128xf32>
    %cst_101 = arith.constant dense<0.000000e+00> : vector<16xf32>
    %261 = vector.multi_reduction <add>, %260, %cst_101 [1] : vector<16x128xf32> to vector<16xf32>
    %262 = vector.shape_cast %261 : vector<16xf32> to vector<16x1xf32>
    %cst_102 = arith.constant 2.500000e-02 : f32
    %263 = vector.broadcast %cst_102 : f32 to vector<16x1xf32>
    %264 = arith.mulf %262, %263 : vector<16x1xf32>
    %265 = vector.broadcast %264 : vector<16x1xf32> to vector<16x128xf32>
    %266 = arith.subf %256, %265 : vector<16x128xf32>
    %267 = vector.broadcast %24 : vector<1x128xf32> to vector<16x128xf32>
    %268 = arith.mulf %266, %267 : vector<16x128xf32>
    %269 = arith.mulf %268, %268 : vector<16x128xf32>
    %cst_103 = arith.constant dense<0.000000e+00> : vector<16xf32>
    %270 = vector.multi_reduction <add>, %269, %cst_103 [1] : vector<16x128xf32> to vector<16xf32>
    %271 = vector.shape_cast %270 : vector<16xf32> to vector<16x1xf32>
    %cst_104 = arith.constant 2.500000e-02 : f32
    %272 = vector.broadcast %cst_104 : f32 to vector<16x1xf32>
    %273 = arith.mulf %271, %272 : vector<16x1xf32>
    %cst_105 = arith.constant 9.99999974E-5 : f32
    %274 = vector.broadcast %cst_105 : f32 to vector<16x1xf32>
    %275 = arith.addf %273, %274 : vector<16x1xf32>
    %276 = math.rsqrt %275 : vector<16x1xf32>
    %277 = vector.broadcast %276 : vector<16x1xf32> to vector<16x128xf32>
    %278 = arith.mulf %268, %277 : vector<16x128xf32>
    %279 = vector.broadcast %257 : vector<1x128xf32> to vector<16x128xf32>
    %280 = arith.mulf %278, %279 : vector<16x128xf32>
    %281 = vector.broadcast %258 : vector<1x128xf32> to vector<16x128xf32>
    %282 = arith.addf %280, %281 : vector<16x128xf32>
    %283 = vector.broadcast %9 : vector<16x1xf32> to vector<16x128xf32>
    %284 = arith.mulf %282, %283 : vector<16x128xf32>
    %285 = vector.extract_strided_slice %0 {offsets = [16, 0], sizes = [1, 128], strides = [1, 1]} : vector<34x128xf32> to vector<1x128xf32>
    %cst_106 = arith.constant 0.000000e+00 : f32
    %286 = vector.broadcast %cst_106 : f32 to vector<1x128xf32>
    %287 = tpu.concatenate %286, %284, %286 in 0 : vector<1x128xf32>, vector<16x128xf32>, vector<1x128xf32> -> vector<18x128xf32>
    %cst_107 = arith.constant 0.000000e+00 : f32
    %288 = vector.broadcast %cst_107 : f32 to vector<16x128xf32>
    %289 = vector.extract_strided_slice %287 {offsets = [0, 0], sizes = [16, 128], strides = [1, 1]} : vector<18x128xf32> to vector<16x128xf32>
    %290 = arith.truncf %289 : vector<16x128xf32> to vector<16x128xbf16>
    %c0_108 = arith.constant 0 : index
    %c0_109 = arith.constant 0 : index
    %c0_110 = arith.constant 0 : index
    %c0_111 = arith.constant 0 : index
    %291 = vector.load %arg9[%c0_108, %c0_109, %c0_110, %c0_111] : memref<2x3x128x128xbf16, #tpu.memory_space<vmem>>, vector<1x1x128x128xbf16>
    %292 = vector.shape_cast %291 : vector<1x1x128x128xbf16> to vector<128x128xbf16>
    %cst_112 = arith.constant dense<0.000000e+00> : vector<16x128xf32>
    %293 = tpu.matmul %290, %292, %cst_112 {dimension_numbers = #tpu.dot_dimension_numbers<[1], [0], [0], [1], [0, 0, 1, 1], [], []>} : vector<16x128xbf16>, vector<128x128xbf16>, vector<16x128xf32> -> vector<16x128xf32>
    %294 = arith.addf %288, %293 : vector<16x128xf32>
    %295 = vector.extract_strided_slice %287 {offsets = [1, 0], sizes = [16, 128], strides = [1, 1]} : vector<18x128xf32> to vector<16x128xf32>
    %296 = arith.truncf %295 : vector<16x128xf32> to vector<16x128xbf16>
    %c0_113 = arith.constant 0 : index
    %c1_114 = arith.constant 1 : index
    %c0_115 = arith.constant 0 : index
    %c0_116 = arith.constant 0 : index
    %297 = vector.load %arg9[%c0_113, %c1_114, %c0_115, %c0_116] : memref<2x3x128x128xbf16, #tpu.memory_space<vmem>>, vector<1x1x128x128xbf16>
    %298 = vector.shape_cast %297 : vector<1x1x128x128xbf16> to vector<128x128xbf16>
    %cst_117 = arith.constant dense<0.000000e+00> : vector<16x128xf32>
    %299 = tpu.matmul %296, %298, %cst_117 {dimension_numbers = #tpu.dot_dimension_numbers<[1], [0], [0], [1], [0, 0, 1, 1], [], []>} : vector<16x128xbf16>, vector<128x128xbf16>, vector<16x128xf32> -> vector<16x128xf32>
    %300 = arith.addf %294, %299 : vector<16x128xf32>
    %301 = vector.extract_strided_slice %287 {offsets = [2, 0], sizes = [16, 128], strides = [1, 1]} : vector<18x128xf32> to vector<16x128xf32>
    %302 = arith.truncf %301 : vector<16x128xf32> to vector<16x128xbf16>
    %c0_118 = arith.constant 0 : index
    %c2_119 = arith.constant 2 : index
    %c0_120 = arith.constant 0 : index
    %c0_121 = arith.constant 0 : index
    %303 = vector.load %arg9[%c0_118, %c2_119, %c0_120, %c0_121] : memref<2x3x128x128xbf16, #tpu.memory_space<vmem>>, vector<1x1x128x128xbf16>
    %304 = vector.shape_cast %303 : vector<1x1x128x128xbf16> to vector<128x128xbf16>
    %cst_122 = arith.constant dense<0.000000e+00> : vector<16x128xf32>
    %305 = tpu.matmul %302, %304, %cst_122 {dimension_numbers = #tpu.dot_dimension_numbers<[1], [0], [0], [1], [0, 0, 1, 1], [], []>} : vector<16x128xbf16>, vector<128x128xbf16>, vector<16x128xf32> -> vector<16x128xf32>
    %306 = arith.addf %300, %305 : vector<16x128xf32>
    %307 = vector.broadcast %285 : vector<1x128xf32> to vector<16x128xf32>
    %308 = arith.addf %306, %307 : vector<16x128xf32>
    %cst_123 = arith.constant 0.000000e+00 : f32
    %309 = vector.broadcast %cst_123 : f32 to vector<16x128xf32>
    %310 = arith.maximumf %308, %309 : vector<16x128xf32>
    %311 = vector.broadcast %9 : vector<16x1xf32> to vector<16x128xf32>
    %312 = arith.mulf %310, %311 : vector<16x128xf32>
    %313 = vector.extract_strided_slice %0 {offsets = [17, 0], sizes = [1, 128], strides = [1, 1]} : vector<34x128xf32> to vector<1x128xf32>
    %cst_124 = arith.constant 0.000000e+00 : f32
    %314 = vector.broadcast %cst_124 : f32 to vector<1x128xf32>
    %315 = tpu.concatenate %314, %312, %314 in 0 : vector<1x128xf32>, vector<16x128xf32>, vector<1x128xf32> -> vector<18x128xf32>
    %cst_125 = arith.constant 0.000000e+00 : f32
    %316 = vector.broadcast %cst_125 : f32 to vector<16x128xf32>
    %317 = vector.extract_strided_slice %315 {offsets = [0, 0], sizes = [16, 128], strides = [1, 1]} : vector<18x128xf32> to vector<16x128xf32>
    %318 = arith.truncf %317 : vector<16x128xf32> to vector<16x128xbf16>
    %c0_126 = arith.constant 0 : index
    %c0_127 = arith.constant 0 : index
    %c0_128 = arith.constant 0 : index
    %c0_129 = arith.constant 0 : index
    %319 = vector.load %arg10[%c0_126, %c0_127, %c0_128, %c0_129] : memref<2x3x128x128xbf16, #tpu.memory_space<vmem>>, vector<1x1x128x128xbf16>
    %320 = vector.shape_cast %319 : vector<1x1x128x128xbf16> to vector<128x128xbf16>
    %cst_130 = arith.constant dense<0.000000e+00> : vector<16x128xf32>
    %321 = tpu.matmul %318, %320, %cst_130 {dimension_numbers = #tpu.dot_dimension_numbers<[1], [0], [0], [1], [0, 0, 1, 1], [], []>} : vector<16x128xbf16>, vector<128x128xbf16>, vector<16x128xf32> -> vector<16x128xf32>
    %322 = arith.addf %316, %321 : vector<16x128xf32>
    %323 = vector.extract_strided_slice %315 {offsets = [1, 0], sizes = [16, 128], strides = [1, 1]} : vector<18x128xf32> to vector<16x128xf32>
    %324 = arith.truncf %323 : vector<16x128xf32> to vector<16x128xbf16>
    %c0_131 = arith.constant 0 : index
    %c1_132 = arith.constant 1 : index
    %c0_133 = arith.constant 0 : index
    %c0_134 = arith.constant 0 : index
    %325 = vector.load %arg10[%c0_131, %c1_132, %c0_133, %c0_134] : memref<2x3x128x128xbf16, #tpu.memory_space<vmem>>, vector<1x1x128x128xbf16>
    %326 = vector.shape_cast %325 : vector<1x1x128x128xbf16> to vector<128x128xbf16>
    %cst_135 = arith.constant dense<0.000000e+00> : vector<16x128xf32>
    %327 = tpu.matmul %324, %326, %cst_135 {dimension_numbers = #tpu.dot_dimension_numbers<[1], [0], [0], [1], [0, 0, 1, 1], [], []>} : vector<16x128xbf16>, vector<128x128xbf16>, vector<16x128xf32> -> vector<16x128xf32>
    %328 = arith.addf %322, %327 : vector<16x128xf32>
    %329 = vector.extract_strided_slice %315 {offsets = [2, 0], sizes = [16, 128], strides = [1, 1]} : vector<18x128xf32> to vector<16x128xf32>
    %330 = arith.truncf %329 : vector<16x128xf32> to vector<16x128xbf16>
    %c0_136 = arith.constant 0 : index
    %c2_137 = arith.constant 2 : index
    %c0_138 = arith.constant 0 : index
    %c0_139 = arith.constant 0 : index
    %331 = vector.load %arg10[%c0_136, %c2_137, %c0_138, %c0_139] : memref<2x3x128x128xbf16, #tpu.memory_space<vmem>>, vector<1x1x128x128xbf16>
    %332 = vector.shape_cast %331 : vector<1x1x128x128xbf16> to vector<128x128xbf16>
    %cst_140 = arith.constant dense<0.000000e+00> : vector<16x128xf32>
    %333 = tpu.matmul %330, %332, %cst_140 {dimension_numbers = #tpu.dot_dimension_numbers<[1], [0], [0], [1], [0, 0, 1, 1], [], []>} : vector<16x128xbf16>, vector<128x128xbf16>, vector<16x128xf32> -> vector<16x128xf32>
    %334 = arith.addf %328, %333 : vector<16x128xf32>
    %335 = vector.broadcast %313 : vector<1x128xf32> to vector<16x128xf32>
    %336 = arith.addf %334, %335 : vector<16x128xf32>
    %337 = vector.broadcast %9 : vector<16x1xf32> to vector<16x128xf32>
    %338 = arith.mulf %336, %337 : vector<16x128xf32>
    %339 = arith.addf %282, %338 : vector<16x128xf32>
    %340 = vector.extract_strided_slice %0 {offsets = [18, 0], sizes = [1, 128], strides = [1, 1]} : vector<34x128xf32> to vector<1x128xf32>
    %341 = vector.extract_strided_slice %0 {offsets = [19, 0], sizes = [1, 128], strides = [1, 1]} : vector<34x128xf32> to vector<1x128xf32>
    %342 = vector.broadcast %24 : vector<1x128xf32> to vector<16x128xf32>
    %343 = arith.mulf %339, %342 : vector<16x128xf32>
    %cst_141 = arith.constant dense<0.000000e+00> : vector<16xf32>
    %344 = vector.multi_reduction <add>, %343, %cst_141 [1] : vector<16x128xf32> to vector<16xf32>
    %345 = vector.shape_cast %344 : vector<16xf32> to vector<16x1xf32>
    %cst_142 = arith.constant 2.500000e-02 : f32
    %346 = vector.broadcast %cst_142 : f32 to vector<16x1xf32>
    %347 = arith.mulf %345, %346 : vector<16x1xf32>
    %348 = vector.broadcast %347 : vector<16x1xf32> to vector<16x128xf32>
    %349 = arith.subf %339, %348 : vector<16x128xf32>
    %350 = vector.broadcast %24 : vector<1x128xf32> to vector<16x128xf32>
    %351 = arith.mulf %349, %350 : vector<16x128xf32>
    %352 = arith.mulf %351, %351 : vector<16x128xf32>
    %cst_143 = arith.constant dense<0.000000e+00> : vector<16xf32>
    %353 = vector.multi_reduction <add>, %352, %cst_143 [1] : vector<16x128xf32> to vector<16xf32>
    %354 = vector.shape_cast %353 : vector<16xf32> to vector<16x1xf32>
    %cst_144 = arith.constant 2.500000e-02 : f32
    %355 = vector.broadcast %cst_144 : f32 to vector<16x1xf32>
    %356 = arith.mulf %354, %355 : vector<16x1xf32>
    %cst_145 = arith.constant 9.99999974E-5 : f32
    %357 = vector.broadcast %cst_145 : f32 to vector<16x1xf32>
    %358 = arith.addf %356, %357 : vector<16x1xf32>
    %359 = math.rsqrt %358 : vector<16x1xf32>
    %360 = vector.broadcast %359 : vector<16x1xf32> to vector<16x128xf32>
    %361 = arith.mulf %351, %360 : vector<16x128xf32>
    %362 = vector.broadcast %340 : vector<1x128xf32> to vector<16x128xf32>
    %363 = arith.mulf %361, %362 : vector<16x128xf32>
    %364 = vector.broadcast %341 : vector<1x128xf32> to vector<16x128xf32>
    %365 = arith.addf %363, %364 : vector<16x128xf32>
    %366 = vector.broadcast %9 : vector<16x1xf32> to vector<16x128xf32>
    %367 = arith.mulf %365, %366 : vector<16x128xf32>
    %368 = arith.truncf %367 : vector<16x128xf32> to vector<16x128xbf16>
    %c1_146 = arith.constant 1 : index
    %c0_147 = arith.constant 0 : index
    %c0_148 = arith.constant 0 : index
    %369 = vector.load %arg7[%c1_146, %c0_147, %c0_148] : memref<2x128x768xbf16, #tpu.memory_space<vmem>>, vector<1x128x768xbf16>
    %370 = vector.shape_cast %369 : vector<1x128x768xbf16> to vector<128x768xbf16>
    %cst_149 = arith.constant dense<0.000000e+00> : vector<16x768xf32>
    %371 = tpu.matmul %368, %370, %cst_149 {dimension_numbers = #tpu.dot_dimension_numbers<[1], [0], [0], [1], [0, 0, 1, 1], [], []>} : vector<16x128xbf16>, vector<128x768xbf16>, vector<16x768xf32> -> vector<16x768xf32>
    %cst_150 = arith.constant 0.000000e+00 : f32
    %372 = vector.broadcast %cst_150 : f32 to vector<16x128xf32>
    %373 = vector.extract_strided_slice %371 {offsets = [0, 0], sizes = [16, 128], strides = [1, 1]} : vector<16x768xf32> to vector<16x128xf32>
    %374 = vector.extract_strided_slice %0 {offsets = [20, 0], sizes = [1, 128], strides = [1, 1]} : vector<34x128xf32> to vector<1x128xf32>
    %375 = vector.broadcast %374 : vector<1x128xf32> to vector<16x128xf32>
    %376 = arith.addf %373, %375 : vector<16x128xf32>
    %377 = vector.extract_strided_slice %371 {offsets = [0, 256], sizes = [16, 128], strides = [1, 1]} : vector<16x768xf32> to vector<16x128xf32>
    %378 = vector.extract_strided_slice %0 {offsets = [21, 0], sizes = [1, 128], strides = [1, 1]} : vector<34x128xf32> to vector<1x128xf32>
    %379 = vector.broadcast %378 : vector<1x128xf32> to vector<16x128xf32>
    %380 = arith.addf %377, %379 : vector<16x128xf32>
    %381 = vector.extract_strided_slice %371 {offsets = [0, 512], sizes = [16, 128], strides = [1, 1]} : vector<16x768xf32> to vector<16x128xf32>
    %382 = vector.extract_strided_slice %0 {offsets = [22, 0], sizes = [1, 128], strides = [1, 1]} : vector<34x128xf32> to vector<1x128xf32>
    %383 = vector.broadcast %382 : vector<1x128xf32> to vector<16x128xf32>
    %384 = arith.addf %381, %383 : vector<16x128xf32>
    %385 = arith.truncf %376 : vector<16x128xf32> to vector<16x128xbf16>
    %386 = arith.truncf %380 : vector<16x128xf32> to vector<16x128xbf16>
    %cst_151 = arith.constant dense<0.000000e+00> : vector<16x16xf32>
    %387 = tpu.matmul %385, %386, %cst_151 {dimension_numbers = #tpu.dot_dimension_numbers<[1], [1], [0], [0], [0, 0, 1, 0], [], []>} : vector<16x128xbf16>, vector<16x128xbf16>, vector<16x16xf32> -> vector<16x16xf32>
    %cst_152 = arith.constant 0.223606795 : f32
    %388 = vector.broadcast %cst_152 : f32 to vector<16x16xf32>
    %389 = arith.mulf %387, %388 : vector<16x16xf32>
    %cst_153 = arith.constant -1.000000e+04 : f32
    %390 = vector.broadcast %cst_153 : f32 to vector<16x16xf32>
    %391 = arith.select %14, %389, %390 : vector<16x16xi1>, vector<16x16xf32>
    %cst_154 = arith.constant dense<0xFF800000> : vector<16xf32>
    %392 = vector.multi_reduction <maximumf>, %391, %cst_154 [1] : vector<16x16xf32> to vector<16xf32>
    %393 = vector.shape_cast %392 : vector<16xf32> to vector<16x1xf32>
    %394 = vector.broadcast %393 : vector<16x1xf32> to vector<16x16xf32>
    %395 = arith.subf %391, %394 : vector<16x16xf32>
    %396 = math.exp %395 : vector<16x16xf32>
    %cst_155 = arith.constant dense<0.000000e+00> : vector<16xf32>
    %397 = vector.multi_reduction <add>, %396, %cst_155 [1] : vector<16x16xf32> to vector<16xf32>
    %398 = vector.shape_cast %397 : vector<16xf32> to vector<16x1xf32>
    %399 = tpu.reciprocal %398 {approx = true} : vector<16x1xf32> -> vector<16x1xf32>
    %400 = vector.broadcast %399 : vector<16x1xf32> to vector<16x16xf32>
    %401 = arith.mulf %396, %400 : vector<16x16xf32>
    %402 = arith.truncf %401 : vector<16x16xf32> to vector<16x16xbf16>
    %403 = arith.truncf %384 : vector<16x128xf32> to vector<16x128xbf16>
    %cst_156 = arith.constant dense<0.000000e+00> : vector<16x128xf32>
    %404 = tpu.matmul %402, %403, %cst_156 {dimension_numbers = #tpu.dot_dimension_numbers<[1], [0], [0], [1], [0, 0, 1, 1], [], []>} : vector<16x16xbf16>, vector<16x128xbf16>, vector<16x128xf32> -> vector<16x128xf32>
    %405 = arith.truncf %404 : vector<16x128xf32> to vector<16x128xbf16>
    %c1_157 = arith.constant 1 : index
    %c0_158 = arith.constant 0 : index
    %c0_159 = arith.constant 0 : index
    %c0_160 = arith.constant 0 : index
    %406 = vector.load %arg8[%c1_157, %c0_158, %c0_159, %c0_160] : memref<2x2x128x128xbf16, #tpu.memory_space<vmem>>, vector<1x1x128x128xbf16>
    %407 = vector.shape_cast %406 : vector<1x1x128x128xbf16> to vector<128x128xbf16>
    %cst_161 = arith.constant dense<0.000000e+00> : vector<16x128xf32>
    %408 = tpu.matmul %405, %407, %cst_161 {dimension_numbers = #tpu.dot_dimension_numbers<[1], [0], [0], [1], [0, 0, 1, 1], [], []>} : vector<16x128xbf16>, vector<128x128xbf16>, vector<16x128xf32> -> vector<16x128xf32>
    %409 = arith.addf %372, %408 : vector<16x128xf32>
    %410 = vector.extract_strided_slice %371 {offsets = [0, 128], sizes = [16, 128], strides = [1, 1]} : vector<16x768xf32> to vector<16x128xf32>
    %411 = vector.extract_strided_slice %0 {offsets = [23, 0], sizes = [1, 128], strides = [1, 1]} : vector<34x128xf32> to vector<1x128xf32>
    %412 = vector.broadcast %411 : vector<1x128xf32> to vector<16x128xf32>
    %413 = arith.addf %410, %412 : vector<16x128xf32>
    %414 = vector.extract_strided_slice %371 {offsets = [0, 384], sizes = [16, 128], strides = [1, 1]} : vector<16x768xf32> to vector<16x128xf32>
    %415 = vector.extract_strided_slice %0 {offsets = [24, 0], sizes = [1, 128], strides = [1, 1]} : vector<34x128xf32> to vector<1x128xf32>
    %416 = vector.broadcast %415 : vector<1x128xf32> to vector<16x128xf32>
    %417 = arith.addf %414, %416 : vector<16x128xf32>
    %418 = vector.extract_strided_slice %371 {offsets = [0, 640], sizes = [16, 128], strides = [1, 1]} : vector<16x768xf32> to vector<16x128xf32>
    %419 = vector.extract_strided_slice %0 {offsets = [25, 0], sizes = [1, 128], strides = [1, 1]} : vector<34x128xf32> to vector<1x128xf32>
    %420 = vector.broadcast %419 : vector<1x128xf32> to vector<16x128xf32>
    %421 = arith.addf %418, %420 : vector<16x128xf32>
    %422 = arith.truncf %413 : vector<16x128xf32> to vector<16x128xbf16>
    %423 = arith.truncf %417 : vector<16x128xf32> to vector<16x128xbf16>
    %cst_162 = arith.constant dense<0.000000e+00> : vector<16x16xf32>
    %424 = tpu.matmul %422, %423, %cst_162 {dimension_numbers = #tpu.dot_dimension_numbers<[1], [1], [0], [0], [0, 0, 1, 0], [], []>} : vector<16x128xbf16>, vector<16x128xbf16>, vector<16x16xf32> -> vector<16x16xf32>
    %cst_163 = arith.constant 0.223606795 : f32
    %425 = vector.broadcast %cst_163 : f32 to vector<16x16xf32>
    %426 = arith.mulf %424, %425 : vector<16x16xf32>
    %cst_164 = arith.constant -1.000000e+04 : f32
    %427 = vector.broadcast %cst_164 : f32 to vector<16x16xf32>
    %428 = arith.select %14, %426, %427 : vector<16x16xi1>, vector<16x16xf32>
    %cst_165 = arith.constant dense<0xFF800000> : vector<16xf32>
    %429 = vector.multi_reduction <maximumf>, %428, %cst_165 [1] : vector<16x16xf32> to vector<16xf32>
    %430 = vector.shape_cast %429 : vector<16xf32> to vector<16x1xf32>
    %431 = vector.broadcast %430 : vector<16x1xf32> to vector<16x16xf32>
    %432 = arith.subf %428, %431 : vector<16x16xf32>
    %433 = math.exp %432 : vector<16x16xf32>
    %cst_166 = arith.constant dense<0.000000e+00> : vector<16xf32>
    %434 = vector.multi_reduction <add>, %433, %cst_166 [1] : vector<16x16xf32> to vector<16xf32>
    %435 = vector.shape_cast %434 : vector<16xf32> to vector<16x1xf32>
    %436 = tpu.reciprocal %435 {approx = true} : vector<16x1xf32> -> vector<16x1xf32>
    %437 = vector.broadcast %436 : vector<16x1xf32> to vector<16x16xf32>
    %438 = arith.mulf %433, %437 : vector<16x16xf32>
    %439 = arith.truncf %438 : vector<16x16xf32> to vector<16x16xbf16>
    %440 = arith.truncf %421 : vector<16x128xf32> to vector<16x128xbf16>
    %cst_167 = arith.constant dense<0.000000e+00> : vector<16x128xf32>
    %441 = tpu.matmul %439, %440, %cst_167 {dimension_numbers = #tpu.dot_dimension_numbers<[1], [0], [0], [1], [0, 0, 1, 1], [], []>} : vector<16x16xbf16>, vector<16x128xbf16>, vector<16x128xf32> -> vector<16x128xf32>
    %442 = arith.truncf %441 : vector<16x128xf32> to vector<16x128xbf16>
    %c1_168 = arith.constant 1 : index
    %c1_169 = arith.constant 1 : index
    %c0_170 = arith.constant 0 : index
    %c0_171 = arith.constant 0 : index
    %443 = vector.load %arg8[%c1_168, %c1_169, %c0_170, %c0_171] : memref<2x2x128x128xbf16, #tpu.memory_space<vmem>>, vector<1x1x128x128xbf16>
    %444 = vector.shape_cast %443 : vector<1x1x128x128xbf16> to vector<128x128xbf16>
    %cst_172 = arith.constant dense<0.000000e+00> : vector<16x128xf32>
    %445 = tpu.matmul %442, %444, %cst_172 {dimension_numbers = #tpu.dot_dimension_numbers<[1], [0], [0], [1], [0, 0, 1, 1], [], []>} : vector<16x128xbf16>, vector<128x128xbf16>, vector<16x128xf32> -> vector<16x128xf32>
    %446 = arith.addf %409, %445 : vector<16x128xf32>
    %447 = vector.extract_strided_slice %0 {offsets = [26, 0], sizes = [1, 128], strides = [1, 1]} : vector<34x128xf32> to vector<1x128xf32>
    %448 = vector.broadcast %447 : vector<1x128xf32> to vector<16x128xf32>
    %449 = arith.addf %446, %448 : vector<16x128xf32>
    %450 = arith.addf %367, %449 : vector<16x128xf32>
    %451 = vector.extract_strided_slice %0 {offsets = [27, 0], sizes = [1, 128], strides = [1, 1]} : vector<34x128xf32> to vector<1x128xf32>
    %452 = vector.extract_strided_slice %0 {offsets = [28, 0], sizes = [1, 128], strides = [1, 1]} : vector<34x128xf32> to vector<1x128xf32>
    %453 = vector.broadcast %24 : vector<1x128xf32> to vector<16x128xf32>
    %454 = arith.mulf %450, %453 : vector<16x128xf32>
    %cst_173 = arith.constant dense<0.000000e+00> : vector<16xf32>
    %455 = vector.multi_reduction <add>, %454, %cst_173 [1] : vector<16x128xf32> to vector<16xf32>
    %456 = vector.shape_cast %455 : vector<16xf32> to vector<16x1xf32>
    %cst_174 = arith.constant 2.500000e-02 : f32
    %457 = vector.broadcast %cst_174 : f32 to vector<16x1xf32>
    %458 = arith.mulf %456, %457 : vector<16x1xf32>
    %459 = vector.broadcast %458 : vector<16x1xf32> to vector<16x128xf32>
    %460 = arith.subf %450, %459 : vector<16x128xf32>
    %461 = vector.broadcast %24 : vector<1x128xf32> to vector<16x128xf32>
    %462 = arith.mulf %460, %461 : vector<16x128xf32>
    %463 = arith.mulf %462, %462 : vector<16x128xf32>
    %cst_175 = arith.constant dense<0.000000e+00> : vector<16xf32>
    %464 = vector.multi_reduction <add>, %463, %cst_175 [1] : vector<16x128xf32> to vector<16xf32>
    %465 = vector.shape_cast %464 : vector<16xf32> to vector<16x1xf32>
    %cst_176 = arith.constant 2.500000e-02 : f32
    %466 = vector.broadcast %cst_176 : f32 to vector<16x1xf32>
    %467 = arith.mulf %465, %466 : vector<16x1xf32>
    %cst_177 = arith.constant 9.99999974E-5 : f32
    %468 = vector.broadcast %cst_177 : f32 to vector<16x1xf32>
    %469 = arith.addf %467, %468 : vector<16x1xf32>
    %470 = math.rsqrt %469 : vector<16x1xf32>
    %471 = vector.broadcast %470 : vector<16x1xf32> to vector<16x128xf32>
    %472 = arith.mulf %462, %471 : vector<16x128xf32>
    %473 = vector.broadcast %451 : vector<1x128xf32> to vector<16x128xf32>
    %474 = arith.mulf %472, %473 : vector<16x128xf32>
    %475 = vector.broadcast %452 : vector<1x128xf32> to vector<16x128xf32>
    %476 = arith.addf %474, %475 : vector<16x128xf32>
    %477 = vector.broadcast %9 : vector<16x1xf32> to vector<16x128xf32>
    %478 = arith.mulf %476, %477 : vector<16x128xf32>
    %479 = vector.extract_strided_slice %0 {offsets = [29, 0], sizes = [1, 128], strides = [1, 1]} : vector<34x128xf32> to vector<1x128xf32>
    %cst_178 = arith.constant 0.000000e+00 : f32
    %480 = vector.broadcast %cst_178 : f32 to vector<1x128xf32>
    %481 = tpu.concatenate %480, %478, %480 in 0 : vector<1x128xf32>, vector<16x128xf32>, vector<1x128xf32> -> vector<18x128xf32>
    %cst_179 = arith.constant 0.000000e+00 : f32
    %482 = vector.broadcast %cst_179 : f32 to vector<16x128xf32>
    %483 = vector.extract_strided_slice %481 {offsets = [0, 0], sizes = [16, 128], strides = [1, 1]} : vector<18x128xf32> to vector<16x128xf32>
    %484 = arith.truncf %483 : vector<16x128xf32> to vector<16x128xbf16>
    %c1_180 = arith.constant 1 : index
    %c0_181 = arith.constant 0 : index
    %c0_182 = arith.constant 0 : index
    %c0_183 = arith.constant 0 : index
    %485 = vector.load %arg9[%c1_180, %c0_181, %c0_182, %c0_183] : memref<2x3x128x128xbf16, #tpu.memory_space<vmem>>, vector<1x1x128x128xbf16>
    %486 = vector.shape_cast %485 : vector<1x1x128x128xbf16> to vector<128x128xbf16>
    %cst_184 = arith.constant dense<0.000000e+00> : vector<16x128xf32>
    %487 = tpu.matmul %484, %486, %cst_184 {dimension_numbers = #tpu.dot_dimension_numbers<[1], [0], [0], [1], [0, 0, 1, 1], [], []>} : vector<16x128xbf16>, vector<128x128xbf16>, vector<16x128xf32> -> vector<16x128xf32>
    %488 = arith.addf %482, %487 : vector<16x128xf32>
    %489 = vector.extract_strided_slice %481 {offsets = [1, 0], sizes = [16, 128], strides = [1, 1]} : vector<18x128xf32> to vector<16x128xf32>
    %490 = arith.truncf %489 : vector<16x128xf32> to vector<16x128xbf16>
    %c1_185 = arith.constant 1 : index
    %c1_186 = arith.constant 1 : index
    %c0_187 = arith.constant 0 : index
    %c0_188 = arith.constant 0 : index
    %491 = vector.load %arg9[%c1_185, %c1_186, %c0_187, %c0_188] : memref<2x3x128x128xbf16, #tpu.memory_space<vmem>>, vector<1x1x128x128xbf16>
    %492 = vector.shape_cast %491 : vector<1x1x128x128xbf16> to vector<128x128xbf16>
    %cst_189 = arith.constant dense<0.000000e+00> : vector<16x128xf32>
    %493 = tpu.matmul %490, %492, %cst_189 {dimension_numbers = #tpu.dot_dimension_numbers<[1], [0], [0], [1], [0, 0, 1, 1], [], []>} : vector<16x128xbf16>, vector<128x128xbf16>, vector<16x128xf32> -> vector<16x128xf32>
    %494 = arith.addf %488, %493 : vector<16x128xf32>
    %495 = vector.extract_strided_slice %481 {offsets = [2, 0], sizes = [16, 128], strides = [1, 1]} : vector<18x128xf32> to vector<16x128xf32>
    %496 = arith.truncf %495 : vector<16x128xf32> to vector<16x128xbf16>
    %c1_190 = arith.constant 1 : index
    %c2_191 = arith.constant 2 : index
    %c0_192 = arith.constant 0 : index
    %c0_193 = arith.constant 0 : index
    %497 = vector.load %arg9[%c1_190, %c2_191, %c0_192, %c0_193] : memref<2x3x128x128xbf16, #tpu.memory_space<vmem>>, vector<1x1x128x128xbf16>
    %498 = vector.shape_cast %497 : vector<1x1x128x128xbf16> to vector<128x128xbf16>
    %cst_194 = arith.constant dense<0.000000e+00> : vector<16x128xf32>
    %499 = tpu.matmul %496, %498, %cst_194 {dimension_numbers = #tpu.dot_dimension_numbers<[1], [0], [0], [1], [0, 0, 1, 1], [], []>} : vector<16x128xbf16>, vector<128x128xbf16>, vector<16x128xf32> -> vector<16x128xf32>
    %500 = arith.addf %494, %499 : vector<16x128xf32>
    %501 = vector.broadcast %479 : vector<1x128xf32> to vector<16x128xf32>
    %502 = arith.addf %500, %501 : vector<16x128xf32>
    %cst_195 = arith.constant 0.000000e+00 : f32
    %503 = vector.broadcast %cst_195 : f32 to vector<16x128xf32>
    %504 = arith.maximumf %502, %503 : vector<16x128xf32>
    %505 = vector.broadcast %9 : vector<16x1xf32> to vector<16x128xf32>
    %506 = arith.mulf %504, %505 : vector<16x128xf32>
    %507 = vector.extract_strided_slice %0 {offsets = [30, 0], sizes = [1, 128], strides = [1, 1]} : vector<34x128xf32> to vector<1x128xf32>
    %cst_196 = arith.constant 0.000000e+00 : f32
    %508 = vector.broadcast %cst_196 : f32 to vector<1x128xf32>
    %509 = tpu.concatenate %508, %506, %508 in 0 : vector<1x128xf32>, vector<16x128xf32>, vector<1x128xf32> -> vector<18x128xf32>
    %cst_197 = arith.constant 0.000000e+00 : f32
    %510 = vector.broadcast %cst_197 : f32 to vector<16x128xf32>
    %511 = vector.extract_strided_slice %509 {offsets = [0, 0], sizes = [16, 128], strides = [1, 1]} : vector<18x128xf32> to vector<16x128xf32>
    %512 = arith.truncf %511 : vector<16x128xf32> to vector<16x128xbf16>
    %c1_198 = arith.constant 1 : index
    %c0_199 = arith.constant 0 : index
    %c0_200 = arith.constant 0 : index
    %c0_201 = arith.constant 0 : index
    %513 = vector.load %arg10[%c1_198, %c0_199, %c0_200, %c0_201] : memref<2x3x128x128xbf16, #tpu.memory_space<vmem>>, vector<1x1x128x128xbf16>
    %514 = vector.shape_cast %513 : vector<1x1x128x128xbf16> to vector<128x128xbf16>
    %cst_202 = arith.constant dense<0.000000e+00> : vector<16x128xf32>
    %515 = tpu.matmul %512, %514, %cst_202 {dimension_numbers = #tpu.dot_dimension_numbers<[1], [0], [0], [1], [0, 0, 1, 1], [], []>} : vector<16x128xbf16>, vector<128x128xbf16>, vector<16x128xf32> -> vector<16x128xf32>
    %516 = arith.addf %510, %515 : vector<16x128xf32>
    %517 = vector.extract_strided_slice %509 {offsets = [1, 0], sizes = [16, 128], strides = [1, 1]} : vector<18x128xf32> to vector<16x128xf32>
    %518 = arith.truncf %517 : vector<16x128xf32> to vector<16x128xbf16>
    %c1_203 = arith.constant 1 : index
    %c1_204 = arith.constant 1 : index
    %c0_205 = arith.constant 0 : index
    %c0_206 = arith.constant 0 : index
    %519 = vector.load %arg10[%c1_203, %c1_204, %c0_205, %c0_206] : memref<2x3x128x128xbf16, #tpu.memory_space<vmem>>, vector<1x1x128x128xbf16>
    %520 = vector.shape_cast %519 : vector<1x1x128x128xbf16> to vector<128x128xbf16>
    %cst_207 = arith.constant dense<0.000000e+00> : vector<16x128xf32>
    %521 = tpu.matmul %518, %520, %cst_207 {dimension_numbers = #tpu.dot_dimension_numbers<[1], [0], [0], [1], [0, 0, 1, 1], [], []>} : vector<16x128xbf16>, vector<128x128xbf16>, vector<16x128xf32> -> vector<16x128xf32>
    %522 = arith.addf %516, %521 : vector<16x128xf32>
    %523 = vector.extract_strided_slice %509 {offsets = [2, 0], sizes = [16, 128], strides = [1, 1]} : vector<18x128xf32> to vector<16x128xf32>
    %524 = arith.truncf %523 : vector<16x128xf32> to vector<16x128xbf16>
    %c1_208 = arith.constant 1 : index
    %c2_209 = arith.constant 2 : index
    %c0_210 = arith.constant 0 : index
    %c0_211 = arith.constant 0 : index
    %525 = vector.load %arg10[%c1_208, %c2_209, %c0_210, %c0_211] : memref<2x3x128x128xbf16, #tpu.memory_space<vmem>>, vector<1x1x128x128xbf16>
    %526 = vector.shape_cast %525 : vector<1x1x128x128xbf16> to vector<128x128xbf16>
    %cst_212 = arith.constant dense<0.000000e+00> : vector<16x128xf32>
    %527 = tpu.matmul %524, %526, %cst_212 {dimension_numbers = #tpu.dot_dimension_numbers<[1], [0], [0], [1], [0, 0, 1, 1], [], []>} : vector<16x128xbf16>, vector<128x128xbf16>, vector<16x128xf32> -> vector<16x128xf32>
    %528 = arith.addf %522, %527 : vector<16x128xf32>
    %529 = vector.broadcast %507 : vector<1x128xf32> to vector<16x128xf32>
    %530 = arith.addf %528, %529 : vector<16x128xf32>
    %531 = vector.broadcast %9 : vector<16x1xf32> to vector<16x128xf32>
    %532 = arith.mulf %530, %531 : vector<16x128xf32>
    %533 = arith.addf %476, %532 : vector<16x128xf32>
    %534 = vector.extract_strided_slice %0 {offsets = [31, 0], sizes = [1, 128], strides = [1, 1]} : vector<34x128xf32> to vector<1x128xf32>
    %535 = vector.extract_strided_slice %0 {offsets = [32, 0], sizes = [1, 128], strides = [1, 1]} : vector<34x128xf32> to vector<1x128xf32>
    %536 = vector.broadcast %24 : vector<1x128xf32> to vector<16x128xf32>
    %537 = arith.mulf %533, %536 : vector<16x128xf32>
    %cst_213 = arith.constant dense<0.000000e+00> : vector<16xf32>
    %538 = vector.multi_reduction <add>, %537, %cst_213 [1] : vector<16x128xf32> to vector<16xf32>
    %539 = vector.shape_cast %538 : vector<16xf32> to vector<16x1xf32>
    %cst_214 = arith.constant 2.500000e-02 : f32
    %540 = vector.broadcast %cst_214 : f32 to vector<16x1xf32>
    %541 = arith.mulf %539, %540 : vector<16x1xf32>
    %542 = vector.broadcast %541 : vector<16x1xf32> to vector<16x128xf32>
    %543 = arith.subf %533, %542 : vector<16x128xf32>
    %544 = vector.broadcast %24 : vector<1x128xf32> to vector<16x128xf32>
    %545 = arith.mulf %543, %544 : vector<16x128xf32>
    %546 = arith.mulf %545, %545 : vector<16x128xf32>
    %cst_215 = arith.constant dense<0.000000e+00> : vector<16xf32>
    %547 = vector.multi_reduction <add>, %546, %cst_215 [1] : vector<16x128xf32> to vector<16xf32>
    %548 = vector.shape_cast %547 : vector<16xf32> to vector<16x1xf32>
    %cst_216 = arith.constant 2.500000e-02 : f32
    %549 = vector.broadcast %cst_216 : f32 to vector<16x1xf32>
    %550 = arith.mulf %548, %549 : vector<16x1xf32>
    %cst_217 = arith.constant 9.99999974E-5 : f32
    %551 = vector.broadcast %cst_217 : f32 to vector<16x1xf32>
    %552 = arith.addf %550, %551 : vector<16x1xf32>
    %553 = math.rsqrt %552 : vector<16x1xf32>
    %554 = vector.broadcast %553 : vector<16x1xf32> to vector<16x128xf32>
    %555 = arith.mulf %545, %554 : vector<16x128xf32>
    %556 = vector.broadcast %534 : vector<1x128xf32> to vector<16x128xf32>
    %557 = arith.mulf %555, %556 : vector<16x128xf32>
    %558 = vector.broadcast %535 : vector<1x128xf32> to vector<16x128xf32>
    %559 = arith.addf %557, %558 : vector<16x128xf32>
    %560 = vector.broadcast %9 : vector<16x1xf32> to vector<16x128xf32>
    %561 = arith.mulf %559, %560 : vector<16x128xf32>
    %562 = arith.truncf %561 : vector<16x128xf32> to vector<16x128xbf16>
    %c0_218 = arith.constant 0 : index
    %c0_219 = arith.constant 0 : index
    %563 = vector.load %arg11[%c0_218, %c0_219] : memref<128x128xbf16, #tpu.memory_space<vmem>>, vector<128x128xbf16>
    %cst_220 = arith.constant dense<0.000000e+00> : vector<16x128xf32>
    %564 = tpu.matmul %562, %563, %cst_220 {dimension_numbers = #tpu.dot_dimension_numbers<[1], [0], [0], [1], [0, 0, 1, 1], [], []>} : vector<16x128xbf16>, vector<128x128xbf16>, vector<16x128xf32> -> vector<16x128xf32>
    %565 = vector.extract_strided_slice %0 {offsets = [33, 0], sizes = [1, 128], strides = [1, 1]} : vector<34x128xf32> to vector<1x128xf32>
    %566 = vector.broadcast %565 : vector<1x128xf32> to vector<16x128xf32>
    %567 = arith.addf %564, %566 : vector<16x128xf32>
    %568 = vector.broadcast %9 : vector<16x1xf32> to vector<16x128xf32>
    %569 = arith.mulf %567, %568 : vector<16x128xf32>
    %c0_221 = arith.constant 0 : index
    %c0_222 = arith.constant 0 : index
    %c0_223 = arith.constant 0 : index
    %570 = vector.load %arg12[%c0_221, %c0_222, %c0_223] : memref<1x16x128xf32, #tpu.memory_space<vmem>>, vector<1x16x128xf32>
    %571 = vector.shape_cast %570 : vector<1x16x128xf32> to vector<16x128xf32>
    %572 = vector.shape_cast %569 : vector<16x128xf32> to vector<1x16x128xf32>
    tpu.vector_store %arg12[%c0_221, %c0_222, %c0_223], %572 {strides = array<i32>} : memref<1x16x128xf32, #tpu.memory_space<vmem>>, vector<1x16x128xf32>,
    return
  }
  func.func @transform_0(%arg0: i32) -> (i32, i32, i32) {
    %c0_i32 = arith.constant 0 : i32
    %c0_i32_0 = arith.constant 0 : i32
    %c0_i32_1 = arith.constant 0 : i32
    return %arg0, %c0_i32, %c0_i32_0 : i32, i32, i32
  }
  func.func @transform_1(%arg0: i32) -> (i32, i32, i32) {
    %c0_i32 = arith.constant 0 : i32
    %c0_i32_0 = arith.constant 0 : i32
    %c0_i32_1 = arith.constant 0 : i32
    return %arg0, %c0_i32, %c0_i32_0 : i32, i32, i32
  }
  func.func @transform_2(%arg0: i32) -> (i32, i32, i32) {
    %c0_i32 = arith.constant 0 : i32
    %c0_i32_0 = arith.constant 0 : i32
    %c0_i32_1 = arith.constant 0 : i32
    return %arg0, %c0_i32, %c0_i32_0 : i32, i32, i32
  }
  func.func @transform_3(%arg0: i32) -> (i32, i32) {
    %c0_i32 = arith.constant 0 : i32
    %c0_i32_0 = arith.constant 0 : i32
    %c0_i32_1 = arith.constant 0 : i32
    return %c0_i32, %c0_i32_0 : i32, i32
  }
  func.func @transform_4(%arg0: i32) -> (i32, i32, i32, i32) {
    %c0_i32 = arith.constant 0 : i32
    %c0_i32_0 = arith.constant 0 : i32
    %c0_i32_1 = arith.constant 0 : i32
    %c0_i32_2 = arith.constant 0 : i32
    %c0_i32_3 = arith.constant 0 : i32
    return %c0_i32, %c0_i32_0, %c0_i32_1, %c0_i32_2 : i32, i32, i32, i32
  }
  func.func @transform_5(%arg0: i32) -> (i32, i32) {
    %c0_i32 = arith.constant 0 : i32
    %c0_i32_0 = arith.constant 0 : i32
    %c0_i32_1 = arith.constant 0 : i32
    return %c0_i32, %c0_i32_0 : i32, i32
  }
  func.func @transform_6(%arg0: i32) -> (i32, i32, i32) {
    %c0_i32 = arith.constant 0 : i32
    %c0_i32_0 = arith.constant 0 : i32
    %c0_i32_1 = arith.constant 0 : i32
    %c0_i32_2 = arith.constant 0 : i32
    return %c0_i32, %c0_i32_0, %c0_i32_1 : i32, i32, i32
  }
  func.func @transform_7(%arg0: i32) -> (i32, i32, i32, i32) {
    %c0_i32 = arith.constant 0 : i32
    %c0_i32_0 = arith.constant 0 : i32
    %c0_i32_1 = arith.constant 0 : i32
    %c0_i32_2 = arith.constant 0 : i32
    %c0_i32_3 = arith.constant 0 : i32
    return %c0_i32, %c0_i32_0, %c0_i32_1, %c0_i32_2 : i32, i32, i32, i32
  }
  func.func @transform_8(%arg0: i32) -> (i32, i32, i32, i32) {
    %c0_i32 = arith.constant 0 : i32
    %c0_i32_0 = arith.constant 0 : i32
    %c0_i32_1 = arith.constant 0 : i32
    %c0_i32_2 = arith.constant 0 : i32
    %c0_i32_3 = arith.constant 0 : i32
    return %c0_i32, %c0_i32_0, %c0_i32_1, %c0_i32_2 : i32, i32, i32, i32
  }
  func.func @transform_9(%arg0: i32) -> (i32, i32, i32, i32) {
    %c0_i32 = arith.constant 0 : i32
    %c0_i32_0 = arith.constant 0 : i32
    %c0_i32_1 = arith.constant 0 : i32
    %c0_i32_2 = arith.constant 0 : i32
    %c0_i32_3 = arith.constant 0 : i32
    return %c0_i32, %c0_i32_0, %c0_i32_1, %c0_i32_2 : i32, i32, i32, i32
  }
  func.func @transform_10(%arg0: i32) -> (i32, i32) {
    %c0_i32 = arith.constant 0 : i32
    %c0_i32_0 = arith.constant 0 : i32
    %c0_i32_1 = arith.constant 0 : i32
    return %c0_i32, %c0_i32_0 : i32, i32
  }
  func.func @transform_11(%arg0: i32) -> (i32, i32, i32) {
    %c0_i32 = arith.constant 0 : i32
    %c0_i32_0 = arith.constant 0 : i32
    %c0_i32_1 = arith.constant 0 : i32
    return %arg0, %c0_i32, %c0_i32_0 : i32, i32, i32
  }
}

</mosaic_0001>

<llo_original>
// kernel: tpu_custom_call.1
$region0: #{tpu_custom_call.1}
  #allocation0 [shape = 'u32[]', space=smem, size = 0x4, offset = 0x4, fixed_abs, tag = 'smem constant byte address 0x4 - core index']
  #allocation1 [shape = 'u32[144,128]{1,0:T(1,128)}', space=vmem, size = 0x12000, scoped, tag = 'internal scratch']
  %s0 = inlined_call_operand.vmem [shape: s32[2,1,1], index: 0, kind: input, shape index: {}]
  %s1 = inlined_call_operand.hbm [shape: f32[2,16,128], index: 1, kind: input, shape index: {}]
  %s2 = inlined_call_operand.vmem [shape: f32[2,1,128], index: 2, kind: input, shape index: {}]
  %s3 = inlined_call_operand.hbm [shape: f32[34,128], index: 3, kind: input, shape index: {}]
  %s4 = inlined_call_operand.hbm [shape: bf16[2,5,128,128], index: 4, kind: input, shape index: {}]
  %s5 = inlined_call_operand.hbm [shape: bf16[128,128], index: 5, kind: input, shape index: {}]
  %s6 = inlined_call_operand.hbm [shape: bf16[2,128,768], index: 6, kind: input, shape index: {}]
  %s7 = inlined_call_operand.hbm [shape: bf16[2,2,128,128], index: 7, kind: input, shape index: {}]
  %s8 = inlined_call_operand.hbm [shape: bf16[2,3,128,128], index: 8, kind: input, shape index: {}]
  %s9 = inlined_call_operand.hbm [shape: bf16[2,3,128,128], index: 9, kind: input, shape index: {}]
  %s10 = inlined_call_operand.hbm [shape: bf16[128,128], index: 10, kind: input, shape index: {}]
  %s11 = inlined_call_operand.hbm [shape: f32[2,16,128], index: 11, kind: output, shape index: {}]
  %s12 = sld [smem:[#allocation0]]
  $region113: #{tpu_custom_call.1} parent=0
    _
  %s14 = ssub.s32 1, %s12
  %s15 = scalar_select 0, %s14, %s12
  $region1: #{tpu_custom_call.1} parent=0
    #allocation2 [shape = 'u8[16384]{0}', space=vmem, size = 0x4000, scoped, tag = 'input window, operand 1']
    #allocation3 [shape = 's32[2]{0}', space=sflag, size = 0x8, scoped, tag = 'scoped memory for tpu_custom_call.1']
    #allocation4 [shape = 's32[2]{0}', space=sflag, size = 0x8, scoped, tag = 'scoped memory for tpu_custom_call.1']
    #allocation5 [shape = 'u8[20480]{0}', space=vmem, size = 0x5000, scoped, tag = 'input window, operand 3, single buffered']
    #allocation6 [shape = 's32[1]{0}', space=sflag, size = 0x4, scoped, tag = 'scoped memory for tpu_custom_call.1']
    #allocation7 [shape = 'u8[327680]{0}', space=vmem, size = 0x50000, scoped, tag = 'input window, operand 4, single buffered']
    #allocation8 [shape = 'u8[32768]{0}', space=vmem, size = 0x8000, scoped, tag = 'input window, operand 5, single buffered']
    #allocation9 [shape = 's32[1]{0}', space=sflag, size = 0x4, scoped, tag = 'scoped memory for tpu_custom_call.1']
    #allocation10 [shape = 'u8[393216]{0}', space=vmem, size = 0x60000, scoped, tag = 'input window, operand 6, single buffered']
    #allocation11 [shape = 'u8[131072]{0}', space=vmem, size = 0x20000, scoped, tag = 'input window, operand 7, single buffered']
    #allocation12 [shape = 's32[1]{0}', space=sflag, size = 0x4, scoped, tag = 'scoped memory for tpu_custom_call.1']
    #allocation13 [shape = 'u8[196608]{0}', space=vmem, size = 0x30000, scoped, tag = 'input window, operand 8, single buffered']
    #allocation14 [shape = 'u8[196608]{0}', space=vmem, size = 0x30000, scoped, tag = 'input window, operand 9, single buffered']
    #allocation15 [shape = 's32[1]{0}', space=sflag, size = 0x4, scoped, tag = 'scoped memory for tpu_custom_call.1']
    #allocation16 [shape = 'u8[32768]{0}', space=vmem, size = 0x8000, scoped, tag = 'input window, operand 10, single buffered']
    #allocation17 [shape = 'u8[16384]{0}', space=vmem, size = 0x4000, scoped, tag = 'output window, operand 0']
    %16 = vsyncpa [#allocation3], 0
    %s17 = scalar_lea.sflag [#allocation3], 1
    %18 = vsyncpa %s17, 0
    %19 = vsyncpa [#allocation6], 0
    %20 = vsyncpa [#allocation9], 0
    %21 = vsyncpa [#allocation12], 0
    %22 = vsyncpa [#allocation15], 0
    %23 = vsyncpa [#allocation4], 0
    %s24 = scalar_lea.sflag [#allocation4], 1
    %25 = vsyncpa %s24, 0
    loop: start=0, step=1, limit=4
    $region2: #{tpu_custom_call.1} parent=1 // loop_pre_header
      _
    $region3: #{tpu_custom_call.1} parent=1 // loop_header
      %s27 = sphi 0, %s31
      %p28 = scmp.ge.s32.totalorder %s27, 4
      %s37 = sphi 0, %s39
      %s40 = sphi 0, %s37
      %s41 = sphi 0, %s40
      %s57 = sphi 0, %s41
      %s63 = sphi 0, %s65
      %s66 = sphi 0, %s63
      %s67 = sphi 0, %s66
      %s83 = sphi 0, %s67
      %s89 = sphi 0, %s91
      %s92 = sphi 0, %s89
      %s93 = sphi 0, %s92
      %s109 = sphi 0, %s93
      %s113 = sphi 0, %s113
      %s115 = sphi 0, %s113
      %s116 = sphi 0, %s115
      %s130 = sphi 0, %s116
      %s134 = sphi 0, %s134
      %s136 = sphi 0, %s134
      %s137 = sphi 0, %s136
      %s151 = sphi 0, %s137
      %s155 = sphi 0, %s155
      %s157 = sphi 0, %s155
      %s158 = sphi 0, %s157
      %s172 = sphi 0, %s158
      %s176 = sphi 0, %s176
      %s178 = sphi 0, %s176
      %s179 = sphi 0, %s178
      %s193 = sphi 0, %s179
      %s197 = sphi 0, %s197
      %s199 = sphi 0, %s197
      %s200 = sphi 0, %s199
      %s214 = sphi 0, %s200
      %s218 = sphi 0, %s218
      %s220 = sphi 0, %s218
      %s221 = sphi 0, %s220
      %s235 = sphi 0, %s221
      %s239 = sphi 0, %s239
      %s241 = sphi 0, %s239
      %s242 = sphi 0, %s241
      %s256 = sphi 0, %s242
      %s260 = sphi 0, %s260
      %s262 = sphi 0, %s260
      %s263 = sphi 0, %s262
      %s277 = sphi 0, %s263
      %s283 = sphi 0, %s285
      %s286 = sphi 0, %s283
      %s287 = sphi 0, %s286
      %s303 = sphi 0, %s287
    $region4: #{tpu_custom_call.1} parent=1 // loop_header_branch
      %30 = sbr.rel (%p28) target = $region8
    $region5: #{tpu_custom_call.1} parent=1 // loop_body
      %s32 = ssub.s32 %s27, 1
      %s33 = ssub.s32 %s27, 2
      %s34 = sadd.s32 %s27, 1
      %s35 = ssub.s32 %s27, %s34
      %p36 = scmp.eq.s32.totalorder %s35, 0
      %s38 = sadd.s32 %s37, 1
      %s39 = scalar_select %p36, %s37, %s38
      %p42 = pneg %p36
      %p43 = scmp.eq.s32.totalorder %s27, 1
      %p44 = por %p42, %p43
      %p45 = scmp.ne.s32.totalorder %s37, %s40
      %p46 = scmp.eq.s32.totalorder %s27, 0
      %p47 = por %p45, %p46
      %p48 = scmp.ne.s32.totalorder %s37, %s40
      %p49 = scmp.eq.s32.totalorder %s32, 1
      %p50 = por %p48, %p49
      %p51 = scmp.ne.s32.totalorder %s40, %s41
      %p52 = scmp.eq.s32.totalorder %s32, 0
      %p53 = por %p51, %p52
      %p54 = scmp.ne.s32.totalorder %s40, %s41
      %p55 = scmp.eq.s32.totalorder %s33, 1
      %p56 = por %p54, %p55
      %p58 = scmp.ne.s32.totalorder %s41, %s57
      %p59 = scmp.eq.s32.totalorder %s33, 0
      %p60 = por %p58, %p59
      %s61 = ssub.s32 %s27, %s34
      %p62 = scmp.eq.s32.totalorder %s61, 0
      %s64 = sadd.s32 %s63, 1
      %s65 = scalar_select %p62, %s63, %s64
      %p68 = pneg %p62
      %p69 = scmp.eq.s32.totalorder %s27, 1
      %p70 = por %p68, %p69
      %p71 = scmp.ne.s32.totalorder %s63, %s66
      %p72 = scmp.eq.s32.totalorder %s27, 0
      %p73 = por %p71, %p72
      %p74 = scmp.ne.s32.totalorder %s63, %s66
      %p75 = scmp.eq.s32.totalorder %s32, 1
      %p76 = por %p74, %p75
      %p77 = scmp.ne.s32.totalorder %s66, %s67
      %p78 = scmp.eq.s32.totalorder %s32, 0
      %p79 = por %p77, %p78
      %p80 = scmp.ne.s32.totalorder %s66, %s67
      %p81 = scmp.eq.s32.totalorder %s33, 1
      %p82 = por %p80, %p81
      %p84 = scmp.ne.s32.totalorder %s67, %s83
      %p85 = scmp.eq.s32.totalorder %s33, 0
      %p86 = por %p84, %p85
      %s87 = ssub.s32 %s27, %s34
      %p88 = scmp.eq.s32.totalorder %s87, 0
      %s90 = sadd.s32 %s89, 1
      %s91 = scalar_select %p88, %s89, %s90
      %p94 = pneg %p88
      %p95 = scmp.eq.s32.totalorder %s27, 1
      %p96 = por %p94, %p95
      %p97 = scmp.ne.s32.totalorder %s89, %s92
      %p98 = scmp.eq.s32.totalorder %s27, 0
      %p99 = por %p97, %p98
      %p100 = scmp.ne.s32.totalorder %s89, %s92
      %p101 = scmp.eq.s32.totalorder %s32, 1
      %p102 = por %p100, %p101
      %p103 = scmp.ne.s32.totalorder %s92, %s93
      %p104 = scmp.eq.s32.totalorder %s32, 0
      %p105 = por %p103, %p104
      %p106 = scmp.ne.s32.totalorder %s92, %s93
      %p107 = scmp.eq.s32.totalorder %s33, 1
      %p108 = por %p106, %p107
      %p110 = scmp.ne.s32.totalorder %s93, %s109
      %p111 = scmp.eq.s32.totalorder %s33, 0
      %p112 = por %p110, %p111
      %s114 = sadd.s32 %s113, 1
      %p117 = scmp.eq.s32.totalorder %s27, 1
      %p118 = scmp.ne.s32.totalorder %s113, %s115
      %p119 = scmp.eq.s32.totalorder %s27, 0
      %p120 = por %p118, %p119
      %p121 = scmp.ne.s32.totalorder %s113, %s115
      %p122 = scmp.eq.s32.totalorder %s32, 1
      %p123 = por %p121, %p122
      %p124 = scmp.ne.s32.totalorder %s115, %s116
      %p125 = scmp.eq.s32.totalorder %s32, 0
      %p126 = por %p124, %p125
      %p127 = scmp.ne.s32.totalorder %s115, %s116
      %p128 = scmp.eq.s32.totalorder %s33, 1
      %p129 = por %p127, %p128
      %p131 = scmp.ne.s32.totalorder %s116, %s130
      %p132 = scmp.eq.s32.totalorder %s33, 0
      %p133 = por %p131, %p132
      %s135 = sadd.s32 %s134, 1
      %p138 = scmp.eq.s32.totalorder %s27, 1
      %p139 = scmp.ne.s32.totalorder %s134, %s136
      %p140 = scmp.eq.s32.totalorder %s27, 0
      %p141 = por %p139, %p140
      %p142 = scmp.ne.s32.totalorder %s134, %s136
      %p143 = scmp.eq.s32.totalorder %s32, 1
      %p144 = por %p142, %p143
      %p145 = scmp.ne.s32.totalorder %s136, %s137
      %p146 = scmp.eq.s32.totalorder %s32, 0
      %p147 = por %p145, %p146
      %p148 = scmp.ne.s32.totalorder %s136, %s137
      %p149 = scmp.eq.s32.totalorder %s33, 1
      %p150 = por %p148, %p149
      %p152 = scmp.ne.s32.totalorder %s137, %s151
      %p153 = scmp.eq.s32.totalorder %s33, 0
      %p154 = por %p152, %p153
      %s156 = sadd.s32 %s155, 1
      %p159 = scmp.eq.s32.totalorder %s27, 1
      %p160 = scmp.ne.s32.totalorder %s155, %s157
      %p161 = scmp.eq.s32.totalorder %s27, 0
      %p162 = por %p160, %p161
      %p163 = scmp.ne.s32.totalorder %s155, %s157
      %p164 = scmp.eq.s32.totalorder %s32, 1
      %p165 = por %p163, %p164
      %p166 = scmp.ne.s32.totalorder %s157, %s158
      %p167 = scmp.eq.s32.totalorder %s32, 0
      %p168 = por %p166, %p167
      %p169 = scmp.ne.s32.totalorder %s157, %s158
      %p170 = scmp.eq.s32.totalorder %s33, 1
      %p171 = por %p169, %p170
      %p173 = scmp.ne.s32.totalorder %s158, %s172
      %p174 = scmp.eq.s32.totalorder %s33, 0
      %p175 = por %p173, %p174
      %s177 = sadd.s32 %s176, 1
      %p180 = scmp.eq.s32.totalorder %s27, 1
      %p181 = scmp.ne.s32.totalorder %s176, %s178
      %p182 = scmp.eq.s32.totalorder %s27, 0
      %p183 = por %p181, %p182
      %p184 = scmp.ne.s32.totalorder %s176, %s178
      %p185 = scmp.eq.s32.totalorder %s32, 1
      %p186 = por %p184, %p185
      %p187 = scmp.ne.s32.totalorder %s178, %s179
      %p188 = scmp.eq.s32.totalorder %s32, 0
      %p189 = por %p187, %p188
      %p190 = scmp.ne.s32.totalorder %s178, %s179
      %p191 = scmp.eq.s32.totalorder %s33, 1
      %p192 = por %p190, %p191
      %p194 = scmp.ne.s32.totalorder %s179, %s193
      %p195 = scmp.eq.s32.totalorder %s33, 0
      %p196 = por %p194, %p195
      %s198 = sadd.s32 %s197, 1
      %p201 = scmp.eq.s32.totalorder %s27, 1
      %p202 = scmp.ne.s32.totalorder %s197, %s199
      %p203 = scmp.eq.s32.totalorder %s27, 0
      %p204 = por %p202, %p203
      %p205 = scmp.ne.s32.totalorder %s197, %s199
      %p206 = scmp.eq.s32.totalorder %s32, 1
      %p207 = por %p205, %p206
      %p208 = scmp.ne.s32.totalorder %s199, %s200
      %p209 = scmp.eq.s32.totalorder %s32, 0
      %p210 = por %p208, %p209
      %p211 = scmp.ne.s32.totalorder %s199, %s200
      %p212 = scmp.eq.s32.totalorder %s33, 1
      %p213 = por %p211, %p212
      %p215 = scmp.ne.s32.totalorder %s200, %s214
      %p216 = scmp.eq.s32.totalorder %s33, 0
      %p217 = por %p215, %p216
      %s219 = sadd.s32 %s218, 1
      %p222 = scmp.eq.s32.totalorder %s27, 1
      %p223 = scmp.ne.s32.totalorder %s218, %s220
      %p224 = scmp.eq.s32.totalorder %s27, 0
      %p225 = por %p223, %p224
      %p226 = scmp.ne.s32.totalorder %s218, %s220
      %p227 = scmp.eq.s32.totalorder %s32, 1
      %p228 = por %p226, %p227
      %p229 = scmp.ne.s32.totalorder %s220, %s221
      %p230 = scmp.eq.s32.totalorder %s32, 0
      %p231 = por %p229, %p230
      %p232 = scmp.ne.s32.totalorder %s220, %s221
      %p233 = scmp.eq.s32.totalorder %s33, 1
      %p234 = por %p232, %p233
      %p236 = scmp.ne.s32.totalorder %s221, %s235
      %p237 = scmp.eq.s32.totalorder %s33, 0
      %p238 = por %p236, %p237
      %s240 = sadd.s32 %s239, 1
      %p243 = scmp.eq.s32.totalorder %s27, 1
      %p244 = scmp.ne.s32.totalorder %s239, %s241
      %p245 = scmp.eq.s32.totalorder %s27, 0
      %p246 = por %p244, %p245
      %p247 = scmp.ne.s32.totalorder %s239, %s241
      %p248 = scmp.eq.s32.totalorder %s32, 1
      %p249 = por %p247, %p248
      %p250 = scmp.ne.s32.totalorder %s241, %s242
      %p251 = scmp.eq.s32.totalorder %s32, 0
      %p252 = por %p250, %p251
      %p253 = scmp.ne.s32.totalorder %s241, %s242
      %p254 = scmp.eq.s32.totalorder %s33, 1
      %p255 = por %p253, %p254
      %p257 = scmp.ne.s32.totalorder %s242, %s256
      %p258 = scmp.eq.s32.totalorder %s33, 0
      %p259 = por %p257, %p258
      %s261 = sadd.s32 %s260, 1
      %p264 = scmp.eq.s32.totalorder %s27, 1
      %p265 = scmp.ne.s32.totalorder %s260, %s262
      %p266 = scmp.eq.s32.totalorder %s27, 0
      %p267 = por %p265, %p266
      %p268 = scmp.ne.s32.totalorder %s260, %s262
      %p269 = scmp.eq.s32.totalorder %s32, 1
      %p270 = por %p268, %p269
      %p271 = scmp.ne.s32.totalorder %s262, %s263
      %p272 = scmp.eq.s32.totalorder %s32, 0
      %p273 = por %p271, %p272
      %p274 = scmp.ne.s32.totalorder %s262, %s263
      %p275 = scmp.eq.s32.totalorder %s33, 1
      %p276 = por %p274, %p275
      %p278 = scmp.ne.s32.totalorder %s263, %s277
      %p279 = scmp.eq.s32.totalorder %s33, 0
      %p280 = por %p278, %p279
      %s281 = ssub.s32 %s27, %s34
      %p282 = scmp.eq.s32.totalorder %s281, 0
      %s284 = sadd.s32 %s283, 1
      %s285 = scalar_select %p282, %s283, %s284
      %p288 = pneg %p282
      %p289 = scmp.eq.s32.totalorder %s27, 1
      %p290 = por %p288, %p289
      %p291 = scmp.ne.s32.totalorder %s283, %s286
      %p292 = scmp.eq.s32.totalorder %s27, 0
      %p293 = por %p291, %p292
      %p294 = scmp.ne.s32.totalorder %s283, %s286
      %p295 = scmp.eq.s32.totalorder %s32, 1
      %p296 = por %p294, %p295
      %p297 = scmp.ne.s32.totalorder %s286, %s287
      %p298 = scmp.eq.s32.totalorder %s32, 0
      %p299 = por %p297, %p298
      %p300 = scmp.ne.s32.totalorder %s286, %s287
      %p301 = scmp.eq.s32.totalorder %s33, 1
      %p302 = por %p300, %p301
      %p304 = scmp.ne.s32.totalorder %s287, %s303
      %p305 = scmp.eq.s32.totalorder %s33, 0
      %p306 = por %p304, %p305
      %p307 = scmp.le.s32.totalorder 1, %s27
      %p308 = scmp.lt.s32.totalorder %s27, 3
      %p309 = pnand %p307, %p308
      %p310 = pneg %p309
      // Predicated region
      $region9: #{tpu_custom_call.1} parent=5 // pred_check
        _
      $region10: #{tpu_custom_call.1} parent=5 // pred_check_branch
        %312 = sbr.rel (%p309) target = $region12
      $region11: #{tpu_custom_call.1} parent=5 // pred_region
        %s313 = ssub.s32 %s27, 1
        // Predicated region
        $region13: #{tpu_custom_call.1} parent=11 // pred_check
          %p314 = pneg %p126
        $region14: #{tpu_custom_call.1} parent=11 // pred_check_branch
          %316 = sbr.rel (%p314) target = $region16
        $region15: #{tpu_custom_call.1} parent=11 // pred_region
          %s318 = ssub.s32 640, 640
          %319 = vsyncadd [#allocation6], %s318
          %s320 = sshll.u32 [#allocation5], 4
          %s321 = int_to_ptr.vmem [resolvable:$true] %s320
          %326 = dma.hbm_to_vmem [thread:$0]  %s3, 640, %s321, [#allocation6], 128, 128, 8
        $region16: #{tpu_custom_call.1} parent=11 // pred_fallthru
          _
        // Predicated region
        $region17: #{tpu_custom_call.1} parent=11 // pred_check
          %p327 = pneg %p147
        $region18: #{tpu_custom_call.1} parent=11 // pred_check_branch
          %329 = sbr.rel (%p327) target = $region20
        $region19: #{tpu_custom_call.1} parent=11 // pred_region
          %s331 = ssub.s32 10240, 10240
          %332 = vsyncadd [#allocation6], %s331
          %s333 = sshll.u32 [#allocation7], 4
          %s334 = int_to_ptr.vmem [resolvable:$true] %s333
          %339 = dma.hbm_to_vmem [thread:$0]  %s4, 10240, %s334, [#allocation6], 64, 64, 4
        $region20: #{tpu_custom_call.1} parent=11 // pred_fallthru
          _
        // Predicated region
        $region21: #{tpu_custom_call.1} parent=11 // pred_check
          %p340 = pneg %p168
        $region22: #{tpu_custom_call.1} parent=11 // pred_check_branch
          %342 = sbr.rel (%p340) target = $region24
        $region23: #{tpu_custom_call.1} parent=11 // pred_region
          %s344 = ssub.s32 1024, 1024
          %345 = vsyncadd [#allocation9], %s344
          %s346 = sshll.u32 [#allocation8], 4
          %s347 = int_to_ptr.vmem [resolvable:$true] %s346
          %352 = dma.hbm_to_vmem [thread:$0]  %s5, 1024, %s347, [#allocation9], 64, 64, 4
        $region24: #{tpu_custom_call.1} parent=11 // pred_fallthru
          _
        // Predicated region
        $region25: #{tpu_custom_call.1} parent=11 // pred_check
          %p353 = pneg %p189
        $region26: #{tpu_custom_call.1} parent=11 // pred_check_branch
          %355 = sbr.rel (%p353) target = $region28
        $region27: #{tpu_custom_call.1} parent=11 // pred_region
          %s357 = ssub.s32 12288, 12288
          %358 = vsyncadd [#allocation9], %s357
          %s359 = sshll.u32 [#allocation10], 4
          %s360 = int_to_ptr.vmem [resolvable:$true] %s359
          %365 = dma.hbm_to_vmem [thread:$0]  %s6, 12288, %s360, [#allocation9], 384, 384, 24
        $region28: #{tpu_custom_call.1} parent=11 // pred_fallthru
          _
        // Predicated region
        $region29: #{tpu_custom_call.1} parent=11 // pred_check
          %p366 = pneg %p210
        $region30: #{tpu_custom_call.1} parent=11 // pred_check_branch
          %368 = sbr.rel (%p366) target = $region32
        $region31: #{tpu_custom_call.1} parent=11 // pred_region
          %s370 = ssub.s32 4096, 4096
          %371 = vsyncadd [#allocation12], %s370
          %s372 = sshll.u32 [#allocation11], 4
          %s373 = int_to_ptr.vmem [resolvable:$true] %s372
          %378 = dma.hbm_to_vmem [thread:$0]  %s7, 4096, %s373, [#allocation12], 64, 64, 4
        $region32: #{tpu_custom_call.1} parent=11 // pred_fallthru
          _
        // Predicated region
        $region33: #{tpu_custom_call.1} parent=11 // pred_check
          %p379 = pneg %p231
        $region34: #{tpu_custom_call.1} parent=11 // pred_check_branch
          %381 = sbr.rel (%p379) target = $region36
        $region35: #{tpu_custom_call.1} parent=11 // pred_region
          %s383 = ssub.s32 6144, 6144
          %384 = vsyncadd [#allocation12], %s383
          %s385 = sshll.u32 [#allocation13], 4
          %s386 = int_to_ptr.vmem [resolvable:$true] %s385
          %391 = dma.hbm_to_vmem [thread:$0]  %s8, 6144, %s386, [#allocation12], 64, 64, 4
        $region36: #{tpu_custom_call.1} parent=11 // pred_fallthru
          _
        // Predicated region
        $region37: #{tpu_custom_call.1} parent=11 // pred_check
          %p392 = pneg %p252
        $region38: #{tpu_custom_call.1} parent=11 // pred_check_branch
          %394 = sbr.rel (%p392) target = $region40
        $region39: #{tpu_custom_call.1} parent=11 // pred_region
          %s396 = ssub.s32 6144, 6144
          %397 = vsyncadd [#allocation15], %s396
          %s398 = sshll.u32 [#allocation14], 4
          %s399 = int_to_ptr.vmem [resolvable:$true] %s398
          %404 = dma.hbm_to_vmem [thread:$0]  %s9, 6144, %s399, [#allocation15], 64, 64, 4
        $region40: #{tpu_custom_call.1} parent=11 // pred_fallthru
          _
        // Predicated region
        $region41: #{tpu_custom_call.1} parent=11 // pred_check
          %p405 = pneg %p273
        $region42: #{tpu_custom_call.1} parent=11 // pred_check_branch
          %407 = sbr.rel (%p405) target = $region44
        $region43: #{tpu_custom_call.1} parent=11 // pred_region
          %s409 = ssub.s32 1024, 1024
          %410 = vsyncadd [#allocation15], %s409
          %s411 = sshll.u32 [#allocation16], 4
          %s412 = int_to_ptr.vmem [resolvable:$true] %s411
          %417 = dma.hbm_to_vmem [thread:$0]  %s10, 1024, %s412, [#allocation15], 64, 64, 4
        $region44: #{tpu_custom_call.1} parent=11 // pred_fallthru
          _
      $region12: #{tpu_custom_call.1} parent=5 // pred_fallthru
        _
      %p418 = scmp.lt.s32.totalorder %s27, 2
      // Predicated region
      $region45: #{tpu_custom_call.1} parent=5 // pred_check
        %p419 = pneg %p418
      $region46: #{tpu_custom_call.1} parent=5 // pred_check_branch
        %421 = sbr.rel (%p419) target = $region48
      $region47: #{tpu_custom_call.1} parent=5 // pred_region
        // Predicated region
        $region49: #{tpu_custom_call.1} parent=47 // pred_check
          %p422 = pneg %p47
        $region50: #{tpu_custom_call.1} parent=47 // pred_check_branch
          %424 = sbr.rel (%p422) target = $region52
        $region51: #{tpu_custom_call.1} parent=47 // pred_region
          %p425 = scmp.lt.s32.totalorder %s27, 1
          %s426 = scalar_select %p425, %s27, 1
          %s427 = scalar_lea.vmem %s0, %s426
        $region52: #{tpu_custom_call.1} parent=47 // pred_fallthru
          _
        // Predicated region
        $region53: #{tpu_custom_call.1} parent=47 // pred_check
          %p428 = pneg %p73
        $region54: #{tpu_custom_call.1} parent=47 // pred_check_branch
          %430 = sbr.rel (%p428) target = $region56
        $region55: #{tpu_custom_call.1} parent=47 // pred_region
          %s431 = sand.u32 %s63, 1
          %s432 = scalar_lea.sflag [#allocation3], %s431
          %s433 = sand.u32 %s63, 1
          %s434 = smul.addr %s433, 16
          %s435 = scalar_lea.vmem [#allocation2], %s434
          %s437 = ssub.s32 256, 256
          %438 = vsyncadd %s432, %s437
          %s439 = smul.addr %s27, 2
          %s440 = smul.addr %s439, 128
          %s441 = scalar_lea.hbm %s1, %s440
          %s442 = sshll.u32 %s435, 4
          %s443 = int_to_ptr.vmem [resolvable:$true] %s442
          %448 = dma.hbm_to_vmem [thread:$0]  %s441, 256, %s443, %s432, 128, 128, 8
        $region56: #{tpu_custom_call.1} parent=47 // pred_fallthru
          _
        // Predicated region
        $region57: #{tpu_custom_call.1} parent=47 // pred_check
          %p449 = pneg %p99
        $region58: #{tpu_custom_call.1} parent=47 // pred_check_branch
          %451 = sbr.rel (%p449) target = $region60
        $region59: #{tpu_custom_call.1} parent=47 // pred_region
          %p452 = scmp.lt.s32.totalorder %s27, 1
          %s453 = scalar_select %p452, %s27, 1
          %s454 = scalar_lea.vmem %s2, %s453
        $region60: #{tpu_custom_call.1} parent=47 // pred_fallthru
          _
      $region48: #{tpu_custom_call.1} parent=5 // pred_fallthru
        _
      %p455 = scmp.le.s32.totalorder 1, %s27
      %p456 = scmp.lt.s32.totalorder %s27, 3
      %p457 = pnand %p455, %p456
      %p458 = pneg %p457
      // Predicated region
      $region61: #{tpu_custom_call.1} parent=5 // pred_check
        _
      $region62: #{tpu_custom_call.1} parent=5 // pred_check_branch
        %460 = sbr.rel (%p457) target = $region64
      $region63: #{tpu_custom_call.1} parent=5 // pred_region
        %s461 = ssub.s32 %s27, 1
        %s462 = sand.u32 %s66, 1
        %s463 = scalar_lea.sflag [#allocation3], %s462
        %s464 = sand.u32 %s66, 1
        %s465 = smul.addr %s464, 16
        %s466 = scalar_lea.vmem [#allocation2], %s465
        // Predicated region
        $region65: #{tpu_custom_call.1} parent=63 // pred_check
          %p467 = pneg %p79
        $region66: #{tpu_custom_call.1} parent=63 // pred_check_branch
          %469 = sbr.rel (%p467) target = $region68
        $region67: #{tpu_custom_call.1} parent=63 // pred_region
          %470 = dma.done %s463, 256
        $region68: #{tpu_custom_call.1} parent=63 // pred_fallthru
          _
        // Predicated region
        $region69: #{tpu_custom_call.1} parent=63 // pred_check
          %p471 = pneg %p126
        $region70: #{tpu_custom_call.1} parent=63 // pred_check_branch
          %473 = sbr.rel (%p471) target = $region72
        $region71: #{tpu_custom_call.1} parent=63 // pred_region
          %474 = dma.done [#allocation6], 640
        $region72: #{tpu_custom_call.1} parent=63 // pred_fallthru
          _
        // Predicated region
        $region73: #{tpu_custom_call.1} parent=63 // pred_check
          %p475 = pneg %p147
        $region74: #{tpu_custom_call.1} parent=63 // pred_check_branch
          %477 = sbr.rel (%p475) target = $region76
        $region75: #{tpu_custom_call.1} parent=63 // pred_region
          %478 = dma.done [#allocation6], 10240
        $region76: #{tpu_custom_call.1} parent=63 // pred_fallthru
          _
        // Predicated region
        $region77: #{tpu_custom_call.1} parent=63 // pred_check
          %p479 = pneg %p168
        $region78: #{tpu_custom_call.1} parent=63 // pred_check_branch
          %481 = sbr.rel (%p479) target = $region80
        $region79: #{tpu_custom_call.1} parent=63 // pred_region
          %482 = dma.done [#allocation9], 1024
        $region80: #{tpu_custom_call.1} parent=63 // pred_fallthru
          _
        // Predicated region
        $region81: #{tpu_custom_call.1} parent=63 // pred_check
          %p483 = pneg %p189
        $region82: #{tpu_custom_call.1} parent=63 // pred_check_branch
          %485 = sbr.rel (%p483) target = $region84
        $region83: #{tpu_custom_call.1} parent=63 // pred_region
          %486 = dma.done [#allocation9], 12288
        $region84: #{tpu_custom_call.1} parent=63 // pred_fallthru
          _
        // Predicated region
        $region85: #{tpu_custom_call.1} parent=63 // pred_check
          %p487 = pneg %p210
        $region86: #{tpu_custom_call.1} parent=63 // pred_check_branch
          %489 = sbr.rel (%p487) target = $region88
        $region87: #{tpu_custom_call.1} parent=63 // pred_region
          %490 = dma.done [#allocation12], 4096
        $region88: #{tpu_custom_call.1} parent=63 // pred_fallthru
          _
        // Predicated region
        $region89: #{tpu_custom_call.1} parent=63 // pred_check
          %p491 = pneg %p231
        $region90: #{tpu_custom_call.1} parent=63 // pred_check_branch
          %493 = sbr.rel (%p491) target = $region92
        $region91: #{tpu_custom_call.1} parent=63 // pred_region
          %494 = dma.done [#allocation12], 6144
        $region92: #{tpu_custom_call.1} parent=63 // pred_fallthru
          _
        // Predicated region
        $region93: #{tpu_custom_call.1} parent=63 // pred_check
          %p495 = pneg %p252
        $region94: #{tpu_custom_call.1} parent=63 // pred_check_branch
          %497 = sbr.rel (%p495) target = $region96
        $region95: #{tpu_custom_call.1} parent=63 // pred_region
          %498 = dma.done [#allocation15], 6144
        $region96: #{tpu_custom_call.1} parent=63 // pred_fallthru
          _
        // Predicated region
        $region97: #{tpu_custom_call.1} parent=63 // pred_check
          %p499 = pneg %p273
        $region98: #{tpu_custom_call.1} parent=63 // pred_check_branch
          %501 = sbr.rel (%p499) target = $region100
        $region99: #{tpu_custom_call.1} parent=63 // pred_region
          %502 = dma.done [#allocation15], 1024
        $region100: #{tpu_custom_call.1} parent=63 // pred_fallthru
          _
        %p503 = scmp.lt.s32.totalorder %s32, 1
        %s504 = scalar_select %p503, %s32, 1
        %s505 = scalar_lea.vmem %s0, %s504
        %p506 = pneg %p53
        %p507 = pneg %p50
        %s508 = sand.u32 %s66, 1
        %s509 = scalar_lea.sflag [#allocation3], %s508
        %s510 = sand.u32 %s66, 1
        %s511 = smul.addr %s510, 16
        %s512 = scalar_lea.vmem [#allocation2], %s511
        %p513 = pneg %p79
        %p514 = pneg %p76
        %p515 = scmp.lt.s32.totalorder %s32, 1
        %s516 = scalar_select %p515, %s32, 1
        %s517 = scalar_lea.vmem %s2, %s516
        %p518 = pneg %p105
        %p519 = pneg %p102
        %p520 = pneg %p126
        %p521 = pneg %p123
        %p522 = pneg %p147
        %p523 = pneg %p144
        %p524 = pneg %p168
        %p525 = pneg %p165
        %p526 = pneg %p189
        %p527 = pneg %p186
        %p528 = pneg %p210
        %p529 = pneg %p207
        %p530 = pneg %p231
        %p531 = pneg %p228
        %p532 = pneg %p252
        %p533 = pneg %p249
        %p534 = pneg %p273
        %p535 = pneg %p270
        %p536 = pneg %p299
        %p537 = pneg %p296
        %s538 = sand.u32 %s286, 1
        %s539 = scalar_lea.sflag [#allocation4], %s538
        %s540 = sand.u32 %s286, 1
        %s541 = smul.addr %s540, 16
        %s542 = scalar_lea.vmem [#allocation17], %s541
        %p543 = scmp.lt.s32.totalorder %s32, 1
        %s544 = scalar_select %p543, %s32, 1
        %s545 = scalar_lea.vmem %s0, %s544
        %p546 = scmp.lt.s32.totalorder %s32, 1
        %s547 = scalar_select %p546, %s32, 1
        %s548 = scalar_lea.vmem %s2, %s547
        %v550 = vld [vmem:[#allocation5] sm:$0xff]
        %v551 = vld [vmem:[#allocation5 + $0x8] sm:$0xff]
        %v552 = vld [vmem:[#allocation5 + $0x10] sm:$0xff]
        %v553 = vld [vmem:[#allocation5 + $0x18] sm:$0xff]
        %v554 = vld [vmem:[#allocation5 + $0x20] sm:$0x3]
        %v555 = vld [vmem:[%s545] sm:$0x1]
        %v556 = vlaneseq
        %v557 = vshrl.u32 %v556, 7
        %v558 = vadd.s32 %v557, 8
        %v559 = vlaneseq
        %v560 = vand.u32 %v559, 127
        %v561 = vlaneseq
        %v562 = vshrl.u32 %v561, 7
        %v563 = vsub.s32 0, %v562
        %v564 = vrot.slane %v555, %v563
        %vm565 = vcmp.lt.s32.totalorder %v557, %v564
        %vm566 = vcmp.lt.s32.totalorder %v558, %v564
        %v567 = vsel %vm565, 1, 0
        %v568 = vsel %vm566, 1, 0
        %v569 = vcvt.s32.f32 %v567
        %v570 = vcvt.s32.f32 %v568
        %571 = vset.pattern.permute.xlu0 0
        %572 = vperm.xlu0 %571, %v564
        %v573 = vpop.permute.xlu0 %572
        %vm574 = vcmp.lt.s32.totalorder %v557, %v573
        %vm575 = vcmp.lt.s32.totalorder %v558, %v573
        %vm576 = vcmp.lt.s32.totalorder %v560, %v573
        %vm577 = vmand %vm574, %vm576
        %vm578 = vmand %vm575, %vm576
        %vm579 = vcmp.lt.s32.totalorder %v560, 32
        %v580 = vsel %vm579, 1, 0
        %v581 = vcvt.s32.f32 %v580
        %vm582 = vcmp.lt.s32.totalorder %v560, 40
        %v583 = vsel %vm582, 1, 0
        %v584 = vcvt.s32.f32 %v583
        %v585 = vld [vmem:[%s466] sm:$0xff]
        %v586 = vld [vmem:[%s466 + $0x8] sm:$0xff]
        %588 = vset.pattern.permute.xlu0 0
        %589 = vperm.xlu0 %588, %v569
        %v590 = vpop.permute.xlu0 %589
        %593 = vset.pattern.permute.xlu0 0
        %594 = vperm.xlu0 %593, %v570
        %v595 = vpop.permute.xlu0 %594
        %v597 = vmul.f32 %v585, %v590
        %v598 = vmul.f32 %v586, %v595
        %vm601 = vcmask 1041408
        %v602 = vrot.slane %v597, 6
        %v603 = vrot.slane %v598, 6
        %v604 = vsel %vm601, %v602, %v603
        %v608 = vsel %vm601, 0.0, %v602
        %v609 = vsel %vm601, %v603, 0.0
        %v610 = vpack.c.bf16 %v604, %v608
        %v611 = vld [vmem:[#allocation7] sm:$0xf]
        %v612 = vld [vmem:[#allocation7 + $0x4] sm:$0xf]
        %v613 = vld [vmem:[#allocation7 + $0x8] sm:$0xf]
        %v614 = vld [vmem:[#allocation7 + $0xc] sm:$0xf]
        %v615 = vld [vmem:[#allocation7 + $0x10] sm:$0xf]
        %v616 = vld [vmem:[#allocation7 + $0x14] sm:$0xf]
        %v617 = vld [vmem:[#allocation7 + $0x18] sm:$0xf]
        %v618 = vld [vmem:[#allocation7 + $0x1c] sm:$0xf]
        %v619 = vld [vmem:[#allocation7 + $0x20] sm:$0xf]
        %v620 = vld [vmem:[#allocation7 + $0x24] sm:$0xf]
        %v621 = vld [vmem:[#allocation7 + $0x28] sm:$0xf]
        %v622 = vld [vmem:[#allocation7 + $0x2c] sm:$0xf]
        %v623 = vld [vmem:[#allocation7 + $0x30] sm:$0xf]
        %v624 = vld [vmem:[#allocation7 + $0x34] sm:$0xf]
        %v625 = vld [vmem:[#allocation7 + $0x38] sm:$0xf]
        %v626 = vld [vmem:[#allocation7 + $0x3c] sm:$0xf]
        %v627 = vpack.c.bf16 %v609, %v609
        %s628 = scalar_lea.vmem [#allocation7], 64
        %v629 = vld [vmem:[%s628] sm:$0xf]
        %v630 = vld [vmem:[%s628 + $0x4] sm:$0xf]
        %v631 = vld [vmem:[%s628 + $0x8] sm:$0xf]
        %v632 = vld [vmem:[%s628 + $0xc] sm:$0xf]
        %v633 = vld [vmem:[%s628 + $0x10] sm:$0xf]
        %v634 = vld [vmem:[%s628 + $0x14] sm:$0xf]
        %v635 = vld [vmem:[%s628 + $0x18] sm:$0xf]
        %v636 = vld [vmem:[%s628 + $0x1c] sm:$0xf]
        %v637 = vld [vmem:[%s628 + $0x20] sm:$0xf]
        %v638 = vld [vmem:[%s628 + $0x24] sm:$0xf]
        %v639 = vld [vmem:[%s628 + $0x28] sm:$0xf]
        %v640 = vld [vmem:[%s628 + $0x2c] sm:$0xf]
        %v641 = vld [vmem:[%s628 + $0x30] sm:$0xf]
        %v642 = vld [vmem:[%s628 + $0x34] sm:$0xf]
        %v643 = vld [vmem:[%s628 + $0x38] sm:$0xf]
        %v644 = vld [vmem:[%s628 + $0x3c] sm:$0xf]
        %vm645 = vsmask.f32 7424
        %v647 = vshrl.u32 %v610, 16
        %v649 = vshll.u32 %v610, 16
        %v651 = vrot.slane %v649, 1
        %v652 = vor.u32 %v647, %v651
        %v654 = vshll.u32 %v627, 16
        %v656 = vrot.slane %v654, 1
        %v657 = vsel %vm645, %v652, %v656
        %v675 = vunpack.c.l.b16 %v629
        %v676 = vunpack.c.l.b16 %v630
        %v677 = vunpack.c.l.b16 %v631
        %v678 = vunpack.c.l.b16 %v632
        %v679 = vunpack.c.l.b16 %v633
        %v680 = vunpack.c.l.b16 %v634
        %v681 = vunpack.c.l.b16 %v635
        %v682 = vunpack.c.l.b16 %v636
        %v683 = vunpack.c.l.b16 %v637
        %v684 = vunpack.c.l.b16 %v638
        %v685 = vunpack.c.l.b16 %v639
        %v686 = vunpack.c.l.b16 %v640
        %v687 = vunpack.c.l.b16 %v641
        %v688 = vunpack.c.l.b16 %v642
        %v689 = vunpack.c.l.b16 %v643
        %v690 = vunpack.c.l.b16 %v644
        %v691 = vpack.c.b16 %v676, %v675
        %v692 = vpack.c.b16 %v678, %v677
        %v693 = vpack.c.b16 %v680, %v679
        %v694 = vpack.c.b16 %v682, %v681
        %v695 = vpack.c.b16 %v684, %v683
        %v696 = vpack.c.b16 %v686, %v685
        %v697 = vpack.c.b16 %v688, %v687
        %v698 = vpack.c.b16 %v690, %v689
        %707 = vmatprep.subr.bf16.mxu0 0
        %708 = vmatpush1.bf16.msra.mxu0 %v691
        %709 = vmatprep.subr.bf16.mxu0 0
        %710 = vmatpush1.bf16.msra.mxu0 %v692
        %711 = vmatprep.subr.bf16.mxu0 0
        %712 = vmatpush1.bf16.msra.mxu0 %v693
        %713 = vmatprep.subr.bf16.mxu0 0
        %714 = vmatpush1.bf16.msra.mxu0 %v694
        %715 = vmatprep.subr.bf16.mxu0 0
        %716 = vmatpush1.bf16.msra.mxu0 %v695
        %717 = vmatprep.subr.bf16.mxu0 0
        %718 = vmatpush1.bf16.msra.mxu0 %v696
        %719 = vmatprep.subr.bf16.mxu0 0
        %720 = vmatpush1.bf16.msra.mxu0 %v697
        %721 = vmatprep.subr.bf16.mxu0 0
        %722 = vmatpush1.bf16.msra.mxu0 %v698
        %723 = vmatprep.subr.bf16.mxu0 0
        %724 = vmatpush1.bf16.msra.mxu0 0
        %725 = vmatprep.subr.bf16.mxu0 0
        %726 = vmatpush1.bf16.msra.mxu0 0
        %727 = vmatprep.subr.bf16.mxu0 0
        %728 = vmatpush1.bf16.msra.mxu0 0
        %729 = vmatprep.subr.bf16.mxu0 0
        %730 = vmatpush1.bf16.msra.mxu0 0
        %731 = vmatprep.subr.bf16.mxu0 0
        %732 = vmatpush1.bf16.msra.mxu0 0
        %733 = vmatprep.subr.bf16.mxu0 0
        %734 = vmatpush1.bf16.msra.mxu0 0
        %735 = vmatprep.subr.bf16.mxu0 0
        %736 = vmatpush1.bf16.msra.mxu0 0
        %737 = vmatprep.subr.bf16.mxu0 0
        %738 = vmatpush1.bf16.msra.mxu0 0
        %739 = vmatprep.mubr.bf16.mxu0 0
        %740 = vmatmul.mubr.bf16.gmra.mrb[0].mxu0 %v657
        %v741 = vpop.f32.mrb[0].mxu0
        %v742 = vadd.f32 0.0, %v741
        %v743 = vpop.f32.mrb[0].mxu0
        %v744 = vpop.f32.mrb[0].mxu0
        %v745 = vadd.f32 0.0, %v744
        %v746 = vpop.f32.mrb[0].mxu0
        %747 = vdwg.mxu0
        %v764 = vunpack.c.l.b16 %v611
        %v765 = vunpack.c.l.b16 %v612
        %v766 = vunpack.c.l.b16 %v613
        %v767 = vunpack.c.l.b16 %v614
        %v768 = vunpack.c.l.b16 %v615
        %v769 = vunpack.c.l.b16 %v616
        %v770 = vunpack.c.l.b16 %v617
        %v771 = vunpack.c.l.b16 %v618
        %v772 = vunpack.c.l.b16 %v619
        %v773 = vunpack.c.l.b16 %v620
        %v774 = vunpack.c.l.b16 %v621
        %v775 = vunpack.c.l.b16 %v622
        %v776 = vunpack.c.l.b16 %v623
        %v777 = vunpack.c.l.b16 %v624
        %v778 = vunpack.c.l.b16 %v625
        %v779 = vunpack.c.l.b16 %v626
        %v780 = vpack.c.b16 %v765, %v764
        %v781 = vpack.c.b16 %v767, %v766
        %v782 = vpack.c.b16 %v769, %v768
        %v783 = vpack.c.b16 %v771, %v770
        %v784 = vpack.c.b16 %v773, %v772
        %v785 = vpack.c.b16 %v775, %v774
        %v786 = vpack.c.b16 %v777, %v776
        %v787 = vpack.c.b16 %v779, %v778
        %796 = vmatprep.subr.bf16.mxu0 0
        %797 = vmatpush1.bf16.msra.mxu0 %v780
        %798 = vmatprep.subr.bf16.mxu0 0
        %799 = vmatpush1.bf16.msra.mxu0 %v781
        %800 = vmatprep.subr.bf16.mxu0 0
        %801 = vmatpush1.bf16.msra.mxu0 %v782
        %802 = vmatprep.subr.bf16.mxu0 0
        %803 = vmatpush1.bf16.msra.mxu0 %v783
        %804 = vmatprep.subr.bf16.mxu0 0
        %805 = vmatpush1.bf16.msra.mxu0 %v784
        %806 = vmatprep.subr.bf16.mxu0 0
        %807 = vmatpush1.bf16.msra.mxu0 %v785
        %808 = vmatprep.subr.bf16.mxu0 0
        %809 = vmatpush1.bf16.msra.mxu0 %v786
        %810 = vmatprep.subr.bf16.mxu0 0
        %811 = vmatpush1.bf16.msra.mxu0 %v787
        %812 = vmatprep.subr.bf16.mxu0 0
        %813 = vmatpush1.bf16.msra.mxu0 0
        %814 = vmatprep.subr.bf16.mxu0 0
        %815 = vmatpush1.bf16.msra.mxu0 0
        %816 = vmatprep.subr.bf16.mxu0 0
        %817 = vmatpush1.bf16.msra.mxu0 0
        %818 = vmatprep.subr.bf16.mxu0 0
        %819 = vmatpush1.bf16.msra.mxu0 0
        %820 = vmatprep.subr.bf16.mxu0 0
        %821 = vmatpush1.bf16.msra.mxu0 0
        %822 = vmatprep.subr.bf16.mxu0 0
        %823 = vmatpush1.bf16.msra.mxu0 0
        %824 = vmatprep.subr.bf16.mxu0 0
        %825 = vmatpush1.bf16.msra.mxu0 0
        %826 = vmatprep.subr.bf16.mxu0 0
        %827 = vmatpush1.bf16.msra.mxu0 0
        %828 = vmatprep.mubr.bf16.mxu0 0
        %829 = vmatmul.mubr.bf16.gmra.mrb[0].mxu0 %v610
        %v830 = vpop.f32.mrb[0].mxu0
        %v831 = vadd.f32 %v742, %v830
        %v832 = vpop.f32.mrb[0].mxu0
        %v833 = vpop.f32.mrb[0].mxu0
        %v834 = vadd.f32 %v745, %v833
        %v835 = vpop.f32.mrb[0].mxu0
        %836 = vdwg.mxu0
        %s837 = scalar_lea.vmem [#allocation7], 128
        %v838 = vld [vmem:[%s837] sm:$0xf]
        %v839 = vld [vmem:[%s837 + $0x4] sm:$0xf]
        %v840 = vld [vmem:[%s837 + $0x8] sm:$0xf]
        %v841 = vld [vmem:[%s837 + $0xc] sm:$0xf]
        %v842 = vld [vmem:[%s837 + $0x10] sm:$0xf]
        %v843 = vld [vmem:[%s837 + $0x14] sm:$0xf]
        %v844 = vld [vmem:[%s837 + $0x18] sm:$0xf]
        %v845 = vld [vmem:[%s837 + $0x1c] sm:$0xf]
        %v846 = vld [vmem:[%s837 + $0x20] sm:$0xf]
        %v847 = vld [vmem:[%s837 + $0x24] sm:$0xf]
        %v848 = vld [vmem:[%s837 + $0x28] sm:$0xf]
        %v849 = vld [vmem:[%s837 + $0x2c] sm:$0xf]
        %v850 = vld [vmem:[%s837 + $0x30] sm:$0xf]
        %v851 = vld [vmem:[%s837 + $0x34] sm:$0xf]
        %v852 = vld [vmem:[%s837 + $0x38] sm:$0xf]
        %v853 = vld [vmem:[%s837 + $0x3c] sm:$0xf]
        %vm856 = vcmask 1046528
        %v857 = vrot.slane %v610, 1
        %v858 = vrot.slane %v627, 1
        %v859 = vsel %vm856, %v857, %v858
        %v877 = vunpack.c.l.b16 %v838
        %v878 = vunpack.c.l.b16 %v839
        %v879 = vunpack.c.l.b16 %v840
        %v880 = vunpack.c.l.b16 %v841
        %v881 = vunpack.c.l.b16 %v842
        %v882 = vunpack.c.l.b16 %v843
        %v883 = vunpack.c.l.b16 %v844
        %v884 = vunpack.c.l.b16 %v845
        %v885 = vunpack.c.l.b16 %v846
        %v886 = vunpack.c.l.b16 %v847
        %v887 = vunpack.c.l.b16 %v848
        %v888 = vunpack.c.l.b16 %v849
        %v889 = vunpack.c.l.b16 %v850
        %v890 = vunpack.c.l.b16 %v851
        %v891 = vunpack.c.l.b16 %v852
        %v892 = vunpack.c.l.b16 %v853
        %v893 = vpack.c.b16 %v878, %v877
        %v894 = vpack.c.b16 %v880, %v879
        %v895 = vpack.c.b16 %v882, %v881
        %v896 = vpack.c.b16 %v884, %v883
        %v897 = vpack.c.b16 %v886, %v885
        %v898 = vpack.c.b16 %v888, %v887
        %v899 = vpack.c.b16 %v890, %v889
        %v900 = vpack.c.b16 %v892, %v891
        %909 = vmatprep.subr.bf16.mxu0 0
        %910 = vmatpush1.bf16.msra.mxu0 %v893
        %911 = vmatprep.subr.bf16.mxu0 0
        %912 = vmatpush1.bf16.msra.mxu0 %v894
        %913 = vmatprep.subr.bf16.mxu0 0
        %914 = vmatpush1.bf16.msra.mxu0 %v895
        %915 = vmatprep.subr.bf16.mxu0 0
        %916 = vmatpush1.bf16.msra.mxu0 %v896
        %917 = vmatprep.subr.bf16.mxu0 0
        %918 = vmatpush1.bf16.msra.mxu0 %v897
        %919 = vmatprep.subr.bf16.mxu0 0
        %920 = vmatpush1.bf16.msra.mxu0 %v898
        %921 = vmatprep.subr.bf16.mxu0 0
        %922 = vmatpush1.bf16.msra.mxu0 %v899
        %923 = vmatprep.subr.bf16.mxu0 0
        %924 = vmatpush1.bf16.msra.mxu0 %v900
        %925 = vmatprep.subr.bf16.mxu0 0
        %926 = vmatpush1.bf16.msra.mxu0 0
        %927 = vmatprep.subr.bf16.mxu0 0
        %928 = vmatpush1.bf16.msra.mxu0 0
        %929 = vmatprep.subr.bf16.mxu0 0
        %930 = vmatpush1.bf16.msra.mxu0 0
        %931 = vmatprep.subr.bf16.mxu0 0
        %932 = vmatpush1.bf16.msra.mxu0 0
        %933 = vmatprep.subr.bf16.mxu0 0
        %934 = vmatpush1.bf16.msra.mxu0 0
        %935 = vmatprep.subr.bf16.mxu0 0
        %936 = vmatpush1.bf16.msra.mxu0 0
        %937 = vmatprep.subr.bf16.mxu0 0
        %938 = vmatpush1.bf16.msra.mxu0 0
        %939 = vmatprep.subr.bf16.mxu0 0
        %940 = vmatpush1.bf16.msra.mxu0 0
        %941 = vmatprep.mubr.bf16.mxu0 0
        %942 = vmatmul.mubr.bf16.gmra.mrb[0].mxu0 %v859
        %v943 = vpop.f32.mrb[0].mxu0
        %v944 = vadd.f32 0.0, %v943
        %v945 = vpop.f32.mrb[0].mxu0
        %v946 = vpop.f32.mrb[0].mxu0
        %v947 = vadd.f32 0.0, %v946
        %v948 = vpop.f32.mrb[0].mxu0
        %949 = vdwg.mxu0
        %v950 = vadd.f32 %v831, %v944
        %v951 = vadd.f32 %v834, %v947
        %s952 = scalar_lea.vmem [#allocation7], 192
        %v953 = vld [vmem:[%s952] sm:$0xf]
        %v954 = vld [vmem:[%s952 + $0x4] sm:$0xf]
        %v955 = vld [vmem:[%s952 + $0x8] sm:$0xf]
        %v956 = vld [vmem:[%s952 + $0xc] sm:$0xf]
        %v957 = vld [vmem:[%s952 + $0x10] sm:$0xf]
        %v958 = vld [vmem:[%s952 + $0x14] sm:$0xf]
        %v959 = vld [vmem:[%s952 + $0x18] sm:$0xf]
        %v960 = vld [vmem:[%s952 + $0x1c] sm:$0xf]
        %v961 = vld [vmem:[%s952 + $0x20] sm:$0xf]
        %v962 = vld [vmem:[%s952 + $0x24] sm:$0xf]
        %v963 = vld [vmem:[%s952 + $0x28] sm:$0xf]
        %v964 = vld [vmem:[%s952 + $0x2c] sm:$0xf]
        %v965 = vld [vmem:[%s952 + $0x30] sm:$0xf]
        %v966 = vld [vmem:[%s952 + $0x34] sm:$0xf]
        %v967 = vld [vmem:[%s952 + $0x38] sm:$0xf]
        %v968 = vld [vmem:[%s952 + $0x3c] sm:$0xf]
        %vm969 = vsmask.f32 6400
        %v970 = vrot.slane %v647, 1
        %v971 = vrot.slane %v649, 2
        %v972 = vor.u32 %v970, %v971
        %v973 = vshrl.u32 %v627, 16
        %v975 = vrot.slane %v973, 1
        %v976 = vrot.slane %v654, 2
        %v977 = vor.u32 %v975, %v976
        %v978 = vsel %vm969, %v972, %v977
        %v996 = vunpack.c.l.b16 %v953
        %v997 = vunpack.c.l.b16 %v954
        %v998 = vunpack.c.l.b16 %v955
        %v999 = vunpack.c.l.b16 %v956
        %v1000 = vunpack.c.l.b16 %v957
        %v1001 = vunpack.c.l.b16 %v958
        %v1002 = vunpack.c.l.b16 %v959
        %v1003 = vunpack.c.l.b16 %v960
        %v1004 = vunpack.c.l.b16 %v961
        %v1005 = vunpack.c.l.b16 %v962
        %v1006 = vunpack.c.l.b16 %v963
        %v1007 = vunpack.c.l.b16 %v964
        %v1008 = vunpack.c.l.b16 %v965
        %v1009 = vunpack.c.l.b16 %v966
        %v1010 = vunpack.c.l.b16 %v967
        %v1011 = vunpack.c.l.b16 %v968
        %v1012 = vpack.c.b16 %v997, %v996
        %v1013 = vpack.c.b16 %v999, %v998
        %v1014 = vpack.c.b16 %v1001, %v1000
        %v1015 = vpack.c.b16 %v1003, %v1002
        %v1016 = vpack.c.b16 %v1005, %v1004
        %v1017 = vpack.c.b16 %v1007, %v1006
        %v1018 = vpack.c.b16 %v1009, %v1008
        %v1019 = vpack.c.b16 %v1011, %v1010
        %1028 = vmatprep.subr.bf16.mxu0 0
        %1029 = vmatpush1.bf16.msra.mxu0 %v1012
        %1030 = vmatprep.subr.bf16.mxu0 0
        %1031 = vmatpush1.bf16.msra.mxu0 %v1013
        %1032 = vmatprep.subr.bf16.mxu0 0
        %1033 = vmatpush1.bf16.msra.mxu0 %v1014
        %1034 = vmatprep.subr.bf16.mxu0 0
        %1035 = vmatpush1.bf16.msra.mxu0 %v1015
        %1036 = vmatprep.subr.bf16.mxu0 0
        %1037 = vmatpush1.bf16.msra.mxu0 %v1016
        %1038 = vmatprep.subr.bf16.mxu0 0
        %1039 = vmatpush1.bf16.msra.mxu0 %v1017
        %1040 = vmatprep.subr.bf16.mxu0 0
        %1041 = vmatpush1.bf16.msra.mxu0 %v1018
        %1042 = vmatprep.subr.bf16.mxu0 0
        %1043 = vmatpush1.bf16.msra.mxu0 %v1019
        %1044 = vmatprep.subr.bf16.mxu0 0
        %1045 = vmatpush1.bf16.msra.mxu0 0
        %1046 = vmatprep.subr.bf16.mxu0 0
        %1047 = vmatpush1.bf16.msra.mxu0 0
        %1048 = vmatprep.subr.bf16.mxu0 0
        %1049 = vmatpush1.bf16.msra.mxu0 0
        %1050 = vmatprep.subr.bf16.mxu0 0
        %1051 = vmatpush1.bf16.msra.mxu0 0
        %1052 = vmatprep.subr.bf16.mxu0 0
        %1053 = vmatpush1.bf16.msra.mxu0 0
        %1054 = vmatprep.subr.bf16.mxu0 0
        %1055 = vmatpush1.bf16.msra.mxu0 0
        %1056 = vmatprep.subr.bf16.mxu0 0
        %1057 = vmatpush1.bf16.msra.mxu0 0
        %1058 = vmatprep.subr.bf16.mxu0 0
        %1059 = vmatpush1.bf16.msra.mxu0 0
        %1060 = vmatprep.mubr.bf16.mxu0 0
        %1061 = vmatmul.mubr.bf16.gmra.mrb[0].mxu0 %v978
        %v1062 = vpop.f32.mrb[0].mxu0
        %v1063 = vadd.f32 0.0, %v1062
        %v1064 = vpop.f32.mrb[0].mxu0
        %v1065 = vpop.f32.mrb[0].mxu0
        %v1066 = vadd.f32 0.0, %v1065
        %v1067 = vpop.f32.mrb[0].mxu0
        %1068 = vdwg.mxu0
        %v1069 = vadd.f32 %v950, %v1063
        %v1070 = vadd.f32 %v951, %v1066
        %s1071 = scalar_lea.vmem [#allocation7], 256
        %v1072 = vld [vmem:[%s1071] sm:$0xf]
        %v1073 = vld [vmem:[%s1071 + $0x4] sm:$0xf]
        %v1074 = vld [vmem:[%s1071 + $0x8] sm:$0xf]
        %v1075 = vld [vmem:[%s1071 + $0xc] sm:$0xf]
        %v1076 = vld [vmem:[%s1071 + $0x10] sm:$0xf]
        %v1077 = vld [vmem:[%s1071 + $0x14] sm:$0xf]
        %v1078 = vld [vmem:[%s1071 + $0x18] sm:$0xf]
        %v1079 = vld [vmem:[%s1071 + $0x1c] sm:$0xf]
        %v1080 = vld [vmem:[%s1071 + $0x20] sm:$0xf]
        %v1081 = vld [vmem:[%s1071 + $0x24] sm:$0xf]
        %v1082 = vld [vmem:[%s1071 + $0x28] sm:$0xf]
        %v1083 = vld [vmem:[%s1071 + $0x2c] sm:$0xf]
        %v1084 = vld [vmem:[%s1071 + $0x30] sm:$0xf]
        %v1085 = vld [vmem:[%s1071 + $0x34] sm:$0xf]
        %v1086 = vld [vmem:[%s1071 + $0x38] sm:$0xf]
        %v1087 = vld [vmem:[%s1071 + $0x3c] sm:$0xf]
        %vm1088 = vcmask 1045504
        %v1089 = vrot.slane %v610, 2
        %v1090 = vrot.slane %v627, 2
        %v1091 = vsel %vm1088, %v1089, %v1090
        %v1109 = vunpack.c.l.b16 %v1072
        %v1110 = vunpack.c.l.b16 %v1073
        %v1111 = vunpack.c.l.b16 %v1074
        %v1112 = vunpack.c.l.b16 %v1075
        %v1113 = vunpack.c.l.b16 %v1076
        %v1114 = vunpack.c.l.b16 %v1077
        %v1115 = vunpack.c.l.b16 %v1078
        %v1116 = vunpack.c.l.b16 %v1079
        %v1117 = vunpack.c.l.b16 %v1080
        %v1118 = vunpack.c.l.b16 %v1081
        %v1119 = vunpack.c.l.b16 %v1082
        %v1120 = vunpack.c.l.b16 %v1083
        %v1121 = vunpack.c.l.b16 %v1084
        %v1122 = vunpack.c.l.b16 %v1085
        %v1123 = vunpack.c.l.b16 %v1086
        %v1124 = vunpack.c.l.b16 %v1087
        %v1125 = vpack.c.b16 %v1110, %v1109
        %v1126 = vpack.c.b16 %v1112, %v1111
        %v1127 = vpack.c.b16 %v1114, %v1113
        %v1128 = vpack.c.b16 %v1116, %v1115
        %v1129 = vpack.c.b16 %v1118, %v1117
        %v1130 = vpack.c.b16 %v1120, %v1119
        %v1131 = vpack.c.b16 %v1122, %v1121
        %v1132 = vpack.c.b16 %v1124, %v1123
        %1141 = vmatprep.subr.bf16.mxu0 0
        %1142 = vmatpush1.bf16.msra.mxu0 %v1125
        %1143 = vmatprep.subr.bf16.mxu0 0
        %1144 = vmatpush1.bf16.msra.mxu0 %v1126
        %1145 = vmatprep.subr.bf16.mxu0 0
        %1146 = vmatpush1.bf16.msra.mxu0 %v1127
        %1147 = vmatprep.subr.bf16.mxu0 0
        %1148 = vmatpush1.bf16.msra.mxu0 %v1128
        %1149 = vmatprep.subr.bf16.mxu0 0
        %1150 = vmatpush1.bf16.msra.mxu0 %v1129
        %1151 = vmatprep.subr.bf16.mxu0 0
        %1152 = vmatpush1.bf16.msra.mxu0 %v1130
        %1153 = vmatprep.subr.bf16.mxu0 0
        %1154 = vmatpush1.bf16.msra.mxu0 %v1131
        %1155 = vmatprep.subr.bf16.mxu0 0
        %1156 = vmatpush1.bf16.msra.mxu0 %v1132
        %1157 = vmatprep.subr.bf16.mxu0 0
        %1158 = vmatpush1.bf16.msra.mxu0 0
        %1159 = vmatprep.subr.bf16.mxu0 0
        %1160 = vmatpush1.bf16.msra.mxu0 0
        %1161 = vmatprep.subr.bf16.mxu0 0
        %1162 = vmatpush1.bf16.msra.mxu0 0
        %1163 = vmatprep.subr.bf16.mxu0 0
        %1164 = vmatpush1.bf16.msra.mxu0 0
        %1165 = vmatprep.subr.bf16.mxu0 0
        %1166 = vmatpush1.bf16.msra.mxu0 0
        %1167 = vmatprep.subr.bf16.mxu0 0
        %1168 = vmatpush1.bf16.msra.mxu0 0
        %1169 = vmatprep.subr.bf16.mxu0 0
        %1170 = vmatpush1.bf16.msra.mxu0 0
        %1171 = vmatprep.subr.bf16.mxu0 0
        %1172 = vmatpush1.bf16.msra.mxu0 0
        %1173 = vmatprep.mubr.bf16.mxu0 0
        %1174 = vmatmul.mubr.bf16.gmra.mrb[0].mxu0 %v1091
        %v1175 = vpop.f32.mrb[0].mxu0
        %v1176 = vadd.f32 0.0, %v1175
        %v1177 = vpop.f32.mrb[0].mxu0
        %v1178 = vpop.f32.mrb[0].mxu0
        %v1179 = vadd.f32 0.0, %v1178
        %v1180 = vpop.f32.mrb[0].mxu0
        %1181 = vdwg.mxu0
        %v1182 = vadd.f32 %v1069, %v1176
        %v1183 = vadd.f32 %v1070, %v1179
        %v1184 = vlaneseq
        %v1185 = vshrl.u32 %v1184, 7
        %v1186 = vsub.s32 0, %v1185
        %v1187 = vrot.slane %v550, %v1186
        %v1188 = vadd.f32 %v1182, %v1187
        %v1189 = vadd.f32 %v1183, %v1187
        %v1190 = vmul.f32 %v1188, %v581
        %v1191 = vmul.f32 %v1189, %v581
        %1192 = vadd.xlane.f32.xlu0 %v1190
        %v1193 = vpop.xlane.xlu0 %1192
        %1194 = vadd.xlane.f32.xlu0 %v1191
        %v1195 = vpop.xlane.xlu0 %1194
        %v1196 = vmul.f32 %v1193, 0.03125
        %v1197 = vmul.f32 %v1195, 0.03125
        %v1198 = vsub.f32 %v1188, %v1196
        %v1199 = vsub.f32 %v1189, %v1197
        %v1200 = vmul.f32 %v1198, %v581
        %v1201 = vmul.f32 %v1199, %v581
        %v1202 = vmul.f32 %v1200, %v1200
        %v1203 = vmul.f32 %v1201, %v1201
        %1204 = vadd.xlane.f32.xlu0 %v1202
        %v1205 = vpop.xlane.xlu0 %1204
        %1206 = vadd.xlane.f32.xlu0 %v1203
        %v1207 = vpop.xlane.xlu0 %1206
        %v1208 = vmul.f32 %v1205, 0.03125
        %v1209 = vmul.f32 %v1207, 0.03125
        %v1210 = vadd.f32 %v1208, 0.0001
        %v1211 = vadd.f32 %v1209, 0.0001
        %v1212 = vrsqrt.pop %v1210
        %v1213 = vrsqrt.pop %v1211
        %v1214 = vmul.f32 %v1200, %v1212
        %v1215 = vmul.f32 %v1201, %v1213
        %v1216 = vlaneseq
        %v1217 = vshrl.u32 %v1216, 7
        %v1218 = vsub.s32 1, %v1217
        %v1219 = vrot.slane %v550, %v1218
        %v1220 = vmul.f32 %v1214, %v1219
        %v1221 = vmul.f32 %v1215, %v1219
        %v1222 = vlaneseq
        %v1223 = vshrl.u32 %v1222, 7
        %v1224 = vsub.s32 2, %v1223
        %v1225 = vrot.slane %v550, %v1224
        %v1226 = vadd.f32 %v1220, %v1225
        %v1227 = vadd.f32 %v1221, %v1225
        %v1228 = vmax.f32 %v1226, 0.0
        %v1229 = vmax.f32 %v1227, 0.0
        %v1230 = vmul.f32 %v1228, %v590
        %v1231 = vmul.f32 %v1229, %v595
        %v1234 = vrot.slane %v1230, 6
        %v1235 = vrot.slane %v1231, 6
        %v1236 = vsel %vm601, %v1234, %v1235
        %v1240 = vsel %vm601, 0.0, %v1234
        %v1241 = vsel %vm601, %v1235, 0.0
        %v1242 = vpack.c.bf16 %v1236, %v1240
        %s1243 = scalar_lea.vmem [#allocation7], 320
        %v1244 = vld [vmem:[%s1243] sm:$0xf]
        %v1245 = vld [vmem:[%s1243 + $0x4] sm:$0xf]
        %v1246 = vld [vmem:[%s1243 + $0x8] sm:$0xf]
        %v1247 = vld [vmem:[%s1243 + $0xc] sm:$0xf]
        %v1248 = vld [vmem:[%s1243 + $0x10] sm:$0xf]
        %v1249 = vld [vmem:[%s1243 + $0x14] sm:$0xf]
        %v1250 = vld [vmem:[%s1243 + $0x18] sm:$0xf]
        %v1251 = vld [vmem:[%s1243 + $0x1c] sm:$0xf]
        %v1252 = vld [vmem:[%s1243 + $0x20] sm:$0xf]
        %v1253 = vld [vmem:[%s1243 + $0x24] sm:$0xf]
        %v1254 = vld [vmem:[%s1243 + $0x28] sm:$0xf]
        %v1255 = vld [vmem:[%s1243 + $0x2c] sm:$0xf]
        %v1256 = vld [vmem:[%s1243 + $0x30] sm:$0xf]
        %v1257 = vld [vmem:[%s1243 + $0x34] sm:$0xf]
        %v1258 = vld [vmem:[%s1243 + $0x38] sm:$0xf]
        %v1259 = vld [vmem:[%s1243 + $0x3c] sm:$0xf]
        %v1260 = vpack.c.bf16 %v1241, %v1241
        %s1261 = scalar_lea.vmem [#allocation7], 384
        %v1262 = vld [vmem:[%s1261] sm:$0xf]
        %v1263 = vld [vmem:[%s1261 + $0x4] sm:$0xf]
        %v1264 = vld [vmem:[%s1261 + $0x8] sm:$0xf]
        %v1265 = vld [vmem:[%s1261 + $0xc] sm:$0xf]
        %v1266 = vld [vmem:[%s1261 + $0x10] sm:$0xf]
        %v1267 = vld [vmem:[%s1261 + $0x14] sm:$0xf]
        %v1268 = vld [vmem:[%s1261 + $0x18] sm:$0xf]
        %v1269 = vld [vmem:[%s1261 + $0x1c] sm:$0xf]
        %v1270 = vld [vmem:[%s1261 + $0x20] sm:$0xf]
        %v1271 = vld [vmem:[%s1261 + $0x24] sm:$0xf]
        %v1272 = vld [vmem:[%s1261 + $0x28] sm:$0xf]
        %v1273 = vld [vmem:[%s1261 + $0x2c] sm:$0xf]
        %v1274 = vld [vmem:[%s1261 + $0x30] sm:$0xf]
        %v1275 = vld [vmem:[%s1261 + $0x34] sm:$0xf]
        %v1276 = vld [vmem:[%s1261 + $0x38] sm:$0xf]
        %v1277 = vld [vmem:[%s1261 + $0x3c] sm:$0xf]
        %v1279 = vshrl.u32 %v1242, 16
        %v1281 = vshll.u32 %v1242, 16
        %v1283 = vrot.slane %v1281, 1
        %v1284 = vor.u32 %v1279, %v1283
        %v1286 = vshll.u32 %v1260, 16
        %v1288 = vrot.slane %v1286, 1
        %v1289 = vsel %vm645, %v1284, %v1288
        %v1307 = vunpack.c.l.b16 %v1262
        %v1308 = vunpack.c.l.b16 %v1263
        %v1309 = vunpack.c.l.b16 %v1264
        %v1310 = vunpack.c.l.b16 %v1265
        %v1311 = vunpack.c.l.b16 %v1266
        %v1312 = vunpack.c.l.b16 %v1267
        %v1313 = vunpack.c.l.b16 %v1268
        %v1314 = vunpack.c.l.b16 %v1269
        %v1315 = vunpack.c.l.b16 %v1270
        %v1316 = vunpack.c.l.b16 %v1271
        %v1317 = vunpack.c.l.b16 %v1272
        %v1318 = vunpack.c.l.b16 %v1273
        %v1319 = vunpack.c.l.b16 %v1274
        %v1320 = vunpack.c.l.b16 %v1275
        %v1321 = vunpack.c.l.b16 %v1276
        %v1322 = vunpack.c.l.b16 %v1277
        %v1323 = vpack.c.b16 %v1308, %v1307
        %v1324 = vpack.c.b16 %v1310, %v1309
        %v1325 = vpack.c.b16 %v1312, %v1311
        %v1326 = vpack.c.b16 %v1314, %v1313
        %v1327 = vpack.c.b16 %v1316, %v1315
        %v1328 = vpack.c.b16 %v1318, %v1317
        %v1329 = vpack.c.b16 %v1320, %v1319
        %v1330 = vpack.c.b16 %v1322, %v1321
        %1339 = vmatprep.subr.bf16.mxu0 0
        %1340 = vmatpush1.bf16.msra.mxu0 %v1323
        %1341 = vmatprep.subr.bf16.mxu0 0
        %1342 = vmatpush1.bf16.msra.mxu0 %v1324
        %1343 = vmatprep.subr.bf16.mxu0 0
        %1344 = vmatpush1.bf16.msra.mxu0 %v1325
        %1345 = vmatprep.subr.bf16.mxu0 0
        %1346 = vmatpush1.bf16.msra.mxu0 %v1326
        %1347 = vmatprep.subr.bf16.mxu0 0
        %1348 = vmatpush1.bf16.msra.mxu0 %v1327
        %1349 = vmatprep.subr.bf16.mxu0 0
        %1350 = vmatpush1.bf16.msra.mxu0 %v1328
        %1351 = vmatprep.subr.bf16.mxu0 0
        %1352 = vmatpush1.bf16.msra.mxu0 %v1329
        %1353 = vmatprep.subr.bf16.mxu0 0
        %1354 = vmatpush1.bf16.msra.mxu0 %v1330
        %1355 = vmatprep.subr.bf16.mxu0 0
        %1356 = vmatpush1.bf16.msra.mxu0 0
        %1357 = vmatprep.subr.bf16.mxu0 0
        %1358 = vmatpush1.bf16.msra.mxu0 0
        %1359 = vmatprep.subr.bf16.mxu0 0
        %1360 = vmatpush1.bf16.msra.mxu0 0
        %1361 = vmatprep.subr.bf16.mxu0 0
        %1362 = vmatpush1.bf16.msra.mxu0 0
        %1363 = vmatprep.subr.bf16.mxu0 0
        %1364 = vmatpush1.bf16.msra.mxu0 0
        %1365 = vmatprep.subr.bf16.mxu0 0
        %1366 = vmatpush1.bf16.msra.mxu0 0
        %1367 = vmatprep.subr.bf16.mxu0 0
        %1368 = vmatpush1.bf16.msra.mxu0 0
        %1369 = vmatprep.subr.bf16.mxu0 0
        %1370 = vmatpush1.bf16.msra.mxu0 0
        %1371 = vmatprep.mubr.bf16.mxu0 0
        %1372 = vmatmul.mubr.bf16.gmra.mrb[0].mxu0 %v1289
        %v1373 = vpop.f32.mrb[0].mxu0
        %v1374 = vadd.f32 0.0, %v1373
        %v1375 = vpop.f32.mrb[0].mxu0
        %v1376 = vpop.f32.mrb[0].mxu0
        %v1377 = vadd.f32 0.0, %v1376
        %v1378 = vpop.f32.mrb[0].mxu0
        %1379 = vdwg.mxu0
        %v1396 = vunpack.c.l.b16 %v1244
        %v1397 = vunpack.c.l.b16 %v1245
        %v1398 = vunpack.c.l.b16 %v1246
        %v1399 = vunpack.c.l.b16 %v1247
        %v1400 = vunpack.c.l.b16 %v1248
        %v1401 = vunpack.c.l.b16 %v1249
        %v1402 = vunpack.c.l.b16 %v1250
        %v1403 = vunpack.c.l.b16 %v1251
        %v1404 = vunpack.c.l.b16 %v1252
        %v1405 = vunpack.c.l.b16 %v1253
        %v1406 = vunpack.c.l.b16 %v1254
        %v1407 = vunpack.c.l.b16 %v1255
        %v1408 = vunpack.c.l.b16 %v1256
        %v1409 = vunpack.c.l.b16 %v1257
        %v1410 = vunpack.c.l.b16 %v1258
        %v1411 = vunpack.c.l.b16 %v1259
        %v1412 = vpack.c.b16 %v1397, %v1396
        %v1413 = vpack.c.b16 %v1399, %v1398
        %v1414 = vpack.c.b16 %v1401, %v1400
        %v1415 = vpack.c.b16 %v1403, %v1402
        %v1416 = vpack.c.b16 %v1405, %v1404
        %v1417 = vpack.c.b16 %v1407, %v1406
        %v1418 = vpack.c.b16 %v1409, %v1408
        %v1419 = vpack.c.b16 %v1411, %v1410
        %1428 = vmatprep.subr.bf16.mxu0 0
        %1429 = vmatpush1.bf16.msra.mxu0 %v1412
        %1430 = vmatprep.subr.bf16.mxu0 0
        %1431 = vmatpush1.bf16.msra.mxu0 %v1413
        %1432 = vmatprep.subr.bf16.mxu0 0
        %1433 = vmatpush1.bf16.msra.mxu0 %v1414
        %1434 = vmatprep.subr.bf16.mxu0 0
        %1435 = vmatpush1.bf16.msra.mxu0 %v1415
        %1436 = vmatprep.subr.bf16.mxu0 0
        %1437 = vmatpush1.bf16.msra.mxu0 %v1416
        %1438 = vmatprep.subr.bf16.mxu0 0
        %1439 = vmatpush1.bf16.msra.mxu0 %v1417
        %1440 = vmatprep.subr.bf16.mxu0 0
        %1441 = vmatpush1.bf16.msra.mxu0 %v1418
        %1442 = vmatprep.subr.bf16.mxu0 0
        %1443 = vmatpush1.bf16.msra.mxu0 %v1419
        %1444 = vmatprep.subr.bf16.mxu0 0
        %1445 = vmatpush1.bf16.msra.mxu0 0
        %1446 = vmatprep.subr.bf16.mxu0 0
        %1447 = vmatpush1.bf16.msra.mxu0 0
        %1448 = vmatprep.subr.bf16.mxu0 0
        %1449 = vmatpush1.bf16.msra.mxu0 0
        %1450 = vmatprep.subr.bf16.mxu0 0
        %1451 = vmatpush1.bf16.msra.mxu0 0
        %1452 = vmatprep.subr.bf16.mxu0 0
        %1453 = vmatpush1.bf16.msra.mxu0 0
        %1454 = vmatprep.subr.bf16.mxu0 0
        %1455 = vmatpush1.bf16.msra.mxu0 0
        %1456 = vmatprep.subr.bf16.mxu0 0
        %1457 = vmatpush1.bf16.msra.mxu0 0
        %1458 = vmatprep.subr.bf16.mxu0 0
        %1459 = vmatpush1.bf16.msra.mxu0 0
        %1460 = vmatprep.mubr.bf16.mxu0 0
        %1461 = vmatmul.mubr.bf16.gmra.mrb[0].mxu0 %v1242
        %v1462 = vpop.f32.mrb[0].mxu0
        %v1463 = vadd.f32 %v1374, %v1462
        %v1464 = vpop.f32.mrb[0].mxu0
        %v1465 = vpop.f32.mrb[0].mxu0
        %v1466 = vadd.f32 %v1377, %v1465
        %v1467 = vpop.f32.mrb[0].mxu0
        %1468 = vdwg.mxu0
        %s1469 = scalar_lea.vmem [#allocation7], 448
        %v1470 = vld [vmem:[%s1469] sm:$0xf]
        %v1471 = vld [vmem:[%s1469 + $0x4] sm:$0xf]
        %v1472 = vld [vmem:[%s1469 + $0x8] sm:$0xf]
        %v1473 = vld [vmem:[%s1469 + $0xc] sm:$0xf]
        %v1474 = vld [vmem:[%s1469 + $0x10] sm:$0xf]
        %v1475 = vld [vmem:[%s1469 + $0x14] sm:$0xf]
        %v1476 = vld [vmem:[%s1469 + $0x18] sm:$0xf]
        %v1477 = vld [vmem:[%s1469 + $0x1c] sm:$0xf]
        %v1478 = vld [vmem:[%s1469 + $0x20] sm:$0xf]
        %v1479 = vld [vmem:[%s1469 + $0x24] sm:$0xf]
        %v1480 = vld [vmem:[%s1469 + $0x28] sm:$0xf]
        %v1481 = vld [vmem:[%s1469 + $0x2c] sm:$0xf]
        %v1482 = vld [vmem:[%s1469 + $0x30] sm:$0xf]
        %v1483 = vld [vmem:[%s1469 + $0x34] sm:$0xf]
        %v1484 = vld [vmem:[%s1469 + $0x38] sm:$0xf]
        %v1485 = vld [vmem:[%s1469 + $0x3c] sm:$0xf]
        %v1488 = vrot.slane %v1242, 1
        %v1489 = vrot.slane %v1260, 1
        %v1490 = vsel %vm856, %v1488, %v1489
        %v1508 = vunpack.c.l.b16 %v1470
        %v1509 = vunpack.c.l.b16 %v1471
        %v1510 = vunpack.c.l.b16 %v1472
        %v1511 = vunpack.c.l.b16 %v1473
        %v1512 = vunpack.c.l.b16 %v1474
        %v1513 = vunpack.c.l.b16 %v1475
        %v1514 = vunpack.c.l.b16 %v1476
        %v1515 = vunpack.c.l.b16 %v1477
        %v1516 = vunpack.c.l.b16 %v1478
        %v1517 = vunpack.c.l.b16 %v1479
        %v1518 = vunpack.c.l.b16 %v1480
        %v1519 = vunpack.c.l.b16 %v1481
        %v1520 = vunpack.c.l.b16 %v1482
        %v1521 = vunpack.c.l.b16 %v1483
        %v1522 = vunpack.c.l.b16 %v1484
        %v1523 = vunpack.c.l.b16 %v1485
        %v1524 = vpack.c.b16 %v1509, %v1508
        %v1525 = vpack.c.b16 %v1511, %v1510
        %v1526 = vpack.c.b16 %v1513, %v1512
        %v1527 = vpack.c.b16 %v1515, %v1514
        %v1528 = vpack.c.b16 %v1517, %v1516
        %v1529 = vpack.c.b16 %v1519, %v1518
        %v1530 = vpack.c.b16 %v1521, %v1520
        %v1531 = vpack.c.b16 %v1523, %v1522
        %1540 = vmatprep.subr.bf16.mxu0 0
        %1541 = vmatpush1.bf16.msra.mxu0 %v1524
        %1542 = vmatprep.subr.bf16.mxu0 0
        %1543 = vmatpush1.bf16.msra.mxu0 %v1525
        %1544 = vmatprep.subr.bf16.mxu0 0
        %1545 = vmatpush1.bf16.msra.mxu0 %v1526
        %1546 = vmatprep.subr.bf16.mxu0 0
        %1547 = vmatpush1.bf16.msra.mxu0 %v1527
        %1548 = vmatprep.subr.bf16.mxu0 0
        %1549 = vmatpush1.bf16.msra.mxu0 %v1528
        %1550 = vmatprep.subr.bf16.mxu0 0
        %1551 = vmatpush1.bf16.msra.mxu0 %v1529
        %1552 = vmatprep.subr.bf16.mxu0 0
        %1553 = vmatpush1.bf16.msra.mxu0 %v1530
        %1554 = vmatprep.subr.bf16.mxu0 0
        %1555 = vmatpush1.bf16.msra.mxu0 %v1531
        %1556 = vmatprep.subr.bf16.mxu0 0
        %1557 = vmatpush1.bf16.msra.mxu0 0
        %1558 = vmatprep.subr.bf16.mxu0 0
        %1559 = vmatpush1.bf16.msra.mxu0 0
        %1560 = vmatprep.subr.bf16.mxu0 0
        %1561 = vmatpush1.bf16.msra.mxu0 0
        %1562 = vmatprep.subr.bf16.mxu0 0
        %1563 = vmatpush1.bf16.msra.mxu0 0
        %1564 = vmatprep.subr.bf16.mxu0 0
        %1565 = vmatpush1.bf16.msra.mxu0 0
        %1566 = vmatprep.subr.bf16.mxu0 0
        %1567 = vmatpush1.bf16.msra.mxu0 0
        %1568 = vmatprep.subr.bf16.mxu0 0
        %1569 = vmatpush1.bf16.msra.mxu0 0
        %1570 = vmatprep.subr.bf16.mxu0 0
        %1571 = vmatpush1.bf16.msra.mxu0 0
        %1572 = vmatprep.mubr.bf16.mxu0 0
        %1573 = vmatmul.mubr.bf16.gmra.mrb[0].mxu0 %v1490
        %v1574 = vpop.f32.mrb[0].mxu0
        %v1575 = vadd.f32 0.0, %v1574
        %v1576 = vpop.f32.mrb[0].mxu0
        %v1577 = vpop.f32.mrb[0].mxu0
        %v1578 = vadd.f32 0.0, %v1577
        %v1579 = vpop.f32.mrb[0].mxu0
        %1580 = vdwg.mxu0
        %v1581 = vadd.f32 %v1463, %v1575
        %v1582 = vadd.f32 %v1466, %v1578
        %s1583 = scalar_lea.vmem [#allocation7], 512
        %v1584 = vld [vmem:[%s1583] sm:$0xf]
        %v1585 = vld [vmem:[%s1583 + $0x4] sm:$0xf]
        %v1586 = vld [vmem:[%s1583 + $0x8] sm:$0xf]
        %v1587 = vld [vmem:[%s1583 + $0xc] sm:$0xf]
        %v1588 = vld [vmem:[%s1583 + $0x10] sm:$0xf]
        %v1589 = vld [vmem:[%s1583 + $0x14] sm:$0xf]
        %v1590 = vld [vmem:[%s1583 + $0x18] sm:$0xf]
        %v1591 = vld [vmem:[%s1583 + $0x1c] sm:$0xf]
        %v1592 = vld [vmem:[%s1583 + $0x20] sm:$0xf]
        %v1593 = vld [vmem:[%s1583 + $0x24] sm:$0xf]
        %v1594 = vld [vmem:[%s1583 + $0x28] sm:$0xf]
        %v1595 = vld [vmem:[%s1583 + $0x2c] sm:$0xf]
        %v1596 = vld [vmem:[%s1583 + $0x30] sm:$0xf]
        %v1597 = vld [vmem:[%s1583 + $0x34] sm:$0xf]
        %v1598 = vld [vmem:[%s1583 + $0x38] sm:$0xf]
        %v1599 = vld [vmem:[%s1583 + $0x3c] sm:$0xf]
        %v1600 = vrot.slane %v1279, 1
        %v1601 = vrot.slane %v1281, 2
        %v1602 = vor.u32 %v1600, %v1601
        %v1603 = vshrl.u32 %v1260, 16
        %v1605 = vrot.slane %v1603, 1
        %v1606 = vrot.slane %v1286, 2
        %v1607 = vor.u32 %v1605, %v1606
        %v1608 = vsel %vm969, %v1602, %v1607
        %v1626 = vunpack.c.l.b16 %v1584
        %v1627 = vunpack.c.l.b16 %v1585
        %v1628 = vunpack.c.l.b16 %v1586
        %v1629 = vunpack.c.l.b16 %v1587
        %v1630 = vunpack.c.l.b16 %v1588
        %v1631 = vunpack.c.l.b16 %v1589
        %v1632 = vunpack.c.l.b16 %v1590
        %v1633 = vunpack.c.l.b16 %v1591
        %v1634 = vunpack.c.l.b16 %v1592
        %v1635 = vunpack.c.l.b16 %v1593
        %v1636 = vunpack.c.l.b16 %v1594
        %v1637 = vunpack.c.l.b16 %v1595
        %v1638 = vunpack.c.l.b16 %v1596
        %v1639 = vunpack.c.l.b16 %v1597
        %v1640 = vunpack.c.l.b16 %v1598
        %v1641 = vunpack.c.l.b16 %v1599
        %v1642 = vpack.c.b16 %v1627, %v1626
        %v1643 = vpack.c.b16 %v1629, %v1628
        %v1644 = vpack.c.b16 %v1631, %v1630
        %v1645 = vpack.c.b16 %v1633, %v1632
        %v1646 = vpack.c.b16 %v1635, %v1634
        %v1647 = vpack.c.b16 %v1637, %v1636
        %v1648 = vpack.c.b16 %v1639, %v1638
        %v1649 = vpack.c.b16 %v1641, %v1640
        %1658 = vmatprep.subr.bf16.mxu0 0
        %1659 = vmatpush1.bf16.msra.mxu0 %v1642
        %1660 = vmatprep.subr.bf16.mxu0 0
        %1661 = vmatpush1.bf16.msra.mxu0 %v1643
        %1662 = vmatprep.subr.bf16.mxu0 0
        %1663 = vmatpush1.bf16.msra.mxu0 %v1644
        %1664 = vmatprep.subr.bf16.mxu0 0
        %1665 = vmatpush1.bf16.msra.mxu0 %v1645
        %1666 = vmatprep.subr.bf16.mxu0 0
        %1667 = vmatpush1.bf16.msra.mxu0 %v1646
        %1668 = vmatprep.subr.bf16.mxu0 0
        %1669 = vmatpush1.bf16.msra.mxu0 %v1647
        %1670 = vmatprep.subr.bf16.mxu0 0
        %1671 = vmatpush1.bf16.msra.mxu0 %v1648
        %1672 = vmatprep.subr.bf16.mxu0 0
        %1673 = vmatpush1.bf16.msra.mxu0 %v1649
        %1674 = vmatprep.subr.bf16.mxu0 0
        %1675 = vmatpush1.bf16.msra.mxu0 0
        %1676 = vmatprep.subr.bf16.mxu0 0
        %1677 = vmatpush1.bf16.msra.mxu0 0
        %1678 = vmatprep.subr.bf16.mxu0 0
        %1679 = vmatpush1.bf16.msra.mxu0 0
        %1680 = vmatprep.subr.bf16.mxu0 0
        %1681 = vmatpush1.bf16.msra.mxu0 0
        %1682 = vmatprep.subr.bf16.mxu0 0
        %1683 = vmatpush1.bf16.msra.mxu0 0
        %1684 = vmatprep.subr.bf16.mxu0 0
        %1685 = vmatpush1.bf16.msra.mxu0 0
        %1686 = vmatprep.subr.bf16.mxu0 0
        %1687 = vmatpush1.bf16.msra.mxu0 0
        %1688 = vmatprep.subr.bf16.mxu0 0
        %1689 = vmatpush1.bf16.msra.mxu0 0
        %1690 = vmatprep.mubr.bf16.mxu0 0
        %1691 = vmatmul.mubr.bf16.gmra.mrb[0].mxu0 %v1608
        %v1692 = vpop.f32.mrb[0].mxu0
        %v1693 = vadd.f32 0.0, %v1692
        %v1694 = vpop.f32.mrb[0].mxu0
        %v1695 = vpop.f32.mrb[0].mxu0
        %v1696 = vadd.f32 0.0, %v1695
        %v1697 = vpop.f32.mrb[0].mxu0
        %1698 = vdwg.mxu0
        %v1699 = vadd.f32 %v1581, %v1693
        %v1700 = vadd.f32 %v1582, %v1696
        %s1701 = scalar_lea.vmem [#allocation7], 576
        %v1702 = vld [vmem:[%s1701] sm:$0xf]
        %v1703 = vld [vmem:[%s1701 + $0x4] sm:$0xf]
        %v1704 = vld [vmem:[%s1701 + $0x8] sm:$0xf]
        %v1705 = vld [vmem:[%s1701 + $0xc] sm:$0xf]
        %v1706 = vld [vmem:[%s1701 + $0x10] sm:$0xf]
        %v1707 = vld [vmem:[%s1701 + $0x14] sm:$0xf]
        %v1708 = vld [vmem:[%s1701 + $0x18] sm:$0xf]
        %v1709 = vld [vmem:[%s1701 + $0x1c] sm:$0xf]
        %v1710 = vld [vmem:[%s1701 + $0x20] sm:$0xf]
        %v1711 = vld [vmem:[%s1701 + $0x24] sm:$0xf]
        %v1712 = vld [vmem:[%s1701 + $0x28] sm:$0xf]
        %v1713 = vld [vmem:[%s1701 + $0x2c] sm:$0xf]
        %v1714 = vld [vmem:[%s1701 + $0x30] sm:$0xf]
        %v1715 = vld [vmem:[%s1701 + $0x34] sm:$0xf]
        %v1716 = vld [vmem:[%s1701 + $0x38] sm:$0xf]
        %v1717 = vld [vmem:[%s1701 + $0x3c] sm:$0xf]
        %v1718 = vrot.slane %v1242, 2
        %v1719 = vrot.slane %v1260, 2
        %v1720 = vsel %vm1088, %v1718, %v1719
        %v1738 = vunpack.c.l.b16 %v1702
        %v1739 = vunpack.c.l.b16 %v1703
        %v1740 = vunpack.c.l.b16 %v1704
        %v1741 = vunpack.c.l.b16 %v1705
        %v1742 = vunpack.c.l.b16 %v1706
        %v1743 = vunpack.c.l.b16 %v1707
        %v1744 = vunpack.c.l.b16 %v1708
        %v1745 = vunpack.c.l.b16 %v1709
        %v1746 = vunpack.c.l.b16 %v1710
        %v1747 = vunpack.c.l.b16 %v1711
        %v1748 = vunpack.c.l.b16 %v1712
        %v1749 = vunpack.c.l.b16 %v1713
        %v1750 = vunpack.c.l.b16 %v1714
        %v1751 = vunpack.c.l.b16 %v1715
        %v1752 = vunpack.c.l.b16 %v1716
        %v1753 = vunpack.c.l.b16 %v1717
        %v1754 = vpack.c.b16 %v1739, %v1738
        %v1755 = vpack.c.b16 %v1741, %v1740
        %v1756 = vpack.c.b16 %v1743, %v1742
        %v1757 = vpack.c.b16 %v1745, %v1744
        %v1758 = vpack.c.b16 %v1747, %v1746
        %v1759 = vpack.c.b16 %v1749, %v1748
        %v1760 = vpack.c.b16 %v1751, %v1750
        %v1761 = vpack.c.b16 %v1753, %v1752
        %1770 = vmatprep.subr.bf16.mxu0 0
        %1771 = vmatpush1.bf16.msra.mxu0 %v1754
        %1772 = vmatprep.subr.bf16.mxu0 0
        %1773 = vmatpush1.bf16.msra.mxu0 %v1755
        %1774 = vmatprep.subr.bf16.mxu0 0
        %1775 = vmatpush1.bf16.msra.mxu0 %v1756
        %1776 = vmatprep.subr.bf16.mxu0 0
        %1777 = vmatpush1.bf16.msra.mxu0 %v1757
        %1778 = vmatprep.subr.bf16.mxu0 0
        %1779 = vmatpush1.bf16.msra.mxu0 %v1758
        %1780 = vmatprep.subr.bf16.mxu0 0
        %1781 = vmatpush1.bf16.msra.mxu0 %v1759
        %1782 = vmatprep.subr.bf16.mxu0 0
        %1783 = vmatpush1.bf16.msra.mxu0 %v1760
        %1784 = vmatprep.subr.bf16.mxu0 0
        %1785 = vmatpush1.bf16.msra.mxu0 %v1761
        %1786 = vmatprep.subr.bf16.mxu0 0
        %1787 = vmatpush1.bf16.msra.mxu0 0
        %1788 = vmatprep.subr.bf16.mxu0 0
        %1789 = vmatpush1.bf16.msra.mxu0 0
        %1790 = vmatprep.subr.bf16.mxu0 0
        %1791 = vmatpush1.bf16.msra.mxu0 0
        %1792 = vmatprep.subr.bf16.mxu0 0
        %1793 = vmatpush1.bf16.msra.mxu0 0
        %1794 = vmatprep.subr.bf16.mxu0 0
        %1795 = vmatpush1.bf16.msra.mxu0 0
        %1796 = vmatprep.subr.bf16.mxu0 0
        %1797 = vmatpush1.bf16.msra.mxu0 0
        %1798 = vmatprep.subr.bf16.mxu0 0
        %1799 = vmatpush1.bf16.msra.mxu0 0
        %1800 = vmatprep.subr.bf16.mxu0 0
        %1801 = vmatpush1.bf16.msra.mxu0 0
        %1802 = vmatprep.mubr.bf16.mxu0 0
        %1803 = vmatmul.mubr.bf16.gmra.mrb[0].mxu0 %v1720
        %v1804 = vpop.f32.mrb[0].mxu0
        %v1805 = vadd.f32 0.0, %v1804
        %v1806 = vpop.f32.mrb[0].mxu0
        %v1807 = vpop.f32.mrb[0].mxu0
        %v1808 = vadd.f32 0.0, %v1807
        %v1809 = vpop.f32.mrb[0].mxu0
        %1810 = vdwg.mxu0
        %v1811 = vadd.f32 %v1699, %v1805
        %v1812 = vadd.f32 %v1700, %v1808
        %v1813 = vlaneseq
        %v1814 = vshrl.u32 %v1813, 7
        %v1815 = vsub.s32 3, %v1814
        %v1816 = vrot.slane %v550, %v1815
        %v1817 = vadd.f32 %v1811, %v1816
        %v1818 = vadd.f32 %v1812, %v1816
        %v1819 = vmul.f32 %v1817, %v581
        %v1820 = vmul.f32 %v1818, %v581
        %1821 = vadd.xlane.f32.xlu0 %v1819
        %v1822 = vpop.xlane.xlu0 %1821
        %1823 = vadd.xlane.f32.xlu0 %v1820
        %v1824 = vpop.xlane.xlu0 %1823
        %v1825 = vmul.f32 %v1822, 0.03125
        %v1826 = vmul.f32 %v1824, 0.03125
        %v1827 = vsub.f32 %v1817, %v1825
        %v1828 = vsub.f32 %v1818, %v1826
        %v1829 = vmul.f32 %v1827, %v581
        %v1830 = vmul.f32 %v1828, %v581
        %v1831 = vmul.f32 %v1829, %v1829
        %v1832 = vmul.f32 %v1830, %v1830
        %1833 = vadd.xlane.f32.xlu0 %v1831
        %v1834 = vpop.xlane.xlu0 %1833
        %1835 = vadd.xlane.f32.xlu0 %v1832
        %v1836 = vpop.xlane.xlu0 %1835
        %v1837 = vmul.f32 %v1834, 0.03125
        %v1838 = vmul.f32 %v1836, 0.03125
        %v1839 = vadd.f32 %v1837, 0.0001
        %v1840 = vadd.f32 %v1838, 0.0001
        %v1841 = vrsqrt.pop %v1839
        %v1842 = vrsqrt.pop %v1840
        %v1843 = vmul.f32 %v1829, %v1841
        %v1844 = vmul.f32 %v1830, %v1842
        %v1845 = vlaneseq
        %v1846 = vshrl.u32 %v1845, 7
        %v1847 = vsub.s32 4, %v1846
        %v1848 = vrot.slane %v550, %v1847
        %v1849 = vmul.f32 %v1843, %v1848
        %v1850 = vmul.f32 %v1844, %v1848
        %v1851 = vlaneseq
        %v1852 = vshrl.u32 %v1851, 7
        %v1853 = vsub.s32 5, %v1852
        %v1854 = vrot.slane %v550, %v1853
        %v1855 = vadd.f32 %v1849, %v1854
        %v1856 = vadd.f32 %v1850, %v1854
        %v1857 = vmax.f32 %v1855, 0.0
        %v1858 = vmax.f32 %v1856, 0.0
        %v1859 = vpack.c.bf16 %v1858, %v1857
        %v1860 = vld [vmem:[#allocation8] sm:$0xf]
        %v1861 = vld [vmem:[#allocation8 + $0x4] sm:$0xf]
        %v1862 = vld [vmem:[#allocation8 + $0x8] sm:$0xf]
        %v1863 = vld [vmem:[#allocation8 + $0xc] sm:$0xf]
        %v1864 = vld [vmem:[#allocation8 + $0x10] sm:$0xf]
        %v1865 = vld [vmem:[#allocation8 + $0x14] sm:$0xf]
        %v1866 = vld [vmem:[#allocation8 + $0x18] sm:$0xf]
        %v1867 = vld [vmem:[#allocation8 + $0x1c] sm:$0xf]
        %v1868 = vld [vmem:[#allocation8 + $0x20] sm:$0xf]
        %v1869 = vld [vmem:[#allocation8 + $0x24] sm:$0xf]
        %v1870 = vld [vmem:[#allocation8 + $0x28] sm:$0xf]
        %v1871 = vld [vmem:[#allocation8 + $0x2c] sm:$0xf]
        %v1872 = vld [vmem:[#allocation8 + $0x30] sm:$0xf]
        %v1873 = vld [vmem:[#allocation8 + $0x34] sm:$0xf]
        %v1874 = vld [vmem:[#allocation8 + $0x38] sm:$0xf]
        %v1875 = vld [vmem:[#allocation8 + $0x3c] sm:$0xf]
        %v1892 = vunpack.c.l.b16 %v1860
        %v1893 = vunpack.c.l.b16 %v1861
        %v1894 = vunpack.c.l.b16 %v1862
        %v1895 = vunpack.c.l.b16 %v1863
        %v1896 = vunpack.c.l.b16 %v1864
        %v1897 = vunpack.c.l.b16 %v1865
        %v1898 = vunpack.c.l.b16 %v1866
        %v1899 = vunpack.c.l.b16 %v1867
        %v1900 = vunpack.c.l.b16 %v1868
        %v1901 = vunpack.c.l.b16 %v1869
        %v1902 = vunpack.c.l.b16 %v1870
        %v1903 = vunpack.c.l.b16 %v1871
        %v1904 = vunpack.c.l.b16 %v1872
        %v1905 = vunpack.c.l.b16 %v1873
        %v1906 = vunpack.c.l.b16 %v1874
        %v1907 = vunpack.c.l.b16 %v1875
        %v1908 = vpack.c.b16 %v1893, %v1892
        %v1909 = vpack.c.b16 %v1895, %v1894
        %v1910 = vpack.c.b16 %v1897, %v1896
        %v1911 = vpack.c.b16 %v1899, %v1898
        %v1912 = vpack.c.b16 %v1901, %v1900
        %v1913 = vpack.c.b16 %v1903, %v1902
        %v1914 = vpack.c.b16 %v1905, %v1904
        %v1915 = vpack.c.b16 %v1907, %v1906
        %1924 = vmatprep.subr.bf16.mxu0 0
        %1925 = vmatpush1.bf16.msra.mxu0 %v1908
        %1926 = vmatprep.subr.bf16.mxu0 0
        %1927 = vmatpush1.bf16.msra.mxu0 %v1909
        %1928 = vmatprep.subr.bf16.mxu0 0
        %1929 = vmatpush1.bf16.msra.mxu0 %v1910
        %1930 = vmatprep.subr.bf16.mxu0 0
        %1931 = vmatpush1.bf16.msra.mxu0 %v1911
        %1932 = vmatprep.subr.bf16.mxu0 0
        %1933 = vmatpush1.bf16.msra.mxu0 %v1912
        %1934 = vmatprep.subr.bf16.mxu0 0
        %1935 = vmatpush1.bf16.msra.mxu0 %v1913
        %1936 = vmatprep.subr.bf16.mxu0 0
        %1937 = vmatpush1.bf16.msra.mxu0 %v1914
        %1938 = vmatprep.subr.bf16.mxu0 0
        %1939 = vmatpush1.bf16.msra.mxu0 %v1915
        %1940 = vmatprep.subr.bf16.mxu0 0
        %1941 = vmatpush1.bf16.msra.mxu0 0
        %1942 = vmatprep.subr.bf16.mxu0 0
        %1943 = vmatpush1.bf16.msra.mxu0 0
        %1944 = vmatprep.subr.bf16.mxu0 0
        %1945 = vmatpush1.bf16.msra.mxu0 0
        %1946 = vmatprep.subr.bf16.mxu0 0
        %1947 = vmatpush1.bf16.msra.mxu0 0
        %1948 = vmatprep.subr.bf16.mxu0 0
        %1949 = vmatpush1.bf16.msra.mxu0 0
        %1950 = vmatprep.subr.bf16.mxu0 0
        %1951 = vmatpush1.bf16.msra.mxu0 0
        %1952 = vmatprep.subr.bf16.mxu0 0
        %1953 = vmatpush1.bf16.msra.mxu0 0
        %1954 = vmatprep.subr.bf16.mxu0 0
        %1955 = vmatpush1.bf16.msra.mxu0 0
        %1956 = vmatprep.mubr.bf16.mxu0 0
        %1957 = vmatmul.mubr.bf16.gmra.mrb[0].mxu0 %v1859
        %v1958 = vpop.f32.mrb[0].mxu0
        %v1959 = vadd.f32 0.0, %v1958
        %v1960 = vpop.f32.mrb[0].mxu0
        %v1961 = vpop.f32.mrb[0].mxu0
        %v1962 = vadd.f32 0.0, %v1961
        %v1963 = vpop.f32.mrb[0].mxu0
        %1964 = vdwg.mxu0
        %v1965 = vadd.f32 %v585, %v1959
        %v1966 = vadd.f32 %v586, %v1962
        %v1967 = vlaneseq
        %v1968 = vshrl.u32 %v1967, 7
        %v1969 = vsub.s32 6, %v1968
        %v1970 = vrot.slane %v550, %v1969
        %v1971 = vadd.f32 %v1965, %v1970
        %v1972 = vadd.f32 %v1966, %v1970
        %v1973 = vmul.f32 %v1971, %v590
        %v1974 = vmul.f32 %v1972, %v595
        %v1975 = vld [vmem:[%s548] sm:$0x1]
        %v1977 = vlaneseq
        %v1978 = vshrl.u32 %v1977, 7
        %v1979 = vsub.s32 0, %v1978
        %v1980 = vrot.slane %v1975, %v1979
        %v1982 = vadd.f32 %v1973, %v1980
        %v1983 = vadd.f32 %v1974, %v1980
        %v1984 = vmul.f32 %v1982, %v590
        %v1985 = vmul.f32 %v1983, %v595
        %v1986 = vpack.c.bf16 %v1985, %v1984
        %v1987 = vld [vmem:[#allocation10] sm:$0xff]
        %v1988 = vld [vmem:[#allocation10 + $0x8] sm:$0xff]
        %v1989 = vld [vmem:[#allocation10 + $0x10] sm:$0xff]
        %v1990 = vld [vmem:[#allocation10 + $0x18] sm:$0xff]
        %v1991 = vld [vmem:[#allocation10 + $0x20] sm:$0xff]
        %v1992 = vld [vmem:[#allocation10 + $0x28] sm:$0xff]
        %v1993 = vld [vmem:[#allocation10 + $0x30] sm:$0xff]
        %v1994 = vld [vmem:[#allocation10 + $0x38] sm:$0xff]
        %v1995 = vld [vmem:[#allocation10 + $0x40] sm:$0xff]
        %v1996 = vld [vmem:[#allocation10 + $0x48] sm:$0xff]
        %v1997 = vld [vmem:[#allocation10 + $0x50] sm:$0xff]
        %v1998 = vld [vmem:[#allocation10 + $0x58] sm:$0xff]
        %v1999 = vld [vmem:[#allocation10 + $0x60] sm:$0xff]
        %v2000 = vld [vmem:[#allocation10 + $0x68] sm:$0xff]
        %v2001 = vld [vmem:[#allocation10 + $0x70] sm:$0xff]
        %v2002 = vld [vmem:[#allocation10 + $0x78] sm:$0xff]
        %v2003 = vld [vmem:[#allocation10 + $0x80] sm:$0xff]
        %v2004 = vld [vmem:[#allocation10 + $0x88] sm:$0xff]
        %v2005 = vld [vmem:[#allocation10 + $0x90] sm:$0xff]
        %v2006 = vld [vmem:[#allocation10 + $0x98] sm:$0xff]
        %v2007 = vld [vmem:[#allocation10 + $0xa0] sm:$0xff]
        %v2008 = vld [vmem:[#allocation10 + $0xa8] sm:$0xff]
        %v2009 = vld [vmem:[#allocation10 + $0xb0] sm:$0xff]
        %v2010 = vld [vmem:[#allocation10 + $0xb8] sm:$0xff]
        %v2011 = vld [vmem:[#allocation10 + $0xc0] sm:$0xff]
        %v2012 = vld [vmem:[#allocation10 + $0xc8] sm:$0xff]
        %v2013 = vld [vmem:[#allocation10 + $0xd0] sm:$0xff]
        %v2014 = vld [vmem:[#allocation10 + $0xd8] sm:$0xff]
        %v2015 = vld [vmem:[#allocation10 + $0xe0] sm:$0xff]
        %v2016 = vld [vmem:[#allocation10 + $0xe8] sm:$0xff]
        %v2017 = vld [vmem:[#allocation10 + $0xf0] sm:$0xff]
        %v2018 = vld [vmem:[#allocation10 + $0xf8] sm:$0xff]
        %v2019 = vld [vmem:[#allocation10 + $0x100] sm:$0xff]
        %v2020 = vld [vmem:[#allocation10 + $0x108] sm:$0xff]
        %v2021 = vld [vmem:[#allocation10 + $0x110] sm:$0xff]
        %v2022 = vld [vmem:[#allocation10 + $0x118] sm:$0xff]
        %v2023 = vld [vmem:[#allocation10 + $0x120] sm:$0xff]
        %v2024 = vld [vmem:[#allocation10 + $0x128] sm:$0xff]
        %v2025 = vld [vmem:[#allocation10 + $0x130] sm:$0xff]
        %v2026 = vld [vmem:[#allocation10 + $0x138] sm:$0xff]
        %v2027 = vld [vmem:[#allocation10 + $0x140] sm:$0xff]
        %v2028 = vld [vmem:[#allocation10 + $0x148] sm:$0xff]
        %v2029 = vld [vmem:[#allocation10 + $0x150] sm:$0xff]
        %v2030 = vld [vmem:[#allocation10 + $0x158] sm:$0xff]
        %v2031 = vld [vmem:[#allocation10 + $0x160] sm:$0xff]
        %v2032 = vld [vmem:[#allocation10 + $0x168] sm:$0xff]
        %v2033 = vld [vmem:[#allocation10 + $0x170] sm:$0xff]
        %v2034 = vld [vmem:[#allocation10 + $0x178] sm:$0xff]
        %v2083 = vunpack.c.l.b16 %v1987
        %v2084 = vunpack.c.h.b16 %v1987
        %v2085 = vunpack.c.l.b16 %v1988
        %v2086 = vunpack.c.h.b16 %v1988
        %v2087 = vunpack.c.l.b16 %v1989
        %v2088 = vunpack.c.h.b16 %v1989
        %v2089 = vunpack.c.l.b16 %v1990
        %v2090 = vunpack.c.h.b16 %v1990
        %v2091 = vunpack.c.l.b16 %v1991
        %v2092 = vunpack.c.h.b16 %v1991
        %v2093 = vunpack.c.l.b16 %v1992
        %v2094 = vunpack.c.h.b16 %v1992
        %v2095 = vunpack.c.l.b16 %v1993
        %v2096 = vunpack.c.h.b16 %v1993
        %v2097 = vunpack.c.l.b16 %v1994
        %v2098 = vunpack.c.h.b16 %v1994
        %v2099 = vunpack.c.l.b16 %v1995
        %v2100 = vunpack.c.h.b16 %v1995
        %v2101 = vunpack.c.l.b16 %v1996
        %v2102 = vunpack.c.h.b16 %v1996
        %v2103 = vunpack.c.l.b16 %v1997
        %v2104 = vunpack.c.h.b16 %v1997
        %v2105 = vunpack.c.l.b16 %v1998
        %v2106 = vunpack.c.h.b16 %v1998
        %v2107 = vunpack.c.l.b16 %v1999
        %v2108 = vunpack.c.h.b16 %v1999
        %v2109 = vunpack.c.l.b16 %v2000
        %v2110 = vunpack.c.h.b16 %v2000
        %v2111 = vunpack.c.l.b16 %v2001
        %v2112 = vunpack.c.h.b16 %v2001
        %v2113 = vunpack.c.l.b16 %v2002
        %v2114 = vunpack.c.h.b16 %v2002
        %v2115 = vunpack.c.l.b16 %v2003
        %v2116 = vunpack.c.h.b16 %v2003
        %v2117 = vunpack.c.l.b16 %v2004
        %v2118 = vunpack.c.h.b16 %v2004
        %v2119 = vunpack.c.l.b16 %v2005
        %v2120 = vunpack.c.h.b16 %v2005
        %v2121 = vunpack.c.l.b16 %v2006
        %v2122 = vunpack.c.h.b16 %v2006
        %v2123 = vunpack.c.l.b16 %v2007
        %v2124 = vunpack.c.h.b16 %v2007
        %v2125 = vunpack.c.l.b16 %v2008
        %v2126 = vunpack.c.h.b16 %v2008
        %v2127 = vunpack.c.l.b16 %v2009
        %v2128 = vunpack.c.h.b16 %v2009
        %v2129 = vunpack.c.l.b16 %v2010
        %v2130 = vunpack.c.h.b16 %v2010
        %v2131 = vunpack.c.l.b16 %v2011
        %v2132 = vunpack.c.h.b16 %v2011
        %v2133 = vunpack.c.l.b16 %v2012
        %v2134 = vunpack.c.h.b16 %v2012
        %v2135 = vunpack.c.l.b16 %v2013
        %v2136 = vunpack.c.h.b16 %v2013
        %v2137 = vunpack.c.l.b16 %v2014
        %v2138 = vunpack.c.h.b16 %v2014
        %v2139 = vunpack.c.l.b16 %v2015
        %v2140 = vunpack.c.h.b16 %v2015
        %v2141 = vunpack.c.l.b16 %v2016
        %v2142 = vunpack.c.h.b16 %v2016
        %v2143 = vunpack.c.l.b16 %v2017
        %v2144 = vunpack.c.h.b16 %v2017
        %v2145 = vunpack.c.l.b16 %v2018
        %v2146 = vunpack.c.h.b16 %v2018
        %v2147 = vunpack.c.l.b16 %v2019
        %v2148 = vunpack.c.h.b16 %v2019
        %v2149 = vunpack.c.l.b16 %v2020
        %v2150 = vunpack.c.h.b16 %v2020
        %v2151 = vunpack.c.l.b16 %v2021
        %v2152 = vunpack.c.h.b16 %v2021
        %v2153 = vunpack.c.l.b16 %v2022
        %v2154 = vunpack.c.h.b16 %v2022
        %v2155 = vunpack.c.l.b16 %v2023
        %v2156 = vunpack.c.h.b16 %v2023
        %v2157 = vunpack.c.l.b16 %v2024
        %v2158 = vunpack.c.h.b16 %v2024
        %v2159 = vunpack.c.l.b16 %v2025
        %v2160 = vunpack.c.h.b16 %v2025
        %v2161 = vunpack.c.l.b16 %v2026
        %v2162 = vunpack.c.h.b16 %v2026
        %v2163 = vunpack.c.l.b16 %v2027
        %v2164 = vunpack.c.h.b16 %v2027
        %v2165 = vunpack.c.l.b16 %v2028
        %v2166 = vunpack.c.h.b16 %v2028
        %v2167 = vunpack.c.l.b16 %v2029
        %v2168 = vunpack.c.h.b16 %v2029
        %v2169 = vunpack.c.l.b16 %v2030
        %v2170 = vunpack.c.h.b16 %v2030
        %v2171 = vunpack.c.l.b16 %v2031
        %v2172 = vunpack.c.h.b16 %v2031
        %v2173 = vunpack.c.l.b16 %v2032
        %v2174 = vunpack.c.h.b16 %v2032
        %v2175 = vunpack.c.l.b16 %v2033
        %v2176 = vunpack.c.h.b16 %v2033
        %v2177 = vunpack.c.l.b16 %v2034
        %v2178 = vunpack.c.h.b16 %v2034
        %v2179 = vpack.c.b16 %v2089, %v2083
        %v2180 = vpack.c.b16 %v2090, %v2084
        %v2181 = vpack.c.b16 %v2091, %v2085
        %v2182 = vpack.c.b16 %v2092, %v2086
        %v2183 = vpack.c.b16 %v2093, %v2087
        %v2184 = vpack.c.b16 %v2094, %v2088
        %v2185 = vpack.c.b16 %v2101, %v2095
        %v2186 = vpack.c.b16 %v2102, %v2096
        %v2187 = vpack.c.b16 %v2103, %v2097
        %v2188 = vpack.c.b16 %v2104, %v2098
        %v2189 = vpack.c.b16 %v2105, %v2099
        %v2190 = vpack.c.b16 %v2106, %v2100
        %v2191 = vpack.c.b16 %v2113, %v2107
        %v2192 = vpack.c.b16 %v2114, %v2108
        %v2193 = vpack.c.b16 %v2115, %v2109
        %v2194 = vpack.c.b16 %v2116, %v2110
        %v2195 = vpack.c.b16 %v2117, %v2111
        %v2196 = vpack.c.b16 %v2118, %v2112
        %v2197 = vpack.c.b16 %v2125, %v2119
        %v2198 = vpack.c.b16 %v2126, %v2120
        %v2199 = vpack.c.b16 %v2127, %v2121
        %v2200 = vpack.c.b16 %v2128, %v2122
        %v2201 = vpack.c.b16 %v2129, %v2123
        %v2202 = vpack.c.b16 %v2130, %v2124
        %v2203 = vpack.c.b16 %v2137, %v2131
        %v2204 = vpack.c.b16 %v2138, %v2132
        %v2205 = vpack.c.b16 %v2139, %v2133
        %v2206 = vpack.c.b16 %v2140, %v2134
        %v2207 = vpack.c.b16 %v2141, %v2135
        %v2208 = vpack.c.b16 %v2142, %v2136
        %v2209 = vpack.c.b16 %v2149, %v2143
        %v2210 = vpack.c.b16 %v2150, %v2144
        %v2211 = vpack.c.b16 %v2151, %v2145
        %v2212 = vpack.c.b16 %v2152, %v2146
        %v2213 = vpack.c.b16 %v2153, %v2147
        %v2214 = vpack.c.b16 %v2154, %v2148
        %v2215 = vpack.c.b16 %v2161, %v2155
        %v2216 = vpack.c.b16 %v2162, %v2156
        %v2217 = vpack.c.b16 %v2163, %v2157
        %v2218 = vpack.c.b16 %v2164, %v2158
        %v2219 = vpack.c.b16 %v2165, %v2159
        %v2220 = vpack.c.b16 %v2166, %v2160
        %v2221 = vpack.c.b16 %v2173, %v2167
        %v2222 = vpack.c.b16 %v2174, %v2168
        %v2223 = vpack.c.b16 %v2175, %v2169
        %v2224 = vpack.c.b16 %v2176, %v2170
        %v2225 = vpack.c.b16 %v2177, %v2171
        %v2226 = vpack.c.b16 %v2178, %v2172
        %2275 = vmatprep.subr.bf16.mxu0 %v2180
        %2276 = vmatpush1.bf16.msra.mxu0 %v2179
        %2277 = vmatprep.subr.bf16.mxu0 %v2186
        %2278 = vmatpush1.bf16.msra.mxu0 %v2185
        %2279 = vmatprep.subr.bf16.mxu0 %v2192
        %2280 = vmatpush1.bf16.msra.mxu0 %v2191
        %2281 = vmatprep.subr.bf16.mxu0 %v2198
        %2282 = vmatpush1.bf16.msra.mxu0 %v2197
        %2283 = vmatprep.subr.bf16.mxu0 %v2204
        %2284 = vmatpush1.bf16.msra.mxu0 %v2203
        %2285 = vmatprep.subr.bf16.mxu0 %v2210
        %2286 = vmatpush1.bf16.msra.mxu0 %v2209
        %2287 = vmatprep.subr.bf16.mxu0 %v2216
        %2288 = vmatpush1.bf16.msra.mxu0 %v2215
        %2289 = vmatprep.subr.bf16.mxu0 %v2222
        %2290 = vmatpush1.bf16.msra.mxu0 %v2221
        %2291 = vmatprep.subr.bf16.mxu0 0
        %2292 = vmatpush1.bf16.msra.mxu0 0
        %2293 = vmatprep.subr.bf16.mxu0 0
        %2294 = vmatpush1.bf16.msra.mxu0 0
        %2295 = vmatprep.subr.bf16.mxu0 0
        %2296 = vmatpush1.bf16.msra.mxu0 0
        %2297 = vmatprep.subr.bf16.mxu0 0
        %2298 = vmatpush1.bf16.msra.mxu0 0
        %2299 = vmatprep.subr.bf16.mxu0 0
        %2300 = vmatpush1.bf16.msra.mxu0 0
        %2301 = vmatprep.subr.bf16.mxu0 0
        %2302 = vmatpush1.bf16.msra.mxu0 0
        %2303 = vmatprep.subr.bf16.mxu0 0
        %2304 = vmatpush1.bf16.msra.mxu0 0
        %2305 = vmatprep.subr.bf16.mxu0 0
        %2306 = vmatpush1.bf16.msra.mxu0 0
        %2307 = vmatprep.mubr.bf16.mxu0 0
        %2308 = vmatmul.mubr.bf16.gmra.mrb[0].mxu0 %v1986
        %v2309 = vpop.f32.mrb[0].mxu0
        %v2310 = vadd.f32 0.0, %v2309
        %v2311 = vpop.f32.mrb[0].mxu0
        %v2312 = vadd.f32 0.0, %v2311
        %v2313 = vpop.f32.mrb[0].mxu0
        %v2314 = vadd.f32 0.0, %v2313
        %v2315 = vpop.f32.mrb[0].mxu0
        %v2316 = vadd.f32 0.0, %v2315
        %2317 = vdwg.mxu0
        %2318 = vmatprep.subr.bf16.mxu0 %v2182
        %2319 = vmatpush1.bf16.msra.mxu0 %v2181
        %2320 = vmatprep.subr.bf16.mxu0 %v2188
        %2321 = vmatpush1.bf16.msra.mxu0 %v2187
        %2322 = vmatprep.subr.bf16.mxu0 %v2194
        %2323 = vmatpush1.bf16.msra.mxu0 %v2193
        %2324 = vmatprep.subr.bf16.mxu0 %v2200
        %2325 = vmatpush1.bf16.msra.mxu0 %v2199
        %2326 = vmatprep.subr.bf16.mxu0 %v2206
        %2327 = vmatpush1.bf16.msra.mxu0 %v2205
        %2328 = vmatprep.subr.bf16.mxu0 %v2212
        %2329 = vmatpush1.bf16.msra.mxu0 %v2211
        %2330 = vmatprep.subr.bf16.mxu0 %v2218
        %2331 = vmatpush1.bf16.msra.mxu0 %v2217
        %2332 = vmatprep.subr.bf16.mxu0 %v2224
        %2333 = vmatpush1.bf16.msra.mxu0 %v2223
        %2334 = vmatprep.subr.bf16.mxu0 0
        %2335 = vmatpush1.bf16.msra.mxu0 0
        %2336 = vmatprep.subr.bf16.mxu0 0
        %2337 = vmatpush1.bf16.msra.mxu0 0
        %2338 = vmatprep.subr.bf16.mxu0 0
        %2339 = vmatpush1.bf16.msra.mxu0 0
        %2340 = vmatprep.subr.bf16.mxu0 0
        %2341 = vmatpush1.bf16.msra.mxu0 0
        %2342 = vmatprep.subr.bf16.mxu0 0
        %2343 = vmatpush1.bf16.msra.mxu0 0
        %2344 = vmatprep.subr.bf16.mxu0 0
        %2345 = vmatpush1.bf16.msra.mxu0 0
        %2346 = vmatprep.subr.bf16.mxu0 0
        %2347 = vmatpush1.bf16.msra.mxu0 0
        %2348 = vmatprep.subr.bf16.mxu0 0
        %2349 = vmatpush1.bf16.msra.mxu0 0
        %2350 = vmatprep.mubr.bf16.mxu0 0
        %2351 = vmatmul.mubr.bf16.gmra.mrb[0].mxu0 %v1986
        %v2352 = vpop.f32.mrb[0].mxu0
        %v2353 = vadd.f32 0.0, %v2352
        %v2354 = vpop.f32.mrb[0].mxu0
        %v2355 = vadd.f32 0.0, %v2354
        %v2356 = vpop.f32.mrb[0].mxu0
        %v2357 = vadd.f32 0.0, %v2356
        %v2358 = vpop.f32.mrb[0].mxu0
        %v2359 = vadd.f32 0.0, %v2358
        %2360 = vdwg.mxu0
        %2361 = vmatprep.subr.bf16.mxu0 %v2184
        %2362 = vmatpush1.bf16.msra.mxu0 %v2183
        %2363 = vmatprep.subr.bf16.mxu0 %v2190
        %2364 = vmatpush1.bf16.msra.mxu0 %v2189
        %2365 = vmatprep.subr.bf16.mxu0 %v2196
        %2366 = vmatpush1.bf16.msra.mxu0 %v2195
        %2367 = vmatprep.subr.bf16.mxu0 %v2202
        %2368 = vmatpush1.bf16.msra.mxu0 %v2201
        %2369 = vmatprep.subr.bf16.mxu0 %v2208
        %2370 = vmatpush1.bf16.msra.mxu0 %v2207
        %2371 = vmatprep.subr.bf16.mxu0 %v2214
        %2372 = vmatpush1.bf16.msra.mxu0 %v2213
        %2373 = vmatprep.subr.bf16.mxu0 %v2220
        %2374 = vmatpush1.bf16.msra.mxu0 %v2219
        %2375 = vmatprep.subr.bf16.mxu0 %v2226
        %2376 = vmatpush1.bf16.msra.mxu0 %v2225
        %2377 = vmatprep.subr.bf16.mxu0 0
        %2378 = vmatpush1.bf16.msra.mxu0 0
        %2379 = vmatprep.subr.bf16.mxu0 0
        %2380 = vmatpush1.bf16.msra.mxu0 0
        %2381 = vmatprep.subr.bf16.mxu0 0
        %2382 = vmatpush1.bf16.msra.mxu0 0
        %2383 = vmatprep.subr.bf16.mxu0 0
        %2384 = vmatpush1.bf16.msra.mxu0 0
        %2385 = vmatprep.subr.bf16.mxu0 0
        %2386 = vmatpush1.bf16.msra.mxu0 0
        %2387 = vmatprep.subr.bf16.mxu0 0
        %2388 = vmatpush1.bf16.msra.mxu0 0
        %2389 = vmatprep.subr.bf16.mxu0 0
        %2390 = vmatpush1.bf16.msra.mxu0 0
        %2391 = vmatprep.subr.bf16.mxu0 0
        %2392 = vmatpush1.bf16.msra.mxu0 0
        %2393 = vmatprep.mubr.bf16.mxu0 0
        %2394 = vmatmul.mubr.bf16.gmra.mrb[0].mxu0 %v1986
        %v2395 = vpop.f32.mrb[0].mxu0
        %v2396 = vadd.f32 0.0, %v2395
        %v2397 = vpop.f32.mrb[0].mxu0
        %v2398 = vadd.f32 0.0, %v2397
        %v2399 = vpop.f32.mrb[0].mxu0
        %v2400 = vadd.f32 0.0, %v2399
        %v2401 = vpop.f32.mrb[0].mxu0
        %v2402 = vadd.f32 0.0, %v2401
        %2403 = vdwg.mxu0
        %v2404 = vlaneseq
        %v2405 = vshrl.u32 %v2404, 7
        %v2406 = vsub.s32 7, %v2405
        %v2407 = vrot.slane %v550, %v2406
        %v2408 = vadd.f32 %v2310, %v2407
        %v2409 = vadd.f32 %v2314, %v2407
        %v2410 = vlaneseq
        %v2411 = vshrl.u32 %v2410, 7
        %v2412 = vsub.s32 0, %v2411
        %v2413 = vrot.slane %v551, %v2412
        %v2414 = vadd.f32 %v2353, %v2413
        %v2415 = vadd.f32 %v2357, %v2413
        %v2416 = vlaneseq
        %v2417 = vshrl.u32 %v2416, 7
        %v2418 = vsub.s32 1, %v2417
        %v2419 = vrot.slane %v551, %v2418
        %v2420 = vadd.f32 %v2396, %v2419
        %v2421 = vadd.f32 %v2400, %v2419
        %v2422 = vpack.c.bf16 %v2409, %v2408
        %v2423 = vpack.c.bf16 %v2415, %v2414
        %2424 = vmatprep.subr.bf16.mxu0 0
        %2425 = vmatpush1.bf16.xpose.msra.mxu0 %v2423
        %2426 = vmatprep.subr.bf16.mxu0 0
        %2427 = vmatpush1.bf16.xpose.msra.mxu0 0
        %2428 = vmatprep.subr.bf16.mxu0 0
        %2429 = vmatpush1.bf16.xpose.msra.mxu0 0
        %2430 = vmatprep.subr.bf16.mxu0 0
        %2431 = vmatpush1.bf16.xpose.msra.mxu0 0
        %2432 = vmatprep.subr.bf16.mxu0 0
        %2433 = vmatpush1.bf16.xpose.msra.mxu0 0
        %2434 = vmatprep.subr.bf16.mxu0 0
        %2435 = vmatpush1.bf16.xpose.msra.mxu0 0
        %2436 = vmatprep.subr.bf16.mxu0 0
        %2437 = vmatpush1.bf16.xpose.msra.mxu0 0
        %2438 = vmatprep.subr.bf16.mxu0 0
        %2439 = vmatpush1.bf16.xpose.msra.mxu0 0
        %2440 = vmatprep.subr.bf16.mxu0 0
        %2441 = vmatpush1.bf16.xpose.msra.mxu0 0
        %2442 = vmatprep.subr.bf16.mxu0 0
        %2443 = vmatpush1.bf16.xpose.msra.mxu0 0
        %2444 = vmatprep.subr.bf16.mxu0 0
        %2445 = vmatpush1.bf16.xpose.msra.mxu0 0
        %2446 = vmatprep.subr.bf16.mxu0 0
        %2447 = vmatpush1.bf16.xpose.msra.mxu0 0
        %2448 = vmatprep.subr.bf16.mxu0 0
        %2449 = vmatpush1.bf16.xpose.msra.mxu0 0
        %2450 = vmatprep.subr.bf16.mxu0 0
        %2451 = vmatpush1.bf16.xpose.msra.mxu0 0
        %2452 = vmatprep.subr.bf16.mxu0 0
        %2453 = vmatpush1.bf16.xpose.msra.mxu0 0
        %2454 = vmatprep.subr.bf16.mxu0 0
        %2455 = vmatpush1.bf16.xpose.msra.mxu0 0
        %2456 = vmatprep.mubr.bf16.mxu0 0
        %2457 = vmatmul.mubr.bf16.gmra.mrb[0].mxu0 %v2422
        %v2458 = vpop.f32.mrb[0].mxu0
        %v2459 = vadd.f32 0.0, %v2458
        %v2460 = vpop.f32.mrb[0].mxu0
        %v2461 = vpop.f32.mrb[0].mxu0
        %v2462 = vadd.f32 0.0, %v2461
        %v2463 = vpop.f32.mrb[0].mxu0
        %2464 = vdwg.mxu0
        %v2465 = vmul.f32 %v2459, 0.2236068
        %v2466 = vmul.f32 %v2462, 0.2236068
        %v2467 = vsel %vm577, %v2465, -10000.0
        %v2468 = vsel %vm578, %v2466, -10000.0
        %vm2469 = vcmask 130048
        %v2470 = vsel %vm2469, %v2467, -inf
        %2471 = vmax.xlane.f32.xlu0 %v2470
        %v2472 = vpop.xlane.xlu0 %2471
        %v2473 = vsel %vm2469, %v2468, -inf
        %2474 = vmax.xlane.f32.xlu0 %v2473
        %v2475 = vpop.xlane.xlu0 %2474
        %v2476 = vsub.f32 %v2467, %v2472
        %v2477 = vsub.f32 %v2468, %v2475
        %v2478 = vmul.f32 %v2476, 1.442695
        %v2479 = vpow.pop %v2478
        %v2480 = vmul.f32 %v2477, 1.442695
        %v2481 = vpow.pop %v2480
        %v2482 = vsel %vm2469, %v2479, 0.0
        %2483 = vadd.xlane.f32.xlu0 %v2482
        %v2484 = vpop.xlane.xlu0 %2483
        %v2485 = vsel %vm2469, %v2481, 0.0
        %2486 = vadd.xlane.f32.xlu0 %v2485
        %v2487 = vpop.xlane.xlu0 %2486
        %v2488 = vrcp.pop %v2484
        %v2489 = vrcp.pop %v2487
        %v2490 = vmul.f32 %v2479, %v2488
        %v2491 = vmul.f32 %v2481, %v2489
        %v2492 = vpack.c.bf16 %v2491, %v2490
        %v2493 = vpack.c.bf16 %v2421, %v2420
        %v2495 = vsel %vm2469, %v2492, 0
        %2497 = vmatprep.subr.bf16.mxu0 0
        %2498 = vmatpush1.bf16.msra.mxu0 %v2493
        %2499 = vmatprep.subr.bf16.mxu0 0
        %2500 = vmatpush1.bf16.msra.mxu0 0
        %2501 = vmatprep.subr.bf16.mxu0 0
        %2502 = vmatpush1.bf16.msra.mxu0 0
        %2503 = vmatprep.subr.bf16.mxu0 0
        %2504 = vmatpush1.bf16.msra.mxu0 0
        %2505 = vmatprep.subr.bf16.mxu0 0
        %2506 = vmatpush1.bf16.msra.mxu0 0
        %2507 = vmatprep.subr.bf16.mxu0 0
        %2508 = vmatpush1.bf16.msra.mxu0 0
        %2509 = vmatprep.subr.bf16.mxu0 0
        %2510 = vmatpush1.bf16.msra.mxu0 0
        %2511 = vmatprep.subr.bf16.mxu0 0
        %2512 = vmatpush1.bf16.msra.mxu0 0
        %2513 = vmatprep.subr.bf16.mxu0 0
        %2514 = vmatpush1.bf16.msra.mxu0 0
        %2515 = vmatprep.subr.bf16.mxu0 0
        %2516 = vmatpush1.bf16.msra.mxu0 0
        %2517 = vmatprep.subr.bf16.mxu0 0
        %2518 = vmatpush1.bf16.msra.mxu0 0
        %2519 = vmatprep.subr.bf16.mxu0 0
        %2520 = vmatpush1.bf16.msra.mxu0 0
        %2521 = vmatprep.subr.bf16.mxu0 0
        %2522 = vmatpush1.bf16.msra.mxu0 0
        %2523 = vmatprep.subr.bf16.mxu0 0
        %2524 = vmatpush1.bf16.msra.mxu0 0
        %2525 = vmatprep.subr.bf16.mxu0 0
        %2526 = vmatpush1.bf16.msra.mxu0 0
        %2527 = vmatprep.subr.bf16.mxu0 0
        %2528 = vmatpush1.bf16.msra.mxu0 0
        %2529 = vmatprep.mubr.bf16.mxu0 0
        %2530 = vmatmul.mubr.bf16.gmra.mrb[0].mxu0 %v2495
        %v2531 = vpop.f32.mrb[0].mxu0
        %v2532 = vadd.f32 0.0, %v2531
        %v2533 = vpop.f32.mrb[0].mxu0
        %v2534 = vpop.f32.mrb[0].mxu0
        %v2535 = vadd.f32 0.0, %v2534
        %v2536 = vpop.f32.mrb[0].mxu0
        %2537 = vdwg.mxu0
        %v2538 = vpack.c.bf16 %v2535, %v2532
        %v2539 = vld [vmem:[#allocation11] sm:$0xf]
        %v2540 = vld [vmem:[#allocation11 + $0x4] sm:$0xf]
        %v2541 = vld [vmem:[#allocation11 + $0x8] sm:$0xf]
        %v2542 = vld [vmem:[#allocation11 + $0xc] sm:$0xf]
        %v2543 = vld [vmem:[#allocation11 + $0x10] sm:$0xf]
        %v2544 = vld [vmem:[#allocation11 + $0x14] sm:$0xf]
        %v2545 = vld [vmem:[#allocation11 + $0x18] sm:$0xf]
        %v2546 = vld [vmem:[#allocation11 + $0x1c] sm:$0xf]
        %v2547 = vld [vmem:[#allocation11 + $0x20] sm:$0xf]
        %v2548 = vld [vmem:[#allocation11 + $0x24] sm:$0xf]
        %v2549 = vld [vmem:[#allocation11 + $0x28] sm:$0xf]
        %v2550 = vld [vmem:[#allocation11 + $0x2c] sm:$0xf]
        %v2551 = vld [vmem:[#allocation11 + $0x30] sm:$0xf]
        %v2552 = vld [vmem:[#allocation11 + $0x34] sm:$0xf]
        %v2553 = vld [vmem:[#allocation11 + $0x38] sm:$0xf]
        %v2554 = vld [vmem:[#allocation11 + $0x3c] sm:$0xf]
        %v2555 = vlaneseq
        %v2556 = vshrl.u32 %v2555, 7
        %v2557 = vsub.s32 2, %v2556
        %v2558 = vrot.slane %v551, %v2557
        %v2559 = vadd.f32 %v2312, %v2558
        %v2560 = vadd.f32 %v2316, %v2558
        %v2561 = vlaneseq
        %v2562 = vshrl.u32 %v2561, 7
        %v2563 = vsub.s32 3, %v2562
        %v2564 = vrot.slane %v551, %v2563
        %v2565 = vadd.f32 %v2355, %v2564
        %v2566 = vadd.f32 %v2359, %v2564
        %v2567 = vlaneseq
        %v2568 = vshrl.u32 %v2567, 7
        %v2569 = vsub.s32 4, %v2568
        %v2570 = vrot.slane %v551, %v2569
        %v2571 = vadd.f32 %v2398, %v2570
        %v2572 = vadd.f32 %v2402, %v2570
        %v2573 = vpack.c.bf16 %v2560, %v2559
        %v2574 = vpack.c.bf16 %v2566, %v2565
        %2575 = vmatprep.subr.bf16.mxu0 0
        %2576 = vmatpush1.bf16.xpose.msra.mxu0 %v2574
        %2577 = vmatprep.subr.bf16.mxu0 0
        %2578 = vmatpush1.bf16.xpose.msra.mxu0 0
        %2579 = vmatprep.subr.bf16.mxu0 0
        %2580 = vmatpush1.bf16.xpose.msra.mxu0 0
        %2581 = vmatprep.subr.bf16.mxu0 0
        %2582 = vmatpush1.bf16.xpose.msra.mxu0 0
        %2583 = vmatprep.subr.bf16.mxu0 0
        %2584 = vmatpush1.bf16.xpose.msra.mxu0 0
        %2585 = vmatprep.subr.bf16.mxu0 0
        %2586 = vmatpush1.bf16.xpose.msra.mxu0 0
        %2587 = vmatprep.subr.bf16.mxu0 0
        %2588 = vmatpush1.bf16.xpose.msra.mxu0 0
        %2589 = vmatprep.subr.bf16.mxu0 0
        %2590 = vmatpush1.bf16.xpose.msra.mxu0 0
        %2591 = vmatprep.subr.bf16.mxu0 0
        %2592 = vmatpush1.bf16.xpose.msra.mxu0 0
        %2593 = vmatprep.subr.bf16.mxu0 0
        %2594 = vmatpush1.bf16.xpose.msra.mxu0 0
        %2595 = vmatprep.subr.bf16.mxu0 0
        %2596 = vmatpush1.bf16.xpose.msra.mxu0 0
        %2597 = vmatprep.subr.bf16.mxu0 0
        %2598 = vmatpush1.bf16.xpose.msra.mxu0 0
        %2599 = vmatprep.subr.bf16.mxu0 0
        %2600 = vmatpush1.bf16.xpose.msra.mxu0 0
        %2601 = vmatprep.subr.bf16.mxu0 0
        %2602 = vmatpush1.bf16.xpose.msra.mxu0 0
        %2603 = vmatprep.subr.bf16.mxu0 0
        %2604 = vmatpush1.bf16.xpose.msra.mxu0 0
        %2605 = vmatprep.subr.bf16.mxu0 0
        %2606 = vmatpush1.bf16.xpose.msra.mxu0 0
        %2607 = vmatprep.mubr.bf16.mxu0 0
        %2608 = vmatmul.mubr.bf16.gmra.mrb[0].mxu0 %v2573
        %v2609 = vpop.f32.mrb[0].mxu0
        %v2610 = vadd.f32 0.0, %v2609
        %v2611 = vpop.f32.mrb[0].mxu0
        %v2612 = vpop.f32.mrb[0].mxu0
        %v2613 = vadd.f32 0.0, %v2612
        %v2614 = vpop.f32.mrb[0].mxu0
        %2615 = vdwg.mxu0
        %v2616 = vmul.f32 %v2610, 0.2236068
        %v2617 = vmul.f32 %v2613, 0.2236068
        %v2618 = vsel %vm577, %v2616, -10000.0
        %v2619 = vsel %vm578, %v2617, -10000.0
        %v2620 = vsel %vm2469, %v2618, -inf
        %2621 = vmax.xlane.f32.xlu0 %v2620
        %v2622 = vpop.xlane.xlu0 %2621
        %v2623 = vsel %vm2469, %v2619, -inf
        %2624 = vmax.xlane.f32.xlu0 %v2623
        %v2625 = vpop.xlane.xlu0 %2624
        %v2626 = vsub.f32 %v2618, %v2622
        %v2627 = vsub.f32 %v2619, %v2625
        %v2628 = vmul.f32 %v2626, 1.442695
        %v2629 = vpow.pop %v2628
        %v2630 = vmul.f32 %v2627, 1.442695
        %v2631 = vpow.pop %v2630
        %v2632 = vsel %vm2469, %v2629, 0.0
        %2633 = vadd.xlane.f32.xlu0 %v2632
        %v2634 = vpop.xlane.xlu0 %2633
        %v2635 = vsel %vm2469, %v2631, 0.0
        %2636 = vadd.xlane.f32.xlu0 %v2635
        %v2637 = vpop.xlane.xlu0 %2636
        %v2638 = vrcp.pop %v2634
        %v2639 = vrcp.pop %v2637
        %v2640 = vmul.f32 %v2629, %v2638
        %v2641 = vmul.f32 %v2631, %v2639
        %v2642 = vpack.c.bf16 %v2641, %v2640
        %v2643 = vpack.c.bf16 %v2572, %v2571
        %v2645 = vsel %vm2469, %v2642, 0
        %2647 = vmatprep.subr.bf16.mxu0 0
        %2648 = vmatpush1.bf16.msra.mxu0 %v2643
        %2649 = vmatprep.subr.bf16.mxu0 0
        %2650 = vmatpush1.bf16.msra.mxu0 0
        %2651 = vmatprep.subr.bf16.mxu0 0
        %2652 = vmatpush1.bf16.msra.mxu0 0
        %2653 = vmatprep.subr.bf16.mxu0 0
        %2654 = vmatpush1.bf16.msra.mxu0 0
        %2655 = vmatprep.subr.bf16.mxu0 0
        %2656 = vmatpush1.bf16.msra.mxu0 0
        %2657 = vmatprep.subr.bf16.mxu0 0
        %2658 = vmatpush1.bf16.msra.mxu0 0
        %2659 = vmatprep.subr.bf16.mxu0 0
        %2660 = vmatpush1.bf16.msra.mxu0 0
        %2661 = vmatprep.subr.bf16.mxu0 0
        %2662 = vmatpush1.bf16.msra.mxu0 0
        %2663 = vmatprep.subr.bf16.mxu0 0
        %2664 = vmatpush1.bf16.msra.mxu0 0
        %2665 = vmatprep.subr.bf16.mxu0 0
        %2666 = vmatpush1.bf16.msra.mxu0 0
        %2667 = vmatprep.subr.bf16.mxu0 0
        %2668 = vmatpush1.bf16.msra.mxu0 0
        %2669 = vmatprep.subr.bf16.mxu0 0
        %2670 = vmatpush1.bf16.msra.mxu0 0
        %2671 = vmatprep.subr.bf16.mxu0 0
        %2672 = vmatpush1.bf16.msra.mxu0 0
        %2673 = vmatprep.subr.bf16.mxu0 0
        %2674 = vmatpush1.bf16.msra.mxu0 0
        %2675 = vmatprep.subr.bf16.mxu0 0
        %2676 = vmatpush1.bf16.msra.mxu0 0
        %2677 = vmatprep.subr.bf16.mxu0 0
        %2678 = vmatpush1.bf16.msra.mxu0 0
        %2679 = vmatprep.mubr.bf16.mxu0 0
        %2680 = vmatmul.mubr.bf16.gmra.mrb[0].mxu0 %v2645
        %v2681 = vpop.f32.mrb[0].mxu0
        %v2682 = vadd.f32 0.0, %v2681
        %v2683 = vpop.f32.mrb[0].mxu0
        %v2684 = vpop.f32.mrb[0].mxu0
        %v2685 = vadd.f32 0.0, %v2684
        %v2686 = vpop.f32.mrb[0].mxu0
        %2687 = vdwg.mxu0
        %v2688 = vpack.c.bf16 %v2685, %v2682
        %s2689 = scalar_lea.vmem [#allocation11], 64
        %v2690 = vld [vmem:[%s2689] sm:$0xf]
        %v2691 = vld [vmem:[%s2689 + $0x4] sm:$0xf]
        %v2692 = vld [vmem:[%s2689 + $0x8] sm:$0xf]
        %v2693 = vld [vmem:[%s2689 + $0xc] sm:$0xf]
        %v2694 = vld [vmem:[%s2689 + $0x10] sm:$0xf]
        %v2695 = vld [vmem:[%s2689 + $0x14] sm:$0xf]
        %v2696 = vld [vmem:[%s2689 + $0x18] sm:$0xf]
        %v2697 = vld [vmem:[%s2689 + $0x1c] sm:$0xf]
        %v2698 = vld [vmem:[%s2689 + $0x20] sm:$0xf]
        %v2699 = vld [vmem:[%s2689 + $0x24] sm:$0xf]
        %v2700 = vld [vmem:[%s2689 + $0x28] sm:$0xf]
        %v2701 = vld [vmem:[%s2689 + $0x2c] sm:$0xf]
        %v2702 = vld [vmem:[%s2689 + $0x30] sm:$0xf]
        %v2703 = vld [vmem:[%s2689 + $0x34] sm:$0xf]
        %v2704 = vld [vmem:[%s2689 + $0x38] sm:$0xf]
        %v2705 = vld [vmem:[%s2689 + $0x3c] sm:$0xf]
        %v2722 = vunpack.c.l.b16 %v2690
        %v2723 = vunpack.c.l.b16 %v2691
        %v2724 = vunpack.c.l.b16 %v2692
        %v2725 = vunpack.c.l.b16 %v2693
        %v2726 = vunpack.c.l.b16 %v2694
        %v2727 = vunpack.c.l.b16 %v2695
        %v2728 = vunpack.c.l.b16 %v2696
        %v2729 = vunpack.c.l.b16 %v2697
        %v2730 = vunpack.c.l.b16 %v2698
        %v2731 = vunpack.c.l.b16 %v2699
        %v2732 = vunpack.c.l.b16 %v2700
        %v2733 = vunpack.c.l.b16 %v2701
        %v2734 = vunpack.c.l.b16 %v2702
        %v2735 = vunpack.c.l.b16 %v2703
        %v2736 = vunpack.c.l.b16 %v2704
        %v2737 = vunpack.c.l.b16 %v2705
        %v2738 = vpack.c.b16 %v2723, %v2722
        %v2739 = vpack.c.b16 %v2725, %v2724
        %v2740 = vpack.c.b16 %v2727, %v2726
        %v2741 = vpack.c.b16 %v2729, %v2728
        %v2742 = vpack.c.b16 %v2731, %v2730
        %v2743 = vpack.c.b16 %v2733, %v2732
        %v2744 = vpack.c.b16 %v2735, %v2734
        %v2745 = vpack.c.b16 %v2737, %v2736
        %2754 = vmatprep.subr.bf16.mxu0 0
        %2755 = vmatpush1.bf16.msra.mxu0 %v2738
        %2756 = vmatprep.subr.bf16.mxu0 0
        %2757 = vmatpush1.bf16.msra.mxu0 %v2739
        %2758 = vmatprep.subr.bf16.mxu0 0
        %2759 = vmatpush1.bf16.msra.mxu0 %v2740
        %2760 = vmatprep.subr.bf16.mxu0 0
        %2761 = vmatpush1.bf16.msra.mxu0 %v2741
        %2762 = vmatprep.subr.bf16.mxu0 0
        %2763 = vmatpush1.bf16.msra.mxu0 %v2742
        %2764 = vmatprep.subr.bf16.mxu0 0
        %2765 = vmatpush1.bf16.msra.mxu0 %v2743
        %2766 = vmatprep.subr.bf16.mxu0 0
        %2767 = vmatpush1.bf16.msra.mxu0 %v2744
        %2768 = vmatprep.subr.bf16.mxu0 0
        %2769 = vmatpush1.bf16.msra.mxu0 %v2745
        %2770 = vmatprep.subr.bf16.mxu0 0
        %2771 = vmatpush1.bf16.msra.mxu0 0
        %2772 = vmatprep.subr.bf16.mxu0 0
        %2773 = vmatpush1.bf16.msra.mxu0 0
        %2774 = vmatprep.subr.bf16.mxu0 0
        %2775 = vmatpush1.bf16.msra.mxu0 0
        %2776 = vmatprep.subr.bf16.mxu0 0
        %2777 = vmatpush1.bf16.msra.mxu0 0
        %2778 = vmatprep.subr.bf16.mxu0 0
        %2779 = vmatpush1.bf16.msra.mxu0 0
        %2780 = vmatprep.subr.bf16.mxu0 0
        %2781 = vmatpush1.bf16.msra.mxu0 0
        %2782 = vmatprep.subr.bf16.mxu0 0
        %2783 = vmatpush1.bf16.msra.mxu0 0
        %2784 = vmatprep.subr.bf16.mxu0 0
        %2785 = vmatpush1.bf16.msra.mxu0 0
        %2786 = vmatprep.mubr.bf16.mxu0 0
        %2787 = vmatmul.mubr.bf16.gmra.mrb[0].mxu0 %v2688
        %v2788 = vpop.f32.mrb[0].mxu0
        %v2789 = vadd.f32 0.0, %v2788
        %v2790 = vpop.f32.mrb[0].mxu0
        %v2791 = vpop.f32.mrb[0].mxu0
        %v2792 = vadd.f32 0.0, %v2791
        %v2793 = vpop.f32.mrb[0].mxu0
        %2794 = vdwg.mxu0
        %v2811 = vunpack.c.l.b16 %v2539
        %v2812 = vunpack.c.l.b16 %v2540
        %v2813 = vunpack.c.l.b16 %v2541
        %v2814 = vunpack.c.l.b16 %v2542
        %v2815 = vunpack.c.l.b16 %v2543
        %v2816 = vunpack.c.l.b16 %v2544
        %v2817 = vunpack.c.l.b16 %v2545
        %v2818 = vunpack.c.l.b16 %v2546
        %v2819 = vunpack.c.l.b16 %v2547
        %v2820 = vunpack.c.l.b16 %v2548
        %v2821 = vunpack.c.l.b16 %v2549
        %v2822 = vunpack.c.l.b16 %v2550
        %v2823 = vunpack.c.l.b16 %v2551
        %v2824 = vunpack.c.l.b16 %v2552
        %v2825 = vunpack.c.l.b16 %v2553
        %v2826 = vunpack.c.l.b16 %v2554
        %v2827 = vpack.c.b16 %v2812, %v2811
        %v2828 = vpack.c.b16 %v2814, %v2813
        %v2829 = vpack.c.b16 %v2816, %v2815
        %v2830 = vpack.c.b16 %v2818, %v2817
        %v2831 = vpack.c.b16 %v2820, %v2819
        %v2832 = vpack.c.b16 %v2822, %v2821
        %v2833 = vpack.c.b16 %v2824, %v2823
        %v2834 = vpack.c.b16 %v2826, %v2825
        %2843 = vmatprep.subr.bf16.mxu0 0
        %2844 = vmatpush1.bf16.msra.mxu0 %v2827
        %2845 = vmatprep.subr.bf16.mxu0 0
        %2846 = vmatpush1.bf16.msra.mxu0 %v2828
        %2847 = vmatprep.subr.bf16.mxu0 0
        %2848 = vmatpush1.bf16.msra.mxu0 %v2829
        %2849 = vmatprep.subr.bf16.mxu0 0
        %2850 = vmatpush1.bf16.msra.mxu0 %v2830
        %2851 = vmatprep.subr.bf16.mxu0 0
        %2852 = vmatpush1.bf16.msra.mxu0 %v2831
        %2853 = vmatprep.subr.bf16.mxu0 0
        %2854 = vmatpush1.bf16.msra.mxu0 %v2832
        %2855 = vmatprep.subr.bf16.mxu0 0
        %2856 = vmatpush1.bf16.msra.mxu0 %v2833
        %2857 = vmatprep.subr.bf16.mxu0 0
        %2858 = vmatpush1.bf16.msra.mxu0 %v2834
        %2859 = vmatprep.subr.bf16.mxu0 0
        %2860 = vmatpush1.bf16.msra.mxu0 0
        %2861 = vmatprep.subr.bf16.mxu0 0
        %2862 = vmatpush1.bf16.msra.mxu0 0
        %2863 = vmatprep.subr.bf16.mxu0 0
        %2864 = vmatpush1.bf16.msra.mxu0 0
        %2865 = vmatprep.subr.bf16.mxu0 0
        %2866 = vmatpush1.bf16.msra.mxu0 0
        %2867 = vmatprep.subr.bf16.mxu0 0
        %2868 = vmatpush1.bf16.msra.mxu0 0
        %2869 = vmatprep.subr.bf16.mxu0 0
        %2870 = vmatpush1.bf16.msra.mxu0 0
        %2871 = vmatprep.subr.bf16.mxu0 0
        %2872 = vmatpush1.bf16.msra.mxu0 0
        %2873 = vmatprep.subr.bf16.mxu0 0
        %2874 = vmatpush1.bf16.msra.mxu0 0
        %2875 = vmatprep.mubr.bf16.mxu0 0
        %2876 = vmatmul.mubr.bf16.gmra.mrb[0].mxu0 %v2538
        %v2877 = vpop.f32.mrb[0].mxu0
        %v2878 = vadd.f32 %v2789, %v2877
        %v2879 = vpop.f32.mrb[0].mxu0
        %v2880 = vpop.f32.mrb[0].mxu0
        %v2881 = vadd.f32 %v2792, %v2880
        %v2882 = vpop.f32.mrb[0].mxu0
        %2883 = vdwg.mxu0
        %v2884 = vlaneseq
        %v2885 = vshrl.u32 %v2884, 7
        %v2886 = vsub.s32 5, %v2885
        %v2887 = vrot.slane %v551, %v2886
        %v2888 = vadd.f32 %v2878, %v2887
        %v2889 = vadd.f32 %v2881, %v2887
        %v2890 = vadd.f32 %v1984, %v2888
        %v2891 = vadd.f32 %v1985, %v2889
        %v2892 = vmul.f32 %v2890, %v584
        %v2893 = vmul.f32 %v2891, %v584
        %2894 = vadd.xlane.f32.xlu0 %v2892
        %v2895 = vpop.xlane.xlu0 %2894
        %2896 = vadd.xlane.f32.xlu0 %v2893
        %v2897 = vpop.xlane.xlu0 %2896
        %v2898 = vmul.f32 %v2895, 0.025
        %v2899 = vmul.f32 %v2897, 0.025
        %v2900 = vsub.f32 %v2890, %v2898
        %v2901 = vsub.f32 %v2891, %v2899
        %v2902 = vmul.f32 %v2900, %v584
        %v2903 = vmul.f32 %v2901, %v584
        %v2904 = vmul.f32 %v2902, %v2902
        %v2905 = vmul.f32 %v2903, %v2903
        %2906 = vadd.xlane.f32.xlu0 %v2904
        %v2907 = vpop.xlane.xlu0 %2906
        %2908 = vadd.xlane.f32.xlu0 %v2905
        %v2909 = vpop.xlane.xlu0 %2908
        %v2910 = vmul.f32 %v2907, 0.025
        %v2911 = vmul.f32 %v2909, 0.025
        %v2912 = vadd.f32 %v2910, 0.0001
        %v2913 = vadd.f32 %v2911, 0.0001
        %v2914 = vrsqrt.pop %v2912
        %v2915 = vrsqrt.pop %v2913
        %v2916 = vmul.f32 %v2902, %v2914
        %v2917 = vmul.f32 %v2903, %v2915
        %v2918 = vlaneseq
        %v2919 = vshrl.u32 %v2918, 7
        %v2920 = vsub.s32 6, %v2919
        %v2921 = vrot.slane %v551, %v2920
        %v2922 = vmul.f32 %v2916, %v2921
        %v2923 = vmul.f32 %v2917, %v2921
        %v2924 = vlaneseq
        %v2925 = vshrl.u32 %v2924, 7
        %v2926 = vsub.s32 7, %v2925
        %v2927 = vrot.slane %v551, %v2926
        %v2928 = vadd.f32 %v2922, %v2927
        %v2929 = vadd.f32 %v2923, %v2927
        %v2930 = vmul.f32 %v2928, %v590
        %v2931 = vmul.f32 %v2929, %v595
        %vm2934 = vcmask 1040384
        %v2935 = vrot.slane %v2930, 7
        %v2936 = vrot.slane %v2931, 7
        %v2937 = vsel %vm2934, %v2935, %v2936
        %v2941 = vsel %vm2934, 0.0, %v2935
        %v2942 = vsel %vm2934, %v2936, 0.0
        %v2943 = vpack.c.bf16 %v2937, %v2941
        %v2944 = vld [vmem:[#allocation13] sm:$0xf]
        %v2945 = vld [vmem:[#allocation13 + $0x4] sm:$0xf]
        %v2946 = vld [vmem:[#allocation13 + $0x8] sm:$0xf]
        %v2947 = vld [vmem:[#allocation13 + $0xc] sm:$0xf]
        %v2948 = vld [vmem:[#allocation13 + $0x10] sm:$0xf]
        %v2949 = vld [vmem:[#allocation13 + $0x14] sm:$0xf]
        %v2950 = vld [vmem:[#allocation13 + $0x18] sm:$0xf]
        %v2951 = vld [vmem:[#allocation13 + $0x1c] sm:$0xf]
        %v2952 = vld [vmem:[#allocation13 + $0x20] sm:$0xf]
        %v2953 = vld [vmem:[#allocation13 + $0x24] sm:$0xf]
        %v2954 = vld [vmem:[#allocation13 + $0x28] sm:$0xf]
        %v2955 = vld [vmem:[#allocation13 + $0x2c] sm:$0xf]
        %v2956 = vld [vmem:[#allocation13 + $0x30] sm:$0xf]
        %v2957 = vld [vmem:[#allocation13 + $0x34] sm:$0xf]
        %v2958 = vld [vmem:[#allocation13 + $0x38] sm:$0xf]
        %v2959 = vld [vmem:[#allocation13 + $0x3c] sm:$0xf]
        %v2960 = vpack.c.bf16 %v2942, %v2942
        %s2961 = scalar_lea.vmem [#allocation13], 64
        %v2962 = vld [vmem:[%s2961] sm:$0xf]
        %v2963 = vld [vmem:[%s2961 + $0x4] sm:$0xf]
        %v2964 = vld [vmem:[%s2961 + $0x8] sm:$0xf]
        %v2965 = vld [vmem:[%s2961 + $0xc] sm:$0xf]
        %v2966 = vld [vmem:[%s2961 + $0x10] sm:$0xf]
        %v2967 = vld [vmem:[%s2961 + $0x14] sm:$0xf]
        %v2968 = vld [vmem:[%s2961 + $0x18] sm:$0xf]
        %v2969 = vld [vmem:[%s2961 + $0x1c] sm:$0xf]
        %v2970 = vld [vmem:[%s2961 + $0x20] sm:$0xf]
        %v2971 = vld [vmem:[%s2961 + $0x24] sm:$0xf]
        %v2972 = vld [vmem:[%s2961 + $0x28] sm:$0xf]
        %v2973 = vld [vmem:[%s2961 + $0x2c] sm:$0xf]
        %v2974 = vld [vmem:[%s2961 + $0x30] sm:$0xf]
        %v2975 = vld [vmem:[%s2961 + $0x34] sm:$0xf]
        %v2976 = vld [vmem:[%s2961 + $0x38] sm:$0xf]
        %v2977 = vld [vmem:[%s2961 + $0x3c] sm:$0xf]
        %v2979 = vshrl.u32 %v2943, 16
        %v2981 = vshll.u32 %v2943, 16
        %v2983 = vrot.slane %v2981, 1
        %v2984 = vor.u32 %v2979, %v2983
        %v2986 = vshll.u32 %v2960, 16
        %v2988 = vrot.slane %v2986, 1
        %v2989 = vsel %vm645, %v2984, %v2988
        %v3007 = vunpack.c.l.b16 %v2962
        %v3008 = vunpack.c.l.b16 %v2963
        %v3009 = vunpack.c.l.b16 %v2964
        %v3010 = vunpack.c.l.b16 %v2965
        %v3011 = vunpack.c.l.b16 %v2966
        %v3012 = vunpack.c.l.b16 %v2967
        %v3013 = vunpack.c.l.b16 %v2968
        %v3014 = vunpack.c.l.b16 %v2969
        %v3015 = vunpack.c.l.b16 %v2970
        %v3016 = vunpack.c.l.b16 %v2971
        %v3017 = vunpack.c.l.b16 %v2972
        %v3018 = vunpack.c.l.b16 %v2973
        %v3019 = vunpack.c.l.b16 %v2974
        %v3020 = vunpack.c.l.b16 %v2975
        %v3021 = vunpack.c.l.b16 %v2976
        %v3022 = vunpack.c.l.b16 %v2977
        %v3023 = vpack.c.b16 %v3008, %v3007
        %v3024 = vpack.c.b16 %v3010, %v3009
        %v3025 = vpack.c.b16 %v3012, %v3011
        %v3026 = vpack.c.b16 %v3014, %v3013
        %v3027 = vpack.c.b16 %v3016, %v3015
        %v3028 = vpack.c.b16 %v3018, %v3017
        %v3029 = vpack.c.b16 %v3020, %v3019
        %v3030 = vpack.c.b16 %v3022, %v3021
        %3039 = vmatprep.subr.bf16.mxu0 0
        %3040 = vmatpush1.bf16.msra.mxu0 %v3023
        %3041 = vmatprep.subr.bf16.mxu0 0
        %3042 = vmatpush1.bf16.msra.mxu0 %v3024
        %3043 = vmatprep.subr.bf16.mxu0 0
        %3044 = vmatpush1.bf16.msra.mxu0 %v3025
        %3045 = vmatprep.subr.bf16.mxu0 0
        %3046 = vmatpush1.bf16.msra.mxu0 %v3026
        %3047 = vmatprep.subr.bf16.mxu0 0
        %3048 = vmatpush1.bf16.msra.mxu0 %v3027
        %3049 = vmatprep.subr.bf16.mxu0 0
        %3050 = vmatpush1.bf16.msra.mxu0 %v3028
        %3051 = vmatprep.subr.bf16.mxu0 0
        %3052 = vmatpush1.bf16.msra.mxu0 %v3029
        %3053 = vmatprep.subr.bf16.mxu0 0
        %3054 = vmatpush1.bf16.msra.mxu0 %v3030
        %3055 = vmatprep.subr.bf16.mxu0 0
        %3056 = vmatpush1.bf16.msra.mxu0 0
        %3057 = vmatprep.subr.bf16.mxu0 0
        %3058 = vmatpush1.bf16.msra.mxu0 0
        %3059 = vmatprep.subr.bf16.mxu0 0
        %3060 = vmatpush1.bf16.msra.mxu0 0
        %3061 = vmatprep.subr.bf16.mxu0 0
        %3062 = vmatpush1.bf16.msra.mxu0 0
        %3063 = vmatprep.subr.bf16.mxu0 0
        %3064 = vmatpush1.bf16.msra.mxu0 0
        %3065 = vmatprep.subr.bf16.mxu0 0
        %3066 = vmatpush1.bf16.msra.mxu0 0
        %3067 = vmatprep.subr.bf16.mxu0 0
        %3068 = vmatpush1.bf16.msra.mxu0 0
        %3069 = vmatprep.subr.bf16.mxu0 0
        %3070 = vmatpush1.bf16.msra.mxu0 0
        %3071 = vmatprep.mubr.bf16.mxu0 0
        %3072 = vmatmul.mubr.bf16.gmra.mrb[0].mxu0 %v2989
        %v3073 = vpop.f32.mrb[0].mxu0
        %v3074 = vadd.f32 0.0, %v3073
        %v3075 = vpop.f32.mrb[0].mxu0
        %v3076 = vpop.f32.mrb[0].mxu0
        %v3077 = vadd.f32 0.0, %v3076
        %v3078 = vpop.f32.mrb[0].mxu0
        %3079 = vdwg.mxu0
        %v3096 = vunpack.c.l.b16 %v2944
        %v3097 = vunpack.c.l.b16 %v2945
        %v3098 = vunpack.c.l.b16 %v2946
        %v3099 = vunpack.c.l.b16 %v2947
        %v3100 = vunpack.c.l.b16 %v2948
        %v3101 = vunpack.c.l.b16 %v2949
        %v3102 = vunpack.c.l.b16 %v2950
        %v3103 = vunpack.c.l.b16 %v2951
        %v3104 = vunpack.c.l.b16 %v2952
        %v3105 = vunpack.c.l.b16 %v2953
        %v3106 = vunpack.c.l.b16 %v2954
        %v3107 = vunpack.c.l.b16 %v2955
        %v3108 = vunpack.c.l.b16 %v2956
        %v3109 = vunpack.c.l.b16 %v2957
        %v3110 = vunpack.c.l.b16 %v2958
        %v3111 = vunpack.c.l.b16 %v2959
        %v3112 = vpack.c.b16 %v3097, %v3096
        %v3113 = vpack.c.b16 %v3099, %v3098
        %v3114 = vpack.c.b16 %v3101, %v3100
        %v3115 = vpack.c.b16 %v3103, %v3102
        %v3116 = vpack.c.b16 %v3105, %v3104
        %v3117 = vpack.c.b16 %v3107, %v3106
        %v3118 = vpack.c.b16 %v3109, %v3108
        %v3119 = vpack.c.b16 %v3111, %v3110
        %3128 = vmatprep.subr.bf16.mxu0 0
        %3129 = vmatpush1.bf16.msra.mxu0 %v3112
        %3130 = vmatprep.subr.bf16.mxu0 0
        %3131 = vmatpush1.bf16.msra.mxu0 %v3113
        %3132 = vmatprep.subr.bf16.mxu0 0
        %3133 = vmatpush1.bf16.msra.mxu0 %v3114
        %3134 = vmatprep.subr.bf16.mxu0 0
        %3135 = vmatpush1.bf16.msra.mxu0 %v3115
        %3136 = vmatprep.subr.bf16.mxu0 0
        %3137 = vmatpush1.bf16.msra.mxu0 %v3116
        %3138 = vmatprep.subr.bf16.mxu0 0
        %3139 = vmatpush1.bf16.msra.mxu0 %v3117
        %3140 = vmatprep.subr.bf16.mxu0 0
        %3141 = vmatpush1.bf16.msra.mxu0 %v3118
        %3142 = vmatprep.subr.bf16.mxu0 0
        %3143 = vmatpush1.bf16.msra.mxu0 %v3119
        %3144 = vmatprep.subr.bf16.mxu0 0
        %3145 = vmatpush1.bf16.msra.mxu0 0
        %3146 = vmatprep.subr.bf16.mxu0 0
        %3147 = vmatpush1.bf16.msra.mxu0 0
        %3148 = vmatprep.subr.bf16.mxu0 0
        %3149 = vmatpush1.bf16.msra.mxu0 0
        %3150 = vmatprep.subr.bf16.mxu0 0
        %3151 = vmatpush1.bf16.msra.mxu0 0
        %3152 = vmatprep.subr.bf16.mxu0 0
        %3153 = vmatpush1.bf16.msra.mxu0 0
        %3154 = vmatprep.subr.bf16.mxu0 0
        %3155 = vmatpush1.bf16.msra.mxu0 0
        %3156 = vmatprep.subr.bf16.mxu0 0
        %3157 = vmatpush1.bf16.msra.mxu0 0
        %3158 = vmatprep.subr.bf16.mxu0 0
        %3159 = vmatpush1.bf16.msra.mxu0 0
        %3160 = vmatprep.mubr.bf16.mxu0 0
        %3161 = vmatmul.mubr.bf16.gmra.mrb[0].mxu0 %v2943
        %v3162 = vpop.f32.mrb[0].mxu0
        %v3163 = vadd.f32 %v3074, %v3162
        %v3164 = vpop.f32.mrb[0].mxu0
        %v3165 = vpop.f32.mrb[0].mxu0
        %v3166 = vadd.f32 %v3077, %v3165
        %v3167 = vpop.f32.mrb[0].mxu0
        %3168 = vdwg.mxu0
        %s3169 = scalar_lea.vmem [#allocation13], 128
        %v3170 = vld [vmem:[%s3169] sm:$0xf]
        %v3171 = vld [vmem:[%s3169 + $0x4] sm:$0xf]
        %v3172 = vld [vmem:[%s3169 + $0x8] sm:$0xf]
        %v3173 = vld [vmem:[%s3169 + $0xc] sm:$0xf]
        %v3174 = vld [vmem:[%s3169 + $0x10] sm:$0xf]
        %v3175 = vld [vmem:[%s3169 + $0x14] sm:$0xf]
        %v3176 = vld [vmem:[%s3169 + $0x18] sm:$0xf]
        %v3177 = vld [vmem:[%s3169 + $0x1c] sm:$0xf]
        %v3178 = vld [vmem:[%s3169 + $0x20] sm:$0xf]
        %v3179 = vld [vmem:[%s3169 + $0x24] sm:$0xf]
        %v3180 = vld [vmem:[%s3169 + $0x28] sm:$0xf]
        %v3181 = vld [vmem:[%s3169 + $0x2c] sm:$0xf]
        %v3182 = vld [vmem:[%s3169 + $0x30] sm:$0xf]
        %v3183 = vld [vmem:[%s3169 + $0x34] sm:$0xf]
        %v3184 = vld [vmem:[%s3169 + $0x38] sm:$0xf]
        %v3185 = vld [vmem:[%s3169 + $0x3c] sm:$0xf]
        %v3188 = vrot.slane %v2943, 1
        %v3189 = vrot.slane %v2960, 1
        %v3190 = vsel %vm856, %v3188, %v3189
        %v3208 = vunpack.c.l.b16 %v3170
        %v3209 = vunpack.c.l.b16 %v3171
        %v3210 = vunpack.c.l.b16 %v3172
        %v3211 = vunpack.c.l.b16 %v3173
        %v3212 = vunpack.c.l.b16 %v3174
        %v3213 = vunpack.c.l.b16 %v3175
        %v3214 = vunpack.c.l.b16 %v3176
        %v3215 = vunpack.c.l.b16 %v3177
        %v3216 = vunpack.c.l.b16 %v3178
        %v3217 = vunpack.c.l.b16 %v3179
        %v3218 = vunpack.c.l.b16 %v3180
        %v3219 = vunpack.c.l.b16 %v3181
        %v3220 = vunpack.c.l.b16 %v3182
        %v3221 = vunpack.c.l.b16 %v3183
        %v3222 = vunpack.c.l.b16 %v3184
        %v3223 = vunpack.c.l.b16 %v3185
        %v3224 = vpack.c.b16 %v3209, %v3208
        %v3225 = vpack.c.b16 %v3211, %v3210
        %v3226 = vpack.c.b16 %v3213, %v3212
        %v3227 = vpack.c.b16 %v3215, %v3214
        %v3228 = vpack.c.b16 %v3217, %v3216
        %v3229 = vpack.c.b16 %v3219, %v3218
        %v3230 = vpack.c.b16 %v3221, %v3220
        %v3231 = vpack.c.b16 %v3223, %v3222
        %3240 = vmatprep.subr.bf16.mxu0 0
        %3241 = vmatpush1.bf16.msra.mxu0 %v3224
        %3242 = vmatprep.subr.bf16.mxu0 0
        %3243 = vmatpush1.bf16.msra.mxu0 %v3225
        %3244 = vmatprep.subr.bf16.mxu0 0
        %3245 = vmatpush1.bf16.msra.mxu0 %v3226
        %3246 = vmatprep.subr.bf16.mxu0 0
        %3247 = vmatpush1.bf16.msra.mxu0 %v3227
        %3248 = vmatprep.subr.bf16.mxu0 0
        %3249 = vmatpush1.bf16.msra.mxu0 %v3228
        %3250 = vmatprep.subr.bf16.mxu0 0
        %3251 = vmatpush1.bf16.msra.mxu0 %v3229
        %3252 = vmatprep.subr.bf16.mxu0 0
        %3253 = vmatpush1.bf16.msra.mxu0 %v3230
        %3254 = vmatprep.subr.bf16.mxu0 0
        %3255 = vmatpush1.bf16.msra.mxu0 %v3231
        %3256 = vmatprep.subr.bf16.mxu0 0
        %3257 = vmatpush1.bf16.msra.mxu0 0
        %3258 = vmatprep.subr.bf16.mxu0 0
        %3259 = vmatpush1.bf16.msra.mxu0 0
        %3260 = vmatprep.subr.bf16.mxu0 0
        %3261 = vmatpush1.bf16.msra.mxu0 0
        %3262 = vmatprep.subr.bf16.mxu0 0
        %3263 = vmatpush1.bf16.msra.mxu0 0
        %3264 = vmatprep.subr.bf16.mxu0 0
        %3265 = vmatpush1.bf16.msra.mxu0 0
        %3266 = vmatprep.subr.bf16.mxu0 0
        %3267 = vmatpush1.bf16.msra.mxu0 0
        %3268 = vmatprep.subr.bf16.mxu0 0
        %3269 = vmatpush1.bf16.msra.mxu0 0
        %3270 = vmatprep.subr.bf16.mxu0 0
        %3271 = vmatpush1.bf16.msra.mxu0 0
        %3272 = vmatprep.mubr.bf16.mxu0 0
        %3273 = vmatmul.mubr.bf16.gmra.mrb[0].mxu0 %v3190
        %v3274 = vpop.f32.mrb[0].mxu0
        %v3275 = vadd.f32 0.0, %v3274
        %v3276 = vpop.f32.mrb[0].mxu0
        %v3277 = vpop.f32.mrb[0].mxu0
        %v3278 = vadd.f32 0.0, %v3277
        %v3279 = vpop.f32.mrb[0].mxu0
        %3280 = vdwg.mxu0
        %v3281 = vadd.f32 %v3163, %v3275
        %v3282 = vadd.f32 %v3166, %v3278
        %v3283 = vlaneseq
        %v3284 = vshrl.u32 %v3283, 7
        %v3285 = vsub.s32 0, %v3284
        %v3286 = vrot.slane %v552, %v3285
        %v3287 = vadd.f32 %v3281, %v3286
        %v3288 = vadd.f32 %v3282, %v3286
        %v3289 = vmax.f32 %v3287, 0.0
        %v3290 = vmax.f32 %v3288, 0.0
        %v3291 = vmul.f32 %v3289, %v590
        %v3292 = vmul.f32 %v3290, %v595
        %v3295 = vrot.slane %v3291, 7
        %v3296 = vrot.slane %v3292, 7
        %v3297 = vsel %vm2934, %v3295, %v3296
        %v3301 = vsel %vm2934, 0.0, %v3295
        %v3302 = vsel %vm2934, %v3296, 0.0
        %v3303 = vpack.c.bf16 %v3297, %v3301
        %v3304 = vld [vmem:[#allocation14] sm:$0xf]
        %v3305 = vld [vmem:[#allocation14 + $0x4] sm:$0xf]
        %v3306 = vld [vmem:[#allocation14 + $0x8] sm:$0xf]
        %v3307 = vld [vmem:[#allocation14 + $0xc] sm:$0xf]
        %v3308 = vld [vmem:[#allocation14 + $0x10] sm:$0xf]
        %v3309 = vld [vmem:[#allocation14 + $0x14] sm:$0xf]
        %v3310 = vld [vmem:[#allocation14 + $0x18] sm:$0xf]
        %v3311 = vld [vmem:[#allocation14 + $0x1c] sm:$0xf]
        %v3312 = vld [vmem:[#allocation14 + $0x20] sm:$0xf]
        %v3313 = vld [vmem:[#allocation14 + $0x24] sm:$0xf]
        %v3314 = vld [vmem:[#allocation14 + $0x28] sm:$0xf]
        %v3315 = vld [vmem:[#allocation14 + $0x2c] sm:$0xf]
        %v3316 = vld [vmem:[#allocation14 + $0x30] sm:$0xf]
        %v3317 = vld [vmem:[#allocation14 + $0x34] sm:$0xf]
        %v3318 = vld [vmem:[#allocation14 + $0x38] sm:$0xf]
        %v3319 = vld [vmem:[#allocation14 + $0x3c] sm:$0xf]
        %v3320 = vpack.c.bf16 %v3302, %v3302
        %s3321 = scalar_lea.vmem [#allocation14], 64
        %v3322 = vld [vmem:[%s3321] sm:$0xf]
        %v3323 = vld [vmem:[%s3321 + $0x4] sm:$0xf]
        %v3324 = vld [vmem:[%s3321 + $0x8] sm:$0xf]
        %v3325 = vld [vmem:[%s3321 + $0xc] sm:$0xf]
        %v3326 = vld [vmem:[%s3321 + $0x10] sm:$0xf]
        %v3327 = vld [vmem:[%s3321 + $0x14] sm:$0xf]
        %v3328 = vld [vmem:[%s3321 + $0x18] sm:$0xf]
        %v3329 = vld [vmem:[%s3321 + $0x1c] sm:$0xf]
        %v3330 = vld [vmem:[%s3321 + $0x20] sm:$0xf]
        %v3331 = vld [vmem:[%s3321 + $0x24] sm:$0xf]
        %v3332 = vld [vmem:[%s3321 + $0x28] sm:$0xf]
        %v3333 = vld [vmem:[%s3321 + $0x2c] sm:$0xf]
        %v3334 = vld [vmem:[%s3321 + $0x30] sm:$0xf]
        %v3335 = vld [vmem:[%s3321 + $0x34] sm:$0xf]
        %v3336 = vld [vmem:[%s3321 + $0x38] sm:$0xf]
        %v3337 = vld [vmem:[%s3321 + $0x3c] sm:$0xf]
        %v3339 = vshrl.u32 %v3303, 16
        %v3341 = vshll.u32 %v3303, 16
        %v3343 = vrot.slane %v3341, 1
        %v3344 = vor.u32 %v3339, %v3343
        %v3346 = vshll.u32 %v3320, 16
        %v3348 = vrot.slane %v3346, 1
        %v3349 = vsel %vm645, %v3344, %v3348
        %v3367 = vunpack.c.l.b16 %v3322
        %v3368 = vunpack.c.l.b16 %v3323
        %v3369 = vunpack.c.l.b16 %v3324
        %v3370 = vunpack.c.l.b16 %v3325
        %v3371 = vunpack.c.l.b16 %v3326
        %v3372 = vunpack.c.l.b16 %v3327
        %v3373 = vunpack.c.l.b16 %v3328
        %v3374 = vunpack.c.l.b16 %v3329
        %v3375 = vunpack.c.l.b16 %v3330
        %v3376 = vunpack.c.l.b16 %v3331
        %v3377 = vunpack.c.l.b16 %v3332
        %v3378 = vunpack.c.l.b16 %v3333
        %v3379 = vunpack.c.l.b16 %v3334
        %v3380 = vunpack.c.l.b16 %v3335
        %v3381 = vunpack.c.l.b16 %v3336
        %v3382 = vunpack.c.l.b16 %v3337
        %v3383 = vpack.c.b16 %v3368, %v3367
        %v3384 = vpack.c.b16 %v3370, %v3369
        %v3385 = vpack.c.b16 %v3372, %v3371
        %v3386 = vpack.c.b16 %v3374, %v3373
        %v3387 = vpack.c.b16 %v3376, %v3375
        %v3388 = vpack.c.b16 %v3378, %v3377
        %v3389 = vpack.c.b16 %v3380, %v3379
        %v3390 = vpack.c.b16 %v3382, %v3381
        %3399 = vmatprep.subr.bf16.mxu0 0
        %3400 = vmatpush1.bf16.msra.mxu0 %v3383
        %3401 = vmatprep.subr.bf16.mxu0 0
        %3402 = vmatpush1.bf16.msra.mxu0 %v3384
        %3403 = vmatprep.subr.bf16.mxu0 0
        %3404 = vmatpush1.bf16.msra.mxu0 %v3385
        %3405 = vmatprep.subr.bf16.mxu0 0
        %3406 = vmatpush1.bf16.msra.mxu0 %v3386
        %3407 = vmatprep.subr.bf16.mxu0 0
        %3408 = vmatpush1.bf16.msra.mxu0 %v3387
        %3409 = vmatprep.subr.bf16.mxu0 0
        %3410 = vmatpush1.bf16.msra.mxu0 %v3388
        %3411 = vmatprep.subr.bf16.mxu0 0
        %3412 = vmatpush1.bf16.msra.mxu0 %v3389
        %3413 = vmatprep.subr.bf16.mxu0 0
        %3414 = vmatpush1.bf16.msra.mxu0 %v3390
        %3415 = vmatprep.subr.bf16.mxu0 0
        %3416 = vmatpush1.bf16.msra.mxu0 0
        %3417 = vmatprep.subr.bf16.mxu0 0
        %3418 = vmatpush1.bf16.msra.mxu0 0
        %3419 = vmatprep.subr.bf16.mxu0 0
        %3420 = vmatpush1.bf16.msra.mxu0 0
        %3421 = vmatprep.subr.bf16.mxu0 0
        %3422 = vmatpush1.bf16.msra.mxu0 0
        %3423 = vmatprep.subr.bf16.mxu0 0
        %3424 = vmatpush1.bf16.msra.mxu0 0
        %3425 = vmatprep.subr.bf16.mxu0 0
        %3426 = vmatpush1.bf16.msra.mxu0 0
        %3427 = vmatprep.subr.bf16.mxu0 0
        %3428 = vmatpush1.bf16.msra.mxu0 0
        %3429 = vmatprep.subr.bf16.mxu0 0
        %3430 = vmatpush1.bf16.msra.mxu0 0
        %3431 = vmatprep.mubr.bf16.mxu0 0
        %3432 = vmatmul.mubr.bf16.gmra.mrb[0].mxu0 %v3349
        %v3433 = vpop.f32.mrb[0].mxu0
        %v3434 = vadd.f32 0.0, %v3433
        %v3435 = vpop.f32.mrb[0].mxu0
        %v3436 = vpop.f32.mrb[0].mxu0
        %v3437 = vadd.f32 0.0, %v3436
        %v3438 = vpop.f32.mrb[0].mxu0
        %3439 = vdwg.mxu0
        %v3456 = vunpack.c.l.b16 %v3304
        %v3457 = vunpack.c.l.b16 %v3305
        %v3458 = vunpack.c.l.b16 %v3306
        %v3459 = vunpack.c.l.b16 %v3307
        %v3460 = vunpack.c.l.b16 %v3308
        %v3461 = vunpack.c.l.b16 %v3309
        %v3462 = vunpack.c.l.b16 %v3310
        %v3463 = vunpack.c.l.b16 %v3311
        %v3464 = vunpack.c.l.b16 %v3312
        %v3465 = vunpack.c.l.b16 %v3313
        %v3466 = vunpack.c.l.b16 %v3314
        %v3467 = vunpack.c.l.b16 %v3315
        %v3468 = vunpack.c.l.b16 %v3316
        %v3469 = vunpack.c.l.b16 %v3317
        %v3470 = vunpack.c.l.b16 %v3318
        %v3471 = vunpack.c.l.b16 %v3319
        %v3472 = vpack.c.b16 %v3457, %v3456
        %v3473 = vpack.c.b16 %v3459, %v3458
        %v3474 = vpack.c.b16 %v3461, %v3460
        %v3475 = vpack.c.b16 %v3463, %v3462
        %v3476 = vpack.c.b16 %v3465, %v3464
        %v3477 = vpack.c.b16 %v3467, %v3466
        %v3478 = vpack.c.b16 %v3469, %v3468
        %v3479 = vpack.c.b16 %v3471, %v3470
        %3488 = vmatprep.subr.bf16.mxu0 0
        %3489 = vmatpush1.bf16.msra.mxu0 %v3472
        %3490 = vmatprep.subr.bf16.mxu0 0
        %3491 = vmatpush1.bf16.msra.mxu0 %v3473
        %3492 = vmatprep.subr.bf16.mxu0 0
        %3493 = vmatpush1.bf16.msra.mxu0 %v3474
        %3494 = vmatprep.subr.bf16.mxu0 0
        %3495 = vmatpush1.bf16.msra.mxu0 %v3475
        %3496 = vmatprep.subr.bf16.mxu0 0
        %3497 = vmatpush1.bf16.msra.mxu0 %v3476
        %3498 = vmatprep.subr.bf16.mxu0 0
        %3499 = vmatpush1.bf16.msra.mxu0 %v3477
        %3500 = vmatprep.subr.bf16.mxu0 0
        %3501 = vmatpush1.bf16.msra.mxu0 %v3478
        %3502 = vmatprep.subr.bf16.mxu0 0
        %3503 = vmatpush1.bf16.msra.mxu0 %v3479
        %3504 = vmatprep.subr.bf16.mxu0 0
        %3505 = vmatpush1.bf16.msra.mxu0 0
        %3506 = vmatprep.subr.bf16.mxu0 0
        %3507 = vmatpush1.bf16.msra.mxu0 0
        %3508 = vmatprep.subr.bf16.mxu0 0
        %3509 = vmatpush1.bf16.msra.mxu0 0
        %3510 = vmatprep.subr.bf16.mxu0 0
        %3511 = vmatpush1.bf16.msra.mxu0 0
        %3512 = vmatprep.subr.bf16.mxu0 0
        %3513 = vmatpush1.bf16.msra.mxu0 0
        %3514 = vmatprep.subr.bf16.mxu0 0
        %3515 = vmatpush1.bf16.msra.mxu0 0
        %3516 = vmatprep.subr.bf16.mxu0 0
        %3517 = vmatpush1.bf16.msra.mxu0 0
        %3518 = vmatprep.subr.bf16.mxu0 0
        %3519 = vmatpush1.bf16.msra.mxu0 0
        %3520 = vmatprep.mubr.bf16.mxu0 0
        %3521 = vmatmul.mubr.bf16.gmra.mrb[0].mxu0 %v3303
        %v3522 = vpop.f32.mrb[0].mxu0
        %v3523 = vadd.f32 %v3434, %v3522
        %v3524 = vpop.f32.mrb[0].mxu0
        %v3525 = vpop.f32.mrb[0].mxu0
        %v3526 = vadd.f32 %v3437, %v3525
        %v3527 = vpop.f32.mrb[0].mxu0
        %3528 = vdwg.mxu0
        %s3529 = scalar_lea.vmem [#allocation14], 128
        %v3530 = vld [vmem:[%s3529] sm:$0xf]
        %v3531 = vld [vmem:[%s3529 + $0x4] sm:$0xf]
        %v3532 = vld [vmem:[%s3529 + $0x8] sm:$0xf]
        %v3533 = vld [vmem:[%s3529 + $0xc] sm:$0xf]
        %v3534 = vld [vmem:[%s3529 + $0x10] sm:$0xf]
        %v3535 = vld [vmem:[%s3529 + $0x14] sm:$0xf]
        %v3536 = vld [vmem:[%s3529 + $0x18] sm:$0xf]
        %v3537 = vld [vmem:[%s3529 + $0x1c] sm:$0xf]
        %v3538 = vld [vmem:[%s3529 + $0x20] sm:$0xf]
        %v3539 = vld [vmem:[%s3529 + $0x24] sm:$0xf]
        %v3540 = vld [vmem:[%s3529 + $0x28] sm:$0xf]
        %v3541 = vld [vmem:[%s3529 + $0x2c] sm:$0xf]
        %v3542 = vld [vmem:[%s3529 + $0x30] sm:$0xf]
        %v3543 = vld [vmem:[%s3529 + $0x34] sm:$0xf]
        %v3544 = vld [vmem:[%s3529 + $0x38] sm:$0xf]
        %v3545 = vld [vmem:[%s3529 + $0x3c] sm:$0xf]
        %v3548 = vrot.slane %v3303, 1
        %v3549 = vrot.slane %v3320, 1
        %v3550 = vsel %vm856, %v3548, %v3549
        %v3568 = vunpack.c.l.b16 %v3530
        %v3569 = vunpack.c.l.b16 %v3531
        %v3570 = vunpack.c.l.b16 %v3532
        %v3571 = vunpack.c.l.b16 %v3533
        %v3572 = vunpack.c.l.b16 %v3534
        %v3573 = vunpack.c.l.b16 %v3535
        %v3574 = vunpack.c.l.b16 %v3536
        %v3575 = vunpack.c.l.b16 %v3537
        %v3576 = vunpack.c.l.b16 %v3538
        %v3577 = vunpack.c.l.b16 %v3539
        %v3578 = vunpack.c.l.b16 %v3540
        %v3579 = vunpack.c.l.b16 %v3541
        %v3580 = vunpack.c.l.b16 %v3542
        %v3581 = vunpack.c.l.b16 %v3543
        %v3582 = vunpack.c.l.b16 %v3544
        %v3583 = vunpack.c.l.b16 %v3545
        %v3584 = vpack.c.b16 %v3569, %v3568
        %v3585 = vpack.c.b16 %v3571, %v3570
        %v3586 = vpack.c.b16 %v3573, %v3572
        %v3587 = vpack.c.b16 %v3575, %v3574
        %v3588 = vpack.c.b16 %v3577, %v3576
        %v3589 = vpack.c.b16 %v3579, %v3578
        %v3590 = vpack.c.b16 %v3581, %v3580
        %v3591 = vpack.c.b16 %v3583, %v3582
        %3600 = vmatprep.subr.bf16.mxu0 0
        %3601 = vmatpush1.bf16.msra.mxu0 %v3584
        %3602 = vmatprep.subr.bf16.mxu0 0
        %3603 = vmatpush1.bf16.msra.mxu0 %v3585
        %3604 = vmatprep.subr.bf16.mxu0 0
        %3605 = vmatpush1.bf16.msra.mxu0 %v3586
        %3606 = vmatprep.subr.bf16.mxu0 0
        %3607 = vmatpush1.bf16.msra.mxu0 %v3587
        %3608 = vmatprep.subr.bf16.mxu0 0
        %3609 = vmatpush1.bf16.msra.mxu0 %v3588
        %3610 = vmatprep.subr.bf16.mxu0 0
        %3611 = vmatpush1.bf16.msra.mxu0 %v3589
        %3612 = vmatprep.subr.bf16.mxu0 0
        %3613 = vmatpush1.bf16.msra.mxu0 %v3590
        %3614 = vmatprep.subr.bf16.mxu0 0
        %3615 = vmatpush1.bf16.msra.mxu0 %v3591
        %3616 = vmatprep.subr.bf16.mxu0 0
        %3617 = vmatpush1.bf16.msra.mxu0 0
        %3618 = vmatprep.subr.bf16.mxu0 0
        %3619 = vmatpush1.bf16.msra.mxu0 0
        %3620 = vmatprep.subr.bf16.mxu0 0
        %3621 = vmatpush1.bf16.msra.mxu0 0
        %3622 = vmatprep.subr.bf16.mxu0 0
        %3623 = vmatpush1.bf16.msra.mxu0 0
        %3624 = vmatprep.subr.bf16.mxu0 0
        %3625 = vmatpush1.bf16.msra.mxu0 0
        %3626 = vmatprep.subr.bf16.mxu0 0
        %3627 = vmatpush1.bf16.msra.mxu0 0
        %3628 = vmatprep.subr.bf16.mxu0 0
        %3629 = vmatpush1.bf16.msra.mxu0 0
        %3630 = vmatprep.subr.bf16.mxu0 0
        %3631 = vmatpush1.bf16.msra.mxu0 0
        %3632 = vmatprep.mubr.bf16.mxu0 0
        %3633 = vmatmul.mubr.bf16.gmra.mrb[0].mxu0 %v3550
        %v3634 = vpop.f32.mrb[0].mxu0
        %v3635 = vadd.f32 0.0, %v3634
        %v3636 = vpop.f32.mrb[0].mxu0
        %v3637 = vpop.f32.mrb[0].mxu0
        %v3638 = vadd.f32 0.0, %v3637
        %v3639 = vpop.f32.mrb[0].mxu0
        %3640 = vdwg.mxu0
        %v3641 = vadd.f32 %v3523, %v3635
        %v3642 = vadd.f32 %v3526, %v3638
        %v3643 = vlaneseq
        %v3644 = vshrl.u32 %v3643, 7
        %v3645 = vsub.s32 1, %v3644
        %v3646 = vrot.slane %v552, %v3645
        %v3647 = vadd.f32 %v3641, %v3646
        %v3648 = vadd.f32 %v3642, %v3646
        %v3649 = vmul.f32 %v3647, %v590
        %v3650 = vmul.f32 %v3648, %v595
        %v3651 = vadd.f32 %v2928, %v3649
        %v3652 = vadd.f32 %v2929, %v3650
        %v3653 = vmul.f32 %v3651, %v584
        %v3654 = vmul.f32 %v3652, %v584
        %3655 = vadd.xlane.f32.xlu0 %v3653
        %v3656 = vpop.xlane.xlu0 %3655
        %3657 = vadd.xlane.f32.xlu0 %v3654
        %v3658 = vpop.xlane.xlu0 %3657
        %v3659 = vmul.f32 %v3656, 0.025
        %v3660 = vmul.f32 %v3658, 0.025
        %v3661 = vsub.f32 %v3651, %v3659
        %v3662 = vsub.f32 %v3652, %v3660
        %v3663 = vmul.f32 %v3661, %v584
        %v3664 = vmul.f32 %v3662, %v584
        %v3665 = vmul.f32 %v3663, %v3663
        %v3666 = vmul.f32 %v3664, %v3664
        %3667 = vadd.xlane.f32.xlu0 %v3665
        %v3668 = vpop.xlane.xlu0 %3667
        %3669 = vadd.xlane.f32.xlu0 %v3666
        %v3670 = vpop.xlane.xlu0 %3669
        %v3671 = vmul.f32 %v3668, 0.025
        %v3672 = vmul.f32 %v3670, 0.025
        %v3673 = vadd.f32 %v3671, 0.0001
        %v3674 = vadd.f32 %v3672, 0.0001
        %v3675 = vrsqrt.pop %v3673
        %v3676 = vrsqrt.pop %v3674
        %v3677 = vmul.f32 %v3663, %v3675
        %v3678 = vmul.f32 %v3664, %v3676
        %v3679 = vlaneseq
        %v3680 = vshrl.u32 %v3679, 7
        %v3681 = vsub.s32 2, %v3680
        %v3682 = vrot.slane %v552, %v3681
        %v3683 = vmul.f32 %v3677, %v3682
        %v3684 = vmul.f32 %v3678, %v3682
        %v3685 = vlaneseq
        %v3686 = vshrl.u32 %v3685, 7
        %v3687 = vsub.s32 3, %v3686
        %v3688 = vrot.slane %v552, %v3687
        %v3689 = vadd.f32 %v3683, %v3688
        %v3690 = vadd.f32 %v3684, %v3688
        %v3691 = vmul.f32 %v3689, %v590
        %v3692 = vmul.f32 %v3690, %v595
        %v3693 = vpack.c.bf16 %v3692, %v3691
        %s3694 = scalar_lea.vmem [#allocation10], 384
        %v3695 = vld [vmem:[%s3694] sm:$0xff]
        %v3696 = vld [vmem:[%s3694 + $0x8] sm:$0xff]
        %v3697 = vld [vmem:[%s3694 + $0x10] sm:$0xff]
        %v3698 = vld [vmem:[%s3694 + $0x18] sm:$0xff]
        %v3699 = vld [vmem:[%s3694 + $0x20] sm:$0xff]
        %v3700 = vld [vmem:[%s3694 + $0x28] sm:$0xff]
        %v3701 = vld [vmem:[%s3694 + $0x30] sm:$0xff]
        %v3702 = vld [vmem:[%s3694 + $0x38] sm:$0xff]
        %v3703 = vld [vmem:[%s3694 + $0x40] sm:$0xff]
        %v3704 = vld [vmem:[%s3694 + $0x48] sm:$0xff]
        %v3705 = vld [vmem:[%s3694 + $0x50] sm:$0xff]
        %v3706 = vld [vmem:[%s3694 + $0x58] sm:$0xff]
        %v3707 = vld [vmem:[%s3694 + $0x60] sm:$0xff]
        %v3708 = vld [vmem:[%s3694 + $0x68] sm:$0xff]
        %v3709 = vld [vmem:[%s3694 + $0x70] sm:$0xff]
        %v3710 = vld [vmem:[%s3694 + $0x78] sm:$0xff]
        %v3711 = vld [vmem:[%s3694 + $0x80] sm:$0xff]
        %v3712 = vld [vmem:[%s3694 + $0x88] sm:$0xff]
        %v3713 = vld [vmem:[%s3694 + $0x90] sm:$0xff]
        %v3714 = vld [vmem:[%s3694 + $0x98] sm:$0xff]
        %v3715 = vld [vmem:[%s3694 + $0xa0] sm:$0xff]
        %v3716 = vld [vmem:[%s3694 + $0xa8] sm:$0xff]
        %v3717 = vld [vmem:[%s3694 + $0xb0] sm:$0xff]
        %v3718 = vld [vmem:[%s3694 + $0xb8] sm:$0xff]
        %v3719 = vld [vmem:[%s3694 + $0xc0] sm:$0xff]
        %v3720 = vld [vmem:[%s3694 + $0xc8] sm:$0xff]
        %v3721 = vld [vmem:[%s3694 + $0xd0] sm:$0xff]
        %v3722 = vld [vmem:[%s3694 + $0xd8] sm:$0xff]
        %v3723 = vld [vmem:[%s3694 + $0xe0] sm:$0xff]
        %v3724 = vld [vmem:[%s3694 + $0xe8] sm:$0xff]
        %v3725 = vld [vmem:[%s3694 + $0xf0] sm:$0xff]
        %v3726 = vld [vmem:[%s3694 + $0xf8] sm:$0xff]
        %v3727 = vld [vmem:[%s3694 + $0x100] sm:$0xff]
        %v3728 = vld [vmem:[%s3694 + $0x108] sm:$0xff]
        %v3729 = vld [vmem:[%s3694 + $0x110] sm:$0xff]
        %v3730 = vld [vmem:[%s3694 + $0x118] sm:$0xff]
        %v3731 = vld [vmem:[%s3694 + $0x120] sm:$0xff]
        %v3732 = vld [vmem:[%s3694 + $0x128] sm:$0xff]
        %v3733 = vld [vmem:[%s3694 + $0x130] sm:$0xff]
        %v3734 = vld [vmem:[%s3694 + $0x138] sm:$0xff]
        %v3735 = vld [vmem:[%s3694 + $0x140] sm:$0xff]
        %v3736 = vld [vmem:[%s3694 + $0x148] sm:$0xff]
        %v3737 = vld [vmem:[%s3694 + $0x150] sm:$0xff]
        %v3738 = vld [vmem:[%s3694 + $0x158] sm:$0xff]
        %v3739 = vld [vmem:[%s3694 + $0x160] sm:$0xff]
        %v3740 = vld [vmem:[%s3694 + $0x168] sm:$0xff]
        %v3741 = vld [vmem:[%s3694 + $0x170] sm:$0xff]
        %v3742 = vld [vmem:[%s3694 + $0x178] sm:$0xff]
        %v3791 = vunpack.c.l.b16 %v3695
        %v3792 = vunpack.c.h.b16 %v3695
        %v3793 = vunpack.c.l.b16 %v3696
        %v3794 = vunpack.c.h.b16 %v3696
        %v3795 = vunpack.c.l.b16 %v3697
        %v3796 = vunpack.c.h.b16 %v3697
        %v3797 = vunpack.c.l.b16 %v3698
        %v3798 = vunpack.c.h.b16 %v3698
        %v3799 = vunpack.c.l.b16 %v3699
        %v3800 = vunpack.c.h.b16 %v3699
        %v3801 = vunpack.c.l.b16 %v3700
        %v3802 = vunpack.c.h.b16 %v3700
        %v3803 = vunpack.c.l.b16 %v3701
        %v3804 = vunpack.c.h.b16 %v3701
        %v3805 = vunpack.c.l.b16 %v3702
        %v3806 = vunpack.c.h.b16 %v3702
        %v3807 = vunpack.c.l.b16 %v3703
        %v3808 = vunpack.c.h.b16 %v3703
        %v3809 = vunpack.c.l.b16 %v3704
        %v3810 = vunpack.c.h.b16 %v3704
        %v3811 = vunpack.c.l.b16 %v3705
        %v3812 = vunpack.c.h.b16 %v3705
        %v3813 = vunpack.c.l.b16 %v3706
        %v3814 = vunpack.c.h.b16 %v3706
        %v3815 = vunpack.c.l.b16 %v3707
        %v3816 = vunpack.c.h.b16 %v3707
        %v3817 = vunpack.c.l.b16 %v3708
        %v3818 = vunpack.c.h.b16 %v3708
        %v3819 = vunpack.c.l.b16 %v3709
        %v3820 = vunpack.c.h.b16 %v3709
        %v3821 = vunpack.c.l.b16 %v3710
        %v3822 = vunpack.c.h.b16 %v3710
        %v3823 = vunpack.c.l.b16 %v3711
        %v3824 = vunpack.c.h.b16 %v3711
        %v3825 = vunpack.c.l.b16 %v3712
        %v3826 = vunpack.c.h.b16 %v3712
        %v3827 = vunpack.c.l.b16 %v3713
        %v3828 = vunpack.c.h.b16 %v3713
        %v3829 = vunpack.c.l.b16 %v3714
        %v3830 = vunpack.c.h.b16 %v3714
        %v3831 = vunpack.c.l.b16 %v3715
        %v3832 = vunpack.c.h.b16 %v3715
        %v3833 = vunpack.c.l.b16 %v3716
        %v3834 = vunpack.c.h.b16 %v3716
        %v3835 = vunpack.c.l.b16 %v3717
        %v3836 = vunpack.c.h.b16 %v3717
        %v3837 = vunpack.c.l.b16 %v3718
        %v3838 = vunpack.c.h.b16 %v3718
        %v3839 = vunpack.c.l.b16 %v3719
        %v3840 = vunpack.c.h.b16 %v3719
        %v3841 = vunpack.c.l.b16 %v3720
        %v3842 = vunpack.c.h.b16 %v3720
        %v3843 = vunpack.c.l.b16 %v3721
        %v3844 = vunpack.c.h.b16 %v3721
        %v3845 = vunpack.c.l.b16 %v3722
        %v3846 = vunpack.c.h.b16 %v3722
        %v3847 = vunpack.c.l.b16 %v3723
        %v3848 = vunpack.c.h.b16 %v3723
        %v3849 = vunpack.c.l.b16 %v3724
        %v3850 = vunpack.c.h.b16 %v3724
        %v3851 = vunpack.c.l.b16 %v3725
        %v3852 = vunpack.c.h.b16 %v3725
        %v3853 = vunpack.c.l.b16 %v3726
        %v3854 = vunpack.c.h.b16 %v3726
        %v3855 = vunpack.c.l.b16 %v3727
        %v3856 = vunpack.c.h.b16 %v3727
        %v3857 = vunpack.c.l.b16 %v3728
        %v3858 = vunpack.c.h.b16 %v3728
        %v3859 = vunpack.c.l.b16 %v3729
        %v3860 = vunpack.c.h.b16 %v3729
        %v3861 = vunpack.c.l.b16 %v3730
        %v3862 = vunpack.c.h.b16 %v3730
        %v3863 = vunpack.c.l.b16 %v3731
        %v3864 = vunpack.c.h.b16 %v3731
        %v3865 = vunpack.c.l.b16 %v3732
        %v3866 = vunpack.c.h.b16 %v3732
        %v3867 = vunpack.c.l.b16 %v3733
        %v3868 = vunpack.c.h.b16 %v3733
        %v3869 = vunpack.c.l.b16 %v3734
        %v3870 = vunpack.c.h.b16 %v3734
        %v3871 = vunpack.c.l.b16 %v3735
        %v3872 = vunpack.c.h.b16 %v3735
        %v3873 = vunpack.c.l.b16 %v3736
        %v3874 = vunpack.c.h.b16 %v3736
        %v3875 = vunpack.c.l.b16 %v3737
        %v3876 = vunpack.c.h.b16 %v3737
        %v3877 = vunpack.c.l.b16 %v3738
        %v3878 = vunpack.c.h.b16 %v3738
        %v3879 = vunpack.c.l.b16 %v3739
        %v3880 = vunpack.c.h.b16 %v3739
        %v3881 = vunpack.c.l.b16 %v3740
        %v3882 = vunpack.c.h.b16 %v3740
        %v3883 = vunpack.c.l.b16 %v3741
        %v3884 = vunpack.c.h.b16 %v3741
        %v3885 = vunpack.c.l.b16 %v3742
        %v3886 = vunpack.c.h.b16 %v3742
        %v3887 = vpack.c.b16 %v3797, %v3791
        %v3888 = vpack.c.b16 %v3798, %v3792
        %v3889 = vpack.c.b16 %v3799, %v3793
        %v3890 = vpack.c.b16 %v3800, %v3794
        %v3891 = vpack.c.b16 %v3801, %v3795
        %v3892 = vpack.c.b16 %v3802, %v3796
        %v3893 = vpack.c.b16 %v3809, %v3803
        %v3894 = vpack.c.b16 %v3810, %v3804
        %v3895 = vpack.c.b16 %v3811, %v3805
        %v3896 = vpack.c.b16 %v3812, %v3806
        %v3897 = vpack.c.b16 %v3813, %v3807
        %v3898 = vpack.c.b16 %v3814, %v3808
        %v3899 = vpack.c.b16 %v3821, %v3815
        %v3900 = vpack.c.b16 %v3822, %v3816
        %v3901 = vpack.c.b16 %v3823, %v3817
        %v3902 = vpack.c.b16 %v3824, %v3818
        %v3903 = vpack.c.b16 %v3825, %v3819
        %v3904 = vpack.c.b16 %v3826, %v3820
        %v3905 = vpack.c.b16 %v3833, %v3827
        %v3906 = vpack.c.b16 %v3834, %v3828
        %v3907 = vpack.c.b16 %v3835, %v3829
        %v3908 = vpack.c.b16 %v3836, %v3830
        %v3909 = vpack.c.b16 %v3837, %v3831
        %v3910 = vpack.c.b16 %v3838, %v3832
        %v3911 = vpack.c.b16 %v3845, %v3839
        %v3912 = vpack.c.b16 %v3846, %v3840
        %v3913 = vpack.c.b16 %v3847, %v3841
        %v3914 = vpack.c.b16 %v3848, %v3842
        %v3915 = vpack.c.b16 %v3849, %v3843
        %v3916 = vpack.c.b16 %v3850, %v3844
        %v3917 = vpack.c.b16 %v3857, %v3851
        %v3918 = vpack.c.b16 %v3858, %v3852
        %v3919 = vpack.c.b16 %v3859, %v3853
        %v3920 = vpack.c.b16 %v3860, %v3854
        %v3921 = vpack.c.b16 %v3861, %v3855
        %v3922 = vpack.c.b16 %v3862, %v3856
        %v3923 = vpack.c.b16 %v3869, %v3863
        %v3924 = vpack.c.b16 %v3870, %v3864
        %v3925 = vpack.c.b16 %v3871, %v3865
        %v3926 = vpack.c.b16 %v3872, %v3866
        %v3927 = vpack.c.b16 %v3873, %v3867
        %v3928 = vpack.c.b16 %v3874, %v3868
        %v3929 = vpack.c.b16 %v3881, %v3875
        %v3930 = vpack.c.b16 %v3882, %v3876
        %v3931 = vpack.c.b16 %v3883, %v3877
        %v3932 = vpack.c.b16 %v3884, %v3878
        %v3933 = vpack.c.b16 %v3885, %v3879
        %v3934 = vpack.c.b16 %v3886, %v3880
        %3983 = vmatprep.subr.bf16.mxu0 %v3888
        %3984 = vmatpush1.bf16.msra.mxu0 %v3887
        %3985 = vmatprep.subr.bf16.mxu0 %v3894
        %3986 = vmatpush1.bf16.msra.mxu0 %v3893
        %3987 = vmatprep.subr.bf16.mxu0 %v3900
        %3988 = vmatpush1.bf16.msra.mxu0 %v3899
        %3989 = vmatprep.subr.bf16.mxu0 %v3906
        %3990 = vmatpush1.bf16.msra.mxu0 %v3905
        %3991 = vmatprep.subr.bf16.mxu0 %v3912
        %3992 = vmatpush1.bf16.msra.mxu0 %v3911
        %3993 = vmatprep.subr.bf16.mxu0 %v3918
        %3994 = vmatpush1.bf16.msra.mxu0 %v3917
        %3995 = vmatprep.subr.bf16.mxu0 %v3924
        %3996 = vmatpush1.bf16.msra.mxu0 %v3923
        %3997 = vmatprep.subr.bf16.mxu0 %v3930
        %3998 = vmatpush1.bf16.msra.mxu0 %v3929
        %3999 = vmatprep.subr.bf16.mxu0 0
        %4000 = vmatpush1.bf16.msra.mxu0 0
        %4001 = vmatprep.subr.bf16.mxu0 0
        %4002 = vmatpush1.bf16.msra.mxu0 0
        %4003 = vmatprep.subr.bf16.mxu0 0
        %4004 = vmatpush1.bf16.msra.mxu0 0
        %4005 = vmatprep.subr.bf16.mxu0 0
        %4006 = vmatpush1.bf16.msra.mxu0 0
        %4007 = vmatprep.subr.bf16.mxu0 0
        %4008 = vmatpush1.bf16.msra.mxu0 0
        %4009 = vmatprep.subr.bf16.mxu0 0
        %4010 = vmatpush1.bf16.msra.mxu0 0
        %4011 = vmatprep.subr.bf16.mxu0 0
        %4012 = vmatpush1.bf16.msra.mxu0 0
        %4013 = vmatprep.subr.bf16.mxu0 0
        %4014 = vmatpush1.bf16.msra.mxu0 0
        %4015 = vmatprep.mubr.bf16.mxu0 0
        %4016 = vmatmul.mubr.bf16.gmra.mrb[0].mxu0 %v3693
        %v4017 = vpop.f32.mrb[0].mxu0
        %v4018 = vadd.f32 0.0, %v4017
        %v4019 = vpop.f32.mrb[0].mxu0
        %v4020 = vadd.f32 0.0, %v4019
        %v4021 = vpop.f32.mrb[0].mxu0
        %v4022 = vadd.f32 0.0, %v4021
        %v4023 = vpop.f32.mrb[0].mxu0
        %v4024 = vadd.f32 0.0, %v4023
        %4025 = vdwg.mxu0
        %4026 = vmatprep.subr.bf16.mxu0 %v3890
        %4027 = vmatpush1.bf16.msra.mxu0 %v3889
        %4028 = vmatprep.subr.bf16.mxu0 %v3896
        %4029 = vmatpush1.bf16.msra.mxu0 %v3895
        %4030 = vmatprep.subr.bf16.mxu0 %v3902
        %4031 = vmatpush1.bf16.msra.mxu0 %v3901
        %4032 = vmatprep.subr.bf16.mxu0 %v3908
        %4033 = vmatpush1.bf16.msra.mxu0 %v3907
        %4034 = vmatprep.subr.bf16.mxu0 %v3914
        %4035 = vmatpush1.bf16.msra.mxu0 %v3913
        %4036 = vmatprep.subr.bf16.mxu0 %v3920
        %4037 = vmatpush1.bf16.msra.mxu0 %v3919
        %4038 = vmatprep.subr.bf16.mxu0 %v3926
        %4039 = vmatpush1.bf16.msra.mxu0 %v3925
        %4040 = vmatprep.subr.bf16.mxu0 %v3932
        %4041 = vmatpush1.bf16.msra.mxu0 %v3931
        %4042 = vmatprep.subr.bf16.mxu0 0
        %4043 = vmatpush1.bf16.msra.mxu0 0
        %4044 = vmatprep.subr.bf16.mxu0 0
        %4045 = vmatpush1.bf16.msra.mxu0 0
        %4046 = vmatprep.subr.bf16.mxu0 0
        %4047 = vmatpush1.bf16.msra.mxu0 0
        %4048 = vmatprep.subr.bf16.mxu0 0
        %4049 = vmatpush1.bf16.msra.mxu0 0
        %4050 = vmatprep.subr.bf16.mxu0 0
        %4051 = vmatpush1.bf16.msra.mxu0 0
        %4052 = vmatprep.subr.bf16.mxu0 0
        %4053 = vmatpush1.bf16.msra.mxu0 0
        %4054 = vmatprep.subr.bf16.mxu0 0
        %4055 = vmatpush1.bf16.msra.mxu0 0
        %4056 = vmatprep.subr.bf16.mxu0 0
        %4057 = vmatpush1.bf16.msra.mxu0 0
        %4058 = vmatprep.mubr.bf16.mxu0 0
        %4059 = vmatmul.mubr.bf16.gmra.mrb[0].mxu0 %v3693
        %v4060 = vpop.f32.mrb[0].mxu0
        %v4061 = vadd.f32 0.0, %v4060
        %v4062 = vpop.f32.mrb[0].mxu0
        %v4063 = vadd.f32 0.0, %v4062
        %v4064 = vpop.f32.mrb[0].mxu0
        %v4065 = vadd.f32 0.0, %v4064
        %v4066 = vpop.f32.mrb[0].mxu0
        %v4067 = vadd.f32 0.0, %v4066
        %4068 = vdwg.mxu0
        %4069 = vmatprep.subr.bf16.mxu0 %v3892
        %4070 = vmatpush1.bf16.msra.mxu0 %v3891
        %4071 = vmatprep.subr.bf16.mxu0 %v3898
        %4072 = vmatpush1.bf16.msra.mxu0 %v3897
        %4073 = vmatprep.subr.bf16.mxu0 %v3904
        %4074 = vmatpush1.bf16.msra.mxu0 %v3903
        %4075 = vmatprep.subr.bf16.mxu0 %v3910
        %4076 = vmatpush1.bf16.msra.mxu0 %v3909
        %4077 = vmatprep.subr.bf16.mxu0 %v3916
        %4078 = vmatpush1.bf16.msra.mxu0 %v3915
        %4079 = vmatprep.subr.bf16.mxu0 %v3922
        %4080 = vmatpush1.bf16.msra.mxu0 %v3921
        %4081 = vmatprep.subr.bf16.mxu0 %v3928
        %4082 = vmatpush1.bf16.msra.mxu0 %v3927
        %4083 = vmatprep.subr.bf16.mxu0 %v3934
        %4084 = vmatpush1.bf16.msra.mxu0 %v3933
        %4085 = vmatprep.subr.bf16.mxu0 0
        %4086 = vmatpush1.bf16.msra.mxu0 0
        %4087 = vmatprep.subr.bf16.mxu0 0
        %4088 = vmatpush1.bf16.msra.mxu0 0
        %4089 = vmatprep.subr.bf16.mxu0 0
        %4090 = vmatpush1.bf16.msra.mxu0 0
        %4091 = vmatprep.subr.bf16.mxu0 0
        %4092 = vmatpush1.bf16.msra.mxu0 0
        %4093 = vmatprep.subr.bf16.mxu0 0
        %4094 = vmatpush1.bf16.msra.mxu0 0
        %4095 = vmatprep.subr.bf16.mxu0 0
        %4096 = vmatpush1.bf16.msra.mxu0 0
        %4097 = vmatprep.subr.bf16.mxu0 0
        %4098 = vmatpush1.bf16.msra.mxu0 0
        %4099 = vmatprep.subr.bf16.mxu0 0
        %4100 = vmatpush1.bf16.msra.mxu0 0
        %4101 = vmatprep.mubr.bf16.mxu0 0
        %4102 = vmatmul.mubr.bf16.gmra.mrb[0].mxu0 %v3693
        %v4103 = vpop.f32.mrb[0].mxu0
        %v4104 = vadd.f32 0.0, %v4103
        %v4105 = vpop.f32.mrb[0].mxu0
        %v4106 = vadd.f32 0.0, %v4105
        %v4107 = vpop.f32.mrb[0].mxu0
        %v4108 = vadd.f32 0.0, %v4107
        %v4109 = vpop.f32.mrb[0].mxu0
        %v4110 = vadd.f32 0.0, %v4109
        %4111 = vdwg.mxu0
        %v4112 = vlaneseq
        %v4113 = vshrl.u32 %v4112, 7
        %v4114 = vsub.s32 4, %v4113
        %v4115 = vrot.slane %v552, %v4114
        %v4116 = vadd.f32 %v4018, %v4115
        %v4117 = vadd.f32 %v4022, %v4115
        %v4118 = vlaneseq
        %v4119 = vshrl.u32 %v4118, 7
        %v4120 = vsub.s32 5, %v4119
        %v4121 = vrot.slane %v552, %v4120
        %v4122 = vadd.f32 %v4061, %v4121
        %v4123 = vadd.f32 %v4065, %v4121
        %v4124 = vlaneseq
        %v4125 = vshrl.u32 %v4124, 7
        %v4126 = vsub.s32 6, %v4125
        %v4127 = vrot.slane %v552, %v4126
        %v4128 = vadd.f32 %v4104, %v4127
        %v4129 = vadd.f32 %v4108, %v4127
        %v4130 = vpack.c.bf16 %v4117, %v4116
        %v4131 = vpack.c.bf16 %v4123, %v4122
        %4132 = vmatprep.subr.bf16.mxu0 0
        %4133 = vmatpush1.bf16.xpose.msra.mxu0 %v4131
        %4134 = vmatprep.subr.bf16.mxu0 0
        %4135 = vmatpush1.bf16.xpose.msra.mxu0 0
        %4136 = vmatprep.subr.bf16.mxu0 0
        %4137 = vmatpush1.bf16.xpose.msra.mxu0 0
        %4138 = vmatprep.subr.bf16.mxu0 0
        %4139 = vmatpush1.bf16.xpose.msra.mxu0 0
        %4140 = vmatprep.subr.bf16.mxu0 0
        %4141 = vmatpush1.bf16.xpose.msra.mxu0 0
        %4142 = vmatprep.subr.bf16.mxu0 0
        %4143 = vmatpush1.bf16.xpose.msra.mxu0 0
        %4144 = vmatprep.subr.bf16.mxu0 0
        %4145 = vmatpush1.bf16.xpose.msra.mxu0 0
        %4146 = vmatprep.subr.bf16.mxu0 0
        %4147 = vmatpush1.bf16.xpose.msra.mxu0 0
        %4148 = vmatprep.subr.bf16.mxu0 0
        %4149 = vmatpush1.bf16.xpose.msra.mxu0 0
        %4150 = vmatprep.subr.bf16.mxu0 0
        %4151 = vmatpush1.bf16.xpose.msra.mxu0 0
        %4152 = vmatprep.subr.bf16.mxu0 0
        %4153 = vmatpush1.bf16.xpose.msra.mxu0 0
        %4154 = vmatprep.subr.bf16.mxu0 0
        %4155 = vmatpush1.bf16.xpose.msra.mxu0 0
        %4156 = vmatprep.subr.bf16.mxu0 0
        %4157 = vmatpush1.bf16.xpose.msra.mxu0 0
        %4158 = vmatprep.subr.bf16.mxu0 0
        %4159 = vmatpush1.bf16.xpose.msra.mxu0 0
        %4160 = vmatprep.subr.bf16.mxu0 0
        %4161 = vmatpush1.bf16.xpose.msra.mxu0 0
        %4162 = vmatprep.subr.bf16.mxu0 0
        %4163 = vmatpush1.bf16.xpose.msra.mxu0 0
        %4164 = vmatprep.mubr.bf16.mxu0 0
        %4165 = vmatmul.mubr.bf16.gmra.mrb[0].mxu0 %v4130
        %v4166 = vpop.f32.mrb[0].mxu0
        %v4167 = vadd.f32 0.0, %v4166
        %v4168 = vpop.f32.mrb[0].mxu0
        %v4169 = vpop.f32.mrb[0].mxu0
        %v4170 = vadd.f32 0.0, %v4169
        %v4171 = vpop.f32.mrb[0].mxu0
        %4172 = vdwg.mxu0
        %v4173 = vmul.f32 %v4167, 0.2236068
        %v4174 = vmul.f32 %v4170, 0.2236068
        %v4175 = vsel %vm577, %v4173, -10000.0
        %v4176 = vsel %vm578, %v4174, -10000.0
        %v4177 = vsel %vm2469, %v4175, -inf
        %4178 = vmax.xlane.f32.xlu0 %v4177
        %v4179 = vpop.xlane.xlu0 %4178
        %v4180 = vsel %vm2469, %v4176, -inf
        %4181 = vmax.xlane.f32.xlu0 %v4180
        %v4182 = vpop.xlane.xlu0 %4181
        %v4183 = vsub.f32 %v4175, %v4179
        %v4184 = vsub.f32 %v4176, %v4182
        %v4185 = vmul.f32 %v4183, 1.442695
        %v4186 = vpow.pop %v4185
        %v4187 = vmul.f32 %v4184, 1.442695
        %v4188 = vpow.pop %v4187
        %v4189 = vsel %vm2469, %v4186, 0.0
        %4190 = vadd.xlane.f32.xlu0 %v4189
        %v4191 = vpop.xlane.xlu0 %4190
        %v4192 = vsel %vm2469, %v4188, 0.0
        %4193 = vadd.xlane.f32.xlu0 %v4192
        %v4194 = vpop.xlane.xlu0 %4193
        %v4195 = vrcp.pop %v4191
        %v4196 = vrcp.pop %v4194
        %v4197 = vmul.f32 %v4186, %v4195
        %v4198 = vmul.f32 %v4188, %v4196
        %v4199 = vpack.c.bf16 %v4198, %v4197
        %v4200 = vpack.c.bf16 %v4129, %v4128
        %v4202 = vsel %vm2469, %v4199, 0
        %4204 = vmatprep.subr.bf16.mxu0 0
        %4205 = vmatpush1.bf16.msra.mxu0 %v4200
        %4206 = vmatprep.subr.bf16.mxu0 0
        %4207 = vmatpush1.bf16.msra.mxu0 0
        %4208 = vmatprep.subr.bf16.mxu0 0
        %4209 = vmatpush1.bf16.msra.mxu0 0
        %4210 = vmatprep.subr.bf16.mxu0 0
        %4211 = vmatpush1.bf16.msra.mxu0 0
        %4212 = vmatprep.subr.bf16.mxu0 0
        %4213 = vmatpush1.bf16.msra.mxu0 0
        %4214 = vmatprep.subr.bf16.mxu0 0
        %4215 = vmatpush1.bf16.msra.mxu0 0
        %4216 = vmatprep.subr.bf16.mxu0 0
        %4217 = vmatpush1.bf16.msra.mxu0 0
        %4218 = vmatprep.subr.bf16.mxu0 0
        %4219 = vmatpush1.bf16.msra.mxu0 0
        %4220 = vmatprep.subr.bf16.mxu0 0
        %4221 = vmatpush1.bf16.msra.mxu0 0
        %4222 = vmatprep.subr.bf16.mxu0 0
        %4223 = vmatpush1.bf16.msra.mxu0 0
        %4224 = vmatprep.subr.bf16.mxu0 0
        %4225 = vmatpush1.bf16.msra.mxu0 0
        %4226 = vmatprep.subr.bf16.mxu0 0
        %4227 = vmatpush1.bf16.msra.mxu0 0
        %4228 = vmatprep.subr.bf16.mxu0 0
        %4229 = vmatpush1.bf16.msra.mxu0 0
        %4230 = vmatprep.subr.bf16.mxu0 0
        %4231 = vmatpush1.bf16.msra.mxu0 0
        %4232 = vmatprep.subr.bf16.mxu0 0
        %4233 = vmatpush1.bf16.msra.mxu0 0
        %4234 = vmatprep.subr.bf16.mxu0 0
        %4235 = vmatpush1.bf16.msra.mxu0 0
        %4236 = vmatprep.mubr.bf16.mxu0 0
        %4237 = vmatmul.mubr.bf16.gmra.mrb[0].mxu0 %v4202
        %v4238 = vpop.f32.mrb[0].mxu0
        %v4239 = vadd.f32 0.0, %v4238
        %v4240 = vpop.f32.mrb[0].mxu0
        %v4241 = vpop.f32.mrb[0].mxu0
        %v4242 = vadd.f32 0.0, %v4241
        %v4243 = vpop.f32.mrb[0].mxu0
        %4244 = vdwg.mxu0
        %v4245 = vpack.c.bf16 %v4242, %v4239
        %s4246 = scalar_lea.vmem [#allocation11], 128
        %v4247 = vld [vmem:[%s4246] sm:$0xf]
        %v4248 = vld [vmem:[%s4246 + $0x4] sm:$0xf]
        %v4249 = vld [vmem:[%s4246 + $0x8] sm:$0xf]
        %v4250 = vld [vmem:[%s4246 + $0xc] sm:$0xf]
        %v4251 = vld [vmem:[%s4246 + $0x10] sm:$0xf]
        %v4252 = vld [vmem:[%s4246 + $0x14] sm:$0xf]
        %v4253 = vld [vmem:[%s4246 + $0x18] sm:$0xf]
        %v4254 = vld [vmem:[%s4246 + $0x1c] sm:$0xf]
        %v4255 = vld [vmem:[%s4246 + $0x20] sm:$0xf]
        %v4256 = vld [vmem:[%s4246 + $0x24] sm:$0xf]
        %v4257 = vld [vmem:[%s4246 + $0x28] sm:$0xf]
        %v4258 = vld [vmem:[%s4246 + $0x2c] sm:$0xf]
        %v4259 = vld [vmem:[%s4246 + $0x30] sm:$0xf]
        %v4260 = vld [vmem:[%s4246 + $0x34] sm:$0xf]
        %v4261 = vld [vmem:[%s4246 + $0x38] sm:$0xf]
        %v4262 = vld [vmem:[%s4246 + $0x3c] sm:$0xf]
        %v4263 = vlaneseq
        %v4264 = vshrl.u32 %v4263, 7
        %v4265 = vsub.s32 7, %v4264
        %v4266 = vrot.slane %v552, %v4265
        %v4267 = vadd.f32 %v4020, %v4266
        %v4268 = vadd.f32 %v4024, %v4266
        %v4269 = vlaneseq
        %v4270 = vshrl.u32 %v4269, 7
        %v4271 = vsub.s32 0, %v4270
        %v4272 = vrot.slane %v553, %v4271
        %v4273 = vadd.f32 %v4063, %v4272
        %v4274 = vadd.f32 %v4067, %v4272
        %v4275 = vlaneseq
        %v4276 = vshrl.u32 %v4275, 7
        %v4277 = vsub.s32 1, %v4276
        %v4278 = vrot.slane %v553, %v4277
        %v4279 = vadd.f32 %v4106, %v4278
        %v4280 = vadd.f32 %v4110, %v4278
        %v4281 = vpack.c.bf16 %v4268, %v4267
        %v4282 = vpack.c.bf16 %v4274, %v4273
        %4283 = vmatprep.subr.bf16.mxu0 0
        %4284 = vmatpush1.bf16.xpose.msra.mxu0 %v4282
        %4285 = vmatprep.subr.bf16.mxu0 0
        %4286 = vmatpush1.bf16.xpose.msra.mxu0 0
        %4287 = vmatprep.subr.bf16.mxu0 0
        %4288 = vmatpush1.bf16.xpose.msra.mxu0 0
        %4289 = vmatprep.subr.bf16.mxu0 0
        %4290 = vmatpush1.bf16.xpose.msra.mxu0 0
        %4291 = vmatprep.subr.bf16.mxu0 0
        %4292 = vmatpush1.bf16.xpose.msra.mxu0 0
        %4293 = vmatprep.subr.bf16.mxu0 0
        %4294 = vmatpush1.bf16.xpose.msra.mxu0 0
        %4295 = vmatprep.subr.bf16.mxu0 0
        %4296 = vmatpush1.bf16.xpose.msra.mxu0 0
        %4297 = vmatprep.subr.bf16.mxu0 0
        %4298 = vmatpush1.bf16.xpose.msra.mxu0 0
        %4299 = vmatprep.subr.bf16.mxu0 0
        %4300 = vmatpush1.bf16.xpose.msra.mxu0 0
        %4301 = vmatprep.subr.bf16.mxu0 0
        %4302 = vmatpush1.bf16.xpose.msra.mxu0 0
        %4303 = vmatprep.subr.bf16.mxu0 0
        %4304 = vmatpush1.bf16.xpose.msra.mxu0 0
        %4305 = vmatprep.subr.bf16.mxu0 0
        %4306 = vmatpush1.bf16.xpose.msra.mxu0 0
        %4307 = vmatprep.subr.bf16.mxu0 0
        %4308 = vmatpush1.bf16.xpose.msra.mxu0 0
        %4309 = vmatprep.subr.bf16.mxu0 0
        %4310 = vmatpush1.bf16.xpose.msra.mxu0 0
        %4311 = vmatprep.subr.bf16.mxu0 0
        %4312 = vmatpush1.bf16.xpose.msra.mxu0 0
        %4313 = vmatprep.subr.bf16.mxu0 0
        %4314 = vmatpush1.bf16.xpose.msra.mxu0 0
        %4315 = vmatprep.mubr.bf16.mxu0 0
        %4316 = vmatmul.mubr.bf16.gmra.mrb[0].mxu0 %v4281
        %v4317 = vpop.f32.mrb[0].mxu0
        %v4318 = vadd.f32 0.0, %v4317
        %v4319 = vpop.f32.mrb[0].mxu0
        %v4320 = vpop.f32.mrb[0].mxu0
        %v4321 = vadd.f32 0.0, %v4320
        %v4322 = vpop.f32.mrb[0].mxu0
        %4323 = vdwg.mxu0
        %v4324 = vmul.f32 %v4318, 0.2236068
        %v4325 = vmul.f32 %v4321, 0.2236068
        %v4326 = vsel %vm577, %v4324, -10000.0
        %v4327 = vsel %vm578, %v4325, -10000.0
        %v4328 = vsel %vm2469, %v4326, -inf
        %4329 = vmax.xlane.f32.xlu0 %v4328
        %v4330 = vpop.xlane.xlu0 %4329
        %v4331 = vsel %vm2469, %v4327, -inf
        %4332 = vmax.xlane.f32.xlu0 %v4331
        %v4333 = vpop.xlane.xlu0 %4332
        %v4334 = vsub.f32 %v4326, %v4330
        %v4335 = vsub.f32 %v4327, %v4333
        %v4336 = vmul.f32 %v4334, 1.442695
        %v4337 = vpow.pop %v4336
        %v4338 = vmul.f32 %v4335, 1.442695
        %v4339 = vpow.pop %v4338
        %v4340 = vsel %vm2469, %v4337, 0.0
        %4341 = vadd.xlane.f32.xlu0 %v4340
        %v4342 = vpop.xlane.xlu0 %4341
        %v4343 = vsel %vm2469, %v4339, 0.0
        %4344 = vadd.xlane.f32.xlu0 %v4343
        %v4345 = vpop.xlane.xlu0 %4344
        %v4346 = vrcp.pop %v4342
        %v4347 = vrcp.pop %v4345
        %v4348 = vmul.f32 %v4337, %v4346
        %v4349 = vmul.f32 %v4339, %v4347
        %v4350 = vpack.c.bf16 %v4349, %v4348
        %v4351 = vpack.c.bf16 %v4280, %v4279
        %v4353 = vsel %vm2469, %v4350, 0
        %4355 = vmatprep.subr.bf16.mxu0 0
        %4356 = vmatpush1.bf16.msra.mxu0 %v4351
        %4357 = vmatprep.subr.bf16.mxu0 0
        %4358 = vmatpush1.bf16.msra.mxu0 0
        %4359 = vmatprep.subr.bf16.mxu0 0
        %4360 = vmatpush1.bf16.msra.mxu0 0
        %4361 = vmatprep.subr.bf16.mxu0 0
        %4362 = vmatpush1.bf16.msra.mxu0 0
        %4363 = vmatprep.subr.bf16.mxu0 0
        %4364 = vmatpush1.bf16.msra.mxu0 0
        %4365 = vmatprep.subr.bf16.mxu0 0
        %4366 = vmatpush1.bf16.msra.mxu0 0
        %4367 = vmatprep.subr.bf16.mxu0 0
        %4368 = vmatpush1.bf16.msra.mxu0 0
        %4369 = vmatprep.subr.bf16.mxu0 0
        %4370 = vmatpush1.bf16.msra.mxu0 0
        %4371 = vmatprep.subr.bf16.mxu0 0
        %4372 = vmatpush1.bf16.msra.mxu0 0
        %4373 = vmatprep.subr.bf16.mxu0 0
        %4374 = vmatpush1.bf16.msra.mxu0 0
        %4375 = vmatprep.subr.bf16.mxu0 0
        %4376 = vmatpush1.bf16.msra.mxu0 0
        %4377 = vmatprep.subr.bf16.mxu0 0
        %4378 = vmatpush1.bf16.msra.mxu0 0
        %4379 = vmatprep.subr.bf16.mxu0 0
        %4380 = vmatpush1.bf16.msra.mxu0 0
        %4381 = vmatprep.subr.bf16.mxu0 0
        %4382 = vmatpush1.bf16.msra.mxu0 0
        %4383 = vmatprep.subr.bf16.mxu0 0
        %4384 = vmatpush1.bf16.msra.mxu0 0
        %4385 = vmatprep.subr.bf16.mxu0 0
        %4386 = vmatpush1.bf16.msra.mxu0 0
        %4387 = vmatprep.mubr.bf16.mxu0 0
        %4388 = vmatmul.mubr.bf16.gmra.mrb[0].mxu0 %v4353
        %v4389 = vpop.f32.mrb[0].mxu0
        %v4390 = vadd.f32 0.0, %v4389
        %v4391 = vpop.f32.mrb[0].mxu0
        %v4392 = vpop.f32.mrb[0].mxu0
        %v4393 = vadd.f32 0.0, %v4392
        %v4394 = vpop.f32.mrb[0].mxu0
        %4395 = vdwg.mxu0
        %v4396 = vpack.c.bf16 %v4393, %v4390
        %s4397 = scalar_lea.vmem [#allocation11], 192
        %v4398 = vld [vmem:[%s4397] sm:$0xf]
        %v4399 = vld [vmem:[%s4397 + $0x4] sm:$0xf]
        %v4400 = vld [vmem:[%s4397 + $0x8] sm:$0xf]
        %v4401 = vld [vmem:[%s4397 + $0xc] sm:$0xf]
        %v4402 = vld [vmem:[%s4397 + $0x10] sm:$0xf]
        %v4403 = vld [vmem:[%s4397 + $0x14] sm:$0xf]
        %v4404 = vld [vmem:[%s4397 + $0x18] sm:$0xf]
        %v4405 = vld [vmem:[%s4397 + $0x1c] sm:$0xf]
        %v4406 = vld [vmem:[%s4397 + $0x20] sm:$0xf]
        %v4407 = vld [vmem:[%s4397 + $0x24] sm:$0xf]
        %v4408 = vld [vmem:[%s4397 + $0x28] sm:$0xf]
        %v4409 = vld [vmem:[%s4397 + $0x2c] sm:$0xf]
        %v4410 = vld [vmem:[%s4397 + $0x30] sm:$0xf]
        %v4411 = vld [vmem:[%s4397 + $0x34] sm:$0xf]
        %v4412 = vld [vmem:[%s4397 + $0x38] sm:$0xf]
        %v4413 = vld [vmem:[%s4397 + $0x3c] sm:$0xf]
        %v4430 = vunpack.c.l.b16 %v4398
        %v4431 = vunpack.c.l.b16 %v4399
        %v4432 = vunpack.c.l.b16 %v4400
        %v4433 = vunpack.c.l.b16 %v4401
        %v4434 = vunpack.c.l.b16 %v4402
        %v4435 = vunpack.c.l.b16 %v4403
        %v4436 = vunpack.c.l.b16 %v4404
        %v4437 = vunpack.c.l.b16 %v4405
        %v4438 = vunpack.c.l.b16 %v4406
        %v4439 = vunpack.c.l.b16 %v4407
        %v4440 = vunpack.c.l.b16 %v4408
        %v4441 = vunpack.c.l.b16 %v4409
        %v4442 = vunpack.c.l.b16 %v4410
        %v4443 = vunpack.c.l.b16 %v4411
        %v4444 = vunpack.c.l.b16 %v4412
        %v4445 = vunpack.c.l.b16 %v4413
        %v4446 = vpack.c.b16 %v4431, %v4430
        %v4447 = vpack.c.b16 %v4433, %v4432
        %v4448 = vpack.c.b16 %v4435, %v4434
        %v4449 = vpack.c.b16 %v4437, %v4436
        %v4450 = vpack.c.b16 %v4439, %v4438
        %v4451 = vpack.c.b16 %v4441, %v4440
        %v4452 = vpack.c.b16 %v4443, %v4442
        %v4453 = vpack.c.b16 %v4445, %v4444
        %4462 = vmatprep.subr.bf16.mxu0 0
        %4463 = vmatpush1.bf16.msra.mxu0 %v4446
        %4464 = vmatprep.subr.bf16.mxu0 0
        %4465 = vmatpush1.bf16.msra.mxu0 %v4447
        %4466 = vmatprep.subr.bf16.mxu0 0
        %4467 = vmatpush1.bf16.msra.mxu0 %v4448
        %4468 = vmatprep.subr.bf16.mxu0 0
        %4469 = vmatpush1.bf16.msra.mxu0 %v4449
        %4470 = vmatprep.subr.bf16.mxu0 0
        %4471 = vmatpush1.bf16.msra.mxu0 %v4450
        %4472 = vmatprep.subr.bf16.mxu0 0
        %4473 = vmatpush1.bf16.msra.mxu0 %v4451
        %4474 = vmatprep.subr.bf16.mxu0 0
        %4475 = vmatpush1.bf16.msra.mxu0 %v4452
        %4476 = vmatprep.subr.bf16.mxu0 0
        %4477 = vmatpush1.bf16.msra.mxu0 %v4453
        %4478 = vmatprep.subr.bf16.mxu0 0
        %4479 = vmatpush1.bf16.msra.mxu0 0
        %4480 = vmatprep.subr.bf16.mxu0 0
        %4481 = vmatpush1.bf16.msra.mxu0 0
        %4482 = vmatprep.subr.bf16.mxu0 0
        %4483 = vmatpush1.bf16.msra.mxu0 0
        %4484 = vmatprep.subr.bf16.mxu0 0
        %4485 = vmatpush1.bf16.msra.mxu0 0
        %4486 = vmatprep.subr.bf16.mxu0 0
        %4487 = vmatpush1.bf16.msra.mxu0 0
        %4488 = vmatprep.subr.bf16.mxu0 0
        %4489 = vmatpush1.bf16.msra.mxu0 0
        %4490 = vmatprep.subr.bf16.mxu0 0
        %4491 = vmatpush1.bf16.msra.mxu0 0
        %4492 = vmatprep.subr.bf16.mxu0 0
        %4493 = vmatpush1.bf16.msra.mxu0 0
        %4494 = vmatprep.mubr.bf16.mxu0 0
        %4495 = vmatmul.mubr.bf16.gmra.mrb[0].mxu0 %v4396
        %v4496 = vpop.f32.mrb[0].mxu0
        %v4497 = vadd.f32 0.0, %v4496
        %v4498 = vpop.f32.mrb[0].mxu0
        %v4499 = vpop.f32.mrb[0].mxu0
        %v4500 = vadd.f32 0.0, %v4499
        %v4501 = vpop.f32.mrb[0].mxu0
        %4502 = vdwg.mxu0
        %v4519 = vunpack.c.l.b16 %v4247
        %v4520 = vunpack.c.l.b16 %v4248
        %v4521 = vunpack.c.l.b16 %v4249
        %v4522 = vunpack.c.l.b16 %v4250
        %v4523 = vunpack.c.l.b16 %v4251
        %v4524 = vunpack.c.l.b16 %v4252
        %v4525 = vunpack.c.l.b16 %v4253
        %v4526 = vunpack.c.l.b16 %v4254
        %v4527 = vunpack.c.l.b16 %v4255
        %v4528 = vunpack.c.l.b16 %v4256
        %v4529 = vunpack.c.l.b16 %v4257
        %v4530 = vunpack.c.l.b16 %v4258
        %v4531 = vunpack.c.l.b16 %v4259
        %v4532 = vunpack.c.l.b16 %v4260
        %v4533 = vunpack.c.l.b16 %v4261
        %v4534 = vunpack.c.l.b16 %v4262
        %v4535 = vpack.c.b16 %v4520, %v4519
        %v4536 = vpack.c.b16 %v4522, %v4521
        %v4537 = vpack.c.b16 %v4524, %v4523
        %v4538 = vpack.c.b16 %v4526, %v4525
        %v4539 = vpack.c.b16 %v4528, %v4527
        %v4540 = vpack.c.b16 %v4530, %v4529
        %v4541 = vpack.c.b16 %v4532, %v4531
        %v4542 = vpack.c.b16 %v4534, %v4533
        %4551 = vmatprep.subr.bf16.mxu0 0
        %4552 = vmatpush1.bf16.msra.mxu0 %v4535
        %4553 = vmatprep.subr.bf16.mxu0 0
        %4554 = vmatpush1.bf16.msra.mxu0 %v4536
        %4555 = vmatprep.subr.bf16.mxu0 0
        %4556 = vmatpush1.bf16.msra.mxu0 %v4537
        %4557 = vmatprep.subr.bf16.mxu0 0
        %4558 = vmatpush1.bf16.msra.mxu0 %v4538
        %4559 = vmatprep.subr.bf16.mxu0 0
        %4560 = vmatpush1.bf16.msra.mxu0 %v4539
        %4561 = vmatprep.subr.bf16.mxu0 0
        %4562 = vmatpush1.bf16.msra.mxu0 %v4540
        %4563 = vmatprep.subr.bf16.mxu0 0
        %4564 = vmatpush1.bf16.msra.mxu0 %v4541
        %4565 = vmatprep.subr.bf16.mxu0 0
        %4566 = vmatpush1.bf16.msra.mxu0 %v4542
        %4567 = vmatprep.subr.bf16.mxu0 0
        %4568 = vmatpush1.bf16.msra.mxu0 0
        %4569 = vmatprep.subr.bf16.mxu0 0
        %4570 = vmatpush1.bf16.msra.mxu0 0
        %4571 = vmatprep.subr.bf16.mxu0 0
        %4572 = vmatpush1.bf16.msra.mxu0 0
        %4573 = vmatprep.subr.bf16.mxu0 0
        %4574 = vmatpush1.bf16.msra.mxu0 0
        %4575 = vmatprep.subr.bf16.mxu0 0
        %4576 = vmatpush1.bf16.msra.mxu0 0
        %4577 = vmatprep.subr.bf16.mxu0 0
        %4578 = vmatpush1.bf16.msra.mxu0 0
        %4579 = vmatprep.subr.bf16.mxu0 0
        %4580 = vmatpush1.bf16.msra.mxu0 0
        %4581 = vmatprep.subr.bf16.mxu0 0
        %4582 = vmatpush1.bf16.msra.mxu0 0
        %4583 = vmatprep.mubr.bf16.mxu0 0
        %4584 = vmatmul.mubr.bf16.gmra.mrb[0].mxu0 %v4245
        %v4585 = vpop.f32.mrb[0].mxu0
        %v4586 = vadd.f32 %v4497, %v4585
        %v4587 = vpop.f32.mrb[0].mxu0
        %v4588 = vpop.f32.mrb[0].mxu0
        %v4589 = vadd.f32 %v4500, %v4588
        %v4590 = vpop.f32.mrb[0].mxu0
        %4591 = vdwg.mxu0
        %v4592 = vlaneseq
        %v4593 = vshrl.u32 %v4592, 7
        %v4594 = vsub.s32 2, %v4593
        %v4595 = vrot.slane %v553, %v4594
        %v4596 = vadd.f32 %v4586, %v4595
        %v4597 = vadd.f32 %v4589, %v4595
        %v4598 = vadd.f32 %v3691, %v4596
        %v4599 = vadd.f32 %v3692, %v4597
        %v4600 = vmul.f32 %v4598, %v584
        %v4601 = vmul.f32 %v4599, %v584
        %4602 = vadd.xlane.f32.xlu0 %v4600
        %v4603 = vpop.xlane.xlu0 %4602
        %4604 = vadd.xlane.f32.xlu0 %v4601
        %v4605 = vpop.xlane.xlu0 %4604
        %v4606 = vmul.f32 %v4603, 0.025
        %v4607 = vmul.f32 %v4605, 0.025
        %v4608 = vsub.f32 %v4598, %v4606
        %v4609 = vsub.f32 %v4599, %v4607
        %v4610 = vmul.f32 %v4608, %v584
        %v4611 = vmul.f32 %v4609, %v584
        %v4612 = vmul.f32 %v4610, %v4610
        %v4613 = vmul.f32 %v4611, %v4611
        %4614 = vadd.xlane.f32.xlu0 %v4612
        %v4615 = vpop.xlane.xlu0 %4614
        %4616 = vadd.xlane.f32.xlu0 %v4613
        %v4617 = vpop.xlane.xlu0 %4616
        %v4618 = vmul.f32 %v4615, 0.025
        %v4619 = vmul.f32 %v4617, 0.025
        %v4620 = vadd.f32 %v4618, 0.0001
        %v4621 = vadd.f32 %v4619, 0.0001
        %v4622 = vrsqrt.pop %v4620
        %v4623 = vrsqrt.pop %v4621
        %v4624 = vmul.f32 %v4610, %v4622
        %v4625 = vmul.f32 %v4611, %v4623
        %v4626 = vlaneseq
        %v4627 = vshrl.u32 %v4626, 7
        %v4628 = vsub.s32 3, %v4627
        %v4629 = vrot.slane %v553, %v4628
        %v4630 = vmul.f32 %v4624, %v4629
        %v4631 = vmul.f32 %v4625, %v4629
        %v4632 = vlaneseq
        %v4633 = vshrl.u32 %v4632, 7
        %v4634 = vsub.s32 4, %v4633
        %v4635 = vrot.slane %v553, %v4634
        %v4636 = vadd.f32 %v4630, %v4635
        %v4637 = vadd.f32 %v4631, %v4635
        %v4638 = vmul.f32 %v4636, %v590
        %v4639 = vmul.f32 %v4637, %v595
        %v4642 = vrot.slane %v4638, 7
        %v4643 = vrot.slane %v4639, 7
        %v4644 = vsel %vm2934, %v4642, %v4643
        %v4648 = vsel %vm2934, 0.0, %v4642
        %v4649 = vsel %vm2934, %v4643, 0.0
        %v4650 = vpack.c.bf16 %v4644, %v4648
        %s4651 = scalar_lea.vmem [#allocation13], 192
        %v4652 = vld [vmem:[%s4651] sm:$0xf]
        %v4653 = vld [vmem:[%s4651 + $0x4] sm:$0xf]
        %v4654 = vld [vmem:[%s4651 + $0x8] sm:$0xf]
        %v4655 = vld [vmem:[%s4651 + $0xc] sm:$0xf]
        %v4656 = vld [vmem:[%s4651 + $0x10] sm:$0xf]
        %v4657 = vld [vmem:[%s4651 + $0x14] sm:$0xf]
        %v4658 = vld [vmem:[%s4651 + $0x18] sm:$0xf]
        %v4659 = vld [vmem:[%s4651 + $0x1c] sm:$0xf]
        %v4660 = vld [vmem:[%s4651 + $0x20] sm:$0xf]
        %v4661 = vld [vmem:[%s4651 + $0x24] sm:$0xf]
        %v4662 = vld [vmem:[%s4651 + $0x28] sm:$0xf]
        %v4663 = vld [vmem:[%s4651 + $0x2c] sm:$0xf]
        %v4664 = vld [vmem:[%s4651 + $0x30] sm:$0xf]
        %v4665 = vld [vmem:[%s4651 + $0x34] sm:$0xf]
        %v4666 = vld [vmem:[%s4651 + $0x38] sm:$0xf]
        %v4667 = vld [vmem:[%s4651 + $0x3c] sm:$0xf]
        %v4668 = vpack.c.bf16 %v4649, %v4649
        %s4669 = scalar_lea.vmem [#allocation13], 256
        %v4670 = vld [vmem:[%s4669] sm:$0xf]
        %v4671 = vld [vmem:[%s4669 + $0x4] sm:$0xf]
        %v4672 = vld [vmem:[%s4669 + $0x8] sm:$0xf]
        %v4673 = vld [vmem:[%s4669 + $0xc] sm:$0xf]
        %v4674 = vld [vmem:[%s4669 + $0x10] sm:$0xf]
        %v4675 = vld [vmem:[%s4669 + $0x14] sm:$0xf]
        %v4676 = vld [vmem:[%s4669 + $0x18] sm:$0xf]
        %v4677 = vld [vmem:[%s4669 + $0x1c] sm:$0xf]
        %v4678 = vld [vmem:[%s4669 + $0x20] sm:$0xf]
        %v4679 = vld [vmem:[%s4669 + $0x24] sm:$0xf]
        %v4680 = vld [vmem:[%s4669 + $0x28] sm:$0xf]
        %v4681 = vld [vmem:[%s4669 + $0x2c] sm:$0xf]
        %v4682 = vld [vmem:[%s4669 + $0x30] sm:$0xf]
        %v4683 = vld [vmem:[%s4669 + $0x34] sm:$0xf]
        %v4684 = vld [vmem:[%s4669 + $0x38] sm:$0xf]
        %v4685 = vld [vmem:[%s4669 + $0x3c] sm:$0xf]
        %v4687 = vshrl.u32 %v4650, 16
        %v4689 = vshll.u32 %v4650, 16
        %v4691 = vrot.slane %v4689, 1
        %v4692 = vor.u32 %v4687, %v4691
        %v4694 = vshll.u32 %v4668, 16
        %v4696 = vrot.slane %v4694, 1
        %v4697 = vsel %vm645, %v4692, %v4696
        %v4715 = vunpack.c.l.b16 %v4670
        %v4716 = vunpack.c.l.b16 %v4671
        %v4717 = vunpack.c.l.b16 %v4672
        %v4718 = vunpack.c.l.b16 %v4673
        %v4719 = vunpack.c.l.b16 %v4674
        %v4720 = vunpack.c.l.b16 %v4675
        %v4721 = vunpack.c.l.b16 %v4676
        %v4722 = vunpack.c.l.b16 %v4677
        %v4723 = vunpack.c.l.b16 %v4678
        %v4724 = vunpack.c.l.b16 %v4679
        %v4725 = vunpack.c.l.b16 %v4680
        %v4726 = vunpack.c.l.b16 %v4681
        %v4727 = vunpack.c.l.b16 %v4682
        %v4728 = vunpack.c.l.b16 %v4683
        %v4729 = vunpack.c.l.b16 %v4684
        %v4730 = vunpack.c.l.b16 %v4685
        %v4731 = vpack.c.b16 %v4716, %v4715
        %v4732 = vpack.c.b16 %v4718, %v4717
        %v4733 = vpack.c.b16 %v4720, %v4719
        %v4734 = vpack.c.b16 %v4722, %v4721
        %v4735 = vpack.c.b16 %v4724, %v4723
        %v4736 = vpack.c.b16 %v4726, %v4725
        %v4737 = vpack.c.b16 %v4728, %v4727
        %v4738 = vpack.c.b16 %v4730, %v4729
        %4747 = vmatprep.subr.bf16.mxu0 0
        %4748 = vmatpush1.bf16.msra.mxu0 %v4731
        %4749 = vmatprep.subr.bf16.mxu0 0
        %4750 = vmatpush1.bf16.msra.mxu0 %v4732
        %4751 = vmatprep.subr.bf16.mxu0 0
        %4752 = vmatpush1.bf16.msra.mxu0 %v4733
        %4753 = vmatprep.subr.bf16.mxu0 0
        %4754 = vmatpush1.bf16.msra.mxu0 %v4734
        %4755 = vmatprep.subr.bf16.mxu0 0
        %4756 = vmatpush1.bf16.msra.mxu0 %v4735
        %4757 = vmatprep.subr.bf16.mxu0 0
        %4758 = vmatpush1.bf16.msra.mxu0 %v4736
        %4759 = vmatprep.subr.bf16.mxu0 0
        %4760 = vmatpush1.bf16.msra.mxu0 %v4737
        %4761 = vmatprep.subr.bf16.mxu0 0
        %4762 = vmatpush1.bf16.msra.mxu0 %v4738
        %4763 = vmatprep.subr.bf16.mxu0 0
        %4764 = vmatpush1.bf16.msra.mxu0 0
        %4765 = vmatprep.subr.bf16.mxu0 0
        %4766 = vmatpush1.bf16.msra.mxu0 0
        %4767 = vmatprep.subr.bf16.mxu0 0
        %4768 = vmatpush1.bf16.msra.mxu0 0
        %4769 = vmatprep.subr.bf16.mxu0 0
        %4770 = vmatpush1.bf16.msra.mxu0 0
        %4771 = vmatprep.subr.bf16.mxu0 0
        %4772 = vmatpush1.bf16.msra.mxu0 0
        %4773 = vmatprep.subr.bf16.mxu0 0
        %4774 = vmatpush1.bf16.msra.mxu0 0
        %4775 = vmatprep.subr.bf16.mxu0 0
        %4776 = vmatpush1.bf16.msra.mxu0 0
        %4777 = vmatprep.subr.bf16.mxu0 0
        %4778 = vmatpush1.bf16.msra.mxu0 0
        %4779 = vmatprep.mubr.bf16.mxu0 0
        %4780 = vmatmul.mubr.bf16.gmra.mrb[0].mxu0 %v4697
        %v4781 = vpop.f32.mrb[0].mxu0
        %v4782 = vadd.f32 0.0, %v4781
        %v4783 = vpop.f32.mrb[0].mxu0
        %v4784 = vpop.f32.mrb[0].mxu0
        %v4785 = vadd.f32 0.0, %v4784
        %v4786 = vpop.f32.mrb[0].mxu0
        %4787 = vdwg.mxu0
        %v4804 = vunpack.c.l.b16 %v4652
        %v4805 = vunpack.c.l.b16 %v4653
        %v4806 = vunpack.c.l.b16 %v4654
        %v4807 = vunpack.c.l.b16 %v4655
        %v4808 = vunpack.c.l.b16 %v4656
        %v4809 = vunpack.c.l.b16 %v4657
        %v4810 = vunpack.c.l.b16 %v4658
        %v4811 = vunpack.c.l.b16 %v4659
        %v4812 = vunpack.c.l.b16 %v4660
        %v4813 = vunpack.c.l.b16 %v4661
        %v4814 = vunpack.c.l.b16 %v4662
        %v4815 = vunpack.c.l.b16 %v4663
        %v4816 = vunpack.c.l.b16 %v4664
        %v4817 = vunpack.c.l.b16 %v4665
        %v4818 = vunpack.c.l.b16 %v4666
        %v4819 = vunpack.c.l.b16 %v4667
        %v4820 = vpack.c.b16 %v4805, %v4804
        %v4821 = vpack.c.b16 %v4807, %v4806
        %v4822 = vpack.c.b16 %v4809, %v4808
        %v4823 = vpack.c.b16 %v4811, %v4810
        %v4824 = vpack.c.b16 %v4813, %v4812
        %v4825 = vpack.c.b16 %v4815, %v4814
        %v4826 = vpack.c.b16 %v4817, %v4816
        %v4827 = vpack.c.b16 %v4819, %v4818
        %4836 = vmatprep.subr.bf16.mxu0 0
        %4837 = vmatpush1.bf16.msra.mxu0 %v4820
        %4838 = vmatprep.subr.bf16.mxu0 0
        %4839 = vmatpush1.bf16.msra.mxu0 %v4821
        %4840 = vmatprep.subr.bf16.mxu0 0
        %4841 = vmatpush1.bf16.msra.mxu0 %v4822
        %4842 = vmatprep.subr.bf16.mxu0 0
        %4843 = vmatpush1.bf16.msra.mxu0 %v4823
        %4844 = vmatprep.subr.bf16.mxu0 0
        %4845 = vmatpush1.bf16.msra.mxu0 %v4824
        %4846 = vmatprep.subr.bf16.mxu0 0
        %4847 = vmatpush1.bf16.msra.mxu0 %v4825
        %4848 = vmatprep.subr.bf16.mxu0 0
        %4849 = vmatpush1.bf16.msra.mxu0 %v4826
        %4850 = vmatprep.subr.bf16.mxu0 0
        %4851 = vmatpush1.bf16.msra.mxu0 %v4827
        %4852 = vmatprep.subr.bf16.mxu0 0
        %4853 = vmatpush1.bf16.msra.mxu0 0
        %4854 = vmatprep.subr.bf16.mxu0 0
        %4855 = vmatpush1.bf16.msra.mxu0 0
        %4856 = vmatprep.subr.bf16.mxu0 0
        %4857 = vmatpush1.bf16.msra.mxu0 0
        %4858 = vmatprep.subr.bf16.mxu0 0
        %4859 = vmatpush1.bf16.msra.mxu0 0
        %4860 = vmatprep.subr.bf16.mxu0 0
        %4861 = vmatpush1.bf16.msra.mxu0 0
        %4862 = vmatprep.subr.bf16.mxu0 0
        %4863 = vmatpush1.bf16.msra.mxu0 0
        %4864 = vmatprep.subr.bf16.mxu0 0
        %4865 = vmatpush1.bf16.msra.mxu0 0
        %4866 = vmatprep.subr.bf16.mxu0 0
        %4867 = vmatpush1.bf16.msra.mxu0 0
        %4868 = vmatprep.mubr.bf16.mxu0 0
        %4869 = vmatmul.mubr.bf16.gmra.mrb[0].mxu0 %v4650
        %v4870 = vpop.f32.mrb[0].mxu0
        %v4871 = vadd.f32 %v4782, %v4870
        %v4872 = vpop.f32.mrb[0].mxu0
        %v4873 = vpop.f32.mrb[0].mxu0
        %v4874 = vadd.f32 %v4785, %v4873
        %v4875 = vpop.f32.mrb[0].mxu0
        %4876 = vdwg.mxu0
        %s4877 = scalar_lea.vmem [#allocation13], 320
        %v4878 = vld [vmem:[%s4877] sm:$0xf]
        %v4879 = vld [vmem:[%s4877 + $0x4] sm:$0xf]
        %v4880 = vld [vmem:[%s4877 + $0x8] sm:$0xf]
        %v4881 = vld [vmem:[%s4877 + $0xc] sm:$0xf]
        %v4882 = vld [vmem:[%s4877 + $0x10] sm:$0xf]
        %v4883 = vld [vmem:[%s4877 + $0x14] sm:$0xf]
        %v4884 = vld [vmem:[%s4877 + $0x18] sm:$0xf]
        %v4885 = vld [vmem:[%s4877 + $0x1c] sm:$0xf]
        %v4886 = vld [vmem:[%s4877 + $0x20] sm:$0xf]
        %v4887 = vld [vmem:[%s4877 + $0x24] sm:$0xf]
        %v4888 = vld [vmem:[%s4877 + $0x28] sm:$0xf]
        %v4889 = vld [vmem:[%s4877 + $0x2c] sm:$0xf]
        %v4890 = vld [vmem:[%s4877 + $0x30] sm:$0xf]
        %v4891 = vld [vmem:[%s4877 + $0x34] sm:$0xf]
        %v4892 = vld [vmem:[%s4877 + $0x38] sm:$0xf]
        %v4893 = vld [vmem:[%s4877 + $0x3c] sm:$0xf]
        %v4896 = vrot.slane %v4650, 1
        %v4897 = vrot.slane %v4668, 1
        %v4898 = vsel %vm856, %v4896, %v4897
        %v4916 = vunpack.c.l.b16 %v4878
        %v4917 = vunpack.c.l.b16 %v4879
        %v4918 = vunpack.c.l.b16 %v4880
        %v4919 = vunpack.c.l.b16 %v4881
        %v4920 = vunpack.c.l.b16 %v4882
        %v4921 = vunpack.c.l.b16 %v4883
        %v4922 = vunpack.c.l.b16 %v4884
        %v4923 = vunpack.c.l.b16 %v4885
        %v4924 = vunpack.c.l.b16 %v4886
        %v4925 = vunpack.c.l.b16 %v4887
        %v4926 = vunpack.c.l.b16 %v4888
        %v4927 = vunpack.c.l.b16 %v4889
        %v4928 = vunpack.c.l.b16 %v4890
        %v4929 = vunpack.c.l.b16 %v4891
        %v4930 = vunpack.c.l.b16 %v4892
        %v4931 = vunpack.c.l.b16 %v4893
        %v4932 = vpack.c.b16 %v4917, %v4916
        %v4933 = vpack.c.b16 %v4919, %v4918
        %v4934 = vpack.c.b16 %v4921, %v4920
        %v4935 = vpack.c.b16 %v4923, %v4922
        %v4936 = vpack.c.b16 %v4925, %v4924
        %v4937 = vpack.c.b16 %v4927, %v4926
        %v4938 = vpack.c.b16 %v4929, %v4928
        %v4939 = vpack.c.b16 %v4931, %v4930
        %4948 = vmatprep.subr.bf16.mxu0 0
        %4949 = vmatpush1.bf16.msra.mxu0 %v4932
        %4950 = vmatprep.subr.bf16.mxu0 0
        %4951 = vmatpush1.bf16.msra.mxu0 %v4933
        %4952 = vmatprep.subr.bf16.mxu0 0
        %4953 = vmatpush1.bf16.msra.mxu0 %v4934
        %4954 = vmatprep.subr.bf16.mxu0 0
        %4955 = vmatpush1.bf16.msra.mxu0 %v4935
        %4956 = vmatprep.subr.bf16.mxu0 0
        %4957 = vmatpush1.bf16.msra.mxu0 %v4936
        %4958 = vmatprep.subr.bf16.mxu0 0
        %4959 = vmatpush1.bf16.msra.mxu0 %v4937
        %4960 = vmatprep.subr.bf16.mxu0 0
        %4961 = vmatpush1.bf16.msra.mxu0 %v4938
        %4962 = vmatprep.subr.bf16.mxu0 0
        %4963 = vmatpush1.bf16.msra.mxu0 %v4939
        %4964 = vmatprep.subr.bf16.mxu0 0
        %4965 = vmatpush1.bf16.msra.mxu0 0
        %4966 = vmatprep.subr.bf16.mxu0 0
        %4967 = vmatpush1.bf16.msra.mxu0 0
        %4968 = vmatprep.subr.bf16.mxu0 0
        %4969 = vmatpush1.bf16.msra.mxu0 0
        %4970 = vmatprep.subr.bf16.mxu0 0
        %4971 = vmatpush1.bf16.msra.mxu0 0
        %4972 = vmatprep.subr.bf16.mxu0 0
        %4973 = vmatpush1.bf16.msra.mxu0 0
        %4974 = vmatprep.subr.bf16.mxu0 0
        %4975 = vmatpush1.bf16.msra.mxu0 0
        %4976 = vmatprep.subr.bf16.mxu0 0
        %4977 = vmatpush1.bf16.msra.mxu0 0
        %4978 = vmatprep.subr.bf16.mxu0 0
        %4979 = vmatpush1.bf16.msra.mxu0 0
        %4980 = vmatprep.mubr.bf16.mxu0 0
        %4981 = vmatmul.mubr.bf16.gmra.mrb[0].mxu0 %v4898
        %v4982 = vpop.f32.mrb[0].mxu0
        %v4983 = vadd.f32 0.0, %v4982
        %v4984 = vpop.f32.mrb[0].mxu0
        %v4985 = vpop.f32.mrb[0].mxu0
        %v4986 = vadd.f32 0.0, %v4985
        %v4987 = vpop.f32.mrb[0].mxu0
        %4988 = vdwg.mxu0
        %v4989 = vadd.f32 %v4871, %v4983
        %v4990 = vadd.f32 %v4874, %v4986
        %v4991 = vlaneseq
        %v4992 = vshrl.u32 %v4991, 7
        %v4993 = vsub.s32 5, %v4992
        %v4994 = vrot.slane %v553, %v4993
        %v4995 = vadd.f32 %v4989, %v4994
        %v4996 = vadd.f32 %v4990, %v4994
        %v4997 = vmax.f32 %v4995, 0.0
        %v4998 = vmax.f32 %v4996, 0.0
        %v4999 = vmul.f32 %v4997, %v590
        %v5000 = vmul.f32 %v4998, %v595
        %v5003 = vrot.slane %v4999, 7
        %v5004 = vrot.slane %v5000, 7
        %v5005 = vsel %vm2934, %v5003, %v5004
        %v5009 = vsel %vm2934, 0.0, %v5003
        %v5010 = vsel %vm2934, %v5004, 0.0
        %v5011 = vpack.c.bf16 %v5005, %v5009
        %s5012 = scalar_lea.vmem [#allocation14], 192
        %v5013 = vld [vmem:[%s5012] sm:$0xf]
        %v5014 = vld [vmem:[%s5012 + $0x4] sm:$0xf]
        %v5015 = vld [vmem:[%s5012 + $0x8] sm:$0xf]
        %v5016 = vld [vmem:[%s5012 + $0xc] sm:$0xf]
        %v5017 = vld [vmem:[%s5012 + $0x10] sm:$0xf]
        %v5018 = vld [vmem:[%s5012 + $0x14] sm:$0xf]
        %v5019 = vld [vmem:[%s5012 + $0x18] sm:$0xf]
        %v5020 = vld [vmem:[%s5012 + $0x1c] sm:$0xf]
        %v5021 = vld [vmem:[%s5012 + $0x20] sm:$0xf]
        %v5022 = vld [vmem:[%s5012 + $0x24] sm:$0xf]
        %v5023 = vld [vmem:[%s5012 + $0x28] sm:$0xf]
        %v5024 = vld [vmem:[%s5012 + $0x2c] sm:$0xf]
        %v5025 = vld [vmem:[%s5012 + $0x30] sm:$0xf]
        %v5026 = vld [vmem:[%s5012 + $0x34] sm:$0xf]
        %v5027 = vld [vmem:[%s5012 + $0x38] sm:$0xf]
        %v5028 = vld [vmem:[%s5012 + $0x3c] sm:$0xf]
        %v5029 = vpack.c.bf16 %v5010, %v5010
        %s5030 = scalar_lea.vmem [#allocation14], 256
        %v5031 = vld [vmem:[%s5030] sm:$0xf]
        %v5032 = vld [vmem:[%s5030 + $0x4] sm:$0xf]
        %v5033 = vld [vmem:[%s5030 + $0x8] sm:$0xf]
        %v5034 = vld [vmem:[%s5030 + $0xc] sm:$0xf]
        %v5035 = vld [vmem:[%s5030 + $0x10] sm:$0xf]
        %v5036 = vld [vmem:[%s5030 + $0x14] sm:$0xf]
        %v5037 = vld [vmem:[%s5030 + $0x18] sm:$0xf]
        %v5038 = vld [vmem:[%s5030 + $0x1c] sm:$0xf]
        %v5039 = vld [vmem:[%s5030 + $0x20] sm:$0xf]
        %v5040 = vld [vmem:[%s5030 + $0x24] sm:$0xf]
        %v5041 = vld [vmem:[%s5030 + $0x28] sm:$0xf]
        %v5042 = vld [vmem:[%s5030 + $0x2c] sm:$0xf]
        %v5043 = vld [vmem:[%s5030 + $0x30] sm:$0xf]
        %v5044 = vld [vmem:[%s5030 + $0x34] sm:$0xf]
        %v5045 = vld [vmem:[%s5030 + $0x38] sm:$0xf]
        %v5046 = vld [vmem:[%s5030 + $0x3c] sm:$0xf]
        %v5048 = vshrl.u32 %v5011, 16
        %v5050 = vshll.u32 %v5011, 16
        %v5052 = vrot.slane %v5050, 1
        %v5053 = vor.u32 %v5048, %v5052
        %v5055 = vshll.u32 %v5029, 16
        %v5057 = vrot.slane %v5055, 1
        %v5058 = vsel %vm645, %v5053, %v5057
        %v5076 = vunpack.c.l.b16 %v5031
        %v5077 = vunpack.c.l.b16 %v5032
        %v5078 = vunpack.c.l.b16 %v5033
        %v5079 = vunpack.c.l.b16 %v5034
        %v5080 = vunpack.c.l.b16 %v5035
        %v5081 = vunpack.c.l.b16 %v5036
        %v5082 = vunpack.c.l.b16 %v5037
        %v5083 = vunpack.c.l.b16 %v5038
        %v5084 = vunpack.c.l.b16 %v5039
        %v5085 = vunpack.c.l.b16 %v5040
        %v5086 = vunpack.c.l.b16 %v5041
        %v5087 = vunpack.c.l.b16 %v5042
        %v5088 = vunpack.c.l.b16 %v5043
        %v5089 = vunpack.c.l.b16 %v5044
        %v5090 = vunpack.c.l.b16 %v5045
        %v5091 = vunpack.c.l.b16 %v5046
        %v5092 = vpack.c.b16 %v5077, %v5076
        %v5093 = vpack.c.b16 %v5079, %v5078
        %v5094 = vpack.c.b16 %v5081, %v5080
        %v5095 = vpack.c.b16 %v5083, %v5082
        %v5096 = vpack.c.b16 %v5085, %v5084
        %v5097 = vpack.c.b16 %v5087, %v5086
        %v5098 = vpack.c.b16 %v5089, %v5088
        %v5099 = vpack.c.b16 %v5091, %v5090
        %5108 = vmatprep.subr.bf16.mxu0 0
        %5109 = vmatpush1.bf16.msra.mxu0 %v5092
        %5110 = vmatprep.subr.bf16.mxu0 0
        %5111 = vmatpush1.bf16.msra.mxu0 %v5093
        %5112 = vmatprep.subr.bf16.mxu0 0
        %5113 = vmatpush1.bf16.msra.mxu0 %v5094
        %5114 = vmatprep.subr.bf16.mxu0 0
        %5115 = vmatpush1.bf16.msra.mxu0 %v5095
        %5116 = vmatprep.subr.bf16.mxu0 0
        %5117 = vmatpush1.bf16.msra.mxu0 %v5096
        %5118 = vmatprep.subr.bf16.mxu0 0
        %5119 = vmatpush1.bf16.msra.mxu0 %v5097
        %5120 = vmatprep.subr.bf16.mxu0 0
        %5121 = vmatpush1.bf16.msra.mxu0 %v5098
        %5122 = vmatprep.subr.bf16.mxu0 0
        %5123 = vmatpush1.bf16.msra.mxu0 %v5099
        %5124 = vmatprep.subr.bf16.mxu0 0
        %5125 = vmatpush1.bf16.msra.mxu0 0
        %5126 = vmatprep.subr.bf16.mxu0 0
        %5127 = vmatpush1.bf16.msra.mxu0 0
        %5128 = vmatprep.subr.bf16.mxu0 0
        %5129 = vmatpush1.bf16.msra.mxu0 0
        %5130 = vmatprep.subr.bf16.mxu0 0
        %5131 = vmatpush1.bf16.msra.mxu0 0
        %5132 = vmatprep.subr.bf16.mxu0 0
        %5133 = vmatpush1.bf16.msra.mxu0 0
        %5134 = vmatprep.subr.bf16.mxu0 0
        %5135 = vmatpush1.bf16.msra.mxu0 0
        %5136 = vmatprep.subr.bf16.mxu0 0
        %5137 = vmatpush1.bf16.msra.mxu0 0
        %5138 = vmatprep.subr.bf16.mxu0 0
        %5139 = vmatpush1.bf16.msra.mxu0 0
        %5140 = vmatprep.mubr.bf16.mxu0 0
        %5141 = vmatmul.mubr.bf16.gmra.mrb[0].mxu0 %v5058
        %v5142 = vpop.f32.mrb[0].mxu0
        %v5143 = vadd.f32 0.0, %v5142
        %v5144 = vpop.f32.mrb[0].mxu0
        %v5145 = vpop.f32.mrb[0].mxu0
        %v5146 = vadd.f32 0.0, %v5145
        %v5147 = vpop.f32.mrb[0].mxu0
        %5148 = vdwg.mxu0
        %v5165 = vunpack.c.l.b16 %v5013
        %v5166 = vunpack.c.l.b16 %v5014
        %v5167 = vunpack.c.l.b16 %v5015
        %v5168 = vunpack.c.l.b16 %v5016
        %v5169 = vunpack.c.l.b16 %v5017
        %v5170 = vunpack.c.l.b16 %v5018
        %v5171 = vunpack.c.l.b16 %v5019
        %v5172 = vunpack.c.l.b16 %v5020
        %v5173 = vunpack.c.l.b16 %v5021
        %v5174 = vunpack.c.l.b16 %v5022
        %v5175 = vunpack.c.l.b16 %v5023
        %v5176 = vunpack.c.l.b16 %v5024
        %v5177 = vunpack.c.l.b16 %v5025
        %v5178 = vunpack.c.l.b16 %v5026
        %v5179 = vunpack.c.l.b16 %v5027
        %v5180 = vunpack.c.l.b16 %v5028
        %v5181 = vpack.c.b16 %v5166, %v5165
        %v5182 = vpack.c.b16 %v5168, %v5167
        %v5183 = vpack.c.b16 %v5170, %v5169
        %v5184 = vpack.c.b16 %v5172, %v5171
        %v5185 = vpack.c.b16 %v5174, %v5173
        %v5186 = vpack.c.b16 %v5176, %v5175
        %v5187 = vpack.c.b16 %v5178, %v5177
        %v5188 = vpack.c.b16 %v5180, %v5179
        %5197 = vmatprep.subr.bf16.mxu0 0
        %5198 = vmatpush1.bf16.msra.mxu0 %v5181
        %5199 = vmatprep.subr.bf16.mxu0 0
        %5200 = vmatpush1.bf16.msra.mxu0 %v5182
        %5201 = vmatprep.subr.bf16.mxu0 0
        %5202 = vmatpush1.bf16.msra.mxu0 %v5183
        %5203 = vmatprep.subr.bf16.mxu0 0
        %5204 = vmatpush1.bf16.msra.mxu0 %v5184
        %5205 = vmatprep.subr.bf16.mxu0 0
        %5206 = vmatpush1.bf16.msra.mxu0 %v5185
        %5207 = vmatprep.subr.bf16.mxu0 0
        %5208 = vmatpush1.bf16.msra.mxu0 %v5186
        %5209 = vmatprep.subr.bf16.mxu0 0
        %5210 = vmatpush1.bf16.msra.mxu0 %v5187
        %5211 = vmatprep.subr.bf16.mxu0 0
        %5212 = vmatpush1.bf16.msra.mxu0 %v5188
        %5213 = vmatprep.subr.bf16.mxu0 0
        %5214 = vmatpush1.bf16.msra.mxu0 0
        %5215 = vmatprep.subr.bf16.mxu0 0
        %5216 = vmatpush1.bf16.msra.mxu0 0
        %5217 = vmatprep.subr.bf16.mxu0 0
        %5218 = vmatpush1.bf16.msra.mxu0 0
        %5219 = vmatprep.subr.bf16.mxu0 0
        %5220 = vmatpush1.bf16.msra.mxu0 0
        %5221 = vmatprep.subr.bf16.mxu0 0
        %5222 = vmatpush1.bf16.msra.mxu0 0
        %5223 = vmatprep.subr.bf16.mxu0 0
        %5224 = vmatpush1.bf16.msra.mxu0 0
        %5225 = vmatprep.subr.bf16.mxu0 0
        %5226 = vmatpush1.bf16.msra.mxu0 0
        %5227 = vmatprep.subr.bf16.mxu0 0
        %5228 = vmatpush1.bf16.msra.mxu0 0
        %5229 = vmatprep.mubr.bf16.mxu0 0
        %5230 = vmatmul.mubr.bf16.gmra.mrb[0].mxu0 %v5011
        %v5231 = vpop.f32.mrb[0].mxu0
        %v5232 = vadd.f32 %v5143, %v5231
        %v5233 = vpop.f32.mrb[0].mxu0
        %v5234 = vpop.f32.mrb[0].mxu0
        %v5235 = vadd.f32 %v5146, %v5234
        %v5236 = vpop.f32.mrb[0].mxu0
        %5237 = vdwg.mxu0
        %s5238 = scalar_lea.vmem [#allocation14], 320
        %v5239 = vld [vmem:[%s5238] sm:$0xf]
        %v5240 = vld [vmem:[%s5238 + $0x4] sm:$0xf]
        %v5241 = vld [vmem:[%s5238 + $0x8] sm:$0xf]
        %v5242 = vld [vmem:[%s5238 + $0xc] sm:$0xf]
        %v5243 = vld [vmem:[%s5238 + $0x10] sm:$0xf]
        %v5244 = vld [vmem:[%s5238 + $0x14] sm:$0xf]
        %v5245 = vld [vmem:[%s5238 + $0x18] sm:$0xf]
        %v5246 = vld [vmem:[%s5238 + $0x1c] sm:$0xf]
        %v5247 = vld [vmem:[%s5238 + $0x20] sm:$0xf]
        %v5248 = vld [vmem:[%s5238 + $0x24] sm:$0xf]
        %v5249 = vld [vmem:[%s5238 + $0x28] sm:$0xf]
        %v5250 = vld [vmem:[%s5238 + $0x2c] sm:$0xf]
        %v5251 = vld [vmem:[%s5238 + $0x30] sm:$0xf]
        %v5252 = vld [vmem:[%s5238 + $0x34] sm:$0xf]
        %v5253 = vld [vmem:[%s5238 + $0x38] sm:$0xf]
        %v5254 = vld [vmem:[%s5238 + $0x3c] sm:$0xf]
        %v5257 = vrot.slane %v5011, 1
        %v5258 = vrot.slane %v5029, 1
        %v5259 = vsel %vm856, %v5257, %v5258
        %v5277 = vunpack.c.l.b16 %v5239
        %v5278 = vunpack.c.l.b16 %v5240
        %v5279 = vunpack.c.l.b16 %v5241
        %v5280 = vunpack.c.l.b16 %v5242
        %v5281 = vunpack.c.l.b16 %v5243
        %v5282 = vunpack.c.l.b16 %v5244
        %v5283 = vunpack.c.l.b16 %v5245
        %v5284 = vunpack.c.l.b16 %v5246
        %v5285 = vunpack.c.l.b16 %v5247
        %v5286 = vunpack.c.l.b16 %v5248
        %v5287 = vunpack.c.l.b16 %v5249
        %v5288 = vunpack.c.l.b16 %v5250
        %v5289 = vunpack.c.l.b16 %v5251
        %v5290 = vunpack.c.l.b16 %v5252
        %v5291 = vunpack.c.l.b16 %v5253
        %v5292 = vunpack.c.l.b16 %v5254
        %v5293 = vpack.c.b16 %v5278, %v5277
        %v5294 = vpack.c.b16 %v5280, %v5279
        %v5295 = vpack.c.b16 %v5282, %v5281
        %v5296 = vpack.c.b16 %v5284, %v5283
        %v5297 = vpack.c.b16 %v5286, %v5285
        %v5298 = vpack.c.b16 %v5288, %v5287
        %v5299 = vpack.c.b16 %v5290, %v5289
        %v5300 = vpack.c.b16 %v5292, %v5291
        %5309 = vmatprep.subr.bf16.mxu0 0
        %5310 = vmatpush1.bf16.msra.mxu0 %v5293
        %5311 = vmatprep.subr.bf16.mxu0 0
        %5312 = vmatpush1.bf16.msra.mxu0 %v5294
        %5313 = vmatprep.subr.bf16.mxu0 0
        %5314 = vmatpush1.bf16.msra.mxu0 %v5295
        %5315 = vmatprep.subr.bf16.mxu0 0
        %5316 = vmatpush1.bf16.msra.mxu0 %v5296
        %5317 = vmatprep.subr.bf16.mxu0 0
        %5318 = vmatpush1.bf16.msra.mxu0 %v5297
        %5319 = vmatprep.subr.bf16.mxu0 0
        %5320 = vmatpush1.bf16.msra.mxu0 %v5298
        %5321 = vmatprep.subr.bf16.mxu0 0
        %5322 = vmatpush1.bf16.msra.mxu0 %v5299
        %5323 = vmatprep.subr.bf16.mxu0 0
        %5324 = vmatpush1.bf16.msra.mxu0 %v5300
        %5325 = vmatprep.subr.bf16.mxu0 0
        %5326 = vmatpush1.bf16.msra.mxu0 0
        %5327 = vmatprep.subr.bf16.mxu0 0
        %5328 = vmatpush1.bf16.msra.mxu0 0
        %5329 = vmatprep.subr.bf16.mxu0 0
        %5330 = vmatpush1.bf16.msra.mxu0 0
        %5331 = vmatprep.subr.bf16.mxu0 0
        %5332 = vmatpush1.bf16.msra.mxu0 0
        %5333 = vmatprep.subr.bf16.mxu0 0
        %5334 = vmatpush1.bf16.msra.mxu0 0
        %5335 = vmatprep.subr.bf16.mxu0 0
        %5336 = vmatpush1.bf16.msra.mxu0 0
        %5337 = vmatprep.subr.bf16.mxu0 0
        %5338 = vmatpush1.bf16.msra.mxu0 0
        %5339 = vmatprep.subr.bf16.mxu0 0
        %5340 = vmatpush1.bf16.msra.mxu0 0
        %5341 = vmatprep.mubr.bf16.mxu0 0
        %5342 = vmatmul.mubr.bf16.gmra.mrb[0].mxu0 %v5259
        %v5343 = vpop.f32.mrb[0].mxu0
        %v5344 = vadd.f32 0.0, %v5343
        %v5345 = vpop.f32.mrb[0].mxu0
        %v5346 = vpop.f32.mrb[0].mxu0
        %v5347 = vadd.f32 0.0, %v5346
        %v5348 = vpop.f32.mrb[0].mxu0
        %5349 = vdwg.mxu0
        %v5350 = vadd.f32 %v5232, %v5344
        %v5351 = vadd.f32 %v5235, %v5347
        %v5352 = vlaneseq
        %v5353 = vshrl.u32 %v5352, 7
        %v5354 = vsub.s32 6, %v5353
        %v5355 = vrot.slane %v553, %v5354
        %v5356 = vadd.f32 %v5350, %v5355
        %v5357 = vadd.f32 %v5351, %v5355
        %v5358 = vmul.f32 %v5356, %v590
        %v5359 = vmul.f32 %v5357, %v595
        %v5360 = vadd.f32 %v4636, %v5358
        %v5361 = vadd.f32 %v4637, %v5359
        %v5362 = vmul.f32 %v5360, %v584
        %v5363 = vmul.f32 %v5361, %v584
        %5364 = vadd.xlane.f32.xlu0 %v5362
        %v5365 = vpop.xlane.xlu0 %5364
        %5366 = vadd.xlane.f32.xlu0 %v5363
        %v5367 = vpop.xlane.xlu0 %5366
        %v5368 = vmul.f32 %v5365, 0.025
        %v5369 = vmul.f32 %v5367, 0.025
        %v5370 = vsub.f32 %v5360, %v5368
        %v5371 = vsub.f32 %v5361, %v5369
        %v5372 = vmul.f32 %v5370, %v584
        %v5373 = vmul.f32 %v5371, %v584
        %v5374 = vmul.f32 %v5372, %v5372
        %v5375 = vmul.f32 %v5373, %v5373
        %5376 = vadd.xlane.f32.xlu0 %v5374
        %v5377 = vpop.xlane.xlu0 %5376
        %5378 = vadd.xlane.f32.xlu0 %v5375
        %v5379 = vpop.xlane.xlu0 %5378
        %v5380 = vmul.f32 %v5377, 0.025
        %v5381 = vmul.f32 %v5379, 0.025
        %v5382 = vadd.f32 %v5380, 0.0001
        %v5383 = vadd.f32 %v5381, 0.0001
        %v5384 = vrsqrt.pop %v5382
        %v5385 = vrsqrt.pop %v5383
        %v5386 = vmul.f32 %v5372, %v5384
        %v5387 = vmul.f32 %v5373, %v5385
        %v5388 = vlaneseq
        %v5389 = vshrl.u32 %v5388, 7
        %v5390 = vsub.s32 7, %v5389
        %v5391 = vrot.slane %v553, %v5390
        %v5392 = vmul.f32 %v5386, %v5391
        %v5393 = vmul.f32 %v5387, %v5391
        %v5394 = vlaneseq
        %v5395 = vshrl.u32 %v5394, 7
        %v5396 = vsub.s32 0, %v5395
        %v5397 = vrot.slane %v554, %v5396
        %v5398 = vadd.f32 %v5392, %v5397
        %v5399 = vadd.f32 %v5393, %v5397
        %v5400 = vmul.f32 %v5398, %v590
        %v5401 = vmul.f32 %v5399, %v595
        %v5402 = vpack.c.bf16 %v5401, %v5400
        %v5403 = vld [vmem:[#allocation16] sm:$0xf]
        %v5404 = vld [vmem:[#allocation16 + $0x4] sm:$0xf]
        %v5405 = vld [vmem:[#allocation16 + $0x8] sm:$0xf]
        %v5406 = vld [vmem:[#allocation16 + $0xc] sm:$0xf]
        %v5407 = vld [vmem:[#allocation16 + $0x10] sm:$0xf]
        %v5408 = vld [vmem:[#allocation16 + $0x14] sm:$0xf]
        %v5409 = vld [vmem:[#allocation16 + $0x18] sm:$0xf]
        %v5410 = vld [vmem:[#allocation16 + $0x1c] sm:$0xf]
        %v5411 = vld [vmem:[#allocation16 + $0x20] sm:$0xf]
        %v5412 = vld [vmem:[#allocation16 + $0x24] sm:$0xf]
        %v5413 = vld [vmem:[#allocation16 + $0x28] sm:$0xf]
        %v5414 = vld [vmem:[#allocation16 + $0x2c] sm:$0xf]
        %v5415 = vld [vmem:[#allocation16 + $0x30] sm:$0xf]
        %v5416 = vld [vmem:[#allocation16 + $0x34] sm:$0xf]
        %v5417 = vld [vmem:[#allocation16 + $0x38] sm:$0xf]
        %v5418 = vld [vmem:[#allocation16 + $0x3c] sm:$0xf]
        %v5419 = vlaneseq
        %v5420 = vshrl.u32 %v5419, 7
        %v5421 = vsub.s32 1, %v5420
        %v5422 = vrot.slane %v554, %v5421
        %v5439 = vunpack.c.l.b16 %v5403
        %v5440 = vunpack.c.l.b16 %v5404
        %v5441 = vunpack.c.l.b16 %v5405
        %v5442 = vunpack.c.l.b16 %v5406
        %v5443 = vunpack.c.l.b16 %v5407
        %v5444 = vunpack.c.l.b16 %v5408
        %v5445 = vunpack.c.l.b16 %v5409
        %v5446 = vunpack.c.l.b16 %v5410
        %v5447 = vunpack.c.l.b16 %v5411
        %v5448 = vunpack.c.l.b16 %v5412
        %v5449 = vunpack.c.l.b16 %v5413
        %v5450 = vunpack.c.l.b16 %v5414
        %v5451 = vunpack.c.l.b16 %v5415
        %v5452 = vunpack.c.l.b16 %v5416
        %v5453 = vunpack.c.l.b16 %v5417
        %v5454 = vunpack.c.l.b16 %v5418
        %v5455 = vpack.c.b16 %v5440, %v5439
        %v5456 = vpack.c.b16 %v5442, %v5441
        %v5457 = vpack.c.b16 %v5444, %v5443
        %v5458 = vpack.c.b16 %v5446, %v5445
        %v5459 = vpack.c.b16 %v5448, %v5447
        %v5460 = vpack.c.b16 %v5450, %v5449
        %v5461 = vpack.c.b16 %v5452, %v5451
        %v5462 = vpack.c.b16 %v5454, %v5453
        %5471 = vmatprep.subr.bf16.mxu0 0
        %5472 = vmatpush1.bf16.msra.mxu0 %v5455
        %5473 = vmatprep.subr.bf16.mxu0 0
        %5474 = vmatpush1.bf16.msra.mxu0 %v5456
        %5475 = vmatprep.subr.bf16.mxu0 0
        %5476 = vmatpush1.bf16.msra.mxu0 %v5457
        %5477 = vmatprep.subr.bf16.mxu0 0
        %5478 = vmatpush1.bf16.msra.mxu0 %v5458
        %5479 = vmatprep.subr.bf16.mxu0 0
        %5480 = vmatpush1.bf16.msra.mxu0 %v5459
        %5481 = vmatprep.subr.bf16.mxu0 0
        %5482 = vmatpush1.bf16.msra.mxu0 %v5460
        %5483 = vmatprep.subr.bf16.mxu0 0
        %5484 = vmatpush1.bf16.msra.mxu0 %v5461
        %5485 = vmatprep.subr.bf16.mxu0 0
        %5486 = vmatpush1.bf16.msra.mxu0 %v5462
        %5487 = vmatprep.subr.bf16.mxu0 0
        %5488 = vmatpush1.bf16.msra.mxu0 0
        %5489 = vmatprep.subr.bf16.mxu0 0
        %5490 = vmatpush1.bf16.msra.mxu0 0
        %5491 = vmatprep.subr.bf16.mxu0 0
        %5492 = vmatpush1.bf16.msra.mxu0 0
        %5493 = vmatprep.subr.bf16.mxu0 0
        %5494 = vmatpush1.bf16.msra.mxu0 0
        %5495 = vmatprep.subr.bf16.mxu0 0
        %5496 = vmatpush1.bf16.msra.mxu0 0
        %5497 = vmatprep.subr.bf16.mxu0 0
        %5498 = vmatpush1.bf16.msra.mxu0 0
        %5499 = vmatprep.subr.bf16.mxu0 0
        %5500 = vmatpush1.bf16.msra.mxu0 0
        %5501 = vmatprep.subr.bf16.mxu0 0
        %5502 = vmatpush1.bf16.msra.mxu0 0
        %5503 = vmatprep.mubr.bf16.mxu0 0
        %5504 = vmatmul.mubr.bf16.gmra.mrb[0].mxu0 %v5402
        %v5505 = vpop.f32.mrb[0].mxu0
        %v5506 = vadd.f32 %v5422, %v5505
        %v5507 = vpop.f32.mrb[0].mxu0
        %v5508 = vpop.f32.mrb[0].mxu0
        %v5509 = vadd.f32 %v5422, %v5508
        %v5510 = vpop.f32.mrb[0].mxu0
        %5511 = vdwg.mxu0
        %v5512 = vmul.f32 %v5506, %v590
        %v5513 = vmul.f32 %v5509, %v595
        %5514 = vst [vmem:[%s542] sm:$0xff] %v5512
        %5515 = vst [vmem:[%s542 + $0x8] sm:$0xff] %v5513
        %s5516 = sand.u32 %s286, 1
        %s5517 = scalar_lea.sflag [#allocation4], %s5516
        %s5518 = sand.u32 %s286, 1
        %s5519 = smul.addr %s5518, 16
        %s5520 = scalar_lea.vmem [#allocation17], %s5519
        // Predicated region
        $region101: #{tpu_custom_call.1} parent=63 // pred_check
          %p5521 = pneg %p296
        $region102: #{tpu_custom_call.1} parent=63 // pred_check_branch
          %5523 = sbr.rel (%p5521) target = $region104
        $region103: #{tpu_custom_call.1} parent=63 // pred_region
          %s5525 = ssub.s32 256, 256
          %5526 = vsyncadd %s5517, %s5525
          %s5527 = smul.addr %s32, 2
          %s5528 = smul.addr %s5527, 128
          %s5529 = scalar_lea.hbm %s11, %s5528
          %s5530 = sshll.u32 %s5520, 4
          %s5531 = int_to_ptr.vmem [resolvable:$true] %s5530
          %5536 = dma.vmem_to_hbm [thread:$0]  %s5531, 256, %s5529, %s5517, 128, 128, 8
        $region104: #{tpu_custom_call.1} parent=63 // pred_fallthru
          _
      $region64: #{tpu_custom_call.1} parent=5 // pred_fallthru
        _
      %p5537 = scmp.le.s32.totalorder 2, %s27
      // Predicated region
      $region105: #{tpu_custom_call.1} parent=5 // pred_check
        %p5538 = pneg %p5537
      $region106: #{tpu_custom_call.1} parent=5 // pred_check_branch
        %5540 = sbr.rel (%p5538) target = $region108
      $region107: #{tpu_custom_call.1} parent=5 // pred_region
        %s5541 = ssub.s32 %s27, 2
        // Predicated region
        $region109: #{tpu_custom_call.1} parent=107 // pred_check
          %p5542 = pneg %p302
        $region110: #{tpu_custom_call.1} parent=107 // pred_check_branch
          %5544 = sbr.rel (%p5542) target = $region112
        $region111: #{tpu_custom_call.1} parent=107 // pred_region
          %s5545 = sand.u32 %s287, 1
          %s5546 = scalar_lea.sflag [#allocation4], %s5545
          %s5547 = sand.u32 %s287, 1
          %s5548 = smul.addr %s5547, 16
          %s5549 = scalar_lea.vmem [#allocation17], %s5548
          %5550 = dma.done %s5546, 256
        $region112: #{tpu_custom_call.1} parent=107 // pred_fallthru
          _
      $region108: #{tpu_custom_call.1} parent=5 // pred_fallthru
        _
    $region6: #{tpu_custom_call.1} parent=1 // loop_footer
      %s31 = sadd.s32 1, %s27
    $region7: #{tpu_custom_call.1} parent=1 // loop_footer_branch
      %26 = sbr.rel target = $region3
    $region8: #{tpu_custom_call.1} parent=1 // loop_exit
      _
    %5551 = vsyncpa [#allocation3], 1
    %s5552 = scalar_lea.sflag [#allocation3], 1
    %5553 = vsyncpa %s5552, 1
    %5554 = vsyncpa [#allocation6], 1
    %5555 = vsyncpa [#allocation9], 1
    %5556 = vsyncpa [#allocation12], 1
    %5557 = vsyncpa [#allocation15], 1
    %5558 = vsyncpa [#allocation4], 1
    %s5559 = scalar_lea.sflag [#allocation4], 1
    %5560 = vsyncpa %s5559, 1

</llo_original>
